<compile_context>
chip_gen: v7x
topology: tpu7x:2x2x1
jax: 0.10.0
libtpu: 0.0.40
codegen_flags: <defaults>
</compile_context>

<pallas_src>
import functools

import jax
import jax.numpy as jnp
from jax.experimental import pallas as pl
from jax.experimental.pallas import tpu as pltpu


NEG_INF = -1e9
# Explicit scoped-VMEM cap: above v5e/v6e scoped defaults, below v7x 64 MiB physical.
VMEM_LIMIT = 48 * 1024 * 1024


def _pick_tile(n, candidates):
    """Largest candidate tile dividing n, else n (full extent)."""
    for t in candidates:
        if n % t == 0:
            return t
    return n


# ---------------------------------------------------------------------------
# In-kernel building blocks (traced inline inside the fused layer kernels).
# ---------------------------------------------------------------------------

def _layernorm(z, g_ref, b_ref, eps=1e-5):
    mu = jnp.mean(z, axis=-1, keepdims=True)
    var = jnp.mean(jnp.square(z - mu), axis=-1, keepdims=True)
    return (z - mu) * jax.lax.rsqrt(var + eps) * g_ref[...] + b_ref[...]


def _multihead_attn(x_q, x_kv, bias, wqkv_ref, bqkv_ref, wo_ref, bo_ref, *,
                    nhead, causal, scale, row_offset=0):
    """Multi-head attention with head-major bf16 weights.

    x_q: (Tq, D) f32, x_kv: (Tk, D) f32, bias: (1, Tk) additive key bias or None.
    wqkv_ref: (3*nhead, D, Dh) bf16 -- slots [0:n)=Q, [n:2n)=K, [2n:3n)=V.
    bqkv_ref: (3*nhead, 1, Dh) f32.  wo_ref: (D, D) bf16, bo_ref: (1, D) f32.
    Returns (Tq, D) f32 attention output (pre-residual).
    """
    Tq, D = x_q.shape
    Tk = x_kv.shape[0]
    xq_b = x_q.astype(jnp.bfloat16)
    xkv_b = x_kv.astype(jnp.bfloat16)

    heads = []
    for h in range(nhead):
        # Per-head projections: leading-axis weight indexing, no lane slicing.
        qh = jnp.dot(xq_b, wqkv_ref[h],
                     preferred_element_type=jnp.float32) + bqkv_ref[h]
        kh = jnp.dot(xkv_b, wqkv_ref[nhead + h],
                     preferred_element_type=jnp.float32) + bqkv_ref[nhead + h]
        vh = jnp.dot(xkv_b, wqkv_ref[2 * nhead + h],
                     preferred_element_type=jnp.float32) + bqkv_ref[2 * nhead + h]

        # q @ k^T without forming a transpose: contract the last dims (bf16 in, f32 acc).
        s = jax.lax.dot_general(qh.astype(jnp.bfloat16), kh.astype(jnp.bfloat16),
                                (((1,), (1,)), ((), ())),
                                preferred_element_type=jnp.float32) * scale
        if bias is not None:
            s = s + bias
        if causal:
            row = jax.lax.broadcasted_iota(jnp.int32, (Tq, Tk), 0) + row_offset
            col = jax.lax.broadcasted_iota(jnp.int32, (Tq, Tk), 1)
            s = jnp.where(col <= row, s, NEG_INF)

        s = s - jnp.max(s, axis=-1, keepdims=True)
        p = jnp.exp(s)
        p = p * pl.reciprocal(jnp.sum(p, axis=-1, keepdims=True), approx=True)
        heads.append(jnp.dot(p.astype(jnp.bfloat16), vh.astype(jnp.bfloat16),
                             preferred_element_type=jnp.float32))

    # One packed output projection (Tq, D) @ (D, D) instead of nhead K=Dh matmuls.
    o_cat = jnp.concatenate(heads, axis=-1).astype(jnp.bfloat16)    # (Tq, D)
    return jnp.dot(o_cat, wo_ref[...],
                   preferred_element_type=jnp.float32) + bo_ref[...]


def _ffn(x, w1_ref, b1_ref, w2_ref, b2_ref):
    h = jnp.dot(x.astype(jnp.bfloat16), w1_ref[...],
                preferred_element_type=jnp.float32) + b1_ref[...]
    h = jnp.maximum(h, 0.0)
    return jnp.dot(h.astype(jnp.bfloat16), w2_ref[...],
                   preferred_element_type=jnp.float32) + b2_ref[...]


# ---------------------------------------------------------------------------
# Fused layer kernels (one pallas_call per layer, grid over batch).
# ---------------------------------------------------------------------------

def _encoder_layer_kernel(x_ref, bias_ref,
                          a_wqkv, a_bqkv, a_wo, a_bo, a_g, a_b,
                          w1, b1, w2, b2, ln2_g, ln2_b,
                          o_ref, *, nhead, scale):
    x = x_ref[0]                                     # (S, D) f32
    attn = _multihead_attn(x, x, bias_ref[0], a_wqkv, a_bqkv, a_wo, a_bo,
                           nhead=nhead, causal=False, scale=scale)
    h = _layernorm(x + attn, a_g, a_b)
    y = _ffn(h, w1, b1, w2, b2)
    o_ref[0] = _layernorm(h + y, ln2_g, ln2_b).astype(o_ref.dtype)


def _decoder_layer_kernel(x_ref, mem_ref, bias_ref,
                          sa_wqkv, sa_bqkv, sa_wo, sa_bo, sa_g, sa_b,
                          ca_wqkv, ca_bqkv, ca_wo, ca_bo, ca_g, ca_b,
                          w1, b1, w2, b2, ln3_g, ln3_b,
                          o_ref, *, nhead, scale):
    """nn.TransformerDecoderLayer (post-norm, eval mode -> dropout = identity)."""
    x = x_ref[0]                                     # (T, D) f32
    mem = mem_ref[0]                                 # (S, D) f32
    sa = _multihead_attn(x, x, None, sa_wqkv, sa_bqkv, sa_wo, sa_bo,
                         nhead=nhead, causal=True, scale=scale)
    h = _layernorm(x + sa, sa_g, sa_b)
    ca = _multihead_attn(h, mem, bias_ref[0], ca_wqkv, ca_bqkv, ca_wo, ca_bo,
                         nhead=nhead, causal=False, scale=scale)
    h = _layernorm(h + ca, ca_g, ca_b)
    y = _ffn(h, w1, b1, w2, b2)
    o_ref[0] = _layernorm(h + y, ln3_g, ln3_b).astype(o_ref.dtype)


def _mha_ln_kernel(xq_ref, xkv_ref, bias_ref,
                   wqkv, bqkv, wo, bo, g, b, o_ref, *, nhead, causal, scale):
    """Standalone LayerNorm(x + MHA(x, kv)) with a q-row tile grid axis."""
    xq = xq_ref[0]                                   # (tq, D)
    row_offset = pl.program_id(1) * xq.shape[0]
    attn = _multihead_attn(xq, xkv_ref[0], bias_ref[0], wqkv, bqkv, wo, bo,
                           nhead=nhead, causal=causal, scale=scale,
                           row_offset=row_offset)
    o_ref[0] = _layernorm(xq + attn, g, b).astype(o_ref.dtype)


def _linear_kernel(x_ref, w_ref, b_ref, o_ref):
    o_ref[...] = (jnp.dot(x_ref[...].astype(jnp.bfloat16), w_ref[...],
                          preferred_element_type=jnp.float32)
                  + b_ref[...]).astype(o_ref.dtype)


# ---------------------------------------------------------------------------
# BlockSpec / argument helpers (weights use constant index maps -> fetched once).
# ---------------------------------------------------------------------------

def _attn_specs(nhead, D):
    Dh = D // nhead
    c3 = lambda *_: (0, 0, 0)
    c2 = lambda *_: (0, 0)
    return [pl.BlockSpec((3 * nhead, D, Dh), c3),    # wqkv (bf16, head-major)
            pl.BlockSpec((3 * nhead, 1, Dh), c3),    # bqkv (f32)
            pl.BlockSpec((D, D), c2),                # wo   (bf16)
            pl.BlockSpec((1, D), c2),                # bo
            pl.BlockSpec((1, D), c2),                # ln gamma
            pl.BlockSpec((1, D), c2)]                # ln beta


def _ffn_specs(D, F):
    c2 = lambda *_: (0, 0)
    return [pl.BlockSpec((D, F), c2), pl.BlockSpec((1, F), c2),
            pl.BlockSpec((F, D), c2), pl.BlockSpec((1, D), c2),
            pl.BlockSpec((1, D), c2), pl.BlockSpec((1, D), c2)]


def _attn_args(a):
    return (a["wqkv"], a["bqkv"], a["wo"], a["bo"], a["ln_g"], a["ln_b"])


def _ffn_args(p, g_key, b_key):
    return (p["w1"], p["b1"], p["w2"], p["b2"], p[g_key], p[b_key])


# ---------------------------------------------------------------------------
# pallas_call wrappers
# ---------------------------------------------------------------------------

def encoder_layer_block(p, x, pad_bias, *, nhead):
    B, S, D = x.shape
    F = p["w1"].shape[1]
    scale = 1.0 / float(D // nhead) ** 0.5
    kern = functools.partial(_encoder_layer_kernel, nhead=nhead, scale=scale)
    return pl.pallas_call(
        kern,
        out_shape=jax.ShapeDtypeStruct((B, S, D), jnp.float32),
        grid=(B,),
        in_specs=[pl.BlockSpec((1, S, D), lambda b: (b, 0, 0)),
                  pl.BlockSpec((1, 1, S), lambda b: (b, 0, 0))]
                 + _attn_specs(nhead, D) + _ffn_specs(D, F),
        out_specs=pl.BlockSpec((1, S, D), lambda b: (b, 0, 0)),
        compiler_params=pltpu.CompilerParams(
            dimension_semantics=("parallel",),
            vmem_limit_bytes=VMEM_LIMIT),
    )(x, pad_bias, *_attn_args(p["self_attn"]), *_ffn_args(p, "ln2_g", "ln2_b"))


def decoder_layer_block(p, x, memory, pad_bias, *, nhead):
    B, T, D = x.shape
    S = memory.shape[1]
    F = p["w1"].shape[1]
    scale = 1.0 / float(D // nhead) ** 0.5
    kern = functools.partial(_decoder_layer_kernel, nhead=nhead, scale=scale)
    return pl.pallas_call(
        kern,
        out_shape=jax.ShapeDtypeStruct((B, T, D), jnp.float32),
        grid=(B,),
        in_specs=[pl.BlockSpec((1, T, D), lambda b: (b, 0, 0)),
                  pl.BlockSpec((1, S, D), lambda b: (b, 0, 0)),
                  pl.BlockSpec((1, 1, S), lambda b: (b, 0, 0))]
                 + _attn_specs(nhead, D) + _attn_specs(nhead, D) + _ffn_specs(D, F),
        out_specs=pl.BlockSpec((1, T, D), lambda b: (b, 0, 0)),
        compiler_params=pltpu.CompilerParams(
            dimension_semantics=("parallel",),
            vmem_limit_bytes=VMEM_LIMIT),
    )(x, memory, pad_bias,
      *_attn_args(p["self_attn"]), *_attn_args(p["cross_attn"]),
      *_ffn_args(p, "ln3_g", "ln3_b"))


def mha_ln_block(p, q_in, kv_in, pad_bias, *, nhead, causal):
    """LayerNorm(q_in + MHA(q_in, kv_in)) with grid = (B, q-row tiles)."""
    B, Tq, D = q_in.shape
    Tk = kv_in.shape[1]
    scale = 1.0 / float(D // nhead) ** 0.5
    tq = _pick_tile(Tq, (256, 128, 64, 32, 16, 8))
    kern = functools.partial(_mha_ln_kernel, nhead=nhead, causal=causal, scale=scale)
    return pl.pallas_call(
        kern,
        out_shape=jax.ShapeDtypeStruct((B, Tq, D), jnp.float32),
        grid=(B, Tq // tq),
        in_specs=[pl.BlockSpec((1, tq, D), lambda b, q: (b, q, 0)),
                  pl.BlockSpec((1, Tk, D), lambda b, q: (b, 0, 0)),
                  pl.BlockSpec((1, 1, Tk), lambda b, q: (b, 0, 0))]
                 + _attn_specs(nhead, D),
        out_specs=pl.BlockSpec((1, tq, D), lambda b, q: (b, q, 0)),
        compiler_params=pltpu.CompilerParams(
            dimension_semantics=("parallel", "parallel"),
            vmem_limit_bytes=VMEM_LIMIT),
    )(q_in, kv_in, pad_bias, *_attn_args(p))


def linear(x, w, b):
    """y = x @ w + b  (vocab projection).  Maximize row tile, then column tile."""
    M, K = x.shape
    N = w.shape[1]
    bm = _pick_tile(M, (1024, 512, 256, 128, 64, 32, 16, 8))
    bn = _pick_tile(N, (2048, 1024, 512, 256, 128))
    return pl.pallas_call(
        _linear_kernel,
        out_shape=jax.ShapeDtypeStruct((M, N), jnp.float32),
        grid=(M // bm, N // bn),
        in_specs=[pl.BlockSpec((bm, K), lambda i, j: (i, 0)),
                  pl.BlockSpec((K, bn), lambda i, j: (0, j)),
                  pl.BlockSpec((1, bn), lambda i, j: (0, j))],
        out_specs=pl.BlockSpec((bm, bn), lambda i, j: (i, j)),
        compiler_params=pltpu.CompilerParams(
            dimension_semantics=("parallel", "parallel"),
            vmem_limit_bytes=VMEM_LIMIT),
    )(x, w, b)


# ---------------------------------------------------------------------------
# Model glue (embedding lookups / reshapes stay in plain JAX)
# ---------------------------------------------------------------------------

def sinusoidal_pe(seq, d):
    pos = jnp.arange(seq, dtype=jnp.float32)[:, None]
    i = jnp.arange(0, d, 2, dtype=jnp.float32)[None, :]
    angle = pos / jnp.power(10000.0, i / d)
    pe = jnp.zeros((seq, d), jnp.float32)
    pe = pe.at[:, 0::2].set(jnp.sin(angle))
    pe = pe.at[:, 1::2].set(jnp.cos(angle))
    return pe


def model_forward(params, src_ids, src_mask, tgt_ids, *, nhead):
    B, S = src_ids.shape
    T = tgt_ids.shape[1]
    D = params["tgt_emb"].shape[1]

    # Key-padding bias (B, 1, S); broadcast inside the kernels (never per-head in HBM).
    pad_bias = jnp.where(src_mask[:, None, :] == 0, NEG_INF, 0.0).astype(jnp.float32)

    # ---- mBERT encoder stand-in ----
    # TODO(synk): real mBERT weights are an external pretrained checkpoint; learned
    # embedding + one fused transformer encoder layer stands in for it.
    src_x = jnp.take(params["src_emb"], src_ids, axis=0) + sinusoidal_pe(S, D)[None]
    enc = encoder_layer_block(params["enc"], src_x, pad_bias, nhead=nhead)

    # ---- hierarchical attention over encoder states (shape-preserving) ----
    # TODO(synk): HierarchicalAttention reference unavailable; MHA refinement + LN.
    memory = mha_ln_block(params["hier"], enc, enc, pad_bias, nhead=nhead, causal=False)

    # ---- target embedding + positional encoding, decoder stack ----
    x = jnp.take(params["tgt_emb"], tgt_ids, axis=0) + sinusoidal_pe(T, D)[None]
    for lp in params["dec_layers"]:
        x = decoder_layer_block(lp, x, memory, pad_bias, nhead=nhead)

    # ---- output projection to target vocab ----
    logits = linear(x.reshape(B * T, D), params["out_w"], params["out_b"])
    return logits.reshape(B, T, -1)


# ---------------------------------------------------------------------------
# Deterministic parameter init (xavier-uniform, like the module's _init_weights);
# weights are stored in the kernel-native layouts (head-major QKV, bf16 matmul inputs).
# ---------------------------------------------------------------------------

def init_params(key, *, src_vocab, tgt_vocab, d, f, nhead, nlayers):
    keys = iter(jax.random.split(key, 256))
    dh = d // nhead

    def xav(shape):
        fan_in, fan_out = shape
        lim = (6.0 / (fan_in + fan_out)) ** 0.5
        return jax.random.uniform(next(keys), shape, jnp.float32, -lim, lim)

    def head_major(w):                      # (d, d) -> (nhead, d, dh)
        return jnp.transpose(w.reshape(d, nhead, dh), (1, 0, 2))

    def attn():
        wqkv = jnp.concatenate([head_major(xav((d, d))) for _ in range(3)], axis=0)
        return {"wqkv": wqkv.astype(jnp.bfloat16),
                "bqkv": jnp.zeros((3 * nhead, 1, dh), jnp.float32),
                "wo": xav((d, d)).astype(jnp.bfloat16),
                "bo": jnp.zeros((1, d), jnp.float32),
                "ln_g": jnp.ones((1, d), jnp.float32),
                "ln_b": jnp.zeros((1, d), jnp.float32)}

    def ffn():
        return {"w1": xav((d, f)).astype(jnp.bfloat16),
                "b1": jnp.zeros((1, f), jnp.float32),
                "w2": xav((f, d)).astype(jnp.bfloat16),
                "b2": jnp.zeros((1, d), jnp.float32)}

    def dec_layer():
        p = {"self_attn": attn(), "cross_attn": attn(),
             "ln3_g": jnp.ones((1, d), jnp.float32),
             "ln3_b": jnp.zeros((1, d), jnp.float32)}
        p.update(ffn())
        return p

    enc = {"self_attn": attn(),
           "ln2_g": jnp.ones((1, d), jnp.float32),
           "ln2_b": jnp.zeros((1, d), jnp.float32)}
    enc.update(ffn())

    return {
        "src_emb": xav((src_vocab, d)),
        "tgt_emb": xav((tgt_vocab, d)),
        "enc": enc,
        "hier": attn(),
        "dec_layers": [dec_layer() for _ in range(nlayers)],
        "out_w": xav((d, tgt_vocab)).astype(jnp.bfloat16),
        "out_b": jnp.zeros((1, tgt_vocab), jnp.float32),
    }


# ---------------------------------------------------------------------------
# Main
# ---------------------------------------------------------------------------

if __name__ == "__main__":
    # Scaled-down config (module default: D=768, nhead=8, ff=2048, layers=6, vocab=32000)
    B, S, T = 2, 8, 8
    D, NHEAD, FF, NLAYERS = 32, 4, 64, 2
    SRC_VOCAB, TGT_VOCAB = 256, 512

    key = jax.random.PRNGKey(0)
    kp, k1, k2 = jax.random.split(key, 3)

    params = init_params(kp, src_vocab=SRC_VOCAB, tgt_vocab=TGT_VOCAB,
                         d=D, f=FF, nhead=NHEAD, nlayers=NLAYERS)

    src_input_ids = jax.random.randint(k1, (B, S), 0, SRC_VOCAB, dtype=jnp.int32)
    src_attention_mask = jnp.ones((B, S), jnp.int32).at[:, S - 2:].set(0)  # last 2 tokens padded
    tgt_input = jax.random.randint(k2, (B, T), 0, TGT_VOCAB, dtype=jnp.int32)

    fwd = jax.jit(functools.partial(model_forward, nhead=NHEAD))
    out = jax.block_until_ready(fwd(params, src_input_ids, src_attention_mask, tgt_input))

    assert out.shape == (B, T, TGT_VOCAB), out.shape
    assert out.dtype == jnp.float32
    assert bool(jnp.all(jnp.isfinite(out)))
    print("KERNEL_OK")
</pallas_src>

<mosaic_0001>
module attributes {stable_mosaic.version = 11 : i64} {
  func.func @_mha_ln_kernel(%arg0: i32, %arg1: i32, %arg2: memref<1x8x32xf32, #tpu.memory_space<vmem>>, %arg3: memref<1x8x32xf32, #tpu.memory_space<vmem>>, %arg4: memref<1x1x8xf32, #tpu.memory_space<vmem>>, %arg5: memref<12x32x8xbf16, #tpu.memory_space<vmem>>, %arg6: memref<12x1x8xf32, #tpu.memory_space<vmem>>, %arg7: memref<32x32xbf16, #tpu.memory_space<vmem>>, %arg8: memref<1x32xf32, #tpu.memory_space<vmem>>, %arg9: memref<1x32xf32, #tpu.memory_space<vmem>>, %arg10: memref<1x32xf32, #tpu.memory_space<vmem>>, %arg11: memref<1x8x32xf32, #tpu.memory_space<vmem>>) attributes {dimension_semantics = [#tpu.dimension_semantics<parallel>, #tpu.dimension_semantics<parallel>], iteration_bounds = array<i64: 2, 1>, scalar_prefetch = 0 : i64, scratch_operands = 0 : i64, tpu.core_type = #tpu.core_type<tc>, window_params = [{transform_indices = @transform_0, window_bounds = array<i64: 1, 8, 32>}, {transform_indices = @transform_1, window_bounds = array<i64: 1, 8, 32>}, {transform_indices = @transform_2, window_bounds = array<i64: 1, 1, 8>}, {pipeline_mode = #tpu.pipeline_mode<synchronous>, transform_indices = @transform_3, window_bounds = array<i64: 12, 32, 8>}, {pipeline_mode = #tpu.pipeline_mode<synchronous>, transform_indices = @transform_4, window_bounds = array<i64: 12, 1, 8>}, {pipeline_mode = #tpu.pipeline_mode<synchronous>, transform_indices = @transform_5, window_bounds = array<i64: 32, 32>}, {pipeline_mode = #tpu.pipeline_mode<synchronous>, transform_indices = @transform_6, window_bounds = array<i64: 1, 32>}, {pipeline_mode = #tpu.pipeline_mode<synchronous>, transform_indices = @transform_7, window_bounds = array<i64: 1, 32>}, {pipeline_mode = #tpu.pipeline_mode<synchronous>, transform_indices = @transform_8, window_bounds = array<i64: 1, 32>}, {transform_indices = @transform_9, window_bounds = array<i64: 1, 8, 32>}]} {
    %c0 = arith.constant 0 : index
    %c0_0 = arith.constant 0 : index
    %c0_1 = arith.constant 0 : index
    %0 = vector.load %arg2[%c0, %c0_0, %c0_1] : memref<1x8x32xf32, #tpu.memory_space<vmem>>, vector<1x8x32xf32>
    %1 = vector.shape_cast %0 : vector<1x8x32xf32> to vector<8x32xf32>
    %c0_2 = arith.constant 0 : index
    %c0_3 = arith.constant 0 : index
    %c0_4 = arith.constant 0 : index
    %2 = vector.load %arg3[%c0_2, %c0_3, %c0_4] : memref<1x8x32xf32, #tpu.memory_space<vmem>>, vector<1x8x32xf32>
    %3 = vector.shape_cast %2 : vector<1x8x32xf32> to vector<8x32xf32>
    %c0_5 = arith.constant 0 : index
    %c0_6 = arith.constant 0 : index
    %c0_7 = arith.constant 0 : index
    %4 = vector.load %arg4[%c0_5, %c0_6, %c0_7] : memref<1x1x8xf32, #tpu.memory_space<vmem>>, vector<1x1x8xf32>
    %5 = vector.shape_cast %4 : vector<1x1x8xf32> to vector<1x8xf32>
    %6 = arith.truncf %1 : vector<8x32xf32> to vector<8x32xbf16>
    %7 = arith.truncf %3 : vector<8x32xf32> to vector<8x32xbf16>
    %c0_8 = arith.constant 0 : index
    %c0_9 = arith.constant 0 : index
    %c0_10 = arith.constant 0 : index
    %8 = vector.load %arg5[%c0_8, %c0_9, %c0_10] : memref<12x32x8xbf16, #tpu.memory_space<vmem>>, vector<1x32x8xbf16>
    %9 = vector.shape_cast %8 : vector<1x32x8xbf16> to vector<32x8xbf16>
    %cst = arith.constant dense<0.000000e+00> : vector<8x8xf32>
    %10 = tpu.matmul %6, %9, %cst {dimension_numbers = #tpu.dot_dimension_numbers<[1], [0], [0], [1], [0, 0, 1, 1], [], []>} : vector<8x32xbf16>, vector<32x8xbf16>, vector<8x8xf32> -> vector<8x8xf32>
    %c0_11 = arith.constant 0 : index
    %c0_12 = arith.constant 0 : index
    %c0_13 = arith.constant 0 : index
    %11 = vector.load %arg6[%c0_11, %c0_12, %c0_13] : memref<12x1x8xf32, #tpu.memory_space<vmem>>, vector<1x1x8xf32>
    %12 = vector.shape_cast %11 : vector<1x1x8xf32> to vector<1x8xf32>
    %13 = vector.broadcast %12 : vector<1x8xf32> to vector<8x8xf32>
    %14 = arith.addf %10, %13 : vector<8x8xf32>
    %c4 = arith.constant 4 : index
    %c0_14 = arith.constant 0 : index
    %c0_15 = arith.constant 0 : index
    %15 = vector.load %arg5[%c4, %c0_14, %c0_15] : memref<12x32x8xbf16, #tpu.memory_space<vmem>>, vector<1x32x8xbf16>
    %16 = vector.shape_cast %15 : vector<1x32x8xbf16> to vector<32x8xbf16>
    %cst_16 = arith.constant dense<0.000000e+00> : vector<8x8xf32>
    %17 = tpu.matmul %7, %16, %cst_16 {dimension_numbers = #tpu.dot_dimension_numbers<[1], [0], [0], [1], [0, 0, 1, 1], [], []>} : vector<8x32xbf16>, vector<32x8xbf16>, vector<8x8xf32> -> vector<8x8xf32>
    %c4_17 = arith.constant 4 : index
    %c0_18 = arith.constant 0 : index
    %c0_19 = arith.constant 0 : index
    %18 = vector.load %arg6[%c4_17, %c0_18, %c0_19] : memref<12x1x8xf32, #tpu.memory_space<vmem>>, vector<1x1x8xf32>
    %19 = vector.shape_cast %18 : vector<1x1x8xf32> to vector<1x8xf32>
    %20 = vector.broadcast %19 : vector<1x8xf32> to vector<8x8xf32>
    %21 = arith.addf %17, %20 : vector<8x8xf32>
    %c8 = arith.constant 8 : index
    %c0_20 = arith.constant 0 : index
    %c0_21 = arith.constant 0 : index
    %22 = vector.load %arg5[%c8, %c0_20, %c0_21] : memref<12x32x8xbf16, #tpu.memory_space<vmem>>, vector<1x32x8xbf16>
    %23 = vector.shape_cast %22 : vector<1x32x8xbf16> to vector<32x8xbf16>
    %cst_22 = arith.constant dense<0.000000e+00> : vector<8x8xf32>
    %24 = tpu.matmul %7, %23, %cst_22 {dimension_numbers = #tpu.dot_dimension_numbers<[1], [0], [0], [1], [0, 0, 1, 1], [], []>} : vector<8x32xbf16>, vector<32x8xbf16>, vector<8x8xf32> -> vector<8x8xf32>
    %c8_23 = arith.constant 8 : index
    %c0_24 = arith.constant 0 : index
    %c0_25 = arith.constant 0 : index
    %25 = vector.load %arg6[%c8_23, %c0_24, %c0_25] : memref<12x1x8xf32, #tpu.memory_space<vmem>>, vector<1x1x8xf32>
    %26 = vector.shape_cast %25 : vector<1x1x8xf32> to vector<1x8xf32>
    %27 = vector.broadcast %26 : vector<1x8xf32> to vector<8x8xf32>
    %28 = arith.addf %24, %27 : vector<8x8xf32>
    %29 = arith.truncf %14 : vector<8x8xf32> to vector<8x8xbf16>
    %30 = arith.truncf %21 : vector<8x8xf32> to vector<8x8xbf16>
    %cst_26 = arith.constant dense<0.000000e+00> : vector<8x8xf32>
    %31 = tpu.matmul %29, %30, %cst_26 {dimension_numbers = #tpu.dot_dimension_numbers<[1], [1], [0], [0], [0, 0, 1, 0], [], []>} : vector<8x8xbf16>, vector<8x8xbf16>, vector<8x8xf32> -> vector<8x8xf32>
    %cst_27 = arith.constant 0.353553385 : f32
    %32 = vector.broadcast %cst_27 : f32 to vector<8x8xf32>
    %33 = arith.mulf %31, %32 : vector<8x8xf32>
    %34 = vector.broadcast %5 : vector<1x8xf32> to vector<8x8xf32>
    %35 = arith.addf %33, %34 : vector<8x8xf32>
    %cst_28 = arith.constant dense<0xFF800000> : vector<8xf32>
    %36 = vector.multi_reduction <maximumf>, %35, %cst_28 [1] : vector<8x8xf32> to vector<8xf32>
    %37 = vector.shape_cast %36 : vector<8xf32> to vector<8x1xf32>
    %38 = vector.broadcast %37 : vector<8x1xf32> to vector<8x8xf32>
    %39 = arith.subf %35, %38 : vector<8x8xf32>
    %40 = math.exp %39 : vector<8x8xf32>
    %cst_29 = arith.constant dense<0.000000e+00> : vector<8xf32>
    %41 = vector.multi_reduction <add>, %40, %cst_29 [1] : vector<8x8xf32> to vector<8xf32>
    %42 = vector.shape_cast %41 : vector<8xf32> to vector<8x1xf32>
    %43 = tpu.reciprocal %42 {approx = true} : vector<8x1xf32> -> vector<8x1xf32>
    %44 = vector.broadcast %43 : vector<8x1xf32> to vector<8x8xf32>
    %45 = arith.mulf %40, %44 : vector<8x8xf32>
    %46 = arith.truncf %45 : vector<8x8xf32> to vector<8x8xbf16>
    %47 = arith.truncf %28 : vector<8x8xf32> to vector<8x8xbf16>
    %cst_30 = arith.constant dense<0.000000e+00> : vector<8x8xf32>
    %48 = tpu.matmul %46, %47, %cst_30 {dimension_numbers = #tpu.dot_dimension_numbers<[1], [0], [0], [1], [0, 0, 1, 1], [], []>} : vector<8x8xbf16>, vector<8x8xbf16>, vector<8x8xf32> -> vector<8x8xf32>
    %c1 = arith.constant 1 : index
    %c0_31 = arith.constant 0 : index
    %c0_32 = arith.constant 0 : index
    %49 = vector.load %arg5[%c1, %c0_31, %c0_32] : memref<12x32x8xbf16, #tpu.memory_space<vmem>>, vector<1x32x8xbf16>
    %50 = vector.shape_cast %49 : vector<1x32x8xbf16> to vector<32x8xbf16>
    %cst_33 = arith.constant dense<0.000000e+00> : vector<8x8xf32>
    %51 = tpu.matmul %6, %50, %cst_33 {dimension_numbers = #tpu.dot_dimension_numbers<[1], [0], [0], [1], [0, 0, 1, 1], [], []>} : vector<8x32xbf16>, vector<32x8xbf16>, vector<8x8xf32> -> vector<8x8xf32>
    %c1_34 = arith.constant 1 : index
    %c0_35 = arith.constant 0 : index
    %c0_36 = arith.constant 0 : index
    %52 = vector.load %arg6[%c1_34, %c0_35, %c0_36] : memref<12x1x8xf32, #tpu.memory_space<vmem>>, vector<1x1x8xf32>
    %53 = vector.shape_cast %52 : vector<1x1x8xf32> to vector<1x8xf32>
    %54 = vector.broadcast %53 : vector<1x8xf32> to vector<8x8xf32>
    %55 = arith.addf %51, %54 : vector<8x8xf32>
    %c5 = arith.constant 5 : index
    %c0_37 = arith.constant 0 : index
    %c0_38 = arith.constant 0 : index
    %56 = vector.load %arg5[%c5, %c0_37, %c0_38] : memref<12x32x8xbf16, #tpu.memory_space<vmem>>, vector<1x32x8xbf16>
    %57 = vector.shape_cast %56 : vector<1x32x8xbf16> to vector<32x8xbf16>
    %cst_39 = arith.constant dense<0.000000e+00> : vector<8x8xf32>
    %58 = tpu.matmul %7, %57, %cst_39 {dimension_numbers = #tpu.dot_dimension_numbers<[1], [0], [0], [1], [0, 0, 1, 1], [], []>} : vector<8x32xbf16>, vector<32x8xbf16>, vector<8x8xf32> -> vector<8x8xf32>
    %c5_40 = arith.constant 5 : index
    %c0_41 = arith.constant 0 : index
    %c0_42 = arith.constant 0 : index
    %59 = vector.load %arg6[%c5_40, %c0_41, %c0_42] : memref<12x1x8xf32, #tpu.memory_space<vmem>>, vector<1x1x8xf32>
    %60 = vector.shape_cast %59 : vector<1x1x8xf32> to vector<1x8xf32>
    %61 = vector.broadcast %60 : vector<1x8xf32> to vector<8x8xf32>
    %62 = arith.addf %58, %61 : vector<8x8xf32>
    %c9 = arith.constant 9 : index
    %c0_43 = arith.constant 0 : index
    %c0_44 = arith.constant 0 : index
    %63 = vector.load %arg5[%c9, %c0_43, %c0_44] : memref<12x32x8xbf16, #tpu.memory_space<vmem>>, vector<1x32x8xbf16>
    %64 = vector.shape_cast %63 : vector<1x32x8xbf16> to vector<32x8xbf16>
    %cst_45 = arith.constant dense<0.000000e+00> : vector<8x8xf32>
    %65 = tpu.matmul %7, %64, %cst_45 {dimension_numbers = #tpu.dot_dimension_numbers<[1], [0], [0], [1], [0, 0, 1, 1], [], []>} : vector<8x32xbf16>, vector<32x8xbf16>, vector<8x8xf32> -> vector<8x8xf32>
    %c9_46 = arith.constant 9 : index
    %c0_47 = arith.constant 0 : index
    %c0_48 = arith.constant 0 : index
    %66 = vector.load %arg6[%c9_46, %c0_47, %c0_48] : memref<12x1x8xf32, #tpu.memory_space<vmem>>, vector<1x1x8xf32>
    %67 = vector.shape_cast %66 : vector<1x1x8xf32> to vector<1x8xf32>
    %68 = vector.broadcast %67 : vector<1x8xf32> to vector<8x8xf32>
    %69 = arith.addf %65, %68 : vector<8x8xf32>
    %70 = arith.truncf %55 : vector<8x8xf32> to vector<8x8xbf16>
    %71 = arith.truncf %62 : vector<8x8xf32> to vector<8x8xbf16>
    %cst_49 = arith.constant dense<0.000000e+00> : vector<8x8xf32>
    %72 = tpu.matmul %70, %71, %cst_49 {dimension_numbers = #tpu.dot_dimension_numbers<[1], [1], [0], [0], [0, 0, 1, 0], [], []>} : vector<8x8xbf16>, vector<8x8xbf16>, vector<8x8xf32> -> vector<8x8xf32>
    %cst_50 = arith.constant 0.353553385 : f32
    %73 = vector.broadcast %cst_50 : f32 to vector<8x8xf32>
    %74 = arith.mulf %72, %73 : vector<8x8xf32>
    %75 = vector.broadcast %5 : vector<1x8xf32> to vector<8x8xf32>
    %76 = arith.addf %74, %75 : vector<8x8xf32>
    %cst_51 = arith.constant dense<0xFF800000> : vector<8xf32>
    %77 = vector.multi_reduction <maximumf>, %76, %cst_51 [1] : vector<8x8xf32> to vector<8xf32>
    %78 = vector.shape_cast %77 : vector<8xf32> to vector<8x1xf32>
    %79 = vector.broadcast %78 : vector<8x1xf32> to vector<8x8xf32>
    %80 = arith.subf %76, %79 : vector<8x8xf32>
    %81 = math.exp %80 : vector<8x8xf32>
    %cst_52 = arith.constant dense<0.000000e+00> : vector<8xf32>
    %82 = vector.multi_reduction <add>, %81, %cst_52 [1] : vector<8x8xf32> to vector<8xf32>
    %83 = vector.shape_cast %82 : vector<8xf32> to vector<8x1xf32>
    %84 = tpu.reciprocal %83 {approx = true} : vector<8x1xf32> -> vector<8x1xf32>
    %85 = vector.broadcast %84 : vector<8x1xf32> to vector<8x8xf32>
    %86 = arith.mulf %81, %85 : vector<8x8xf32>
    %87 = arith.truncf %86 : vector<8x8xf32> to vector<8x8xbf16>
    %88 = arith.truncf %69 : vector<8x8xf32> to vector<8x8xbf16>
    %cst_53 = arith.constant dense<0.000000e+00> : vector<8x8xf32>
    %89 = tpu.matmul %87, %88, %cst_53 {dimension_numbers = #tpu.dot_dimension_numbers<[1], [0], [0], [1], [0, 0, 1, 1], [], []>} : vector<8x8xbf16>, vector<8x8xbf16>, vector<8x8xf32> -> vector<8x8xf32>
    %c2 = arith.constant 2 : index
    %c0_54 = arith.constant 0 : index
    %c0_55 = arith.constant 0 : index
    %90 = vector.load %arg5[%c2, %c0_54, %c0_55] : memref<12x32x8xbf16, #tpu.memory_space<vmem>>, vector<1x32x8xbf16>
    %91 = vector.shape_cast %90 : vector<1x32x8xbf16> to vector<32x8xbf16>
    %cst_56 = arith.constant dense<0.000000e+00> : vector<8x8xf32>
    %92 = tpu.matmul %6, %91, %cst_56 {dimension_numbers = #tpu.dot_dimension_numbers<[1], [0], [0], [1], [0, 0, 1, 1], [], []>} : vector<8x32xbf16>, vector<32x8xbf16>, vector<8x8xf32> -> vector<8x8xf32>
    %c2_57 = arith.constant 2 : index
    %c0_58 = arith.constant 0 : index
    %c0_59 = arith.constant 0 : index
    %93 = vector.load %arg6[%c2_57, %c0_58, %c0_59] : memref<12x1x8xf32, #tpu.memory_space<vmem>>, vector<1x1x8xf32>
    %94 = vector.shape_cast %93 : vector<1x1x8xf32> to vector<1x8xf32>
    %95 = vector.broadcast %94 : vector<1x8xf32> to vector<8x8xf32>
    %96 = arith.addf %92, %95 : vector<8x8xf32>
    %c6 = arith.constant 6 : index
    %c0_60 = arith.constant 0 : index
    %c0_61 = arith.constant 0 : index
    %97 = vector.load %arg5[%c6, %c0_60, %c0_61] : memref<12x32x8xbf16, #tpu.memory_space<vmem>>, vector<1x32x8xbf16>
    %98 = vector.shape_cast %97 : vector<1x32x8xbf16> to vector<32x8xbf16>
    %cst_62 = arith.constant dense<0.000000e+00> : vector<8x8xf32>
    %99 = tpu.matmul %7, %98, %cst_62 {dimension_numbers = #tpu.dot_dimension_numbers<[1], [0], [0], [1], [0, 0, 1, 1], [], []>} : vector<8x32xbf16>, vector<32x8xbf16>, vector<8x8xf32> -> vector<8x8xf32>
    %c6_63 = arith.constant 6 : index
    %c0_64 = arith.constant 0 : index
    %c0_65 = arith.constant 0 : index
    %100 = vector.load %arg6[%c6_63, %c0_64, %c0_65] : memref<12x1x8xf32, #tpu.memory_space<vmem>>, vector<1x1x8xf32>
    %101 = vector.shape_cast %100 : vector<1x1x8xf32> to vector<1x8xf32>
    %102 = vector.broadcast %101 : vector<1x8xf32> to vector<8x8xf32>
    %103 = arith.addf %99, %102 : vector<8x8xf32>
    %c10 = arith.constant 10 : index
    %c0_66 = arith.constant 0 : index
    %c0_67 = arith.constant 0 : index
    %104 = vector.load %arg5[%c10, %c0_66, %c0_67] : memref<12x32x8xbf16, #tpu.memory_space<vmem>>, vector<1x32x8xbf16>
    %105 = vector.shape_cast %104 : vector<1x32x8xbf16> to vector<32x8xbf16>
    %cst_68 = arith.constant dense<0.000000e+00> : vector<8x8xf32>
    %106 = tpu.matmul %7, %105, %cst_68 {dimension_numbers = #tpu.dot_dimension_numbers<[1], [0], [0], [1], [0, 0, 1, 1], [], []>} : vector<8x32xbf16>, vector<32x8xbf16>, vector<8x8xf32> -> vector<8x8xf32>
    %c10_69 = arith.constant 10 : index
    %c0_70 = arith.constant 0 : index
    %c0_71 = arith.constant 0 : index
    %107 = vector.load %arg6[%c10_69, %c0_70, %c0_71] : memref<12x1x8xf32, #tpu.memory_space<vmem>>, vector<1x1x8xf32>
    %108 = vector.shape_cast %107 : vector<1x1x8xf32> to vector<1x8xf32>
    %109 = vector.broadcast %108 : vector<1x8xf32> to vector<8x8xf32>
    %110 = arith.addf %106, %109 : vector<8x8xf32>
    %111 = arith.truncf %96 : vector<8x8xf32> to vector<8x8xbf16>
    %112 = arith.truncf %103 : vector<8x8xf32> to vector<8x8xbf16>
    %cst_72 = arith.constant dense<0.000000e+00> : vector<8x8xf32>
    %113 = tpu.matmul %111, %112, %cst_72 {dimension_numbers = #tpu.dot_dimension_numbers<[1], [1], [0], [0], [0, 0, 1, 0], [], []>} : vector<8x8xbf16>, vector<8x8xbf16>, vector<8x8xf32> -> vector<8x8xf32>
    %cst_73 = arith.constant 0.353553385 : f32
    %114 = vector.broadcast %cst_73 : f32 to vector<8x8xf32>
    %115 = arith.mulf %113, %114 : vector<8x8xf32>
    %116 = vector.broadcast %5 : vector<1x8xf32> to vector<8x8xf32>
    %117 = arith.addf %115, %116 : vector<8x8xf32>
    %cst_74 = arith.constant dense<0xFF800000> : vector<8xf32>
    %118 = vector.multi_reduction <maximumf>, %117, %cst_74 [1] : vector<8x8xf32> to vector<8xf32>
    %119 = vector.shape_cast %118 : vector<8xf32> to vector<8x1xf32>
    %120 = vector.broadcast %119 : vector<8x1xf32> to vector<8x8xf32>
    %121 = arith.subf %117, %120 : vector<8x8xf32>
    %122 = math.exp %121 : vector<8x8xf32>
    %cst_75 = arith.constant dense<0.000000e+00> : vector<8xf32>
    %123 = vector.multi_reduction <add>, %122, %cst_75 [1] : vector<8x8xf32> to vector<8xf32>
    %124 = vector.shape_cast %123 : vector<8xf32> to vector<8x1xf32>
    %125 = tpu.reciprocal %124 {approx = true} : vector<8x1xf32> -> vector<8x1xf32>
    %126 = vector.broadcast %125 : vector<8x1xf32> to vector<8x8xf32>
    %127 = arith.mulf %122, %126 : vector<8x8xf32>
    %128 = arith.truncf %127 : vector<8x8xf32> to vector<8x8xbf16>
    %129 = arith.truncf %110 : vector<8x8xf32> to vector<8x8xbf16>
    %cst_76 = arith.constant dense<0.000000e+00> : vector<8x8xf32>
    %130 = tpu.matmul %128, %129, %cst_76 {dimension_numbers = #tpu.dot_dimension_numbers<[1], [0], [0], [1], [0, 0, 1, 1], [], []>} : vector<8x8xbf16>, vector<8x8xbf16>, vector<8x8xf32> -> vector<8x8xf32>
    %c3 = arith.constant 3 : index
    %c0_77 = arith.constant 0 : index
    %c0_78 = arith.constant 0 : index
    %131 = vector.load %arg5[%c3, %c0_77, %c0_78] : memref<12x32x8xbf16, #tpu.memory_space<vmem>>, vector<1x32x8xbf16>
    %132 = vector.shape_cast %131 : vector<1x32x8xbf16> to vector<32x8xbf16>
    %cst_79 = arith.constant dense<0.000000e+00> : vector<8x8xf32>
    %133 = tpu.matmul %6, %132, %cst_79 {dimension_numbers = #tpu.dot_dimension_numbers<[1], [0], [0], [1], [0, 0, 1, 1], [], []>} : vector<8x32xbf16>, vector<32x8xbf16>, vector<8x8xf32> -> vector<8x8xf32>
    %c3_80 = arith.constant 3 : index
    %c0_81 = arith.constant 0 : index
    %c0_82 = arith.constant 0 : index
    %134 = vector.load %arg6[%c3_80, %c0_81, %c0_82] : memref<12x1x8xf32, #tpu.memory_space<vmem>>, vector<1x1x8xf32>
    %135 = vector.shape_cast %134 : vector<1x1x8xf32> to vector<1x8xf32>
    %136 = vector.broadcast %135 : vector<1x8xf32> to vector<8x8xf32>
    %137 = arith.addf %133, %136 : vector<8x8xf32>
    %c7 = arith.constant 7 : index
    %c0_83 = arith.constant 0 : index
    %c0_84 = arith.constant 0 : index
    %138 = vector.load %arg5[%c7, %c0_83, %c0_84] : memref<12x32x8xbf16, #tpu.memory_space<vmem>>, vector<1x32x8xbf16>
    %139 = vector.shape_cast %138 : vector<1x32x8xbf16> to vector<32x8xbf16>
    %cst_85 = arith.constant dense<0.000000e+00> : vector<8x8xf32>
    %140 = tpu.matmul %7, %139, %cst_85 {dimension_numbers = #tpu.dot_dimension_numbers<[1], [0], [0], [1], [0, 0, 1, 1], [], []>} : vector<8x32xbf16>, vector<32x8xbf16>, vector<8x8xf32> -> vector<8x8xf32>
    %c7_86 = arith.constant 7 : index
    %c0_87 = arith.constant 0 : index
    %c0_88 = arith.constant 0 : index
    %141 = vector.load %arg6[%c7_86, %c0_87, %c0_88] : memref<12x1x8xf32, #tpu.memory_space<vmem>>, vector<1x1x8xf32>
    %142 = vector.shape_cast %141 : vector<1x1x8xf32> to vector<1x8xf32>
    %143 = vector.broadcast %142 : vector<1x8xf32> to vector<8x8xf32>
    %144 = arith.addf %140, %143 : vector<8x8xf32>
    %c11 = arith.constant 11 : index
    %c0_89 = arith.constant 0 : index
    %c0_90 = arith.constant 0 : index
    %145 = vector.load %arg5[%c11, %c0_89, %c0_90] : memref<12x32x8xbf16, #tpu.memory_space<vmem>>, vector<1x32x8xbf16>
    %146 = vector.shape_cast %145 : vector<1x32x8xbf16> to vector<32x8xbf16>
    %cst_91 = arith.constant dense<0.000000e+00> : vector<8x8xf32>
    %147 = tpu.matmul %7, %146, %cst_91 {dimension_numbers = #tpu.dot_dimension_numbers<[1], [0], [0], [1], [0, 0, 1, 1], [], []>} : vector<8x32xbf16>, vector<32x8xbf16>, vector<8x8xf32> -> vector<8x8xf32>
    %c11_92 = arith.constant 11 : index
    %c0_93 = arith.constant 0 : index
    %c0_94 = arith.constant 0 : index
    %148 = vector.load %arg6[%c11_92, %c0_93, %c0_94] : memref<12x1x8xf32, #tpu.memory_space<vmem>>, vector<1x1x8xf32>
    %149 = vector.shape_cast %148 : vector<1x1x8xf32> to vector<1x8xf32>
    %150 = vector.broadcast %149 : vector<1x8xf32> to vector<8x8xf32>
    %151 = arith.addf %147, %150 : vector<8x8xf32>
    %152 = arith.truncf %137 : vector<8x8xf32> to vector<8x8xbf16>
    %153 = arith.truncf %144 : vector<8x8xf32> to vector<8x8xbf16>
    %cst_95 = arith.constant dense<0.000000e+00> : vector<8x8xf32>
    %154 = tpu.matmul %152, %153, %cst_95 {dimension_numbers = #tpu.dot_dimension_numbers<[1], [1], [0], [0], [0, 0, 1, 0], [], []>} : vector<8x8xbf16>, vector<8x8xbf16>, vector<8x8xf32> -> vector<8x8xf32>
    %cst_96 = arith.constant 0.353553385 : f32
    %155 = vector.broadcast %cst_96 : f32 to vector<8x8xf32>
    %156 = arith.mulf %154, %155 : vector<8x8xf32>
    %157 = vector.broadcast %5 : vector<1x8xf32> to vector<8x8xf32>
    %158 = arith.addf %156, %157 : vector<8x8xf32>
    %cst_97 = arith.constant dense<0xFF800000> : vector<8xf32>
    %159 = vector.multi_reduction <maximumf>, %158, %cst_97 [1] : vector<8x8xf32> to vector<8xf32>
    %160 = vector.shape_cast %159 : vector<8xf32> to vector<8x1xf32>
    %161 = vector.broadcast %160 : vector<8x1xf32> to vector<8x8xf32>
    %162 = arith.subf %158, %161 : vector<8x8xf32>
    %163 = math.exp %162 : vector<8x8xf32>
    %cst_98 = arith.constant dense<0.000000e+00> : vector<8xf32>
    %164 = vector.multi_reduction <add>, %163, %cst_98 [1] : vector<8x8xf32> to vector<8xf32>
    %165 = vector.shape_cast %164 : vector<8xf32> to vector<8x1xf32>
    %166 = tpu.reciprocal %165 {approx = true} : vector<8x1xf32> -> vector<8x1xf32>
    %167 = vector.broadcast %166 : vector<8x1xf32> to vector<8x8xf32>
    %168 = arith.mulf %163, %167 : vector<8x8xf32>
    %169 = arith.truncf %168 : vector<8x8xf32> to vector<8x8xbf16>
    %170 = arith.truncf %151 : vector<8x8xf32> to vector<8x8xbf16>
    %cst_99 = arith.constant dense<0.000000e+00> : vector<8x8xf32>
    %171 = tpu.matmul %169, %170, %cst_99 {dimension_numbers = #tpu.dot_dimension_numbers<[1], [0], [0], [1], [0, 0, 1, 1], [], []>} : vector<8x8xbf16>, vector<8x8xbf16>, vector<8x8xf32> -> vector<8x8xf32>
    %172 = tpu.concatenate %48, %89, %130, %171 in 1 : vector<8x8xf32>, vector<8x8xf32>, vector<8x8xf32>, vector<8x8xf32> -> vector<8x32xf32>
    %173 = arith.truncf %172 : vector<8x32xf32> to vector<8x32xbf16>
    %c0_100 = arith.constant 0 : index
    %c0_101 = arith.constant 0 : index
    %174 = vector.load %arg7[%c0_100, %c0_101] : memref<32x32xbf16, #tpu.memory_space<vmem>>, vector<32x32xbf16>
    %cst_102 = arith.constant dense<0.000000e+00> : vector<8x32xf32>
    %175 = tpu.matmul %173, %174, %cst_102 {dimension_numbers = #tpu.dot_dimension_numbers<[1], [0], [0], [1], [0, 0, 1, 1], [], []>} : vector<8x32xbf16>, vector<32x32xbf16>, vector<8x32xf32> -> vector<8x32xf32>
    %c0_103 = arith.constant 0 : index
    %c0_104 = arith.constant 0 : index
    %176 = vector.load %arg8[%c0_103, %c0_104] : memref<1x32xf32, #tpu.memory_space<vmem>>, vector<1x32xf32>
    %177 = vector.broadcast %176 : vector<1x32xf32> to vector<8x32xf32>
    %178 = arith.addf %175, %177 : vector<8x32xf32>
    %179 = arith.addf %1, %178 : vector<8x32xf32>
    %cst_105 = arith.constant dense<0.000000e+00> : vector<8xf32>
    %180 = vector.multi_reduction <add>, %179, %cst_105 [1] : vector<8x32xf32> to vector<8xf32>
    %181 = vector.shape_cast %180 : vector<8xf32> to vector<8x1xf32>
    %cst_106 = arith.constant 3.200000e+01 : f32
    %182 = vector.broadcast %cst_106 : f32 to vector<8x1xf32>
    %183 = arith.divf %181, %182 : vector<8x1xf32>
    %184 = vector.broadcast %183 : vector<8x1xf32> to vector<8x32xf32>
    %185 = arith.subf %179, %184 : vector<8x32xf32>
    %186 = arith.mulf %185, %185 : vector<8x32xf32>
    %cst_107 = arith.constant dense<0.000000e+00> : vector<8xf32>
    %187 = vector.multi_reduction <add>, %186, %cst_107 [1] : vector<8x32xf32> to vector<8xf32>
    %188 = vector.shape_cast %187 : vector<8xf32> to vector<8x1xf32>
    %cst_108 = arith.constant 3.200000e+01 : f32
    %189 = vector.broadcast %cst_108 : f32 to vector<8x1xf32>
    %190 = arith.divf %188, %189 : vector<8x1xf32>
    %191 = vector.broadcast %183 : vector<8x1xf32> to vector<8x32xf32>
    %192 = arith.subf %179, %191 : vector<8x32xf32>
    %cst_109 = arith.constant 9.99999974E-6 : f32
    %193 = vector.broadcast %cst_109 : f32 to vector<8x1xf32>
    %194 = arith.addf %190, %193 : vector<8x1xf32>
    %195 = math.rsqrt %194 : vector<8x1xf32>
    %196 = vector.broadcast %195 : vector<8x1xf32> to vector<8x32xf32>
    %197 = arith.mulf %192, %196 : vector<8x32xf32>
    %c0_110 = arith.constant 0 : index
    %c0_111 = arith.constant 0 : index
    %198 = vector.load %arg9[%c0_110, %c0_111] : memref<1x32xf32, #tpu.memory_space<vmem>>, vector<1x32xf32>
    %199 = vector.broadcast %198 : vector<1x32xf32> to vector<8x32xf32>
    %200 = arith.mulf %197, %199 : vector<8x32xf32>
    %c0_112 = arith.constant 0 : index
    %c0_113 = arith.constant 0 : index
    %201 = vector.load %arg10[%c0_112, %c0_113] : memref<1x32xf32, #tpu.memory_space<vmem>>, vector<1x32xf32>
    %202 = vector.broadcast %201 : vector<1x32xf32> to vector<8x32xf32>
    %203 = arith.addf %200, %202 : vector<8x32xf32>
    %c0_114 = arith.constant 0 : index
    %c0_115 = arith.constant 0 : index
    %c0_116 = arith.constant 0 : index
    %204 = vector.load %arg11[%c0_114, %c0_115, %c0_116] : memref<1x8x32xf32, #tpu.memory_space<vmem>>, vector<1x8x32xf32>
    %205 = vector.shape_cast %204 : vector<1x8x32xf32> to vector<8x32xf32>
    %206 = vector.shape_cast %203 : vector<8x32xf32> to vector<1x8x32xf32>
    tpu.vector_store %arg11[%c0_114, %c0_115, %c0_116], %206 {strides = array<i32>} : memref<1x8x32xf32, #tpu.memory_space<vmem>>, vector<1x8x32xf32>,
    return
  }
  func.func @transform_0(%arg0: i32, %arg1: i32) -> (i32, i32, i32) {
    %c0_i32 = arith.constant 0 : i32
    %c0_i32_0 = arith.constant 0 : i32
    return %arg0, %arg1, %c0_i32 : i32, i32, i32
  }
  func.func @transform_1(%arg0: i32, %arg1: i32) -> (i32, i32, i32) {
    %c0_i32 = arith.constant 0 : i32
    %c0_i32_0 = arith.constant 0 : i32
    %c0_i32_1 = arith.constant 0 : i32
    return %arg0, %c0_i32, %c0_i32_0 : i32, i32, i32
  }
  func.func @transform_2(%arg0: i32, %arg1: i32) -> (i32, i32, i32) {
    %c0_i32 = arith.constant 0 : i32
    %c0_i32_0 = arith.constant 0 : i32
    %c0_i32_1 = arith.constant 0 : i32
    return %arg0, %c0_i32, %c0_i32_0 : i32, i32, i32
  }
  func.func @transform_3(%arg0: i32, %arg1: i32) -> (i32, i32, i32) {
    %c0_i32 = arith.constant 0 : i32
    %c0_i32_0 = arith.constant 0 : i32
    %c0_i32_1 = arith.constant 0 : i32
    %c0_i32_2 = arith.constant 0 : i32
    return %c0_i32, %c0_i32_0, %c0_i32_1 : i32, i32, i32
  }
  func.func @transform_4(%arg0: i32, %arg1: i32) -> (i32, i32, i32) {
    %c0_i32 = arith.constant 0 : i32
    %c0_i32_0 = arith.constant 0 : i32
    %c0_i32_1 = arith.constant 0 : i32
    %c0_i32_2 = arith.constant 0 : i32
    return %c0_i32, %c0_i32_0, %c0_i32_1 : i32, i32, i32
  }
  func.func @transform_5(%arg0: i32, %arg1: i32) -> (i32, i32) {
    %c0_i32 = arith.constant 0 : i32
    %c0_i32_0 = arith.constant 0 : i32
    %c0_i32_1 = arith.constant 0 : i32
    return %c0_i32, %c0_i32_0 : i32, i32
  }
  func.func @transform_6(%arg0: i32, %arg1: i32) -> (i32, i32) {
    %c0_i32 = arith.constant 0 : i32
    %c0_i32_0 = arith.constant 0 : i32
    %c0_i32_1 = arith.constant 0 : i32
    return %c0_i32, %c0_i32_0 : i32, i32
  }
  func.func @transform_7(%arg0: i32, %arg1: i32) -> (i32, i32) {
    %c0_i32 = arith.constant 0 : i32
    %c0_i32_0 = arith.constant 0 : i32
    %c0_i32_1 = arith.constant 0 : i32
    return %c0_i32, %c0_i32_0 : i32, i32
  }
  func.func @transform_8(%arg0: i32, %arg1: i32) -> (i32, i32) {
    %c0_i32 = arith.constant 0 : i32
    %c0_i32_0 = arith.constant 0 : i32
    %c0_i32_1 = arith.constant 0 : i32
    return %c0_i32, %c0_i32_0 : i32, i32
  }
  func.func @transform_9(%arg0: i32, %arg1: i32) -> (i32, i32, i32) {
    %c0_i32 = arith.constant 0 : i32
    %c0_i32_0 = arith.constant 0 : i32
    return %arg0, %arg1, %c0_i32 : i32, i32, i32
  }
}

module attributes {stable_mosaic.version = 11 : i64} {
  func.func @_linear_kernel(%arg0: i32, %arg1: i32, %arg2: memref<16x32xf32, #tpu.memory_space<vmem>>, %arg3: memref<32x512xbf16, #tpu.memory_space<vmem>>, %arg4: memref<1x512xf32, #tpu.memory_space<vmem>>, %arg5: memref<16x512xf32, #tpu.memory_space<vmem>>) attributes {dimension_semantics = [#tpu.dimension_semantics<parallel>, #tpu.dimension_semantics<parallel>], iteration_bounds = array<i64: 1, 1>, scalar_prefetch = 0 : i64, scratch_operands = 0 : i64, tpu.core_type = #tpu.core_type<tc>, window_params = [{transform_indices = @transform_0, window_bounds = array<i64: 16, 32>}, {transform_indices = @transform_1, window_bounds = array<i64: 32, 512>}, {transform_indices = @transform_2, window_bounds = array<i64: 1, 512>}, {transform_indices = @transform_3, window_bounds = array<i64: 16, 512>}]} {
    %c0 = arith.constant 0 : index
    %c0_0 = arith.constant 0 : index
    %0 = vector.load %arg2[%c0, %c0_0] : memref<16x32xf32, #tpu.memory_space<vmem>>, vector<16x32xf32>
    %1 = arith.truncf %0 : vector<16x32xf32> to vector<16x32xbf16>
    %c0_1 = arith.constant 0 : index
    %c0_2 = arith.constant 0 : index
    %2 = vector.load %arg3[%c0_1, %c0_2] : memref<32x512xbf16, #tpu.memory_space<vmem>>, vector<32x512xbf16>
    %cst = arith.constant dense<0.000000e+00> : vector<16x512xf32>
    %3 = tpu.matmul %1, %2, %cst {dimension_numbers = #tpu.dot_dimension_numbers<[1], [0], [0], [1], [0, 0, 1, 1], [], []>} : vector<16x32xbf16>, vector<32x512xbf16>, vector<16x512xf32> -> vector<16x512xf32>
    %c0_3 = arith.constant 0 : index
    %c0_4 = arith.constant 0 : index
    %4 = vector.load %arg4[%c0_3, %c0_4] : memref<1x512xf32, #tpu.memory_space<vmem>>, vector<1x512xf32>
    %5 = vector.broadcast %4 : vector<1x512xf32> to vector<16x512xf32>
    %6 = arith.addf %3, %5 : vector<16x512xf32>
    %c0_5 = arith.constant 0 : index
    %c0_6 = arith.constant 0 : index
    %7 = vector.load %arg5[%c0_5, %c0_6] : memref<16x512xf32, #tpu.memory_space<vmem>>, vector<16x512xf32>
    tpu.vector_store %arg5[%c0_5, %c0_6], %6 {strides = array<i32>} : memref<16x512xf32, #tpu.memory_space<vmem>>, vector<16x512xf32>,
    return
  }
  func.func @transform_0(%arg0: i32, %arg1: i32) -> (i32, i32) {
    %c0_i32 = arith.constant 0 : i32
    %c0_i32_0 = arith.constant 0 : i32
    return %arg0, %c0_i32 : i32, i32
  }
  func.func @transform_1(%arg0: i32, %arg1: i32) -> (i32, i32) {
    %c0_i32 = arith.constant 0 : i32
    %c0_i32_0 = arith.constant 0 : i32
    return %c0_i32, %arg1 : i32, i32
  }
  func.func @transform_2(%arg0: i32, %arg1: i32) -> (i32, i32) {
    %c0_i32 = arith.constant 0 : i32
    %c0_i32_0 = arith.constant 0 : i32
    return %c0_i32, %arg1 : i32, i32
  }
  func.func @transform_3(%arg0: i32, %arg1: i32) -> (i32, i32) {
    %c0_i32 = arith.constant 0 : i32
    return %arg0, %arg1 : i32, i32
  }
}

module attributes {stable_mosaic.version = 11 : i64} {
  func.func @_encoder_layer_kernel(%arg0: i32, %arg1: memref<1x8x32xf32, #tpu.memory_space<vmem>>, %arg2: memref<1x1x8xf32, #tpu.memory_space<vmem>>, %arg3: memref<12x32x8xbf16, #tpu.memory_space<vmem>>, %arg4: memref<12x1x8xf32, #tpu.memory_space<vmem>>, %arg5: memref<32x32xbf16, #tpu.memory_space<vmem>>, %arg6: memref<1x32xf32, #tpu.memory_space<vmem>>, %arg7: memref<1x32xf32, #tpu.memory_space<vmem>>, %arg8: memref<1x32xf32, #tpu.memory_space<vmem>>, %arg9: memref<32x64xbf16, #tpu.memory_space<vmem>>, %arg10: memref<1x64xf32, #tpu.memory_space<vmem>>, %arg11: memref<64x32xbf16, #tpu.memory_space<vmem>>, %arg12: memref<1x32xf32, #tpu.memory_space<vmem>>, %arg13: memref<1x32xf32, #tpu.memory_space<vmem>>, %arg14: memref<1x32xf32, #tpu.memory_space<vmem>>, %arg15: memref<1x8x32xf32, #tpu.memory_space<vmem>>) attributes {dimension_semantics = [#tpu.dimension_semantics<parallel>], iteration_bounds = array<i64: 2>, scalar_prefetch = 0 : i64, scratch_operands = 0 : i64, tpu.core_type = #tpu.core_type<tc>, window_params = [{transform_indices = @transform_0, window_bounds = array<i64: 1, 8, 32>}, {transform_indices = @transform_1, window_bounds = array<i64: 1, 1, 8>}, {pipeline_mode = #tpu.pipeline_mode<synchronous>, transform_indices = @transform_2, window_bounds = array<i64: 12, 32, 8>}, {pipeline_mode = #tpu.pipeline_mode<synchronous>, transform_indices = @transform_3, window_bounds = array<i64: 12, 1, 8>}, {pipeline_mode = #tpu.pipeline_mode<synchronous>, transform_indices = @transform_4, window_bounds = array<i64: 32, 32>}, {pipeline_mode = #tpu.pipeline_mode<synchronous>, transform_indices = @transform_5, window_bounds = array<i64: 1, 32>}, {pipeline_mode = #tpu.pipeline_mode<synchronous>, transform_indices = @transform_6, window_bounds = array<i64: 1, 32>}, {pipeline_mode = #tpu.pipeline_mode<synchronous>, transform_indices = @transform_7, window_bounds = array<i64: 1, 32>}, {pipeline_mode = #tpu.pipeline_mode<synchronous>, transform_indices = @transform_8, window_bounds = array<i64: 32, 64>}, {pipeline_mode = #tpu.pipeline_mode<synchronous>, transform_indices = @transform_9, window_bounds = array<i64: 1, 64>}, {pipeline_mode = #tpu.pipeline_mode<synchronous>, transform_indices = @transform_10, window_bounds = array<i64: 64, 32>}, {pipeline_mode = #tpu.pipeline_mode<synchronous>, transform_indices = @transform_11, window_bounds = array<i64: 1, 32>}, {pipeline_mode = #tpu.pipeline_mode<synchronous>, transform_indices = @transform_12, window_bounds = array<i64: 1, 32>}, {pipeline_mode = #tpu.pipeline_mode<synchronous>, transform_indices = @transform_13, window_bounds = array<i64: 1, 32>}, {transform_indices = @transform_14, window_bounds = array<i64: 1, 8, 32>}]} {
    %c0 = arith.constant 0 : index
    %c0_0 = arith.constant 0 : index
    %c0_1 = arith.constant 0 : index
    %0 = vector.load %arg1[%c0, %c0_0, %c0_1] : memref<1x8x32xf32, #tpu.memory_space<vmem>>, vector<1x8x32xf32>
    %1 = vector.shape_cast %0 : vector<1x8x32xf32> to vector<8x32xf32>
    %c0_2 = arith.constant 0 : index
    %c0_3 = arith.constant 0 : index
    %c0_4 = arith.constant 0 : index
    %2 = vector.load %arg2[%c0_2, %c0_3, %c0_4] : memref<1x1x8xf32, #tpu.memory_space<vmem>>, vector<1x1x8xf32>
    %3 = vector.shape_cast %2 : vector<1x1x8xf32> to vector<1x8xf32>
    %4 = arith.truncf %1 : vector<8x32xf32> to vector<8x32xbf16>
    %5 = arith.truncf %1 : vector<8x32xf32> to vector<8x32xbf16>
    %c0_5 = arith.constant 0 : index
    %c0_6 = arith.constant 0 : index
    %c0_7 = arith.constant 0 : index
    %6 = vector.load %arg3[%c0_5, %c0_6, %c0_7] : memref<12x32x8xbf16, #tpu.memory_space<vmem>>, vector<1x32x8xbf16>
    %7 = vector.shape_cast %6 : vector<1x32x8xbf16> to vector<32x8xbf16>
    %cst = arith.constant dense<0.000000e+00> : vector<8x8xf32>
    %8 = tpu.matmul %4, %7, %cst {dimension_numbers = #tpu.dot_dimension_numbers<[1], [0], [0], [1], [0, 0, 1, 1], [], []>} : vector<8x32xbf16>, vector<32x8xbf16>, vector<8x8xf32> -> vector<8x8xf32>
    %c0_8 = arith.constant 0 : index
    %c0_9 = arith.constant 0 : index
    %c0_10 = arith.constant 0 : index
    %9 = vector.load %arg4[%c0_8, %c0_9, %c0_10] : memref<12x1x8xf32, #tpu.memory_space<vmem>>, vector<1x1x8xf32>
    %10 = vector.shape_cast %9 : vector<1x1x8xf32> to vector<1x8xf32>
    %11 = vector.broadcast %10 : vector<1x8xf32> to vector<8x8xf32>
    %12 = arith.addf %8, %11 : vector<8x8xf32>
    %c4 = arith.constant 4 : index
    %c0_11 = arith.constant 0 : index
    %c0_12 = arith.constant 0 : index
    %13 = vector.load %arg3[%c4, %c0_11, %c0_12] : memref<12x32x8xbf16, #tpu.memory_space<vmem>>, vector<1x32x8xbf16>
    %14 = vector.shape_cast %13 : vector<1x32x8xbf16> to vector<32x8xbf16>
    %cst_13 = arith.constant dense<0.000000e+00> : vector<8x8xf32>
    %15 = tpu.matmul %5, %14, %cst_13 {dimension_numbers = #tpu.dot_dimension_numbers<[1], [0], [0], [1], [0, 0, 1, 1], [], []>} : vector<8x32xbf16>, vector<32x8xbf16>, vector<8x8xf32> -> vector<8x8xf32>
    %c4_14 = arith.constant 4 : index
    %c0_15 = arith.constant 0 : index
    %c0_16 = arith.constant 0 : index
    %16 = vector.load %arg4[%c4_14, %c0_15, %c0_16] : memref<12x1x8xf32, #tpu.memory_space<vmem>>, vector<1x1x8xf32>
    %17 = vector.shape_cast %16 : vector<1x1x8xf32> to vector<1x8xf32>
    %18 = vector.broadcast %17 : vector<1x8xf32> to vector<8x8xf32>
    %19 = arith.addf %15, %18 : vector<8x8xf32>
    %c8 = arith.constant 8 : index
    %c0_17 = arith.constant 0 : index
    %c0_18 = arith.constant 0 : index
    %20 = vector.load %arg3[%c8, %c0_17, %c0_18] : memref<12x32x8xbf16, #tpu.memory_space<vmem>>, vector<1x32x8xbf16>
    %21 = vector.shape_cast %20 : vector<1x32x8xbf16> to vector<32x8xbf16>
    %cst_19 = arith.constant dense<0.000000e+00> : vector<8x8xf32>
    %22 = tpu.matmul %5, %21, %cst_19 {dimension_numbers = #tpu.dot_dimension_numbers<[1], [0], [0], [1], [0, 0, 1, 1], [], []>} : vector<8x32xbf16>, vector<32x8xbf16>, vector<8x8xf32> -> vector<8x8xf32>
    %c8_20 = arith.constant 8 : index
    %c0_21 = arith.constant 0 : index
    %c0_22 = arith.constant 0 : index
    %23 = vector.load %arg4[%c8_20, %c0_21, %c0_22] : memref<12x1x8xf32, #tpu.memory_space<vmem>>, vector<1x1x8xf32>
    %24 = vector.shape_cast %23 : vector<1x1x8xf32> to vector<1x8xf32>
    %25 = vector.broadcast %24 : vector<1x8xf32> to vector<8x8xf32>
    %26 = arith.addf %22, %25 : vector<8x8xf32>
    %27 = arith.truncf %12 : vector<8x8xf32> to vector<8x8xbf16>
    %28 = arith.truncf %19 : vector<8x8xf32> to vector<8x8xbf16>
    %cst_23 = arith.constant dense<0.000000e+00> : vector<8x8xf32>
    %29 = tpu.matmul %27, %28, %cst_23 {dimension_numbers = #tpu.dot_dimension_numbers<[1], [1], [0], [0], [0, 0, 1, 0], [], []>} : vector<8x8xbf16>, vector<8x8xbf16>, vector<8x8xf32> -> vector<8x8xf32>
    %cst_24 = arith.constant 0.353553385 : f32
    %30 = vector.broadcast %cst_24 : f32 to vector<8x8xf32>
    %31 = arith.mulf %29, %30 : vector<8x8xf32>
    %32 = vector.broadcast %3 : vector<1x8xf32> to vector<8x8xf32>
    %33 = arith.addf %31, %32 : vector<8x8xf32>
    %cst_25 = arith.constant dense<0xFF800000> : vector<8xf32>
    %34 = vector.multi_reduction <maximumf>, %33, %cst_25 [1] : vector<8x8xf32> to vector<8xf32>
    %35 = vector.shape_cast %34 : vector<8xf32> to vector<8x1xf32>
    %36 = vector.broadcast %35 : vector<8x1xf32> to vector<8x8xf32>
    %37 = arith.subf %33, %36 : vector<8x8xf32>
    %38 = math.exp %37 : vector<8x8xf32>
    %cst_26 = arith.constant dense<0.000000e+00> : vector<8xf32>
    %39 = vector.multi_reduction <add>, %38, %cst_26 [1] : vector<8x8xf32> to vector<8xf32>
    %40 = vector.shape_cast %39 : vector<8xf32> to vector<8x1xf32>
    %41 = tpu.reciprocal %40 {approx = true} : vector<8x1xf32> -> vector<8x1xf32>
    %42 = vector.broadcast %41 : vector<8x1xf32> to vector<8x8xf32>
    %43 = arith.mulf %38, %42 : vector<8x8xf32>
    %44 = arith.truncf %43 : vector<8x8xf32> to vector<8x8xbf16>
    %45 = arith.truncf %26 : vector<8x8xf32> to vector<8x8xbf16>
    %cst_27 = arith.constant dense<0.000000e+00> : vector<8x8xf32>
    %46 = tpu.matmul %44, %45, %cst_27 {dimension_numbers = #tpu.dot_dimension_numbers<[1], [0], [0], [1], [0, 0, 1, 1], [], []>} : vector<8x8xbf16>, vector<8x8xbf16>, vector<8x8xf32> -> vector<8x8xf32>
    %c1 = arith.constant 1 : index
    %c0_28 = arith.constant 0 : index
    %c0_29 = arith.constant 0 : index
    %47 = vector.load %arg3[%c1, %c0_28, %c0_29] : memref<12x32x8xbf16, #tpu.memory_space<vmem>>, vector<1x32x8xbf16>
    %48 = vector.shape_cast %47 : vector<1x32x8xbf16> to vector<32x8xbf16>
    %cst_30 = arith.constant dense<0.000000e+00> : vector<8x8xf32>
    %49 = tpu.matmul %4, %48, %cst_30 {dimension_numbers = #tpu.dot_dimension_numbers<[1], [0], [0], [1], [0, 0, 1, 1], [], []>} : vector<8x32xbf16>, vector<32x8xbf16>, vector<8x8xf32> -> vector<8x8xf32>
    %c1_31 = arith.constant 1 : index
    %c0_32 = arith.constant 0 : index
    %c0_33 = arith.constant 0 : index
    %50 = vector.load %arg4[%c1_31, %c0_32, %c0_33] : memref<12x1x8xf32, #tpu.memory_space<vmem>>, vector<1x1x8xf32>
    %51 = vector.shape_cast %50 : vector<1x1x8xf32> to vector<1x8xf32>
    %52 = vector.broadcast %51 : vector<1x8xf32> to vector<8x8xf32>
    %53 = arith.addf %49, %52 : vector<8x8xf32>
    %c5 = arith.constant 5 : index
    %c0_34 = arith.constant 0 : index
    %c0_35 = arith.constant 0 : index
    %54 = vector.load %arg3[%c5, %c0_34, %c0_35] : memref<12x32x8xbf16, #tpu.memory_space<vmem>>, vector<1x32x8xbf16>
    %55 = vector.shape_cast %54 : vector<1x32x8xbf16> to vector<32x8xbf16>
    %cst_36 = arith.constant dense<0.000000e+00> : vector<8x8xf32>
    %56 = tpu.matmul %5, %55, %cst_36 {dimension_numbers = #tpu.dot_dimension_numbers<[1], [0], [0], [1], [0, 0, 1, 1], [], []>} : vector<8x32xbf16>, vector<32x8xbf16>, vector<8x8xf32> -> vector<8x8xf32>
    %c5_37 = arith.constant 5 : index
    %c0_38 = arith.constant 0 : index
    %c0_39 = arith.constant 0 : index
    %57 = vector.load %arg4[%c5_37, %c0_38, %c0_39] : memref<12x1x8xf32, #tpu.memory_space<vmem>>, vector<1x1x8xf32>
    %58 = vector.shape_cast %57 : vector<1x1x8xf32> to vector<1x8xf32>
    %59 = vector.broadcast %58 : vector<1x8xf32> to vector<8x8xf32>
    %60 = arith.addf %56, %59 : vector<8x8xf32>
    %c9 = arith.constant 9 : index
    %c0_40 = arith.constant 0 : index
    %c0_41 = arith.constant 0 : index
    %61 = vector.load %arg3[%c9, %c0_40, %c0_41] : memref<12x32x8xbf16, #tpu.memory_space<vmem>>, vector<1x32x8xbf16>
    %62 = vector.shape_cast %61 : vector<1x32x8xbf16> to vector<32x8xbf16>
    %cst_42 = arith.constant dense<0.000000e+00> : vector<8x8xf32>
    %63 = tpu.matmul %5, %62, %cst_42 {dimension_numbers = #tpu.dot_dimension_numbers<[1], [0], [0], [1], [0, 0, 1, 1], [], []>} : vector<8x32xbf16>, vector<32x8xbf16>, vector<8x8xf32> -> vector<8x8xf32>
    %c9_43 = arith.constant 9 : index
    %c0_44 = arith.constant 0 : index
    %c0_45 = arith.constant 0 : index
    %64 = vector.load %arg4[%c9_43, %c0_44, %c0_45] : memref<12x1x8xf32, #tpu.memory_space<vmem>>, vector<1x1x8xf32>
    %65 = vector.shape_cast %64 : vector<1x1x8xf32> to vector<1x8xf32>
    %66 = vector.broadcast %65 : vector<1x8xf32> to vector<8x8xf32>
    %67 = arith.addf %63, %66 : vector<8x8xf32>
    %68 = arith.truncf %53 : vector<8x8xf32> to vector<8x8xbf16>
    %69 = arith.truncf %60 : vector<8x8xf32> to vector<8x8xbf16>
    %cst_46 = arith.constant dense<0.000000e+00> : vector<8x8xf32>
    %70 = tpu.matmul %68, %69, %cst_46 {dimension_numbers = #tpu.dot_dimension_numbers<[1], [1], [0], [0], [0, 0, 1, 0], [], []>} : vector<8x8xbf16>, vector<8x8xbf16>, vector<8x8xf32> -> vector<8x8xf32>
    %cst_47 = arith.constant 0.353553385 : f32
    %71 = vector.broadcast %cst_47 : f32 to vector<8x8xf32>
    %72 = arith.mulf %70, %71 : vector<8x8xf32>
    %73 = vector.broadcast %3 : vector<1x8xf32> to vector<8x8xf32>
    %74 = arith.addf %72, %73 : vector<8x8xf32>
    %cst_48 = arith.constant dense<0xFF800000> : vector<8xf32>
    %75 = vector.multi_reduction <maximumf>, %74, %cst_48 [1] : vector<8x8xf32> to vector<8xf32>
    %76 = vector.shape_cast %75 : vector<8xf32> to vector<8x1xf32>
    %77 = vector.broadcast %76 : vector<8x1xf32> to vector<8x8xf32>
    %78 = arith.subf %74, %77 : vector<8x8xf32>
    %79 = math.exp %78 : vector<8x8xf32>
    %cst_49 = arith.constant dense<0.000000e+00> : vector<8xf32>
    %80 = vector.multi_reduction <add>, %79, %cst_49 [1] : vector<8x8xf32> to vector<8xf32>
    %81 = vector.shape_cast %80 : vector<8xf32> to vector<8x1xf32>
    %82 = tpu.reciprocal %81 {approx = true} : vector<8x1xf32> -> vector<8x1xf32>
    %83 = vector.broadcast %82 : vector<8x1xf32> to vector<8x8xf32>
    %84 = arith.mulf %79, %83 : vector<8x8xf32>
    %85 = arith.truncf %84 : vector<8x8xf32> to vector<8x8xbf16>
    %86 = arith.truncf %67 : vector<8x8xf32> to vector<8x8xbf16>
    %cst_50 = arith.constant dense<0.000000e+00> : vector<8x8xf32>
    %87 = tpu.matmul %85, %86, %cst_50 {dimension_numbers = #tpu.dot_dimension_numbers<[1], [0], [0], [1], [0, 0, 1, 1], [], []>} : vector<8x8xbf16>, vector<8x8xbf16>, vector<8x8xf32> -> vector<8x8xf32>
    %c2 = arith.constant 2 : index
    %c0_51 = arith.constant 0 : index
    %c0_52 = arith.constant 0 : index
    %88 = vector.load %arg3[%c2, %c0_51, %c0_52] : memref<12x32x8xbf16, #tpu.memory_space<vmem>>, vector<1x32x8xbf16>
    %89 = vector.shape_cast %88 : vector<1x32x8xbf16> to vector<32x8xbf16>
    %cst_53 = arith.constant dense<0.000000e+00> : vector<8x8xf32>
    %90 = tpu.matmul %4, %89, %cst_53 {dimension_numbers = #tpu.dot_dimension_numbers<[1], [0], [0], [1], [0, 0, 1, 1], [], []>} : vector<8x32xbf16>, vector<32x8xbf16>, vector<8x8xf32> -> vector<8x8xf32>
    %c2_54 = arith.constant 2 : index
    %c0_55 = arith.constant 0 : index
    %c0_56 = arith.constant 0 : index
    %91 = vector.load %arg4[%c2_54, %c0_55, %c0_56] : memref<12x1x8xf32, #tpu.memory_space<vmem>>, vector<1x1x8xf32>
    %92 = vector.shape_cast %91 : vector<1x1x8xf32> to vector<1x8xf32>
    %93 = vector.broadcast %92 : vector<1x8xf32> to vector<8x8xf32>
    %94 = arith.addf %90, %93 : vector<8x8xf32>
    %c6 = arith.constant 6 : index
    %c0_57 = arith.constant 0 : index
    %c0_58 = arith.constant 0 : index
    %95 = vector.load %arg3[%c6, %c0_57, %c0_58] : memref<12x32x8xbf16, #tpu.memory_space<vmem>>, vector<1x32x8xbf16>
    %96 = vector.shape_cast %95 : vector<1x32x8xbf16> to vector<32x8xbf16>
    %cst_59 = arith.constant dense<0.000000e+00> : vector<8x8xf32>
    %97 = tpu.matmul %5, %96, %cst_59 {dimension_numbers = #tpu.dot_dimension_numbers<[1], [0], [0], [1], [0, 0, 1, 1], [], []>} : vector<8x32xbf16>, vector<32x8xbf16>, vector<8x8xf32> -> vector<8x8xf32>
    %c6_60 = arith.constant 6 : index
    %c0_61 = arith.constant 0 : index
    %c0_62 = arith.constant 0 : index
    %98 = vector.load %arg4[%c6_60, %c0_61, %c0_62] : memref<12x1x8xf32, #tpu.memory_space<vmem>>, vector<1x1x8xf32>
    %99 = vector.shape_cast %98 : vector<1x1x8xf32> to vector<1x8xf32>
    %100 = vector.broadcast %99 : vector<1x8xf32> to vector<8x8xf32>
    %101 = arith.addf %97, %100 : vector<8x8xf32>
    %c10 = arith.constant 10 : index
    %c0_63 = arith.constant 0 : index
    %c0_64 = arith.constant 0 : index
    %102 = vector.load %arg3[%c10, %c0_63, %c0_64] : memref<12x32x8xbf16, #tpu.memory_space<vmem>>, vector<1x32x8xbf16>
    %103 = vector.shape_cast %102 : vector<1x32x8xbf16> to vector<32x8xbf16>
    %cst_65 = arith.constant dense<0.000000e+00> : vector<8x8xf32>
    %104 = tpu.matmul %5, %103, %cst_65 {dimension_numbers = #tpu.dot_dimension_numbers<[1], [0], [0], [1], [0, 0, 1, 1], [], []>} : vector<8x32xbf16>, vector<32x8xbf16>, vector<8x8xf32> -> vector<8x8xf32>
    %c10_66 = arith.constant 10 : index
    %c0_67 = arith.constant 0 : index
    %c0_68 = arith.constant 0 : index
    %105 = vector.load %arg4[%c10_66, %c0_67, %c0_68] : memref<12x1x8xf32, #tpu.memory_space<vmem>>, vector<1x1x8xf32>
    %106 = vector.shape_cast %105 : vector<1x1x8xf32> to vector<1x8xf32>
    %107 = vector.broadcast %106 : vector<1x8xf32> to vector<8x8xf32>
    %108 = arith.addf %104, %107 : vector<8x8xf32>
    %109 = arith.truncf %94 : vector<8x8xf32> to vector<8x8xbf16>
    %110 = arith.truncf %101 : vector<8x8xf32> to vector<8x8xbf16>
    %cst_69 = arith.constant dense<0.000000e+00> : vector<8x8xf32>
    %111 = tpu.matmul %109, %110, %cst_69 {dimension_numbers = #tpu.dot_dimension_numbers<[1], [1], [0], [0], [0, 0, 1, 0], [], []>} : vector<8x8xbf16>, vector<8x8xbf16>, vector<8x8xf32> -> vector<8x8xf32>
    %cst_70 = arith.constant 0.353553385 : f32
    %112 = vector.broadcast %cst_70 : f32 to vector<8x8xf32>
    %113 = arith.mulf %111, %112 : vector<8x8xf32>
    %114 = vector.broadcast %3 : vector<1x8xf32> to vector<8x8xf32>
    %115 = arith.addf %113, %114 : vector<8x8xf32>
    %cst_71 = arith.constant dense<0xFF800000> : vector<8xf32>
    %116 = vector.multi_reduction <maximumf>, %115, %cst_71 [1] : vector<8x8xf32> to vector<8xf32>
    %117 = vector.shape_cast %116 : vector<8xf32> to vector<8x1xf32>
    %118 = vector.broadcast %117 : vector<8x1xf32> to vector<8x8xf32>
    %119 = arith.subf %115, %118 : vector<8x8xf32>
    %120 = math.exp %119 : vector<8x8xf32>
    %cst_72 = arith.constant dense<0.000000e+00> : vector<8xf32>
    %121 = vector.multi_reduction <add>, %120, %cst_72 [1] : vector<8x8xf32> to vector<8xf32>
    %122 = vector.shape_cast %121 : vector<8xf32> to vector<8x1xf32>
    %123 = tpu.reciprocal %122 {approx = true} : vector<8x1xf32> -> vector<8x1xf32>
    %124 = vector.broadcast %123 : vector<8x1xf32> to vector<8x8xf32>
    %125 = arith.mulf %120, %124 : vector<8x8xf32>
    %126 = arith.truncf %125 : vector<8x8xf32> to vector<8x8xbf16>
    %127 = arith.truncf %108 : vector<8x8xf32> to vector<8x8xbf16>
    %cst_73 = arith.constant dense<0.000000e+00> : vector<8x8xf32>
    %128 = tpu.matmul %126, %127, %cst_73 {dimension_numbers = #tpu.dot_dimension_numbers<[1], [0], [0], [1], [0, 0, 1, 1], [], []>} : vector<8x8xbf16>, vector<8x8xbf16>, vector<8x8xf32> -> vector<8x8xf32>
    %c3 = arith.constant 3 : index
    %c0_74 = arith.constant 0 : index
    %c0_75 = arith.constant 0 : index
    %129 = vector.load %arg3[%c3, %c0_74, %c0_75] : memref<12x32x8xbf16, #tpu.memory_space<vmem>>, vector<1x32x8xbf16>
    %130 = vector.shape_cast %129 : vector<1x32x8xbf16> to vector<32x8xbf16>
    %cst_76 = arith.constant dense<0.000000e+00> : vector<8x8xf32>
    %131 = tpu.matmul %4, %130, %cst_76 {dimension_numbers = #tpu.dot_dimension_numbers<[1], [0], [0], [1], [0, 0, 1, 1], [], []>} : vector<8x32xbf16>, vector<32x8xbf16>, vector<8x8xf32> -> vector<8x8xf32>
    %c3_77 = arith.constant 3 : index
    %c0_78 = arith.constant 0 : index
    %c0_79 = arith.constant 0 : index
    %132 = vector.load %arg4[%c3_77, %c0_78, %c0_79] : memref<12x1x8xf32, #tpu.memory_space<vmem>>, vector<1x1x8xf32>
    %133 = vector.shape_cast %132 : vector<1x1x8xf32> to vector<1x8xf32>
    %134 = vector.broadcast %133 : vector<1x8xf32> to vector<8x8xf32>
    %135 = arith.addf %131, %134 : vector<8x8xf32>
    %c7 = arith.constant 7 : index
    %c0_80 = arith.constant 0 : index
    %c0_81 = arith.constant 0 : index
    %136 = vector.load %arg3[%c7, %c0_80, %c0_81] : memref<12x32x8xbf16, #tpu.memory_space<vmem>>, vector<1x32x8xbf16>
    %137 = vector.shape_cast %136 : vector<1x32x8xbf16> to vector<32x8xbf16>
    %cst_82 = arith.constant dense<0.000000e+00> : vector<8x8xf32>
    %138 = tpu.matmul %5, %137, %cst_82 {dimension_numbers = #tpu.dot_dimension_numbers<[1], [0], [0], [1], [0, 0, 1, 1], [], []>} : vector<8x32xbf16>, vector<32x8xbf16>, vector<8x8xf32> -> vector<8x8xf32>
    %c7_83 = arith.constant 7 : index
    %c0_84 = arith.constant 0 : index
    %c0_85 = arith.constant 0 : index
    %139 = vector.load %arg4[%c7_83, %c0_84, %c0_85] : memref<12x1x8xf32, #tpu.memory_space<vmem>>, vector<1x1x8xf32>
    %140 = vector.shape_cast %139 : vector<1x1x8xf32> to vector<1x8xf32>
    %141 = vector.broadcast %140 : vector<1x8xf32> to vector<8x8xf32>
    %142 = arith.addf %138, %141 : vector<8x8xf32>
    %c11 = arith.constant 11 : index
    %c0_86 = arith.constant 0 : index
    %c0_87 = arith.constant 0 : index
    %143 = vector.load %arg3[%c11, %c0_86, %c0_87] : memref<12x32x8xbf16, #tpu.memory_space<vmem>>, vector<1x32x8xbf16>
    %144 = vector.shape_cast %143 : vector<1x32x8xbf16> to vector<32x8xbf16>
    %cst_88 = arith.constant dense<0.000000e+00> : vector<8x8xf32>
    %145 = tpu.matmul %5, %144, %cst_88 {dimension_numbers = #tpu.dot_dimension_numbers<[1], [0], [0], [1], [0, 0, 1, 1], [], []>} : vector<8x32xbf16>, vector<32x8xbf16>, vector<8x8xf32> -> vector<8x8xf32>
    %c11_89 = arith.constant 11 : index
    %c0_90 = arith.constant 0 : index
    %c0_91 = arith.constant 0 : index
    %146 = vector.load %arg4[%c11_89, %c0_90, %c0_91] : memref<12x1x8xf32, #tpu.memory_space<vmem>>, vector<1x1x8xf32>
    %147 = vector.shape_cast %146 : vector<1x1x8xf32> to vector<1x8xf32>
    %148 = vector.broadcast %147 : vector<1x8xf32> to vector<8x8xf32>
    %149 = arith.addf %145, %148 : vector<8x8xf32>
    %150 = arith.truncf %135 : vector<8x8xf32> to vector<8x8xbf16>
    %151 = arith.truncf %142 : vector<8x8xf32> to vector<8x8xbf16>
    %cst_92 = arith.constant dense<0.000000e+00> : vector<8x8xf32>
    %152 = tpu.matmul %150, %151, %cst_92 {dimension_numbers = #tpu.dot_dimension_numbers<[1], [1], [0], [0], [0, 0, 1, 0], [], []>} : vector<8x8xbf16>, vector<8x8xbf16>, vector<8x8xf32> -> vector<8x8xf32>
    %cst_93 = arith.constant 0.353553385 : f32
    %153 = vector.broadcast %cst_93 : f32 to vector<8x8xf32>
    %154 = arith.mulf %152, %153 : vector<8x8xf32>
    %155 = vector.broadcast %3 : vector<1x8xf32> to vector<8x8xf32>
    %156 = arith.addf %154, %155 : vector<8x8xf32>
    %cst_94 = arith.constant dense<0xFF800000> : vector<8xf32>
    %157 = vector.multi_reduction <maximumf>, %156, %cst_94 [1] : vector<8x8xf32> to vector<8xf32>
    %158 = vector.shape_cast %157 : vector<8xf32> to vector<8x1xf32>
    %159 = vector.broadcast %158 : vector<8x1xf32> to vector<8x8xf32>
    %160 = arith.subf %156, %159 : vector<8x8xf32>
    %161 = math.exp %160 : vector<8x8xf32>
    %cst_95 = arith.constant dense<0.000000e+00> : vector<8xf32>
    %162 = vector.multi_reduction <add>, %161, %cst_95 [1] : vector<8x8xf32> to vector<8xf32>
    %163 = vector.shape_cast %162 : vector<8xf32> to vector<8x1xf32>
    %164 = tpu.reciprocal %163 {approx = true} : vector<8x1xf32> -> vector<8x1xf32>
    %165 = vector.broadcast %164 : vector<8x1xf32> to vector<8x8xf32>
    %166 = arith.mulf %161, %165 : vector<8x8xf32>
    %167 = arith.truncf %166 : vector<8x8xf32> to vector<8x8xbf16>
    %168 = arith.truncf %149 : vector<8x8xf32> to vector<8x8xbf16>
    %cst_96 = arith.constant dense<0.000000e+00> : vector<8x8xf32>
    %169 = tpu.matmul %167, %168, %cst_96 {dimension_numbers = #tpu.dot_dimension_numbers<[1], [0], [0], [1], [0, 0, 1, 1], [], []>} : vector<8x8xbf16>, vector<8x8xbf16>, vector<8x8xf32> -> vector<8x8xf32>
    %170 = tpu.concatenate %46, %87, %128, %169 in 1 : vector<8x8xf32>, vector<8x8xf32>, vector<8x8xf32>, vector<8x8xf32> -> vector<8x32xf32>
    %171 = arith.truncf %170 : vector<8x32xf32> to vector<8x32xbf16>
    %c0_97 = arith.constant 0 : index
    %c0_98 = arith.constant 0 : index
    %172 = vector.load %arg5[%c0_97, %c0_98] : memref<32x32xbf16, #tpu.memory_space<vmem>>, vector<32x32xbf16>
    %cst_99 = arith.constant dense<0.000000e+00> : vector<8x32xf32>
    %173 = tpu.matmul %171, %172, %cst_99 {dimension_numbers = #tpu.dot_dimension_numbers<[1], [0], [0], [1], [0, 0, 1, 1], [], []>} : vector<8x32xbf16>, vector<32x32xbf16>, vector<8x32xf32> -> vector<8x32xf32>
    %c0_100 = arith.constant 0 : index
    %c0_101 = arith.constant 0 : index
    %174 = vector.load %arg6[%c0_100, %c0_101] : memref<1x32xf32, #tpu.memory_space<vmem>>, vector<1x32xf32>
    %175 = vector.broadcast %174 : vector<1x32xf32> to vector<8x32xf32>
    %176 = arith.addf %173, %175 : vector<8x32xf32>
    %177 = arith.addf %1, %176 : vector<8x32xf32>
    %cst_102 = arith.constant dense<0.000000e+00> : vector<8xf32>
    %178 = vector.multi_reduction <add>, %177, %cst_102 [1] : vector<8x32xf32> to vector<8xf32>
    %179 = vector.shape_cast %178 : vector<8xf32> to vector<8x1xf32>
    %cst_103 = arith.constant 3.200000e+01 : f32
    %180 = vector.broadcast %cst_103 : f32 to vector<8x1xf32>
    %181 = arith.divf %179, %180 : vector<8x1xf32>
    %182 = vector.broadcast %181 : vector<8x1xf32> to vector<8x32xf32>
    %183 = arith.subf %177, %182 : vector<8x32xf32>
    %184 = arith.mulf %183, %183 : vector<8x32xf32>
    %cst_104 = arith.constant dense<0.000000e+00> : vector<8xf32>
    %185 = vector.multi_reduction <add>, %184, %cst_104 [1] : vector<8x32xf32> to vector<8xf32>
    %186 = vector.shape_cast %185 : vector<8xf32> to vector<8x1xf32>
    %cst_105 = arith.constant 3.200000e+01 : f32
    %187 = vector.broadcast %cst_105 : f32 to vector<8x1xf32>
    %188 = arith.divf %186, %187 : vector<8x1xf32>
    %189 = vector.broadcast %181 : vector<8x1xf32> to vector<8x32xf32>
    %190 = arith.subf %177, %189 : vector<8x32xf32>
    %cst_106 = arith.constant 9.99999974E-6 : f32
    %191 = vector.broadcast %cst_106 : f32 to vector<8x1xf32>
    %192 = arith.addf %188, %191 : vector<8x1xf32>
    %193 = math.rsqrt %192 : vector<8x1xf32>
    %194 = vector.broadcast %193 : vector<8x1xf32> to vector<8x32xf32>
    %195 = arith.mulf %190, %194 : vector<8x32xf32>
    %c0_107 = arith.constant 0 : index
    %c0_108 = arith.constant 0 : index
    %196 = vector.load %arg7[%c0_107, %c0_108] : memref<1x32xf32, #tpu.memory_space<vmem>>, vector<1x32xf32>
    %197 = vector.broadcast %196 : vector<1x32xf32> to vector<8x32xf32>
    %198 = arith.mulf %195, %197 : vector<8x32xf32>
    %c0_109 = arith.constant 0 : index
    %c0_110 = arith.constant 0 : index
    %199 = vector.load %arg8[%c0_109, %c0_110] : memref<1x32xf32, #tpu.memory_space<vmem>>, vector<1x32xf32>
    %200 = vector.broadcast %199 : vector<1x32xf32> to vector<8x32xf32>
    %201 = arith.addf %198, %200 : vector<8x32xf32>
    %202 = arith.truncf %201 : vector<8x32xf32> to vector<8x32xbf16>
    %c0_111 = arith.constant 0 : index
    %c0_112 = arith.constant 0 : index
    %203 = vector.load %arg9[%c0_111, %c0_112] : memref<32x64xbf16, #tpu.memory_space<vmem>>, vector<32x64xbf16>
    %cst_113 = arith.constant dense<0.000000e+00> : vector<8x64xf32>
    %204 = tpu.matmul %202, %203, %cst_113 {dimension_numbers = #tpu.dot_dimension_numbers<[1], [0], [0], [1], [0, 0, 1, 1], [], []>} : vector<8x32xbf16>, vector<32x64xbf16>, vector<8x64xf32> -> vector<8x64xf32>
    %c0_114 = arith.constant 0 : index
    %c0_115 = arith.constant 0 : index
    %205 = vector.load %arg10[%c0_114, %c0_115] : memref<1x64xf32, #tpu.memory_space<vmem>>, vector<1x64xf32>
    %206 = vector.broadcast %205 : vector<1x64xf32> to vector<8x64xf32>
    %207 = arith.addf %204, %206 : vector<8x64xf32>
    %cst_116 = arith.constant 0.000000e+00 : f32
    %208 = vector.broadcast %cst_116 : f32 to vector<8x64xf32>
    %209 = arith.maximumf %207, %208 : vector<8x64xf32>
    %210 = arith.truncf %209 : vector<8x64xf32> to vector<8x64xbf16>
    %c0_117 = arith.constant 0 : index
    %c0_118 = arith.constant 0 : index
    %211 = vector.load %arg11[%c0_117, %c0_118] : memref<64x32xbf16, #tpu.memory_space<vmem>>, vector<64x32xbf16>
    %cst_119 = arith.constant dense<0.000000e+00> : vector<8x32xf32>
    %212 = tpu.matmul %210, %211, %cst_119 {dimension_numbers = #tpu.dot_dimension_numbers<[1], [0], [0], [1], [0, 0, 1, 1], [], []>} : vector<8x64xbf16>, vector<64x32xbf16>, vector<8x32xf32> -> vector<8x32xf32>
    %c0_120 = arith.constant 0 : index
    %c0_121 = arith.constant 0 : index
    %213 = vector.load %arg12[%c0_120, %c0_121] : memref<1x32xf32, #tpu.memory_space<vmem>>, vector<1x32xf32>
    %214 = vector.broadcast %213 : vector<1x32xf32> to vector<8x32xf32>
    %215 = arith.addf %212, %214 : vector<8x32xf32>
    %216 = arith.addf %201, %215 : vector<8x32xf32>
    %cst_122 = arith.constant dense<0.000000e+00> : vector<8xf32>
    %217 = vector.multi_reduction <add>, %216, %cst_122 [1] : vector<8x32xf32> to vector<8xf32>
    %218 = vector.shape_cast %217 : vector<8xf32> to vector<8x1xf32>
    %cst_123 = arith.constant 3.200000e+01 : f32
    %219 = vector.broadcast %cst_123 : f32 to vector<8x1xf32>
    %220 = arith.divf %218, %219 : vector<8x1xf32>
    %221 = vector.broadcast %220 : vector<8x1xf32> to vector<8x32xf32>
    %222 = arith.subf %216, %221 : vector<8x32xf32>
    %223 = arith.mulf %222, %222 : vector<8x32xf32>
    %cst_124 = arith.constant dense<0.000000e+00> : vector<8xf32>
    %224 = vector.multi_reduction <add>, %223, %cst_124 [1] : vector<8x32xf32> to vector<8xf32>
    %225 = vector.shape_cast %224 : vector<8xf32> to vector<8x1xf32>
    %cst_125 = arith.constant 3.200000e+01 : f32
    %226 = vector.broadcast %cst_125 : f32 to vector<8x1xf32>
    %227 = arith.divf %225, %226 : vector<8x1xf32>
    %228 = vector.broadcast %220 : vector<8x1xf32> to vector<8x32xf32>
    %229 = arith.subf %216, %228 : vector<8x32xf32>
    %cst_126 = arith.constant 9.99999974E-6 : f32
    %230 = vector.broadcast %cst_126 : f32 to vector<8x1xf32>
    %231 = arith.addf %227, %230 : vector<8x1xf32>
    %232 = math.rsqrt %231 : vector<8x1xf32>
    %233 = vector.broadcast %232 : vector<8x1xf32> to vector<8x32xf32>
    %234 = arith.mulf %229, %233 : vector<8x32xf32>
    %c0_127 = arith.constant 0 : index
    %c0_128 = arith.constant 0 : index
    %235 = vector.load %arg13[%c0_127, %c0_128] : memref<1x32xf32, #tpu.memory_space<vmem>>, vector<1x32xf32>
    %236 = vector.broadcast %235 : vector<1x32xf32> to vector<8x32xf32>
    %237 = arith.mulf %234, %236 : vector<8x32xf32>
    %c0_129 = arith.constant 0 : index
    %c0_130 = arith.constant 0 : index
    %238 = vector.load %arg14[%c0_129, %c0_130] : memref<1x32xf32, #tpu.memory_space<vmem>>, vector<1x32xf32>
    %239 = vector.broadcast %238 : vector<1x32xf32> to vector<8x32xf32>
    %240 = arith.addf %237, %239 : vector<8x32xf32>
    %c0_131 = arith.constant 0 : index
    %c0_132 = arith.constant 0 : index
    %c0_133 = arith.constant 0 : index
    %241 = vector.load %arg15[%c0_131, %c0_132, %c0_133] : memref<1x8x32xf32, #tpu.memory_space<vmem>>, vector<1x8x32xf32>
    %242 = vector.shape_cast %241 : vector<1x8x32xf32> to vector<8x32xf32>
    %243 = vector.shape_cast %240 : vector<8x32xf32> to vector<1x8x32xf32>
    tpu.vector_store %arg15[%c0_131, %c0_132, %c0_133], %243 {strides = array<i32>} : memref<1x8x32xf32, #tpu.memory_space<vmem>>, vector<1x8x32xf32>,
    return
  }
  func.func @transform_0(%arg0: i32) -> (i32, i32, i32) {
    %c0_i32 = arith.constant 0 : i32
    %c0_i32_0 = arith.constant 0 : i32
    %c0_i32_1 = arith.constant 0 : i32
    return %arg0, %c0_i32, %c0_i32_0 : i32, i32, i32
  }
  func.func @transform_1(%arg0: i32) -> (i32, i32, i32) {
    %c0_i32 = arith.constant 0 : i32
    %c0_i32_0 = arith.constant 0 : i32
    %c0_i32_1 = arith.constant 0 : i32
    return %arg0, %c0_i32, %c0_i32_0 : i32, i32, i32
  }
  func.func @transform_2(%arg0: i32) -> (i32, i32, i32) {
    %c0_i32 = arith.constant 0 : i32
    %c0_i32_0 = arith.constant 0 : i32
    %c0_i32_1 = arith.constant 0 : i32
    %c0_i32_2 = arith.constant 0 : i32
    return %c0_i32, %c0_i32_0, %c0_i32_1 : i32, i32, i32
  }
  func.func @transform_3(%arg0: i32) -> (i32, i32, i32) {
    %c0_i32 = arith.constant 0 : i32
    %c0_i32_0 = arith.constant 0 : i32
    %c0_i32_1 = arith.constant 0 : i32
    %c0_i32_2 = arith.constant 0 : i32
    return %c0_i32, %c0_i32_0, %c0_i32_1 : i32, i32, i32
  }
  func.func @transform_4(%arg0: i32) -> (i32, i32) {
    %c0_i32 = arith.constant 0 : i32
    %c0_i32_0 = arith.constant 0 : i32
    %c0_i32_1 = arith.constant 0 : i32
    return %c0_i32, %c0_i32_0 : i32, i32
  }
  func.func @transform_5(%arg0: i32) -> (i32, i32) {
    %c0_i32 = arith.constant 0 : i32
    %c0_i32_0 = arith.constant 0 : i32
    %c0_i32_1 = arith.constant 0 : i32
    return %c0_i32, %c0_i32_0 : i32, i32
  }
  func.func @transform_6(%arg0: i32) -> (i32, i32) {
    %c0_i32 = arith.constant 0 : i32
    %c0_i32_0 = arith.constant 0 : i32
    %c0_i32_1 = arith.constant 0 : i32
    return %c0_i32, %c0_i32_0 : i32, i32
  }
  func.func @transform_7(%arg0: i32) -> (i32, i32) {
    %c0_i32 = arith.constant 0 : i32
    %c0_i32_0 = arith.constant 0 : i32
    %c0_i32_1 = arith.constant 0 : i32
    return %c0_i32, %c0_i32_0 : i32, i32
  }
  func.func @transform_8(%arg0: i32) -> (i32, i32) {
    %c0_i32 = arith.constant 0 : i32
    %c0_i32_0 = arith.constant 0 : i32
    %c0_i32_1 = arith.constant 0 : i32
    return %c0_i32, %c0_i32_0 : i32, i32
  }
  func.func @transform_9(%arg0: i32) -> (i32, i32) {
    %c0_i32 = arith.constant 0 : i32
    %c0_i32_0 = arith.constant 0 : i32
    %c0_i32_1 = arith.constant 0 : i32
    return %c0_i32, %c0_i32_0 : i32, i32
  }
  func.func @transform_10(%arg0: i32) -> (i32, i32) {
    %c0_i32 = arith.constant 0 : i32
    %c0_i32_0 = arith.constant 0 : i32
    %c0_i32_1 = arith.constant 0 : i32
    return %c0_i32, %c0_i32_0 : i32, i32
  }
  func.func @transform_11(%arg0: i32) -> (i32, i32) {
    %c0_i32 = arith.constant 0 : i32
    %c0_i32_0 = arith.constant 0 : i32
    %c0_i32_1 = arith.constant 0 : i32
    return %c0_i32, %c0_i32_0 : i32, i32
  }
  func.func @transform_12(%arg0: i32) -> (i32, i32) {
    %c0_i32 = arith.constant 0 : i32
    %c0_i32_0 = arith.constant 0 : i32
    %c0_i32_1 = arith.constant 0 : i32
    return %c0_i32, %c0_i32_0 : i32, i32
  }
  func.func @transform_13(%arg0: i32) -> (i32, i32) {
    %c0_i32 = arith.constant 0 : i32
    %c0_i32_0 = arith.constant 0 : i32
    %c0_i32_1 = arith.constant 0 : i32
    return %c0_i32, %c0_i32_0 : i32, i32
  }
  func.func @transform_14(%arg0: i32) -> (i32, i32, i32) {
    %c0_i32 = arith.constant 0 : i32
    %c0_i32_0 = arith.constant 0 : i32
    %c0_i32_1 = arith.constant 0 : i32
    return %arg0, %c0_i32, %c0_i32_0 : i32, i32, i32
  }
}

module attributes {stable_mosaic.version = 11 : i64} {
  func.func @_decoder_layer_kernel(%arg0: i32, %arg1: memref<1x8x32xf32, #tpu.memory_space<vmem>>, %arg2: memref<1x8x32xf32, #tpu.memory_space<vmem>>, %arg3: memref<1x1x8xf32, #tpu.memory_space<vmem>>, %arg4: memref<12x32x8xbf16, #tpu.memory_space<vmem>>, %arg5: memref<12x1x8xf32, #tpu.memory_space<vmem>>, %arg6: memref<32x32xbf16, #tpu.memory_space<vmem>>, %arg7: memref<1x32xf32, #tpu.memory_space<vmem>>, %arg8: memref<1x32xf32, #tpu.memory_space<vmem>>, %arg9: memref<1x32xf32, #tpu.memory_space<vmem>>, %arg10: memref<12x32x8xbf16, #tpu.memory_space<vmem>>, %arg11: memref<12x1x8xf32, #tpu.memory_space<vmem>>, %arg12: memref<32x32xbf16, #tpu.memory_space<vmem>>, %arg13: memref<1x32xf32, #tpu.memory_space<vmem>>, %arg14: memref<1x32xf32, #tpu.memory_space<vmem>>, %arg15: memref<1x32xf32, #tpu.memory_space<vmem>>, %arg16: memref<32x64xbf16, #tpu.memory_space<vmem>>, %arg17: memref<1x64xf32, #tpu.memory_space<vmem>>, %arg18: memref<64x32xbf16, #tpu.memory_space<vmem>>, %arg19: memref<1x32xf32, #tpu.memory_space<vmem>>, %arg20: memref<1x32xf32, #tpu.memory_space<vmem>>, %arg21: memref<1x32xf32, #tpu.memory_space<vmem>>, %arg22: memref<1x8x32xf32, #tpu.memory_space<vmem>>) attributes {dimension_semantics = [#tpu.dimension_semantics<parallel>], iteration_bounds = array<i64: 2>, scalar_prefetch = 0 : i64, scratch_operands = 0 : i64, tpu.core_type = #tpu.core_type<tc>, window_params = [{transform_indices = @transform_0, window_bounds = array<i64: 1, 8, 32>}, {transform_indices = @transform_1, window_bounds = array<i64: 1, 8, 32>}, {transform_indices = @transform_2, window_bounds = array<i64: 1, 1, 8>}, {pipeline_mode = #tpu.pipeline_mode<synchronous>, transform_indices = @transform_3, window_bounds = array<i64: 12, 32, 8>}, {pipeline_mode = #tpu.pipeline_mode<synchronous>, transform_indices = @transform_4, window_bounds = array<i64: 12, 1, 8>}, {pipeline_mode = #tpu.pipeline_mode<synchronous>, transform_indices = @transform_5, window_bounds = array<i64: 32, 32>}, {pipeline_mode = #tpu.pipeline_mode<synchronous>, transform_indices = @transform_6, window_bounds = array<i64: 1, 32>}, {pipeline_mode = #tpu.pipeline_mode<synchronous>, transform_indices = @transform_7, window_bounds = array<i64: 1, 32>}, {pipeline_mode = #tpu.pipeline_mode<synchronous>, transform_indices = @transform_8, window_bounds = array<i64: 1, 32>}, {pipeline_mode = #tpu.pipeline_mode<synchronous>, transform_indices = @transform_9, window_bounds = array<i64: 12, 32, 8>}, {pipeline_mode = #tpu.pipeline_mode<synchronous>, transform_indices = @transform_10, window_bounds = array<i64: 12, 1, 8>}, {pipeline_mode = #tpu.pipeline_mode<synchronous>, transform_indices = @transform_11, window_bounds = array<i64: 32, 32>}, {pipeline_mode = #tpu.pipeline_mode<synchronous>, transform_indices = @transform_12, window_bounds = array<i64: 1, 32>}, {pipeline_mode = #tpu.pipeline_mode<synchronous>, transform_indices = @transform_13, window_bounds = array<i64: 1, 32>}, {pipeline_mode = #tpu.pipeline_mode<synchronous>, transform_indices = @transform_14, window_bounds = array<i64: 1, 32>}, {pipeline_mode = #tpu.pipeline_mode<synchronous>, transform_indices = @transform_15, window_bounds = array<i64: 32, 64>}, {pipeline_mode = #tpu.pipeline_mode<synchronous>, transform_indices = @transform_16, window_bounds = array<i64: 1, 64>}, {pipeline_mode = #tpu.pipeline_mode<synchronous>, transform_indices = @transform_17, window_bounds = array<i64: 64, 32>}, {pipeline_mode = #tpu.pipeline_mode<synchronous>, transform_indices = @transform_18, window_bounds = array<i64: 1, 32>}, {pipeline_mode = #tpu.pipeline_mode<synchronous>, transform_indices = @transform_19, window_bounds = array<i64: 1, 32>}, {pipeline_mode = #tpu.pipeline_mode<synchronous>, transform_indices = @transform_20, window_bounds = array<i64: 1, 32>}, {transform_indices = @transform_21, window_bounds = array<i64: 1, 8, 32>}]} {
    %c0 = arith.constant 0 : index
    %c0_0 = arith.constant 0 : index
    %c0_1 = arith.constant 0 : index
    %0 = vector.load %arg1[%c0, %c0_0, %c0_1] : memref<1x8x32xf32, #tpu.memory_space<vmem>>, vector<1x8x32xf32>
    %1 = vector.shape_cast %0 : vector<1x8x32xf32> to vector<8x32xf32>
    %c0_2 = arith.constant 0 : index
    %c0_3 = arith.constant 0 : index
    %c0_4 = arith.constant 0 : index
    %2 = vector.load %arg2[%c0_2, %c0_3, %c0_4] : memref<1x8x32xf32, #tpu.memory_space<vmem>>, vector<1x8x32xf32>
    %3 = vector.shape_cast %2 : vector<1x8x32xf32> to vector<8x32xf32>
    %4 = arith.truncf %1 : vector<8x32xf32> to vector<8x32xbf16>
    %5 = arith.truncf %1 : vector<8x32xf32> to vector<8x32xbf16>
    %c0_5 = arith.constant 0 : index
    %c0_6 = arith.constant 0 : index
    %c0_7 = arith.constant 0 : index
    %6 = vector.load %arg4[%c0_5, %c0_6, %c0_7] : memref<12x32x8xbf16, #tpu.memory_space<vmem>>, vector<1x32x8xbf16>
    %7 = vector.shape_cast %6 : vector<1x32x8xbf16> to vector<32x8xbf16>
    %cst = arith.constant dense<0.000000e+00> : vector<8x8xf32>
    %8 = tpu.matmul %4, %7, %cst {dimension_numbers = #tpu.dot_dimension_numbers<[1], [0], [0], [1], [0, 0, 1, 1], [], []>} : vector<8x32xbf16>, vector<32x8xbf16>, vector<8x8xf32> -> vector<8x8xf32>
    %c0_8 = arith.constant 0 : index
    %c0_9 = arith.constant 0 : index
    %c0_10 = arith.constant 0 : index
    %9 = vector.load %arg5[%c0_8, %c0_9, %c0_10] : memref<12x1x8xf32, #tpu.memory_space<vmem>>, vector<1x1x8xf32>
    %10 = vector.shape_cast %9 : vector<1x1x8xf32> to vector<1x8xf32>
    %11 = vector.broadcast %10 : vector<1x8xf32> to vector<8x8xf32>
    %12 = arith.addf %8, %11 : vector<8x8xf32>
    %c4 = arith.constant 4 : index
    %c0_11 = arith.constant 0 : index
    %c0_12 = arith.constant 0 : index
    %13 = vector.load %arg4[%c4, %c0_11, %c0_12] : memref<12x32x8xbf16, #tpu.memory_space<vmem>>, vector<1x32x8xbf16>
    %14 = vector.shape_cast %13 : vector<1x32x8xbf16> to vector<32x8xbf16>
    %cst_13 = arith.constant dense<0.000000e+00> : vector<8x8xf32>
    %15 = tpu.matmul %5, %14, %cst_13 {dimension_numbers = #tpu.dot_dimension_numbers<[1], [0], [0], [1], [0, 0, 1, 1], [], []>} : vector<8x32xbf16>, vector<32x8xbf16>, vector<8x8xf32> -> vector<8x8xf32>
    %c4_14 = arith.constant 4 : index
    %c0_15 = arith.constant 0 : index
    %c0_16 = arith.constant 0 : index
    %16 = vector.load %arg5[%c4_14, %c0_15, %c0_16] : memref<12x1x8xf32, #tpu.memory_space<vmem>>, vector<1x1x8xf32>
    %17 = vector.shape_cast %16 : vector<1x1x8xf32> to vector<1x8xf32>
    %18 = vector.broadcast %17 : vector<1x8xf32> to vector<8x8xf32>
    %19 = arith.addf %15, %18 : vector<8x8xf32>
    %c8 = arith.constant 8 : index
    %c0_17 = arith.constant 0 : index
    %c0_18 = arith.constant 0 : index
    %20 = vector.load %arg4[%c8, %c0_17, %c0_18] : memref<12x32x8xbf16, #tpu.memory_space<vmem>>, vector<1x32x8xbf16>
    %21 = vector.shape_cast %20 : vector<1x32x8xbf16> to vector<32x8xbf16>
    %cst_19 = arith.constant dense<0.000000e+00> : vector<8x8xf32>
    %22 = tpu.matmul %5, %21, %cst_19 {dimension_numbers = #tpu.dot_dimension_numbers<[1], [0], [0], [1], [0, 0, 1, 1], [], []>} : vector<8x32xbf16>, vector<32x8xbf16>, vector<8x8xf32> -> vector<8x8xf32>
    %c8_20 = arith.constant 8 : index
    %c0_21 = arith.constant 0 : index
    %c0_22 = arith.constant 0 : index
    %23 = vector.load %arg5[%c8_20, %c0_21, %c0_22] : memref<12x1x8xf32, #tpu.memory_space<vmem>>, vector<1x1x8xf32>
    %24 = vector.shape_cast %23 : vector<1x1x8xf32> to vector<1x8xf32>
    %25 = vector.broadcast %24 : vector<1x8xf32> to vector<8x8xf32>
    %26 = arith.addf %22, %25 : vector<8x8xf32>
    %27 = arith.truncf %12 : vector<8x8xf32> to vector<8x8xbf16>
    %28 = arith.truncf %19 : vector<8x8xf32> to vector<8x8xbf16>
    %cst_23 = arith.constant dense<0.000000e+00> : vector<8x8xf32>
    %29 = tpu.matmul %27, %28, %cst_23 {dimension_numbers = #tpu.dot_dimension_numbers<[1], [1], [0], [0], [0, 0, 1, 0], [], []>} : vector<8x8xbf16>, vector<8x8xbf16>, vector<8x8xf32> -> vector<8x8xf32>
    %cst_24 = arith.constant 0.353553385 : f32
    %30 = vector.broadcast %cst_24 : f32 to vector<8x8xf32>
    %31 = arith.mulf %29, %30 : vector<8x8xf32>
    %32 = tpu.iota {dimensions = array<i32: 0>} : vector<8x8xi32>
    %c0_i32 = arith.constant 0 : i32
    %33 = vector.broadcast %c0_i32 : i32 to vector<8x8xi32>
    %34 = arith.addi %32, %33 : vector<8x8xi32>
    %35 = tpu.iota {dimensions = array<i32: 1>} : vector<8x8xi32>
    %36 = arith.cmpi sle, %35, %34 : vector<8x8xi32>
    %cst_25 = arith.constant -1.000000e+09 : f32
    %37 = vector.broadcast %cst_25 : f32 to vector<8x8xf32>
    %38 = arith.select %36, %31, %37 : vector<8x8xi1>, vector<8x8xf32>
    %cst_26 = arith.constant dense<0xFF800000> : vector<8xf32>
    %39 = vector.multi_reduction <maximumf>, %38, %cst_26 [1] : vector<8x8xf32> to vector<8xf32>
    %40 = vector.shape_cast %39 : vector<8xf32> to vector<8x1xf32>
    %41 = vector.broadcast %40 : vector<8x1xf32> to vector<8x8xf32>
    %42 = arith.subf %38, %41 : vector<8x8xf32>
    %43 = math.exp %42 : vector<8x8xf32>
    %cst_27 = arith.constant dense<0.000000e+00> : vector<8xf32>
    %44 = vector.multi_reduction <add>, %43, %cst_27 [1] : vector<8x8xf32> to vector<8xf32>
    %45 = vector.shape_cast %44 : vector<8xf32> to vector<8x1xf32>
    %46 = tpu.reciprocal %45 {approx = true} : vector<8x1xf32> -> vector<8x1xf32>
    %47 = vector.broadcast %46 : vector<8x1xf32> to vector<8x8xf32>
    %48 = arith.mulf %43, %47 : vector<8x8xf32>
    %49 = arith.truncf %48 : vector<8x8xf32> to vector<8x8xbf16>
    %50 = arith.truncf %26 : vector<8x8xf32> to vector<8x8xbf16>
    %cst_28 = arith.constant dense<0.000000e+00> : vector<8x8xf32>
    %51 = tpu.matmul %49, %50, %cst_28 {dimension_numbers = #tpu.dot_dimension_numbers<[1], [0], [0], [1], [0, 0, 1, 1], [], []>} : vector<8x8xbf16>, vector<8x8xbf16>, vector<8x8xf32> -> vector<8x8xf32>
    %c1 = arith.constant 1 : index
    %c0_29 = arith.constant 0 : index
    %c0_30 = arith.constant 0 : index
    %52 = vector.load %arg4[%c1, %c0_29, %c0_30] : memref<12x32x8xbf16, #tpu.memory_space<vmem>>, vector<1x32x8xbf16>
    %53 = vector.shape_cast %52 : vector<1x32x8xbf16> to vector<32x8xbf16>
    %cst_31 = arith.constant dense<0.000000e+00> : vector<8x8xf32>
    %54 = tpu.matmul %4, %53, %cst_31 {dimension_numbers = #tpu.dot_dimension_numbers<[1], [0], [0], [1], [0, 0, 1, 1], [], []>} : vector<8x32xbf16>, vector<32x8xbf16>, vector<8x8xf32> -> vector<8x8xf32>
    %c1_32 = arith.constant 1 : index
    %c0_33 = arith.constant 0 : index
    %c0_34 = arith.constant 0 : index
    %55 = vector.load %arg5[%c1_32, %c0_33, %c0_34] : memref<12x1x8xf32, #tpu.memory_space<vmem>>, vector<1x1x8xf32>
    %56 = vector.shape_cast %55 : vector<1x1x8xf32> to vector<1x8xf32>
    %57 = vector.broadcast %56 : vector<1x8xf32> to vector<8x8xf32>
    %58 = arith.addf %54, %57 : vector<8x8xf32>
    %c5 = arith.constant 5 : index
    %c0_35 = arith.constant 0 : index
    %c0_36 = arith.constant 0 : index
    %59 = vector.load %arg4[%c5, %c0_35, %c0_36] : memref<12x32x8xbf16, #tpu.memory_space<vmem>>, vector<1x32x8xbf16>
    %60 = vector.shape_cast %59 : vector<1x32x8xbf16> to vector<32x8xbf16>
    %cst_37 = arith.constant dense<0.000000e+00> : vector<8x8xf32>
    %61 = tpu.matmul %5, %60, %cst_37 {dimension_numbers = #tpu.dot_dimension_numbers<[1], [0], [0], [1], [0, 0, 1, 1], [], []>} : vector<8x32xbf16>, vector<32x8xbf16>, vector<8x8xf32> -> vector<8x8xf32>
    %c5_38 = arith.constant 5 : index
    %c0_39 = arith.constant 0 : index
    %c0_40 = arith.constant 0 : index
    %62 = vector.load %arg5[%c5_38, %c0_39, %c0_40] : memref<12x1x8xf32, #tpu.memory_space<vmem>>, vector<1x1x8xf32>
    %63 = vector.shape_cast %62 : vector<1x1x8xf32> to vector<1x8xf32>
    %64 = vector.broadcast %63 : vector<1x8xf32> to vector<8x8xf32>
    %65 = arith.addf %61, %64 : vector<8x8xf32>
    %c9 = arith.constant 9 : index
    %c0_41 = arith.constant 0 : index
    %c0_42 = arith.constant 0 : index
    %66 = vector.load %arg4[%c9, %c0_41, %c0_42] : memref<12x32x8xbf16, #tpu.memory_space<vmem>>, vector<1x32x8xbf16>
    %67 = vector.shape_cast %66 : vector<1x32x8xbf16> to vector<32x8xbf16>
    %cst_43 = arith.constant dense<0.000000e+00> : vector<8x8xf32>
    %68 = tpu.matmul %5, %67, %cst_43 {dimension_numbers = #tpu.dot_dimension_numbers<[1], [0], [0], [1], [0, 0, 1, 1], [], []>} : vector<8x32xbf16>, vector<32x8xbf16>, vector<8x8xf32> -> vector<8x8xf32>
    %c9_44 = arith.constant 9 : index
    %c0_45 = arith.constant 0 : index
    %c0_46 = arith.constant 0 : index
    %69 = vector.load %arg5[%c9_44, %c0_45, %c0_46] : memref<12x1x8xf32, #tpu.memory_space<vmem>>, vector<1x1x8xf32>
    %70 = vector.shape_cast %69 : vector<1x1x8xf32> to vector<1x8xf32>
    %71 = vector.broadcast %70 : vector<1x8xf32> to vector<8x8xf32>
    %72 = arith.addf %68, %71 : vector<8x8xf32>
    %73 = arith.truncf %58 : vector<8x8xf32> to vector<8x8xbf16>
    %74 = arith.truncf %65 : vector<8x8xf32> to vector<8x8xbf16>
    %cst_47 = arith.constant dense<0.000000e+00> : vector<8x8xf32>
    %75 = tpu.matmul %73, %74, %cst_47 {dimension_numbers = #tpu.dot_dimension_numbers<[1], [1], [0], [0], [0, 0, 1, 0], [], []>} : vector<8x8xbf16>, vector<8x8xbf16>, vector<8x8xf32> -> vector<8x8xf32>
    %cst_48 = arith.constant 0.353553385 : f32
    %76 = vector.broadcast %cst_48 : f32 to vector<8x8xf32>
    %77 = arith.mulf %75, %76 : vector<8x8xf32>
    %78 = tpu.iota {dimensions = array<i32: 0>} : vector<8x8xi32>
    %c0_i32_49 = arith.constant 0 : i32
    %79 = vector.broadcast %c0_i32_49 : i32 to vector<8x8xi32>
    %80 = arith.addi %78, %79 : vector<8x8xi32>
    %81 = tpu.iota {dimensions = array<i32: 1>} : vector<8x8xi32>
    %82 = arith.cmpi sle, %81, %80 : vector<8x8xi32>
    %cst_50 = arith.constant -1.000000e+09 : f32
    %83 = vector.broadcast %cst_50 : f32 to vector<8x8xf32>
    %84 = arith.select %82, %77, %83 : vector<8x8xi1>, vector<8x8xf32>
    %cst_51 = arith.constant dense<0xFF800000> : vector<8xf32>
    %85 = vector.multi_reduction <maximumf>, %84, %cst_51 [1] : vector<8x8xf32> to vector<8xf32>
    %86 = vector.shape_cast %85 : vector<8xf32> to vector<8x1xf32>
    %87 = vector.broadcast %86 : vector<8x1xf32> to vector<8x8xf32>
    %88 = arith.subf %84, %87 : vector<8x8xf32>
    %89 = math.exp %88 : vector<8x8xf32>
    %cst_52 = arith.constant dense<0.000000e+00> : vector<8xf32>
    %90 = vector.multi_reduction <add>, %89, %cst_52 [1] : vector<8x8xf32> to vector<8xf32>
    %91 = vector.shape_cast %90 : vector<8xf32> to vector<8x1xf32>
    %92 = tpu.reciprocal %91 {approx = true} : vector<8x1xf32> -> vector<8x1xf32>
    %93 = vector.broadcast %92 : vector<8x1xf32> to vector<8x8xf32>
    %94 = arith.mulf %89, %93 : vector<8x8xf32>
    %95 = arith.truncf %94 : vector<8x8xf32> to vector<8x8xbf16>
    %96 = arith.truncf %72 : vector<8x8xf32> to vector<8x8xbf16>
    %cst_53 = arith.constant dense<0.000000e+00> : vector<8x8xf32>
    %97 = tpu.matmul %95, %96, %cst_53 {dimension_numbers = #tpu.dot_dimension_numbers<[1], [0], [0], [1], [0, 0, 1, 1], [], []>} : vector<8x8xbf16>, vector<8x8xbf16>, vector<8x8xf32> -> vector<8x8xf32>
    %c2 = arith.constant 2 : index
    %c0_54 = arith.constant 0 : index
    %c0_55 = arith.constant 0 : index
    %98 = vector.load %arg4[%c2, %c0_54, %c0_55] : memref<12x32x8xbf16, #tpu.memory_space<vmem>>, vector<1x32x8xbf16>
    %99 = vector.shape_cast %98 : vector<1x32x8xbf16> to vector<32x8xbf16>
    %cst_56 = arith.constant dense<0.000000e+00> : vector<8x8xf32>
    %100 = tpu.matmul %4, %99, %cst_56 {dimension_numbers = #tpu.dot_dimension_numbers<[1], [0], [0], [1], [0, 0, 1, 1], [], []>} : vector<8x32xbf16>, vector<32x8xbf16>, vector<8x8xf32> -> vector<8x8xf32>
    %c2_57 = arith.constant 2 : index
    %c0_58 = arith.constant 0 : index
    %c0_59 = arith.constant 0 : index
    %101 = vector.load %arg5[%c2_57, %c0_58, %c0_59] : memref<12x1x8xf32, #tpu.memory_space<vmem>>, vector<1x1x8xf32>
    %102 = vector.shape_cast %101 : vector<1x1x8xf32> to vector<1x8xf32>
    %103 = vector.broadcast %102 : vector<1x8xf32> to vector<8x8xf32>
    %104 = arith.addf %100, %103 : vector<8x8xf32>
    %c6 = arith.constant 6 : index
    %c0_60 = arith.constant 0 : index
    %c0_61 = arith.constant 0 : index
    %105 = vector.load %arg4[%c6, %c0_60, %c0_61] : memref<12x32x8xbf16, #tpu.memory_space<vmem>>, vector<1x32x8xbf16>
    %106 = vector.shape_cast %105 : vector<1x32x8xbf16> to vector<32x8xbf16>
    %cst_62 = arith.constant dense<0.000000e+00> : vector<8x8xf32>
    %107 = tpu.matmul %5, %106, %cst_62 {dimension_numbers = #tpu.dot_dimension_numbers<[1], [0], [0], [1], [0, 0, 1, 1], [], []>} : vector<8x32xbf16>, vector<32x8xbf16>, vector<8x8xf32> -> vector<8x8xf32>
    %c6_63 = arith.constant 6 : index
    %c0_64 = arith.constant 0 : index
    %c0_65 = arith.constant 0 : index
    %108 = vector.load %arg5[%c6_63, %c0_64, %c0_65] : memref<12x1x8xf32, #tpu.memory_space<vmem>>, vector<1x1x8xf32>
    %109 = vector.shape_cast %108 : vector<1x1x8xf32> to vector<1x8xf32>
    %110 = vector.broadcast %109 : vector<1x8xf32> to vector<8x8xf32>
    %111 = arith.addf %107, %110 : vector<8x8xf32>
    %c10 = arith.constant 10 : index
    %c0_66 = arith.constant 0 : index
    %c0_67 = arith.constant 0 : index
    %112 = vector.load %arg4[%c10, %c0_66, %c0_67] : memref<12x32x8xbf16, #tpu.memory_space<vmem>>, vector<1x32x8xbf16>
    %113 = vector.shape_cast %112 : vector<1x32x8xbf16> to vector<32x8xbf16>
    %cst_68 = arith.constant dense<0.000000e+00> : vector<8x8xf32>
    %114 = tpu.matmul %5, %113, %cst_68 {dimension_numbers = #tpu.dot_dimension_numbers<[1], [0], [0], [1], [0, 0, 1, 1], [], []>} : vector<8x32xbf16>, vector<32x8xbf16>, vector<8x8xf32> -> vector<8x8xf32>
    %c10_69 = arith.constant 10 : index
    %c0_70 = arith.constant 0 : index
    %c0_71 = arith.constant 0 : index
    %115 = vector.load %arg5[%c10_69, %c0_70, %c0_71] : memref<12x1x8xf32, #tpu.memory_space<vmem>>, vector<1x1x8xf32>
    %116 = vector.shape_cast %115 : vector<1x1x8xf32> to vector<1x8xf32>
    %117 = vector.broadcast %116 : vector<1x8xf32> to vector<8x8xf32>
    %118 = arith.addf %114, %117 : vector<8x8xf32>
    %119 = arith.truncf %104 : vector<8x8xf32> to vector<8x8xbf16>
    %120 = arith.truncf %111 : vector<8x8xf32> to vector<8x8xbf16>
    %cst_72 = arith.constant dense<0.000000e+00> : vector<8x8xf32>
    %121 = tpu.matmul %119, %120, %cst_72 {dimension_numbers = #tpu.dot_dimension_numbers<[1], [1], [0], [0], [0, 0, 1, 0], [], []>} : vector<8x8xbf16>, vector<8x8xbf16>, vector<8x8xf32> -> vector<8x8xf32>
    %cst_73 = arith.constant 0.353553385 : f32
    %122 = vector.broadcast %cst_73 : f32 to vector<8x8xf32>
    %123 = arith.mulf %121, %122 : vector<8x8xf32>
    %124 = tpu.iota {dimensions = array<i32: 0>} : vector<8x8xi32>
    %c0_i32_74 = arith.constant 0 : i32
    %125 = vector.broadcast %c0_i32_74 : i32 to vector<8x8xi32>
    %126 = arith.addi %124, %125 : vector<8x8xi32>
    %127 = tpu.iota {dimensions = array<i32: 1>} : vector<8x8xi32>
    %128 = arith.cmpi sle, %127, %126 : vector<8x8xi32>
    %cst_75 = arith.constant -1.000000e+09 : f32
    %129 = vector.broadcast %cst_75 : f32 to vector<8x8xf32>
    %130 = arith.select %128, %123, %129 : vector<8x8xi1>, vector<8x8xf32>
    %cst_76 = arith.constant dense<0xFF800000> : vector<8xf32>
    %131 = vector.multi_reduction <maximumf>, %130, %cst_76 [1] : vector<8x8xf32> to vector<8xf32>
    %132 = vector.shape_cast %131 : vector<8xf32> to vector<8x1xf32>
    %133 = vector.broadcast %132 : vector<8x1xf32> to vector<8x8xf32>
    %134 = arith.subf %130, %133 : vector<8x8xf32>
    %135 = math.exp %134 : vector<8x8xf32>
    %cst_77 = arith.constant dense<0.000000e+00> : vector<8xf32>
    %136 = vector.multi_reduction <add>, %135, %cst_77 [1] : vector<8x8xf32> to vector<8xf32>
    %137 = vector.shape_cast %136 : vector<8xf32> to vector<8x1xf32>
    %138 = tpu.reciprocal %137 {approx = true} : vector<8x1xf32> -> vector<8x1xf32>
    %139 = vector.broadcast %138 : vector<8x1xf32> to vector<8x8xf32>
    %140 = arith.mulf %135, %139 : vector<8x8xf32>
    %141 = arith.truncf %140 : vector<8x8xf32> to vector<8x8xbf16>
    %142 = arith.truncf %118 : vector<8x8xf32> to vector<8x8xbf16>
    %cst_78 = arith.constant dense<0.000000e+00> : vector<8x8xf32>
    %143 = tpu.matmul %141, %142, %cst_78 {dimension_numbers = #tpu.dot_dimension_numbers<[1], [0], [0], [1], [0, 0, 1, 1], [], []>} : vector<8x8xbf16>, vector<8x8xbf16>, vector<8x8xf32> -> vector<8x8xf32>
    %c3 = arith.constant 3 : index
    %c0_79 = arith.constant 0 : index
    %c0_80 = arith.constant 0 : index
    %144 = vector.load %arg4[%c3, %c0_79, %c0_80] : memref<12x32x8xbf16, #tpu.memory_space<vmem>>, vector<1x32x8xbf16>
    %145 = vector.shape_cast %144 : vector<1x32x8xbf16> to vector<32x8xbf16>
    %cst_81 = arith.constant dense<0.000000e+00> : vector<8x8xf32>
    %146 = tpu.matmul %4, %145, %cst_81 {dimension_numbers = #tpu.dot_dimension_numbers<[1], [0], [0], [1], [0, 0, 1, 1], [], []>} : vector<8x32xbf16>, vector<32x8xbf16>, vector<8x8xf32> -> vector<8x8xf32>
    %c3_82 = arith.constant 3 : index
    %c0_83 = arith.constant 0 : index
    %c0_84 = arith.constant 0 : index
    %147 = vector.load %arg5[%c3_82, %c0_83, %c0_84] : memref<12x1x8xf32, #tpu.memory_space<vmem>>, vector<1x1x8xf32>
    %148 = vector.shape_cast %147 : vector<1x1x8xf32> to vector<1x8xf32>
    %149 = vector.broadcast %148 : vector<1x8xf32> to vector<8x8xf32>
    %150 = arith.addf %146, %149 : vector<8x8xf32>
    %c7 = arith.constant 7 : index
    %c0_85 = arith.constant 0 : index
    %c0_86 = arith.constant 0 : index
    %151 = vector.load %arg4[%c7, %c0_85, %c0_86] : memref<12x32x8xbf16, #tpu.memory_space<vmem>>, vector<1x32x8xbf16>
    %152 = vector.shape_cast %151 : vector<1x32x8xbf16> to vector<32x8xbf16>
    %cst_87 = arith.constant dense<0.000000e+00> : vector<8x8xf32>
    %153 = tpu.matmul %5, %152, %cst_87 {dimension_numbers = #tpu.dot_dimension_numbers<[1], [0], [0], [1], [0, 0, 1, 1], [], []>} : vector<8x32xbf16>, vector<32x8xbf16>, vector<8x8xf32> -> vector<8x8xf32>
    %c7_88 = arith.constant 7 : index
    %c0_89 = arith.constant 0 : index
    %c0_90 = arith.constant 0 : index
    %154 = vector.load %arg5[%c7_88, %c0_89, %c0_90] : memref<12x1x8xf32, #tpu.memory_space<vmem>>, vector<1x1x8xf32>
    %155 = vector.shape_cast %154 : vector<1x1x8xf32> to vector<1x8xf32>
    %156 = vector.broadcast %155 : vector<1x8xf32> to vector<8x8xf32>
    %157 = arith.addf %153, %156 : vector<8x8xf32>
    %c11 = arith.constant 11 : index
    %c0_91 = arith.constant 0 : index
    %c0_92 = arith.constant 0 : index
    %158 = vector.load %arg4[%c11, %c0_91, %c0_92] : memref<12x32x8xbf16, #tpu.memory_space<vmem>>, vector<1x32x8xbf16>
    %159 = vector.shape_cast %158 : vector<1x32x8xbf16> to vector<32x8xbf16>
    %cst_93 = arith.constant dense<0.000000e+00> : vector<8x8xf32>
    %160 = tpu.matmul %5, %159, %cst_93 {dimension_numbers = #tpu.dot_dimension_numbers<[1], [0], [0], [1], [0, 0, 1, 1], [], []>} : vector<8x32xbf16>, vector<32x8xbf16>, vector<8x8xf32> -> vector<8x8xf32>
    %c11_94 = arith.constant 11 : index
    %c0_95 = arith.constant 0 : index
    %c0_96 = arith.constant 0 : index
    %161 = vector.load %arg5[%c11_94, %c0_95, %c0_96] : memref<12x1x8xf32, #tpu.memory_space<vmem>>, vector<1x1x8xf32>
    %162 = vector.shape_cast %161 : vector<1x1x8xf32> to vector<1x8xf32>
    %163 = vector.broadcast %162 : vector<1x8xf32> to vector<8x8xf32>
    %164 = arith.addf %160, %163 : vector<8x8xf32>
    %165 = arith.truncf %150 : vector<8x8xf32> to vector<8x8xbf16>
    %166 = arith.truncf %157 : vector<8x8xf32> to vector<8x8xbf16>
    %cst_97 = arith.constant dense<0.000000e+00> : vector<8x8xf32>
    %167 = tpu.matmul %165, %166, %cst_97 {dimension_numbers = #tpu.dot_dimension_numbers<[1], [1], [0], [0], [0, 0, 1, 0], [], []>} : vector<8x8xbf16>, vector<8x8xbf16>, vector<8x8xf32> -> vector<8x8xf32>
    %cst_98 = arith.constant 0.353553385 : f32
    %168 = vector.broadcast %cst_98 : f32 to vector<8x8xf32>
    %169 = arith.mulf %167, %168 : vector<8x8xf32>
    %170 = tpu.iota {dimensions = array<i32: 0>} : vector<8x8xi32>
    %c0_i32_99 = arith.constant 0 : i32
    %171 = vector.broadcast %c0_i32_99 : i32 to vector<8x8xi32>
    %172 = arith.addi %170, %171 : vector<8x8xi32>
    %173 = tpu.iota {dimensions = array<i32: 1>} : vector<8x8xi32>
    %174 = arith.cmpi sle, %173, %172 : vector<8x8xi32>
    %cst_100 = arith.constant -1.000000e+09 : f32
    %175 = vector.broadcast %cst_100 : f32 to vector<8x8xf32>
    %176 = arith.select %174, %169, %175 : vector<8x8xi1>, vector<8x8xf32>
    %cst_101 = arith.constant dense<0xFF800000> : vector<8xf32>
    %177 = vector.multi_reduction <maximumf>, %176, %cst_101 [1] : vector<8x8xf32> to vector<8xf32>
    %178 = vector.shape_cast %177 : vector<8xf32> to vector<8x1xf32>
    %179 = vector.broadcast %178 : vector<8x1xf32> to vector<8x8xf32>
    %180 = arith.subf %176, %179 : vector<8x8xf32>
    %181 = math.exp %180 : vector<8x8xf32>
    %cst_102 = arith.constant dense<0.000000e+00> : vector<8xf32>
    %182 = vector.multi_reduction <add>, %181, %cst_102 [1] : vector<8x8xf32> to vector<8xf32>
    %183 = vector.shape_cast %182 : vector<8xf32> to vector<8x1xf32>
    %184 = tpu.reciprocal %183 {approx = true} : vector<8x1xf32> -> vector<8x1xf32>
    %185 = vector.broadcast %184 : vector<8x1xf32> to vector<8x8xf32>
    %186 = arith.mulf %181, %185 : vector<8x8xf32>
    %187 = arith.truncf %186 : vector<8x8xf32> to vector<8x8xbf16>
    %188 = arith.truncf %164 : vector<8x8xf32> to vector<8x8xbf16>
    %cst_103 = arith.constant dense<0.000000e+00> : vector<8x8xf32>
    %189 = tpu.matmul %187, %188, %cst_103 {dimension_numbers = #tpu.dot_dimension_numbers<[1], [0], [0], [1], [0, 0, 1, 1], [], []>} : vector<8x8xbf16>, vector<8x8xbf16>, vector<8x8xf32> -> vector<8x8xf32>
    %190 = tpu.concatenate %51, %97, %143, %189 in 1 : vector<8x8xf32>, vector<8x8xf32>, vector<8x8xf32>, vector<8x8xf32> -> vector<8x32xf32>
    %191 = arith.truncf %190 : vector<8x32xf32> to vector<8x32xbf16>
    %c0_104 = arith.constant 0 : index
    %c0_105 = arith.constant 0 : index
    %192 = vector.load %arg6[%c0_104, %c0_105] : memref<32x32xbf16, #tpu.memory_space<vmem>>, vector<32x32xbf16>
    %cst_106 = arith.constant dense<0.000000e+00> : vector<8x32xf32>
    %193 = tpu.matmul %191, %192, %cst_106 {dimension_numbers = #tpu.dot_dimension_numbers<[1], [0], [0], [1], [0, 0, 1, 1], [], []>} : vector<8x32xbf16>, vector<32x32xbf16>, vector<8x32xf32> -> vector<8x32xf32>
    %c0_107 = arith.constant 0 : index
    %c0_108 = arith.constant 0 : index
    %194 = vector.load %arg7[%c0_107, %c0_108] : memref<1x32xf32, #tpu.memory_space<vmem>>, vector<1x32xf32>
    %195 = vector.broadcast %194 : vector<1x32xf32> to vector<8x32xf32>
    %196 = arith.addf %193, %195 : vector<8x32xf32>
    %197 = arith.addf %1, %196 : vector<8x32xf32>
    %cst_109 = arith.constant dense<0.000000e+00> : vector<8xf32>
    %198 = vector.multi_reduction <add>, %197, %cst_109 [1] : vector<8x32xf32> to vector<8xf32>
    %199 = vector.shape_cast %198 : vector<8xf32> to vector<8x1xf32>
    %cst_110 = arith.constant 3.200000e+01 : f32
    %200 = vector.broadcast %cst_110 : f32 to vector<8x1xf32>
    %201 = arith.divf %199, %200 : vector<8x1xf32>
    %202 = vector.broadcast %201 : vector<8x1xf32> to vector<8x32xf32>
    %203 = arith.subf %197, %202 : vector<8x32xf32>
    %204 = arith.mulf %203, %203 : vector<8x32xf32>
    %cst_111 = arith.constant dense<0.000000e+00> : vector<8xf32>
    %205 = vector.multi_reduction <add>, %204, %cst_111 [1] : vector<8x32xf32> to vector<8xf32>
    %206 = vector.shape_cast %205 : vector<8xf32> to vector<8x1xf32>
    %cst_112 = arith.constant 3.200000e+01 : f32
    %207 = vector.broadcast %cst_112 : f32 to vector<8x1xf32>
    %208 = arith.divf %206, %207 : vector<8x1xf32>
    %209 = vector.broadcast %201 : vector<8x1xf32> to vector<8x32xf32>
    %210 = arith.subf %197, %209 : vector<8x32xf32>
    %cst_113 = arith.constant 9.99999974E-6 : f32
    %211 = vector.broadcast %cst_113 : f32 to vector<8x1xf32>
    %212 = arith.addf %208, %211 : vector<8x1xf32>
    %213 = math.rsqrt %212 : vector<8x1xf32>
    %214 = vector.broadcast %213 : vector<8x1xf32> to vector<8x32xf32>
    %215 = arith.mulf %210, %214 : vector<8x32xf32>
    %c0_114 = arith.constant 0 : index
    %c0_115 = arith.constant 0 : index
    %216 = vector.load %arg8[%c0_114, %c0_115] : memref<1x32xf32, #tpu.memory_space<vmem>>, vector<1x32xf32>
    %217 = vector.broadcast %216 : vector<1x32xf32> to vector<8x32xf32>
    %218 = arith.mulf %215, %217 : vector<8x32xf32>
    %c0_116 = arith.constant 0 : index
    %c0_117 = arith.constant 0 : index
    %219 = vector.load %arg9[%c0_116, %c0_117] : memref<1x32xf32, #tpu.memory_space<vmem>>, vector<1x32xf32>
    %220 = vector.broadcast %219 : vector<1x32xf32> to vector<8x32xf32>
    %221 = arith.addf %218, %220 : vector<8x32xf32>
    %c0_118 = arith.constant 0 : index
    %c0_119 = arith.constant 0 : index
    %c0_120 = arith.constant 0 : index
    %222 = vector.load %arg3[%c0_118, %c0_119, %c0_120] : memref<1x1x8xf32, #tpu.memory_space<vmem>>, vector<1x1x8xf32>
    %223 = vector.shape_cast %222 : vector<1x1x8xf32> to vector<1x8xf32>
    %224 = arith.truncf %221 : vector<8x32xf32> to vector<8x32xbf16>
    %225 = arith.truncf %3 : vector<8x32xf32> to vector<8x32xbf16>
    %c0_121 = arith.constant 0 : index
    %c0_122 = arith.constant 0 : index
    %c0_123 = arith.constant 0 : index
    %226 = vector.load %arg10[%c0_121, %c0_122, %c0_123] : memref<12x32x8xbf16, #tpu.memory_space<vmem>>, vector<1x32x8xbf16>
    %227 = vector.shape_cast %226 : vector<1x32x8xbf16> to vector<32x8xbf16>
    %cst_124 = arith.constant dense<0.000000e+00> : vector<8x8xf32>
    %228 = tpu.matmul %224, %227, %cst_124 {dimension_numbers = #tpu.dot_dimension_numbers<[1], [0], [0], [1], [0, 0, 1, 1], [], []>} : vector<8x32xbf16>, vector<32x8xbf16>, vector<8x8xf32> -> vector<8x8xf32>
    %c0_125 = arith.constant 0 : index
    %c0_126 = arith.constant 0 : index
    %c0_127 = arith.constant 0 : index
    %229 = vector.load %arg11[%c0_125, %c0_126, %c0_127] : memref<12x1x8xf32, #tpu.memory_space<vmem>>, vector<1x1x8xf32>
    %230 = vector.shape_cast %229 : vector<1x1x8xf32> to vector<1x8xf32>
    %231 = vector.broadcast %230 : vector<1x8xf32> to vector<8x8xf32>
    %232 = arith.addf %228, %231 : vector<8x8xf32>
    %c4_128 = arith.constant 4 : index
    %c0_129 = arith.constant 0 : index
    %c0_130 = arith.constant 0 : index
    %233 = vector.load %arg10[%c4_128, %c0_129, %c0_130] : memref<12x32x8xbf16, #tpu.memory_space<vmem>>, vector<1x32x8xbf16>
    %234 = vector.shape_cast %233 : vector<1x32x8xbf16> to vector<32x8xbf16>
    %cst_131 = arith.constant dense<0.000000e+00> : vector<8x8xf32>
    %235 = tpu.matmul %225, %234, %cst_131 {dimension_numbers = #tpu.dot_dimension_numbers<[1], [0], [0], [1], [0, 0, 1, 1], [], []>} : vector<8x32xbf16>, vector<32x8xbf16>, vector<8x8xf32> -> vector<8x8xf32>
    %c4_132 = arith.constant 4 : index
    %c0_133 = arith.constant 0 : index
    %c0_134 = arith.constant 0 : index
    %236 = vector.load %arg11[%c4_132, %c0_133, %c0_134] : memref<12x1x8xf32, #tpu.memory_space<vmem>>, vector<1x1x8xf32>
    %237 = vector.shape_cast %236 : vector<1x1x8xf32> to vector<1x8xf32>
    %238 = vector.broadcast %237 : vector<1x8xf32> to vector<8x8xf32>
    %239 = arith.addf %235, %238 : vector<8x8xf32>
    %c8_135 = arith.constant 8 : index
    %c0_136 = arith.constant 0 : index
    %c0_137 = arith.constant 0 : index
    %240 = vector.load %arg10[%c8_135, %c0_136, %c0_137] : memref<12x32x8xbf16, #tpu.memory_space<vmem>>, vector<1x32x8xbf16>
    %241 = vector.shape_cast %240 : vector<1x32x8xbf16> to vector<32x8xbf16>
    %cst_138 = arith.constant dense<0.000000e+00> : vector<8x8xf32>
    %242 = tpu.matmul %225, %241, %cst_138 {dimension_numbers = #tpu.dot_dimension_numbers<[1], [0], [0], [1], [0, 0, 1, 1], [], []>} : vector<8x32xbf16>, vector<32x8xbf16>, vector<8x8xf32> -> vector<8x8xf32>
    %c8_139 = arith.constant 8 : index
    %c0_140 = arith.constant 0 : index
    %c0_141 = arith.constant 0 : index
    %243 = vector.load %arg11[%c8_139, %c0_140, %c0_141] : memref<12x1x8xf32, #tpu.memory_space<vmem>>, vector<1x1x8xf32>
    %244 = vector.shape_cast %243 : vector<1x1x8xf32> to vector<1x8xf32>
    %245 = vector.broadcast %244 : vector<1x8xf32> to vector<8x8xf32>
    %246 = arith.addf %242, %245 : vector<8x8xf32>
    %247 = arith.truncf %232 : vector<8x8xf32> to vector<8x8xbf16>
    %248 = arith.truncf %239 : vector<8x8xf32> to vector<8x8xbf16>
    %cst_142 = arith.constant dense<0.000000e+00> : vector<8x8xf32>
    %249 = tpu.matmul %247, %248, %cst_142 {dimension_numbers = #tpu.dot_dimension_numbers<[1], [1], [0], [0], [0, 0, 1, 0], [], []>} : vector<8x8xbf16>, vector<8x8xbf16>, vector<8x8xf32> -> vector<8x8xf32>
    %cst_143 = arith.constant 0.353553385 : f32
    %250 = vector.broadcast %cst_143 : f32 to vector<8x8xf32>
    %251 = arith.mulf %249, %250 : vector<8x8xf32>
    %252 = vector.broadcast %223 : vector<1x8xf32> to vector<8x8xf32>
    %253 = arith.addf %251, %252 : vector<8x8xf32>
    %cst_144 = arith.constant dense<0xFF800000> : vector<8xf32>
    %254 = vector.multi_reduction <maximumf>, %253, %cst_144 [1] : vector<8x8xf32> to vector<8xf32>
    %255 = vector.shape_cast %254 : vector<8xf32> to vector<8x1xf32>
    %256 = vector.broadcast %255 : vector<8x1xf32> to vector<8x8xf32>
    %257 = arith.subf %253, %256 : vector<8x8xf32>
    %258 = math.exp %257 : vector<8x8xf32>
    %cst_145 = arith.constant dense<0.000000e+00> : vector<8xf32>
    %259 = vector.multi_reduction <add>, %258, %cst_145 [1] : vector<8x8xf32> to vector<8xf32>
    %260 = vector.shape_cast %259 : vector<8xf32> to vector<8x1xf32>
    %261 = tpu.reciprocal %260 {approx = true} : vector<8x1xf32> -> vector<8x1xf32>
    %262 = vector.broadcast %261 : vector<8x1xf32> to vector<8x8xf32>
    %263 = arith.mulf %258, %262 : vector<8x8xf32>
    %264 = arith.truncf %263 : vector<8x8xf32> to vector<8x8xbf16>
    %265 = arith.truncf %246 : vector<8x8xf32> to vector<8x8xbf16>
    %cst_146 = arith.constant dense<0.000000e+00> : vector<8x8xf32>
    %266 = tpu.matmul %264, %265, %cst_146 {dimension_numbers = #tpu.dot_dimension_numbers<[1], [0], [0], [1], [0, 0, 1, 1], [], []>} : vector<8x8xbf16>, vector<8x8xbf16>, vector<8x8xf32> -> vector<8x8xf32>
    %c1_147 = arith.constant 1 : index
    %c0_148 = arith.constant 0 : index
    %c0_149 = arith.constant 0 : index
    %267 = vector.load %arg10[%c1_147, %c0_148, %c0_149] : memref<12x32x8xbf16, #tpu.memory_space<vmem>>, vector<1x32x8xbf16>
    %268 = vector.shape_cast %267 : vector<1x32x8xbf16> to vector<32x8xbf16>
    %cst_150 = arith.constant dense<0.000000e+00> : vector<8x8xf32>
    %269 = tpu.matmul %224, %268, %cst_150 {dimension_numbers = #tpu.dot_dimension_numbers<[1], [0], [0], [1], [0, 0, 1, 1], [], []>} : vector<8x32xbf16>, vector<32x8xbf16>, vector<8x8xf32> -> vector<8x8xf32>
    %c1_151 = arith.constant 1 : index
    %c0_152 = arith.constant 0 : index
    %c0_153 = arith.constant 0 : index
    %270 = vector.load %arg11[%c1_151, %c0_152, %c0_153] : memref<12x1x8xf32, #tpu.memory_space<vmem>>, vector<1x1x8xf32>
    %271 = vector.shape_cast %270 : vector<1x1x8xf32> to vector<1x8xf32>
    %272 = vector.broadcast %271 : vector<1x8xf32> to vector<8x8xf32>
    %273 = arith.addf %269, %272 : vector<8x8xf32>
    %c5_154 = arith.constant 5 : index
    %c0_155 = arith.constant 0 : index
    %c0_156 = arith.constant 0 : index
    %274 = vector.load %arg10[%c5_154, %c0_155, %c0_156] : memref<12x32x8xbf16, #tpu.memory_space<vmem>>, vector<1x32x8xbf16>
    %275 = vector.shape_cast %274 : vector<1x32x8xbf16> to vector<32x8xbf16>
    %cst_157 = arith.constant dense<0.000000e+00> : vector<8x8xf32>
    %276 = tpu.matmul %225, %275, %cst_157 {dimension_numbers = #tpu.dot_dimension_numbers<[1], [0], [0], [1], [0, 0, 1, 1], [], []>} : vector<8x32xbf16>, vector<32x8xbf16>, vector<8x8xf32> -> vector<8x8xf32>
    %c5_158 = arith.constant 5 : index
    %c0_159 = arith.constant 0 : index
    %c0_160 = arith.constant 0 : index
    %277 = vector.load %arg11[%c5_158, %c0_159, %c0_160] : memref<12x1x8xf32, #tpu.memory_space<vmem>>, vector<1x1x8xf32>
    %278 = vector.shape_cast %277 : vector<1x1x8xf32> to vector<1x8xf32>
    %279 = vector.broadcast %278 : vector<1x8xf32> to vector<8x8xf32>
    %280 = arith.addf %276, %279 : vector<8x8xf32>
    %c9_161 = arith.constant 9 : index
    %c0_162 = arith.constant 0 : index
    %c0_163 = arith.constant 0 : index
    %281 = vector.load %arg10[%c9_161, %c0_162, %c0_163] : memref<12x32x8xbf16, #tpu.memory_space<vmem>>, vector<1x32x8xbf16>
    %282 = vector.shape_cast %281 : vector<1x32x8xbf16> to vector<32x8xbf16>
    %cst_164 = arith.constant dense<0.000000e+00> : vector<8x8xf32>
    %283 = tpu.matmul %225, %282, %cst_164 {dimension_numbers = #tpu.dot_dimension_numbers<[1], [0], [0], [1], [0, 0, 1, 1], [], []>} : vector<8x32xbf16>, vector<32x8xbf16>, vector<8x8xf32> -> vector<8x8xf32>
    %c9_165 = arith.constant 9 : index
    %c0_166 = arith.constant 0 : index
    %c0_167 = arith.constant 0 : index
    %284 = vector.load %arg11[%c9_165, %c0_166, %c0_167] : memref<12x1x8xf32, #tpu.memory_space<vmem>>, vector<1x1x8xf32>
    %285 = vector.shape_cast %284 : vector<1x1x8xf32> to vector<1x8xf32>
    %286 = vector.broadcast %285 : vector<1x8xf32> to vector<8x8xf32>
    %287 = arith.addf %283, %286 : vector<8x8xf32>
    %288 = arith.truncf %273 : vector<8x8xf32> to vector<8x8xbf16>
    %289 = arith.truncf %280 : vector<8x8xf32> to vector<8x8xbf16>
    %cst_168 = arith.constant dense<0.000000e+00> : vector<8x8xf32>
    %290 = tpu.matmul %288, %289, %cst_168 {dimension_numbers = #tpu.dot_dimension_numbers<[1], [1], [0], [0], [0, 0, 1, 0], [], []>} : vector<8x8xbf16>, vector<8x8xbf16>, vector<8x8xf32> -> vector<8x8xf32>
    %cst_169 = arith.constant 0.353553385 : f32
    %291 = vector.broadcast %cst_169 : f32 to vector<8x8xf32>
    %292 = arith.mulf %290, %291 : vector<8x8xf32>
    %293 = vector.broadcast %223 : vector<1x8xf32> to vector<8x8xf32>
    %294 = arith.addf %292, %293 : vector<8x8xf32>
    %cst_170 = arith.constant dense<0xFF800000> : vector<8xf32>
    %295 = vector.multi_reduction <maximumf>, %294, %cst_170 [1] : vector<8x8xf32> to vector<8xf32>
    %296 = vector.shape_cast %295 : vector<8xf32> to vector<8x1xf32>
    %297 = vector.broadcast %296 : vector<8x1xf32> to vector<8x8xf32>
    %298 = arith.subf %294, %297 : vector<8x8xf32>
    %299 = math.exp %298 : vector<8x8xf32>
    %cst_171 = arith.constant dense<0.000000e+00> : vector<8xf32>
    %300 = vector.multi_reduction <add>, %299, %cst_171 [1] : vector<8x8xf32> to vector<8xf32>
    %301 = vector.shape_cast %300 : vector<8xf32> to vector<8x1xf32>
    %302 = tpu.reciprocal %301 {approx = true} : vector<8x1xf32> -> vector<8x1xf32>
    %303 = vector.broadcast %302 : vector<8x1xf32> to vector<8x8xf32>
    %304 = arith.mulf %299, %303 : vector<8x8xf32>
    %305 = arith.truncf %304 : vector<8x8xf32> to vector<8x8xbf16>
    %306 = arith.truncf %287 : vector<8x8xf32> to vector<8x8xbf16>
    %cst_172 = arith.constant dense<0.000000e+00> : vector<8x8xf32>
    %307 = tpu.matmul %305, %306, %cst_172 {dimension_numbers = #tpu.dot_dimension_numbers<[1], [0], [0], [1], [0, 0, 1, 1], [], []>} : vector<8x8xbf16>, vector<8x8xbf16>, vector<8x8xf32> -> vector<8x8xf32>
    %c2_173 = arith.constant 2 : index
    %c0_174 = arith.constant 0 : index
    %c0_175 = arith.constant 0 : index
    %308 = vector.load %arg10[%c2_173, %c0_174, %c0_175] : memref<12x32x8xbf16, #tpu.memory_space<vmem>>, vector<1x32x8xbf16>
    %309 = vector.shape_cast %308 : vector<1x32x8xbf16> to vector<32x8xbf16>
    %cst_176 = arith.constant dense<0.000000e+00> : vector<8x8xf32>
    %310 = tpu.matmul %224, %309, %cst_176 {dimension_numbers = #tpu.dot_dimension_numbers<[1], [0], [0], [1], [0, 0, 1, 1], [], []>} : vector<8x32xbf16>, vector<32x8xbf16>, vector<8x8xf32> -> vector<8x8xf32>
    %c2_177 = arith.constant 2 : index
    %c0_178 = arith.constant 0 : index
    %c0_179 = arith.constant 0 : index
    %311 = vector.load %arg11[%c2_177, %c0_178, %c0_179] : memref<12x1x8xf32, #tpu.memory_space<vmem>>, vector<1x1x8xf32>
    %312 = vector.shape_cast %311 : vector<1x1x8xf32> to vector<1x8xf32>
    %313 = vector.broadcast %312 : vector<1x8xf32> to vector<8x8xf32>
    %314 = arith.addf %310, %313 : vector<8x8xf32>
    %c6_180 = arith.constant 6 : index
    %c0_181 = arith.constant 0 : index
    %c0_182 = arith.constant 0 : index
    %315 = vector.load %arg10[%c6_180, %c0_181, %c0_182] : memref<12x32x8xbf16, #tpu.memory_space<vmem>>, vector<1x32x8xbf16>
    %316 = vector.shape_cast %315 : vector<1x32x8xbf16> to vector<32x8xbf16>
    %cst_183 = arith.constant dense<0.000000e+00> : vector<8x8xf32>
    %317 = tpu.matmul %225, %316, %cst_183 {dimension_numbers = #tpu.dot_dimension_numbers<[1], [0], [0], [1], [0, 0, 1, 1], [], []>} : vector<8x32xbf16>, vector<32x8xbf16>, vector<8x8xf32> -> vector<8x8xf32>
    %c6_184 = arith.constant 6 : index
    %c0_185 = arith.constant 0 : index
    %c0_186 = arith.constant 0 : index
    %318 = vector.load %arg11[%c6_184, %c0_185, %c0_186] : memref<12x1x8xf32, #tpu.memory_space<vmem>>, vector<1x1x8xf32>
    %319 = vector.shape_cast %318 : vector<1x1x8xf32> to vector<1x8xf32>
    %320 = vector.broadcast %319 : vector<1x8xf32> to vector<8x8xf32>
    %321 = arith.addf %317, %320 : vector<8x8xf32>
    %c10_187 = arith.constant 10 : index
    %c0_188 = arith.constant 0 : index
    %c0_189 = arith.constant 0 : index
    %322 = vector.load %arg10[%c10_187, %c0_188, %c0_189] : memref<12x32x8xbf16, #tpu.memory_space<vmem>>, vector<1x32x8xbf16>
    %323 = vector.shape_cast %322 : vector<1x32x8xbf16> to vector<32x8xbf16>
    %cst_190 = arith.constant dense<0.000000e+00> : vector<8x8xf32>
    %324 = tpu.matmul %225, %323, %cst_190 {dimension_numbers = #tpu.dot_dimension_numbers<[1], [0], [0], [1], [0, 0, 1, 1], [], []>} : vector<8x32xbf16>, vector<32x8xbf16>, vector<8x8xf32> -> vector<8x8xf32>
    %c10_191 = arith.constant 10 : index
    %c0_192 = arith.constant 0 : index
    %c0_193 = arith.constant 0 : index
    %325 = vector.load %arg11[%c10_191, %c0_192, %c0_193] : memref<12x1x8xf32, #tpu.memory_space<vmem>>, vector<1x1x8xf32>
    %326 = vector.shape_cast %325 : vector<1x1x8xf32> to vector<1x8xf32>
    %327 = vector.broadcast %326 : vector<1x8xf32> to vector<8x8xf32>
    %328 = arith.addf %324, %327 : vector<8x8xf32>
    %329 = arith.truncf %314 : vector<8x8xf32> to vector<8x8xbf16>
    %330 = arith.truncf %321 : vector<8x8xf32> to vector<8x8xbf16>
    %cst_194 = arith.constant dense<0.000000e+00> : vector<8x8xf32>
    %331 = tpu.matmul %329, %330, %cst_194 {dimension_numbers = #tpu.dot_dimension_numbers<[1], [1], [0], [0], [0, 0, 1, 0], [], []>} : vector<8x8xbf16>, vector<8x8xbf16>, vector<8x8xf32> -> vector<8x8xf32>
    %cst_195 = arith.constant 0.353553385 : f32
    %332 = vector.broadcast %cst_195 : f32 to vector<8x8xf32>
    %333 = arith.mulf %331, %332 : vector<8x8xf32>
    %334 = vector.broadcast %223 : vector<1x8xf32> to vector<8x8xf32>
    %335 = arith.addf %333, %334 : vector<8x8xf32>
    %cst_196 = arith.constant dense<0xFF800000> : vector<8xf32>
    %336 = vector.multi_reduction <maximumf>, %335, %cst_196 [1] : vector<8x8xf32> to vector<8xf32>
    %337 = vector.shape_cast %336 : vector<8xf32> to vector<8x1xf32>
    %338 = vector.broadcast %337 : vector<8x1xf32> to vector<8x8xf32>
    %339 = arith.subf %335, %338 : vector<8x8xf32>
    %340 = math.exp %339 : vector<8x8xf32>
    %cst_197 = arith.constant dense<0.000000e+00> : vector<8xf32>
    %341 = vector.multi_reduction <add>, %340, %cst_197 [1] : vector<8x8xf32> to vector<8xf32>
    %342 = vector.shape_cast %341 : vector<8xf32> to vector<8x1xf32>
    %343 = tpu.reciprocal %342 {approx = true} : vector<8x1xf32> -> vector<8x1xf32>
    %344 = vector.broadcast %343 : vector<8x1xf32> to vector<8x8xf32>
    %345 = arith.mulf %340, %344 : vector<8x8xf32>
    %346 = arith.truncf %345 : vector<8x8xf32> to vector<8x8xbf16>
    %347 = arith.truncf %328 : vector<8x8xf32> to vector<8x8xbf16>
    %cst_198 = arith.constant dense<0.000000e+00> : vector<8x8xf32>
    %348 = tpu.matmul %346, %347, %cst_198 {dimension_numbers = #tpu.dot_dimension_numbers<[1], [0], [0], [1], [0, 0, 1, 1], [], []>} : vector<8x8xbf16>, vector<8x8xbf16>, vector<8x8xf32> -> vector<8x8xf32>
    %c3_199 = arith.constant 3 : index
    %c0_200 = arith.constant 0 : index
    %c0_201 = arith.constant 0 : index
    %349 = vector.load %arg10[%c3_199, %c0_200, %c0_201] : memref<12x32x8xbf16, #tpu.memory_space<vmem>>, vector<1x32x8xbf16>
    %350 = vector.shape_cast %349 : vector<1x32x8xbf16> to vector<32x8xbf16>
    %cst_202 = arith.constant dense<0.000000e+00> : vector<8x8xf32>
    %351 = tpu.matmul %224, %350, %cst_202 {dimension_numbers = #tpu.dot_dimension_numbers<[1], [0], [0], [1], [0, 0, 1, 1], [], []>} : vector<8x32xbf16>, vector<32x8xbf16>, vector<8x8xf32> -> vector<8x8xf32>
    %c3_203 = arith.constant 3 : index
    %c0_204 = arith.constant 0 : index
    %c0_205 = arith.constant 0 : index
    %352 = vector.load %arg11[%c3_203, %c0_204, %c0_205] : memref<12x1x8xf32, #tpu.memory_space<vmem>>, vector<1x1x8xf32>
    %353 = vector.shape_cast %352 : vector<1x1x8xf32> to vector<1x8xf32>
    %354 = vector.broadcast %353 : vector<1x8xf32> to vector<8x8xf32>
    %355 = arith.addf %351, %354 : vector<8x8xf32>
    %c7_206 = arith.constant 7 : index
    %c0_207 = arith.constant 0 : index
    %c0_208 = arith.constant 0 : index
    %356 = vector.load %arg10[%c7_206, %c0_207, %c0_208] : memref<12x32x8xbf16, #tpu.memory_space<vmem>>, vector<1x32x8xbf16>
    %357 = vector.shape_cast %356 : vector<1x32x8xbf16> to vector<32x8xbf16>
    %cst_209 = arith.constant dense<0.000000e+00> : vector<8x8xf32>
    %358 = tpu.matmul %225, %357, %cst_209 {dimension_numbers = #tpu.dot_dimension_numbers<[1], [0], [0], [1], [0, 0, 1, 1], [], []>} : vector<8x32xbf16>, vector<32x8xbf16>, vector<8x8xf32> -> vector<8x8xf32>
    %c7_210 = arith.constant 7 : index
    %c0_211 = arith.constant 0 : index
    %c0_212 = arith.constant 0 : index
    %359 = vector.load %arg11[%c7_210, %c0_211, %c0_212] : memref<12x1x8xf32, #tpu.memory_space<vmem>>, vector<1x1x8xf32>
    %360 = vector.shape_cast %359 : vector<1x1x8xf32> to vector<1x8xf32>
    %361 = vector.broadcast %360 : vector<1x8xf32> to vector<8x8xf32>
    %362 = arith.addf %358, %361 : vector<8x8xf32>
    %c11_213 = arith.constant 11 : index
    %c0_214 = arith.constant 0 : index
    %c0_215 = arith.constant 0 : index
    %363 = vector.load %arg10[%c11_213, %c0_214, %c0_215] : memref<12x32x8xbf16, #tpu.memory_space<vmem>>, vector<1x32x8xbf16>
    %364 = vector.shape_cast %363 : vector<1x32x8xbf16> to vector<32x8xbf16>
    %cst_216 = arith.constant dense<0.000000e+00> : vector<8x8xf32>
    %365 = tpu.matmul %225, %364, %cst_216 {dimension_numbers = #tpu.dot_dimension_numbers<[1], [0], [0], [1], [0, 0, 1, 1], [], []>} : vector<8x32xbf16>, vector<32x8xbf16>, vector<8x8xf32> -> vector<8x8xf32>
    %c11_217 = arith.constant 11 : index
    %c0_218 = arith.constant 0 : index
    %c0_219 = arith.constant 0 : index
    %366 = vector.load %arg11[%c11_217, %c0_218, %c0_219] : memref<12x1x8xf32, #tpu.memory_space<vmem>>, vector<1x1x8xf32>
    %367 = vector.shape_cast %366 : vector<1x1x8xf32> to vector<1x8xf32>
    %368 = vector.broadcast %367 : vector<1x8xf32> to vector<8x8xf32>
    %369 = arith.addf %365, %368 : vector<8x8xf32>
    %370 = arith.truncf %355 : vector<8x8xf32> to vector<8x8xbf16>
    %371 = arith.truncf %362 : vector<8x8xf32> to vector<8x8xbf16>
    %cst_220 = arith.constant dense<0.000000e+00> : vector<8x8xf32>
    %372 = tpu.matmul %370, %371, %cst_220 {dimension_numbers = #tpu.dot_dimension_numbers<[1], [1], [0], [0], [0, 0, 1, 0], [], []>} : vector<8x8xbf16>, vector<8x8xbf16>, vector<8x8xf32> -> vector<8x8xf32>
    %cst_221 = arith.constant 0.353553385 : f32
    %373 = vector.broadcast %cst_221 : f32 to vector<8x8xf32>
    %374 = arith.mulf %372, %373 : vector<8x8xf32>
    %375 = vector.broadcast %223 : vector<1x8xf32> to vector<8x8xf32>
    %376 = arith.addf %374, %375 : vector<8x8xf32>
    %cst_222 = arith.constant dense<0xFF800000> : vector<8xf32>
    %377 = vector.multi_reduction <maximumf>, %376, %cst_222 [1] : vector<8x8xf32> to vector<8xf32>
    %378 = vector.shape_cast %377 : vector<8xf32> to vector<8x1xf32>
    %379 = vector.broadcast %378 : vector<8x1xf32> to vector<8x8xf32>
    %380 = arith.subf %376, %379 : vector<8x8xf32>
    %381 = math.exp %380 : vector<8x8xf32>
    %cst_223 = arith.constant dense<0.000000e+00> : vector<8xf32>
    %382 = vector.multi_reduction <add>, %381, %cst_223 [1] : vector<8x8xf32> to vector<8xf32>
    %383 = vector.shape_cast %382 : vector<8xf32> to vector<8x1xf32>
    %384 = tpu.reciprocal %383 {approx = true} : vector<8x1xf32> -> vector<8x1xf32>
    %385 = vector.broadcast %384 : vector<8x1xf32> to vector<8x8xf32>
    %386 = arith.mulf %381, %385 : vector<8x8xf32>
    %387 = arith.truncf %386 : vector<8x8xf32> to vector<8x8xbf16>
    %388 = arith.truncf %369 : vector<8x8xf32> to vector<8x8xbf16>
    %cst_224 = arith.constant dense<0.000000e+00> : vector<8x8xf32>
    %389 = tpu.matmul %387, %388, %cst_224 {dimension_numbers = #tpu.dot_dimension_numbers<[1], [0], [0], [1], [0, 0, 1, 1], [], []>} : vector<8x8xbf16>, vector<8x8xbf16>, vector<8x8xf32> -> vector<8x8xf32>
    %390 = tpu.concatenate %266, %307, %348, %389 in 1 : vector<8x8xf32>, vector<8x8xf32>, vector<8x8xf32>, vector<8x8xf32> -> vector<8x32xf32>
    %391 = arith.truncf %390 : vector<8x32xf32> to vector<8x32xbf16>
    %c0_225 = arith.constant 0 : index
    %c0_226 = arith.constant 0 : index
    %392 = vector.load %arg12[%c0_225, %c0_226] : memref<32x32xbf16, #tpu.memory_space<vmem>>, vector<32x32xbf16>
    %cst_227 = arith.constant dense<0.000000e+00> : vector<8x32xf32>
    %393 = tpu.matmul %391, %392, %cst_227 {dimension_numbers = #tpu.dot_dimension_numbers<[1], [0], [0], [1], [0, 0, 1, 1], [], []>} : vector<8x32xbf16>, vector<32x32xbf16>, vector<8x32xf32> -> vector<8x32xf32>
    %c0_228 = arith.constant 0 : index
    %c0_229 = arith.constant 0 : index
    %394 = vector.load %arg13[%c0_228, %c0_229] : memref<1x32xf32, #tpu.memory_space<vmem>>, vector<1x32xf32>
    %395 = vector.broadcast %394 : vector<1x32xf32> to vector<8x32xf32>
    %396 = arith.addf %393, %395 : vector<8x32xf32>
    %397 = arith.addf %221, %396 : vector<8x32xf32>
    %cst_230 = arith.constant dense<0.000000e+00> : vector<8xf32>
    %398 = vector.multi_reduction <add>, %397, %cst_230 [1] : vector<8x32xf32> to vector<8xf32>
    %399 = vector.shape_cast %398 : vector<8xf32> to vector<8x1xf32>
    %cst_231 = arith.constant 3.200000e+01 : f32
    %400 = vector.broadcast %cst_231 : f32 to vector<8x1xf32>
    %401 = arith.divf %399, %400 : vector<8x1xf32>
    %402 = vector.broadcast %401 : vector<8x1xf32> to vector<8x32xf32>
    %403 = arith.subf %397, %402 : vector<8x32xf32>
    %404 = arith.mulf %403, %403 : vector<8x32xf32>
    %cst_232 = arith.constant dense<0.000000e+00> : vector<8xf32>
    %405 = vector.multi_reduction <add>, %404, %cst_232 [1] : vector<8x32xf32> to vector<8xf32>
    %406 = vector.shape_cast %405 : vector<8xf32> to vector<8x1xf32>
    %cst_233 = arith.constant 3.200000e+01 : f32
    %407 = vector.broadcast %cst_233 : f32 to vector<8x1xf32>
    %408 = arith.divf %406, %407 : vector<8x1xf32>
    %409 = vector.broadcast %401 : vector<8x1xf32> to vector<8x32xf32>
    %410 = arith.subf %397, %409 : vector<8x32xf32>
    %cst_234 = arith.constant 9.99999974E-6 : f32
    %411 = vector.broadcast %cst_234 : f32 to vector<8x1xf32>
    %412 = arith.addf %408, %411 : vector<8x1xf32>
    %413 = math.rsqrt %412 : vector<8x1xf32>
    %414 = vector.broadcast %413 : vector<8x1xf32> to vector<8x32xf32>
    %415 = arith.mulf %410, %414 : vector<8x32xf32>
    %c0_235 = arith.constant 0 : index
    %c0_236 = arith.constant 0 : index
    %416 = vector.load %arg14[%c0_235, %c0_236] : memref<1x32xf32, #tpu.memory_space<vmem>>, vector<1x32xf32>
    %417 = vector.broadcast %416 : vector<1x32xf32> to vector<8x32xf32>
    %418 = arith.mulf %415, %417 : vector<8x32xf32>
    %c0_237 = arith.constant 0 : index
    %c0_238 = arith.constant 0 : index
    %419 = vector.load %arg15[%c0_237, %c0_238] : memref<1x32xf32, #tpu.memory_space<vmem>>, vector<1x32xf32>
    %420 = vector.broadcast %419 : vector<1x32xf32> to vector<8x32xf32>
    %421 = arith.addf %418, %420 : vector<8x32xf32>
    %422 = arith.truncf %421 : vector<8x32xf32> to vector<8x32xbf16>
    %c0_239 = arith.constant 0 : index
    %c0_240 = arith.constant 0 : index
    %423 = vector.load %arg16[%c0_239, %c0_240] : memref<32x64xbf16, #tpu.memory_space<vmem>>, vector<32x64xbf16>
    %cst_241 = arith.constant dense<0.000000e+00> : vector<8x64xf32>
    %424 = tpu.matmul %422, %423, %cst_241 {dimension_numbers = #tpu.dot_dimension_numbers<[1], [0], [0], [1], [0, 0, 1, 1], [], []>} : vector<8x32xbf16>, vector<32x64xbf16>, vector<8x64xf32> -> vector<8x64xf32>
    %c0_242 = arith.constant 0 : index
    %c0_243 = arith.constant 0 : index
    %425 = vector.load %arg17[%c0_242, %c0_243] : memref<1x64xf32, #tpu.memory_space<vmem>>, vector<1x64xf32>
    %426 = vector.broadcast %425 : vector<1x64xf32> to vector<8x64xf32>
    %427 = arith.addf %424, %426 : vector<8x64xf32>
    %cst_244 = arith.constant 0.000000e+00 : f32
    %428 = vector.broadcast %cst_244 : f32 to vector<8x64xf32>
    %429 = arith.maximumf %427, %428 : vector<8x64xf32>
    %430 = arith.truncf %429 : vector<8x64xf32> to vector<8x64xbf16>
    %c0_245 = arith.constant 0 : index
    %c0_246 = arith.constant 0 : index
    %431 = vector.load %arg18[%c0_245, %c0_246] : memref<64x32xbf16, #tpu.memory_space<vmem>>, vector<64x32xbf16>
    %cst_247 = arith.constant dense<0.000000e+00> : vector<8x32xf32>
    %432 = tpu.matmul %430, %431, %cst_247 {dimension_numbers = #tpu.dot_dimension_numbers<[1], [0], [0], [1], [0, 0, 1, 1], [], []>} : vector<8x64xbf16>, vector<64x32xbf16>, vector<8x32xf32> -> vector<8x32xf32>
    %c0_248 = arith.constant 0 : index
    %c0_249 = arith.constant 0 : index
    %433 = vector.load %arg19[%c0_248, %c0_249] : memref<1x32xf32, #tpu.memory_space<vmem>>, vector<1x32xf32>
    %434 = vector.broadcast %433 : vector<1x32xf32> to vector<8x32xf32>
    %435 = arith.addf %432, %434 : vector<8x32xf32>
    %436 = arith.addf %421, %435 : vector<8x32xf32>
    %cst_250 = arith.constant dense<0.000000e+00> : vector<8xf32>
    %437 = vector.multi_reduction <add>, %436, %cst_250 [1] : vector<8x32xf32> to vector<8xf32>
    %438 = vector.shape_cast %437 : vector<8xf32> to vector<8x1xf32>
    %cst_251 = arith.constant 3.200000e+01 : f32
    %439 = vector.broadcast %cst_251 : f32 to vector<8x1xf32>
    %440 = arith.divf %438, %439 : vector<8x1xf32>
    %441 = vector.broadcast %440 : vector<8x1xf32> to vector<8x32xf32>
    %442 = arith.subf %436, %441 : vector<8x32xf32>
    %443 = arith.mulf %442, %442 : vector<8x32xf32>
    %cst_252 = arith.constant dense<0.000000e+00> : vector<8xf32>
    %444 = vector.multi_reduction <add>, %443, %cst_252 [1] : vector<8x32xf32> to vector<8xf32>
    %445 = vector.shape_cast %444 : vector<8xf32> to vector<8x1xf32>
    %cst_253 = arith.constant 3.200000e+01 : f32
    %446 = vector.broadcast %cst_253 : f32 to vector<8x1xf32>
    %447 = arith.divf %445, %446 : vector<8x1xf32>
    %448 = vector.broadcast %440 : vector<8x1xf32> to vector<8x32xf32>
    %449 = arith.subf %436, %448 : vector<8x32xf32>
    %cst_254 = arith.constant 9.99999974E-6 : f32
    %450 = vector.broadcast %cst_254 : f32 to vector<8x1xf32>
    %451 = arith.addf %447, %450 : vector<8x1xf32>
    %452 = math.rsqrt %451 : vector<8x1xf32>
    %453 = vector.broadcast %452 : vector<8x1xf32> to vector<8x32xf32>
    %454 = arith.mulf %449, %453 : vector<8x32xf32>
    %c0_255 = arith.constant 0 : index
    %c0_256 = arith.constant 0 : index
    %455 = vector.load %arg20[%c0_255, %c0_256] : memref<1x32xf32, #tpu.memory_space<vmem>>, vector<1x32xf32>
    %456 = vector.broadcast %455 : vector<1x32xf32> to vector<8x32xf32>
    %457 = arith.mulf %454, %456 : vector<8x32xf32>
    %c0_257 = arith.constant 0 : index
    %c0_258 = arith.constant 0 : index
    %458 = vector.load %arg21[%c0_257, %c0_258] : memref<1x32xf32, #tpu.memory_space<vmem>>, vector<1x32xf32>
    %459 = vector.broadcast %458 : vector<1x32xf32> to vector<8x32xf32>
    %460 = arith.addf %457, %459 : vector<8x32xf32>
    %c0_259 = arith.constant 0 : index
    %c0_260 = arith.constant 0 : index
    %c0_261 = arith.constant 0 : index
    %461 = vector.load %arg22[%c0_259, %c0_260, %c0_261] : memref<1x8x32xf32, #tpu.memory_space<vmem>>, vector<1x8x32xf32>
    %462 = vector.shape_cast %461 : vector<1x8x32xf32> to vector<8x32xf32>
    %463 = vector.shape_cast %460 : vector<8x32xf32> to vector<1x8x32xf32>
    tpu.vector_store %arg22[%c0_259, %c0_260, %c0_261], %463 {strides = array<i32>} : memref<1x8x32xf32, #tpu.memory_space<vmem>>, vector<1x8x32xf32>,
    return
  }
  func.func @transform_0(%arg0: i32) -> (i32, i32, i32) {
    %c0_i32 = arith.constant 0 : i32
    %c0_i32_0 = arith.constant 0 : i32
    %c0_i32_1 = arith.constant 0 : i32
    return %arg0, %c0_i32, %c0_i32_0 : i32, i32, i32
  }
  func.func @transform_1(%arg0: i32) -> (i32, i32, i32) {
    %c0_i32 = arith.constant 0 : i32
    %c0_i32_0 = arith.constant 0 : i32
    %c0_i32_1 = arith.constant 0 : i32
    return %arg0, %c0_i32, %c0_i32_0 : i32, i32, i32
  }
  func.func @transform_2(%arg0: i32) -> (i32, i32, i32) {
    %c0_i32 = arith.constant 0 : i32
    %c0_i32_0 = arith.constant 0 : i32
    %c0_i32_1 = arith.constant 0 : i32
    return %arg0, %c0_i32, %c0_i32_0 : i32, i32, i32
  }
  func.func @transform_3(%arg0: i32) -> (i32, i32, i32) {
    %c0_i32 = arith.constant 0 : i32
    %c0_i32_0 = arith.constant 0 : i32
    %c0_i32_1 = arith.constant 0 : i32
    %c0_i32_2 = arith.constant 0 : i32
    return %c0_i32, %c0_i32_0, %c0_i32_1 : i32, i32, i32
  }
  func.func @transform_4(%arg0: i32) -> (i32, i32, i32) {
    %c0_i32 = arith.constant 0 : i32
    %c0_i32_0 = arith.constant 0 : i32
    %c0_i32_1 = arith.constant 0 : i32
    %c0_i32_2 = arith.constant 0 : i32
    return %c0_i32, %c0_i32_0, %c0_i32_1 : i32, i32, i32
  }
  func.func @transform_5(%arg0: i32) -> (i32, i32) {
    %c0_i32 = arith.constant 0 : i32
    %c0_i32_0 = arith.constant 0 : i32
    %c0_i32_1 = arith.constant 0 : i32
    return %c0_i32, %c0_i32_0 : i32, i32
  }
  func.func @transform_6(%arg0: i32) -> (i32, i32) {
    %c0_i32 = arith.constant 0 : i32
    %c0_i32_0 = arith.constant 0 : i32
    %c0_i32_1 = arith.constant 0 : i32
    return %c0_i32, %c0_i32_0 : i32, i32
  }
  func.func @transform_7(%arg0: i32) -> (i32, i32) {
    %c0_i32 = arith.constant 0 : i32
    %c0_i32_0 = arith.constant 0 : i32
    %c0_i32_1 = arith.constant 0 : i32
    return %c0_i32, %c0_i32_0 : i32, i32
  }
  func.func @transform_8(%arg0: i32) -> (i32, i32) {
    %c0_i32 = arith.constant 0 : i32
    %c0_i32_0 = arith.constant 0 : i32
    %c0_i32_1 = arith.constant 0 : i32
    return %c0_i32, %c0_i32_0 : i32, i32
  }
  func.func @transform_9(%arg0: i32) -> (i32, i32, i32) {
    %c0_i32 = arith.constant 0 : i32
    %c0_i32_0 = arith.constant 0 : i32
    %c0_i32_1 = arith.constant 0 : i32
    %c0_i32_2 = arith.constant 0 : i32
    return %c0_i32, %c0_i32_0, %c0_i32_1 : i32, i32, i32
  }
  func.func @transform_10(%arg0: i32) -> (i32, i32, i32) {
    %c0_i32 = arith.constant 0 : i32
    %c0_i32_0 = arith.constant 0 : i32
    %c0_i32_1 = arith.constant 0 : i32
    %c0_i32_2 = arith.constant 0 : i32
    return %c0_i32, %c0_i32_0, %c0_i32_1 : i32, i32, i32
  }
  func.func @transform_11(%arg0: i32) -> (i32, i32) {
    %c0_i32 = arith.constant 0 : i32
    %c0_i32_0 = arith.constant 0 : i32
    %c0_i32_1 = arith.constant 0 : i32
    return %c0_i32, %c0_i32_0 : i32, i32
  }
  func.func @transform_12(%arg0: i32) -> (i32, i32) {
    %c0_i32 = arith.constant 0 : i32
    %c0_i32_0 = arith.constant 0 : i32
    %c0_i32_1 = arith.constant 0 : i32
    return %c0_i32, %c0_i32_0 : i32, i32
  }
  func.func @transform_13(%arg0: i32) -> (i32, i32) {
    %c0_i32 = arith.constant 0 : i32
    %c0_i32_0 = arith.constant 0 : i32
    %c0_i32_1 = arith.constant 0 : i32
    return %c0_i32, %c0_i32_0 : i32, i32
  }
  func.func @transform_14(%arg0: i32) -> (i32, i32) {
    %c0_i32 = arith.constant 0 : i32
    %c0_i32_0 = arith.constant 0 : i32
    %c0_i32_1 = arith.constant 0 : i32
    return %c0_i32, %c0_i32_0 : i32, i32
  }
  func.func @transform_15(%arg0: i32) -> (i32, i32) {
    %c0_i32 = arith.constant 0 : i32
    %c0_i32_0 = arith.constant 0 : i32
    %c0_i32_1 = arith.constant 0 : i32
    return %c0_i32, %c0_i32_0 : i32, i32
  }
  func.func @transform_16(%arg0: i32) -> (i32, i32) {
    %c0_i32 = arith.constant 0 : i32
    %c0_i32_0 = arith.constant 0 : i32
    %c0_i32_1 = arith.constant 0 : i32
    return %c0_i32, %c0_i32_0 : i32, i32
  }
  func.func @transform_17(%arg0: i32) -> (i32, i32) {
    %c0_i32 = arith.constant 0 : i32
    %c0_i32_0 = arith.constant 0 : i32
    %c0_i32_1 = arith.constant 0 : i32
    return %c0_i32, %c0_i32_0 : i32, i32
  }
  func.func @transform_18(%arg0: i32) -> (i32, i32) {
    %c0_i32 = arith.constant 0 : i32
    %c0_i32_0 = arith.constant 0 : i32
    %c0_i32_1 = arith.constant 0 : i32
    return %c0_i32, %c0_i32_0 : i32, i32
  }
  func.func @transform_19(%arg0: i32) -> (i32, i32) {
    %c0_i32 = arith.constant 0 : i32
    %c0_i32_0 = arith.constant 0 : i32
    %c0_i32_1 = arith.constant 0 : i32
    return %c0_i32, %c0_i32_0 : i32, i32
  }
  func.func @transform_20(%arg0: i32) -> (i32, i32) {
    %c0_i32 = arith.constant 0 : i32
    %c0_i32_0 = arith.constant 0 : i32
    %c0_i32_1 = arith.constant 0 : i32
    return %c0_i32, %c0_i32_0 : i32, i32
  }
  func.func @transform_21(%arg0: i32) -> (i32, i32, i32) {
    %c0_i32 = arith.constant 0 : i32
    %c0_i32_0 = arith.constant 0 : i32
    %c0_i32_1 = arith.constant 0 : i32
    return %arg0, %c0_i32, %c0_i32_0 : i32, i32, i32
  }
}

</mosaic_0001>

<llo_original>
// kernel: model_forward.9
$region0: #{model_forward.9}
  #allocation0 [shape = 'u32[]', space=smem, size = 0x4, offset = 0x4, fixed_abs, tag = 'smem constant byte address 0x4 - core index']
  #allocation1 [shape = 'u32[144,128]{1,0:T(1,128)}', space=vmem, size = 0x12000, scoped, tag = 'internal scratch']
  %s0 = inlined_call_operand.vmem [shape: f32[16,32], index: 0, kind: input, shape index: {}]
  %s1 = inlined_call_operand.vmem [shape: bf16[32,512], index: 1, kind: input, shape index: {}]
  %s2 = inlined_call_operand.vmem [shape: f32[1,512], index: 2, kind: input, shape index: {}]
  %s3 = inlined_call_operand.hbm [shape: f32[16,512], index: 3, kind: output, shape index: {}]
  %s4 = sld [smem:[#allocation0]]
  $region22: #{model_forward.9} parent=0
    _
  %s6 = ssub.s32 1, %s4
  %s7 = scalar_select 0, %s6, %s4
  $region1: #{model_forward.9} parent=0
    #allocation2 [shape = 'u8[32768]{0}', space=vmem, size = 0x8000, scoped, tag = 'output window, operand 0, single buffered']
    #allocation3 [shape = 's32[1]{0}', space=sflag, size = 0x4, scoped, tag = 'scoped memory for model_forward.9']
    %8 = vsyncpa [#allocation3], 0
    // Predicated region
    $region2: #{model_forward.9} parent=1 // pred_check
      _
    $region3: #{model_forward.9} parent=1 // pred_check_branch
      %10 = sbr.rel (0) target = $region5
    $region4: #{model_forward.9} parent=1 // pred_region
      _
    $region5: #{model_forward.9} parent=1 // pred_fallthru
      _
    // Predicated region
    $region6: #{model_forward.9} parent=1 // pred_check
      _
    $region7: #{model_forward.9} parent=1 // pred_check_branch
      %12 = sbr.rel (0) target = $region9
    $region8: #{model_forward.9} parent=1 // pred_region
      _
    $region9: #{model_forward.9} parent=1 // pred_fallthru
      _
    // Predicated region
    $region10: #{model_forward.9} parent=1 // pred_check
      _
    $region11: #{model_forward.9} parent=1 // pred_check_branch
      %14 = sbr.rel (0) target = $region13
    $region12: #{model_forward.9} parent=1 // pred_region
      _
    $region13: #{model_forward.9} parent=1 // pred_fallthru
      _
    %v16 = vld [vmem:[%s0] sm:$0xff]
    %v17 = vld [vmem:[%s0 + $0x8] sm:$0xff]
    %v18 = vpack.c.bf16 %v17, %v16
    %v19 = vld [vmem:[%s1] sm:$0xff]
    %v20 = vld [vmem:[%s1 + $0x8] sm:$0xff]
    %v21 = vld [vmem:[%s1 + $0x10] sm:$0xff]
    %v22 = vld [vmem:[%s1 + $0x18] sm:$0xff]
    %v23 = vld [vmem:[%s1 + $0x20] sm:$0xff]
    %v24 = vld [vmem:[%s1 + $0x28] sm:$0xff]
    %v25 = vld [vmem:[%s1 + $0x30] sm:$0xff]
    %v26 = vld [vmem:[%s1 + $0x38] sm:$0xff]
    %v27 = vld [vmem:[%s2] sm:$0xf]
    %v29 = vlaneseq
    %v30 = vshrl.u32 %v29, 7
    %v31 = vsub.s32 0, %v30
    %v32 = vrot.slane %v27, %v31
    %v33 = vlaneseq
    %v34 = vshrl.u32 %v33, 7
    %v35 = vsub.s32 1, %v34
    %v36 = vrot.slane %v27, %v35
    %v37 = vlaneseq
    %v38 = vshrl.u32 %v37, 7
    %v39 = vsub.s32 2, %v38
    %v40 = vrot.slane %v27, %v39
    %v41 = vlaneseq
    %v42 = vshrl.u32 %v41, 7
    %v43 = vsub.s32 3, %v42
    %v44 = vrot.slane %v27, %v43
    %v57 = vunpack.c.l.b16 %v19
    %v58 = vunpack.c.h.b16 %v19
    %v59 = vunpack.c.l.b16 %v20
    %v60 = vunpack.c.h.b16 %v20
    %v61 = vunpack.c.l.b16 %v21
    %v62 = vunpack.c.h.b16 %v21
    %v63 = vunpack.c.l.b16 %v22
    %v64 = vunpack.c.h.b16 %v22
    %v65 = vunpack.c.l.b16 %v23
    %v66 = vunpack.c.h.b16 %v23
    %v67 = vunpack.c.l.b16 %v24
    %v68 = vunpack.c.h.b16 %v24
    %v69 = vunpack.c.l.b16 %v25
    %v70 = vunpack.c.h.b16 %v25
    %v71 = vunpack.c.l.b16 %v26
    %v72 = vunpack.c.h.b16 %v26
    %v73 = vpack.c.b16 %v61, %v57
    %v74 = vpack.c.b16 %v62, %v58
    %v75 = vpack.c.b16 %v63, %v59
    %v76 = vpack.c.b16 %v64, %v60
    %v77 = vpack.c.b16 %v69, %v65
    %v78 = vpack.c.b16 %v70, %v66
    %v79 = vpack.c.b16 %v71, %v67
    %v80 = vpack.c.b16 %v72, %v68
    %vm89 = vcmask 261120
    %v91 = vsel %vm89, %v18, 0
    %93 = vmatprep.subr.bf16.mxu0 %v74
    %94 = vmatpush1.bf16.msra.mxu0 %v73
    %95 = vmatprep.subr.bf16.mxu0 %v78
    %96 = vmatpush1.bf16.msra.mxu0 %v77
    %97 = vmatprep.subr.bf16.mxu0 0
    %98 = vmatpush1.bf16.msra.mxu0 0
    %99 = vmatprep.subr.bf16.mxu0 0
    %100 = vmatpush1.bf16.msra.mxu0 0
    %101 = vmatprep.subr.bf16.mxu0 0
    %102 = vmatpush1.bf16.msra.mxu0 0
    %103 = vmatprep.subr.bf16.mxu0 0
    %104 = vmatpush1.bf16.msra.mxu0 0
    %105 = vmatprep.subr.bf16.mxu0 0
    %106 = vmatpush1.bf16.msra.mxu0 0
    %107 = vmatprep.subr.bf16.mxu0 0
    %108 = vmatpush1.bf16.msra.mxu0 0
    %109 = vmatprep.subr.bf16.mxu0 0
    %110 = vmatpush1.bf16.msra.mxu0 0
    %111 = vmatprep.subr.bf16.mxu0 0
    %112 = vmatpush1.bf16.msra.mxu0 0
    %113 = vmatprep.subr.bf16.mxu0 0
    %114 = vmatpush1.bf16.msra.mxu0 0
    %115 = vmatprep.subr.bf16.mxu0 0
    %116 = vmatpush1.bf16.msra.mxu0 0
    %117 = vmatprep.subr.bf16.mxu0 0
    %118 = vmatpush1.bf16.msra.mxu0 0
    %119 = vmatprep.subr.bf16.mxu0 0
    %120 = vmatpush1.bf16.msra.mxu0 0
    %121 = vmatprep.subr.bf16.mxu0 0
    %122 = vmatpush1.bf16.msra.mxu0 0
    %123 = vmatprep.subr.bf16.mxu0 0
    %124 = vmatpush1.bf16.msra.mxu0 0
    %125 = vmatprep.mubr.bf16.mxu0 0
    %126 = vmatmul.mubr.bf16.gmra.mrb[0].mxu0 %v91
    %v127 = vpop.f32.mrb[0].mxu0
    %v128 = vadd.f32 %v32, %v127
    %v129 = vpop.f32.mrb[0].mxu0
    %v130 = vadd.f32 %v36, %v129
    %v131 = vpop.f32.mrb[0].mxu0
    %v132 = vadd.f32 %v32, %v131
    %v133 = vpop.f32.mrb[0].mxu0
    %v134 = vadd.f32 %v36, %v133
    %135 = vdwg.mxu0
    %136 = vmatprep.subr.bf16.mxu0 %v76
    %137 = vmatpush1.bf16.msra.mxu0 %v75
    %138 = vmatprep.subr.bf16.mxu0 %v80
    %139 = vmatpush1.bf16.msra.mxu0 %v79
    %140 = vmatprep.subr.bf16.mxu0 0
    %141 = vmatpush1.bf16.msra.mxu0 0
    %142 = vmatprep.subr.bf16.mxu0 0
    %143 = vmatpush1.bf16.msra.mxu0 0
    %144 = vmatprep.subr.bf16.mxu0 0
    %145 = vmatpush1.bf16.msra.mxu0 0
    %146 = vmatprep.subr.bf16.mxu0 0
    %147 = vmatpush1.bf16.msra.mxu0 0
    %148 = vmatprep.subr.bf16.mxu0 0
    %149 = vmatpush1.bf16.msra.mxu0 0
    %150 = vmatprep.subr.bf16.mxu0 0
    %151 = vmatpush1.bf16.msra.mxu0 0
    %152 = vmatprep.subr.bf16.mxu0 0
    %153 = vmatpush1.bf16.msra.mxu0 0
    %154 = vmatprep.subr.bf16.mxu0 0
    %155 = vmatpush1.bf16.msra.mxu0 0
    %156 = vmatprep.subr.bf16.mxu0 0
    %157 = vmatpush1.bf16.msra.mxu0 0
    %158 = vmatprep.subr.bf16.mxu0 0
    %159 = vmatpush1.bf16.msra.mxu0 0
    %160 = vmatprep.subr.bf16.mxu0 0
    %161 = vmatpush1.bf16.msra.mxu0 0
    %162 = vmatprep.subr.bf16.mxu0 0
    %163 = vmatpush1.bf16.msra.mxu0 0
    %164 = vmatprep.subr.bf16.mxu0 0
    %165 = vmatpush1.bf16.msra.mxu0 0
    %166 = vmatprep.subr.bf16.mxu0 0
    %167 = vmatpush1.bf16.msra.mxu0 0
    %168 = vmatprep.mubr.bf16.mxu0 0
    %169 = vmatmul.mubr.bf16.gmra.mrb[0].mxu0 %v91
    %v170 = vpop.f32.mrb[0].mxu0
    %v171 = vadd.f32 %v40, %v170
    %v172 = vpop.f32.mrb[0].mxu0
    %v173 = vadd.f32 %v44, %v172
    %v174 = vpop.f32.mrb[0].mxu0
    %v175 = vadd.f32 %v40, %v174
    %v176 = vpop.f32.mrb[0].mxu0
    %v177 = vadd.f32 %v44, %v176
    %178 = vdwg.mxu0
    %179 = vst [vmem:[#allocation2] sm:$0xff] %v128
    %180 = vst [vmem:[#allocation2 + $0x8] sm:$0xff] %v130
    %181 = vst [vmem:[#allocation2 + $0x10] sm:$0xff] %v171
    %182 = vst [vmem:[#allocation2 + $0x18] sm:$0xff] %v173
    %183 = vst [vmem:[#allocation2 + $0x20] sm:$0xff] %v132
    %184 = vst [vmem:[#allocation2 + $0x28] sm:$0xff] %v134
    %185 = vst [vmem:[#allocation2 + $0x30] sm:$0xff] %v175
    %186 = vst [vmem:[#allocation2 + $0x38] sm:$0xff] %v177
    // Predicated region
    $region14: #{model_forward.9} parent=1 // pred_check
      _
    $region15: #{model_forward.9} parent=1 // pred_check_branch
      %188 = sbr.rel (0) target = $region17
    $region16: #{model_forward.9} parent=1 // pred_region
      %s190 = ssub.s32 1024, 1024
      %191 = vsyncadd [#allocation3], %s190
      %s192 = sshll.u32 [#allocation2], 4
      %s193 = int_to_ptr.vmem [resolvable:$true] %s192
      %198 = dma.vmem_to_hbm [thread:$0]  %s193, 1024, %s3, [#allocation3], 512, 512, 32
    $region17: #{model_forward.9} parent=1 // pred_fallthru
      _
    // Predicated region
    $region18: #{model_forward.9} parent=1 // pred_check
      _
    $region19: #{model_forward.9} parent=1 // pred_check_branch
      %200 = sbr.rel (0) target = $region21
    $region20: #{model_forward.9} parent=1 // pred_region
      %201 = dma.done [#allocation3], 1024
    $region21: #{model_forward.9} parent=1 // pred_fallthru
      _
    %202 = vsyncpa [#allocation3], 1

// kernel: model_forward.6
$region0: #{model_forward.6}
  #allocation0 [shape = 'u32[]', space=smem, size = 0x4, offset = 0x4, fixed_abs, tag = 'smem constant byte address 0x4 - core index']
  #allocation1 [shape = 'u32[144,128]{1,0:T(1,128)}', space=vmem, size = 0x12000, scoped, tag = 'internal scratch']
  %s0 = inlined_call_operand.vmem [shape: f32[2,8,32], index: 0, kind: input, shape index: {}, may-alias: {0,1}]
  %s1 = inlined_call_operand.vmem [shape: f32[2,8,32], index: 1, kind: input, shape index: {}, may-alias: {0,1}]
  %s2 = inlined_call_operand.vmem [shape: f32[2,1,8], index: 2, kind: input, shape index: {}]
  %s3 = inlined_call_operand.vmem [shape: bf16[12,32,8], index: 3, kind: input, shape index: {}]
  %s4 = inlined_call_operand.vmem [shape: f32[12,1,8], index: 4, kind: input, shape index: {}]
  %s5 = inlined_call_operand.vmem [shape: bf16[32,32], index: 5, kind: input, shape index: {}]
  %s6 = inlined_call_operand.vmem [shape: f32[1,32], index: 6, kind: input, shape index: {}]
  %s7 = inlined_call_operand.vmem [shape: f32[1,32], index: 7, kind: input, shape index: {}]
  %s8 = inlined_call_operand.vmem [shape: f32[1,32], index: 8, kind: input, shape index: {}]
  %s9 = inlined_call_operand.vmem [shape: f32[2,8,32], index: 9, kind: output, shape index: {}]
  %s10 = sld [smem:[#allocation0]]
  $region69: #{model_forward.6} parent=0
    _
  %s12 = ssub.s32 1, %s10
  %s13 = scalar_select 0, %s12, %s10
  loop: start=0, step=1, limit=4
  $region2: #{model_forward.6} parent=0 // loop_pre_header
    _
  $region3: #{model_forward.6} parent=0 // loop_header
    %s15 = sphi 0, %s19
    %p16 = scmp.ge.s32.totalorder %s15, 4
    %s22 = sphi 0, %s34
    %s23 = sphi 0, %s30
    %s24 = sphi 0, %s22
    %s25 = sphi 0, %s23
    %s26 = sphi 0, %s24
    %s27 = sphi 0, %s25
    %s39 = sphi 0, %s41
    %s42 = sphi 0, %s39
    %s43 = sphi 0, %s42
    %s59 = sphi 0, %s43
    %s65 = sphi 0, %s67
    %s68 = sphi 0, %s65
    %s69 = sphi 0, %s68
    %s85 = sphi 0, %s69
    %s91 = sphi 0, %s93
    %s94 = sphi 0, %s91
    %s95 = sphi 0, %s94
    %s111 = sphi 0, %s95
    %s115 = sphi 0, %s115
    %s117 = sphi 0, %s115
    %s118 = sphi 0, %s117
    %s132 = sphi 0, %s118
    %s136 = sphi 0, %s136
    %s138 = sphi 0, %s136
    %s139 = sphi 0, %s138
    %s153 = sphi 0, %s139
    %s157 = sphi 0, %s157
    %s159 = sphi 0, %s157
    %s160 = sphi 0, %s159
    %s174 = sphi 0, %s160
    %s178 = sphi 0, %s178
    %s180 = sphi 0, %s178
    %s181 = sphi 0, %s180
    %s195 = sphi 0, %s181
    %s199 = sphi 0, %s199
    %s201 = sphi 0, %s199
    %s202 = sphi 0, %s201
    %s216 = sphi 0, %s202
    %s220 = sphi 0, %s220
    %s222 = sphi 0, %s220
    %s223 = sphi 0, %s222
    %s237 = sphi 0, %s223
    %s245 = sphi 0, %s247
    %s248 = sphi 0, %s245
    %s249 = sphi 0, %s248
    %s265 = sphi 0, %s249
  $region4: #{model_forward.6} parent=0 // loop_header_branch
    %18 = sbr.rel (%p16) target = $region8
  $region5: #{model_forward.6} parent=0 // loop_body
    %s20 = ssub.s32 %s15, 1
    %s21 = ssub.s32 %s15, 2
    %s28 = sadd.s32 1, %s23
    %p29 = scmp.ge.s32.totalorder %s28, 1
    %s30 = scalar_select %p29, 0, %s28
    %s31 = sadd.s32 1, %s22
    %s32 = scalar_select %p29, %s31, %s22
    %p33 = scmp.ge.s32.totalorder %s32, 2
    %s34 = scalar_select %p33, 0, %s32
    %s35 = ssub.s32 %s22, %s34
    %s36 = ssub.s32 %s23, %s30
    %s37 = sor.u32 %s35, %s36
    %p38 = scmp.eq.s32.totalorder %s37, 0
    %s40 = sadd.s32 %s39, 1
    %s41 = scalar_select %p38, %s39, %s40
    %p44 = pneg %p38
    %p45 = scmp.eq.s32.totalorder %s15, 1
    %p46 = por %p44, %p45
    %p47 = scmp.ne.s32.totalorder %s39, %s42
    %p48 = scmp.eq.s32.totalorder %s15, 0
    %p49 = por %p47, %p48
    %p50 = scmp.ne.s32.totalorder %s39, %s42
    %p51 = scmp.eq.s32.totalorder %s20, 1
    %p52 = por %p50, %p51
    %p53 = scmp.ne.s32.totalorder %s42, %s43
    %p54 = scmp.eq.s32.totalorder %s20, 0
    %p55 = por %p53, %p54
    %p56 = scmp.ne.s32.totalorder %s42, %s43
    %p57 = scmp.eq.s32.totalorder %s21, 1
    %p58 = por %p56, %p57
    %p60 = scmp.ne.s32.totalorder %s43, %s59
    %p61 = scmp.eq.s32.totalorder %s21, 0
    %p62 = por %p60, %p61
    %s63 = ssub.s32 %s22, %s34
    %p64 = scmp.eq.s32.totalorder %s63, 0
    %s66 = sadd.s32 %s65, 1
    %s67 = scalar_select %p64, %s65, %s66
    %p70 = pneg %p64
    %p71 = scmp.eq.s32.totalorder %s15, 1
    %p72 = por %p70, %p71
    %p73 = scmp.ne.s32.totalorder %s65, %s68
    %p74 = scmp.eq.s32.totalorder %s15, 0
    %p75 = por %p73, %p74
    %p76 = scmp.ne.s32.totalorder %s65, %s68
    %p77 = scmp.eq.s32.totalorder %s20, 1
    %p78 = por %p76, %p77
    %p79 = scmp.ne.s32.totalorder %s68, %s69
    %p80 = scmp.eq.s32.totalorder %s20, 0
    %p81 = por %p79, %p80
    %p82 = scmp.ne.s32.totalorder %s68, %s69
    %p83 = scmp.eq.s32.totalorder %s21, 1
    %p84 = por %p82, %p83
    %p86 = scmp.ne.s32.totalorder %s69, %s85
    %p87 = scmp.eq.s32.totalorder %s21, 0
    %p88 = por %p86, %p87
    %s89 = ssub.s32 %s22, %s34
    %p90 = scmp.eq.s32.totalorder %s89, 0
    %s92 = sadd.s32 %s91, 1
    %s93 = scalar_select %p90, %s91, %s92
    %p96 = pneg %p90
    %p97 = scmp.eq.s32.totalorder %s15, 1
    %p98 = por %p96, %p97
    %p99 = scmp.ne.s32.totalorder %s91, %s94
    %p100 = scmp.eq.s32.totalorder %s15, 0
    %p101 = por %p99, %p100
    %p102 = scmp.ne.s32.totalorder %s91, %s94
    %p103 = scmp.eq.s32.totalorder %s20, 1
    %p104 = por %p102, %p103
    %p105 = scmp.ne.s32.totalorder %s94, %s95
    %p106 = scmp.eq.s32.totalorder %s20, 0
    %p107 = por %p105, %p106
    %p108 = scmp.ne.s32.totalorder %s94, %s95
    %p109 = scmp.eq.s32.totalorder %s21, 1
    %p110 = por %p108, %p109
    %p112 = scmp.ne.s32.totalorder %s95, %s111
    %p113 = scmp.eq.s32.totalorder %s21, 0
    %p114 = por %p112, %p113
    %s116 = sadd.s32 %s115, 1
    %p119 = scmp.eq.s32.totalorder %s15, 1
    %p120 = scmp.ne.s32.totalorder %s115, %s117
    %p121 = scmp.eq.s32.totalorder %s15, 0
    %p122 = por %p120, %p121
    %p123 = scmp.ne.s32.totalorder %s115, %s117
    %p124 = scmp.eq.s32.totalorder %s20, 1
    %p125 = por %p123, %p124
    %p126 = scmp.ne.s32.totalorder %s117, %s118
    %p127 = scmp.eq.s32.totalorder %s20, 0
    %p128 = por %p126, %p127
    %p129 = scmp.ne.s32.totalorder %s117, %s118
    %p130 = scmp.eq.s32.totalorder %s21, 1
    %p131 = por %p129, %p130
    %p133 = scmp.ne.s32.totalorder %s118, %s132
    %p134 = scmp.eq.s32.totalorder %s21, 0
    %p135 = por %p133, %p134
    %s137 = sadd.s32 %s136, 1
    %p140 = scmp.eq.s32.totalorder %s15, 1
    %p141 = scmp.ne.s32.totalorder %s136, %s138
    %p142 = scmp.eq.s32.totalorder %s15, 0
    %p143 = por %p141, %p142
    %p144 = scmp.ne.s32.totalorder %s136, %s138
    %p145 = scmp.eq.s32.totalorder %s20, 1
    %p146 = por %p144, %p145
    %p147 = scmp.ne.s32.totalorder %s138, %s139
    %p148 = scmp.eq.s32.totalorder %s20, 0
    %p149 = por %p147, %p148
    %p150 = scmp.ne.s32.totalorder %s138, %s139
    %p151 = scmp.eq.s32.totalorder %s21, 1
    %p152 = por %p150, %p151
    %p154 = scmp.ne.s32.totalorder %s139, %s153
    %p155 = scmp.eq.s32.totalorder %s21, 0
    %p156 = por %p154, %p155
    %s158 = sadd.s32 %s157, 1
    %p161 = scmp.eq.s32.totalorder %s15, 1
    %p162 = scmp.ne.s32.totalorder %s157, %s159
    %p163 = scmp.eq.s32.totalorder %s15, 0
    %p164 = por %p162, %p163
    %p165 = scmp.ne.s32.totalorder %s157, %s159
    %p166 = scmp.eq.s32.totalorder %s20, 1
    %p167 = por %p165, %p166
    %p168 = scmp.ne.s32.totalorder %s159, %s160
    %p169 = scmp.eq.s32.totalorder %s20, 0
    %p170 = por %p168, %p169
    %p171 = scmp.ne.s32.totalorder %s159, %s160
    %p172 = scmp.eq.s32.totalorder %s21, 1
    %p173 = por %p171, %p172
    %p175 = scmp.ne.s32.totalorder %s160, %s174
    %p176 = scmp.eq.s32.totalorder %s21, 0
    %p177 = por %p175, %p176
    %s179 = sadd.s32 %s178, 1
    %p182 = scmp.eq.s32.totalorder %s15, 1
    %p183 = scmp.ne.s32.totalorder %s178, %s180
    %p184 = scmp.eq.s32.totalorder %s15, 0
    %p185 = por %p183, %p184
    %p186 = scmp.ne.s32.totalorder %s178, %s180
    %p187 = scmp.eq.s32.totalorder %s20, 1
    %p188 = por %p186, %p187
    %p189 = scmp.ne.s32.totalorder %s180, %s181
    %p190 = scmp.eq.s32.totalorder %s20, 0
    %p191 = por %p189, %p190
    %p192 = scmp.ne.s32.totalorder %s180, %s181
    %p193 = scmp.eq.s32.totalorder %s21, 1
    %p194 = por %p192, %p193
    %p196 = scmp.ne.s32.totalorder %s181, %s195
    %p197 = scmp.eq.s32.totalorder %s21, 0
    %p198 = por %p196, %p197
    %s200 = sadd.s32 %s199, 1
    %p203 = scmp.eq.s32.totalorder %s15, 1
    %p204 = scmp.ne.s32.totalorder %s199, %s201
    %p205 = scmp.eq.s32.totalorder %s15, 0
    %p206 = por %p204, %p205
    %p207 = scmp.ne.s32.totalorder %s199, %s201
    %p208 = scmp.eq.s32.totalorder %s20, 1
    %p209 = por %p207, %p208
    %p210 = scmp.ne.s32.totalorder %s201, %s202
    %p211 = scmp.eq.s32.totalorder %s20, 0
    %p212 = por %p210, %p211
    %p213 = scmp.ne.s32.totalorder %s201, %s202
    %p214 = scmp.eq.s32.totalorder %s21, 1
    %p215 = por %p213, %p214
    %p217 = scmp.ne.s32.totalorder %s202, %s216
    %p218 = scmp.eq.s32.totalorder %s21, 0
    %p219 = por %p217, %p218
    %s221 = sadd.s32 %s220, 1
    %p224 = scmp.eq.s32.totalorder %s15, 1
    %p225 = scmp.ne.s32.totalorder %s220, %s222
    %p226 = scmp.eq.s32.totalorder %s15, 0
    %p227 = por %p225, %p226
    %p228 = scmp.ne.s32.totalorder %s220, %s222
    %p229 = scmp.eq.s32.totalorder %s20, 1
    %p230 = por %p228, %p229
    %p231 = scmp.ne.s32.totalorder %s222, %s223
    %p232 = scmp.eq.s32.totalorder %s20, 0
    %p233 = por %p231, %p232
    %p234 = scmp.ne.s32.totalorder %s222, %s223
    %p235 = scmp.eq.s32.totalorder %s21, 1
    %p236 = por %p234, %p235
    %p238 = scmp.ne.s32.totalorder %s223, %s237
    %p239 = scmp.eq.s32.totalorder %s21, 0
    %p240 = por %p238, %p239
    %s241 = ssub.s32 %s22, %s34
    %s242 = ssub.s32 %s23, %s30
    %s243 = sor.u32 %s241, %s242
    %p244 = scmp.eq.s32.totalorder %s243, 0
    %s246 = sadd.s32 %s245, 1
    %s247 = scalar_select %p244, %s245, %s246
    %p250 = pneg %p244
    %p251 = scmp.eq.s32.totalorder %s15, 1
    %p252 = por %p250, %p251
    %p253 = scmp.ne.s32.totalorder %s245, %s248
    %p254 = scmp.eq.s32.totalorder %s15, 0
    %p255 = por %p253, %p254
    %p256 = scmp.ne.s32.totalorder %s245, %s248
    %p257 = scmp.eq.s32.totalorder %s20, 1
    %p258 = por %p256, %p257
    %p259 = scmp.ne.s32.totalorder %s248, %s249
    %p260 = scmp.eq.s32.totalorder %s20, 0
    %p261 = por %p259, %p260
    %p262 = scmp.ne.s32.totalorder %s248, %s249
    %p263 = scmp.eq.s32.totalorder %s21, 1
    %p264 = por %p262, %p263
    %p266 = scmp.ne.s32.totalorder %s249, %s265
    %p267 = scmp.eq.s32.totalorder %s21, 0
    %p268 = por %p266, %p267
    %p269 = scmp.le.s32.totalorder 1, %s15
    %p270 = scmp.lt.s32.totalorder %s15, 3
    %p271 = pnand %p269, %p270
    %p272 = pneg %p271
    // Predicated region
    $region9: #{model_forward.6} parent=5 // pred_check
      _
    $region10: #{model_forward.6} parent=5 // pred_check_branch
      %274 = sbr.rel (%p271) target = $region12
    $region11: #{model_forward.6} parent=5 // pred_region
      %s275 = ssub.s32 %s15, 1
      // Predicated region
      $region13: #{model_forward.6} parent=11 // pred_check
        %p276 = pneg %p128
      $region14: #{model_forward.6} parent=11 // pred_check_branch
        %278 = sbr.rel (%p276) target = $region16
      $region15: #{model_forward.6} parent=11 // pred_region
        _
      $region16: #{model_forward.6} parent=11 // pred_fallthru
        _
      // Predicated region
      $region17: #{model_forward.6} parent=11 // pred_check
        %p279 = pneg %p149
      $region18: #{model_forward.6} parent=11 // pred_check_branch
        %281 = sbr.rel (%p279) target = $region20
      $region19: #{model_forward.6} parent=11 // pred_region
        _
      $region20: #{model_forward.6} parent=11 // pred_fallthru
        _
      // Predicated region
      $region21: #{model_forward.6} parent=11 // pred_check
        %p282 = pneg %p170
      $region22: #{model_forward.6} parent=11 // pred_check_branch
        %284 = sbr.rel (%p282) target = $region24
      $region23: #{model_forward.6} parent=11 // pred_region
        _
      $region24: #{model_forward.6} parent=11 // pred_fallthru
        _
      // Predicated region
      $region25: #{model_forward.6} parent=11 // pred_check
        %p285 = pneg %p191
      $region26: #{model_forward.6} parent=11 // pred_check_branch
        %287 = sbr.rel (%p285) target = $region28
      $region27: #{model_forward.6} parent=11 // pred_region
        _
      $region28: #{model_forward.6} parent=11 // pred_fallthru
        _
      // Predicated region
      $region29: #{model_forward.6} parent=11 // pred_check
        %p288 = pneg %p212
      $region30: #{model_forward.6} parent=11 // pred_check_branch
        %290 = sbr.rel (%p288) target = $region32
      $region31: #{model_forward.6} parent=11 // pred_region
        _
      $region32: #{model_forward.6} parent=11 // pred_fallthru
        _
      // Predicated region
      $region33: #{model_forward.6} parent=11 // pred_check
        %p291 = pneg %p233
      $region34: #{model_forward.6} parent=11 // pred_check_branch
        %293 = sbr.rel (%p291) target = $region36
      $region35: #{model_forward.6} parent=11 // pred_region
        _
      $region36: #{model_forward.6} parent=11 // pred_fallthru
        _
    $region12: #{model_forward.6} parent=5 // pred_fallthru
      _
    %p294 = scmp.lt.s32.totalorder %s15, 2
    // Predicated region
    $region37: #{model_forward.6} parent=5 // pred_check
      %p295 = pneg %p294
    $region38: #{model_forward.6} parent=5 // pred_check_branch
      %297 = sbr.rel (%p295) target = $region40
    $region39: #{model_forward.6} parent=5 // pred_region
      // Predicated region
      $region41: #{model_forward.6} parent=39 // pred_check
        %p298 = pneg %p49
      $region42: #{model_forward.6} parent=39 // pred_check_branch
        %300 = sbr.rel (%p298) target = $region44
      $region43: #{model_forward.6} parent=39 // pred_region
        %p301 = scmp.lt.s32.totalorder %s22, 1
        %s302 = scalar_select %p301, %s22, 1
        %p303 = scmp.lt.s32.totalorder %s23, 0
        %s304 = scalar_select %p303, %s23, 0
        %s305 = sadd.s32 %s304, %s302
        %s306 = smul.addr %s305, 8
        %s307 = scalar_lea.vmem %s0, %s306
      $region44: #{model_forward.6} parent=39 // pred_fallthru
        _
      // Predicated region
      $region45: #{model_forward.6} parent=39 // pred_check
        %p308 = pneg %p75
      $region46: #{model_forward.6} parent=39 // pred_check_branch
        %310 = sbr.rel (%p308) target = $region48
      $region47: #{model_forward.6} parent=39 // pred_region
        %p311 = scmp.lt.s32.totalorder %s22, 1
        %s312 = scalar_select %p311, %s22, 1
        %s313 = smul.addr %s312, 8
        %s314 = scalar_lea.vmem %s1, %s313
      $region48: #{model_forward.6} parent=39 // pred_fallthru
        _
      // Predicated region
      $region49: #{model_forward.6} parent=39 // pred_check
        %p315 = pneg %p101
      $region50: #{model_forward.6} parent=39 // pred_check_branch
        %317 = sbr.rel (%p315) target = $region52
      $region51: #{model_forward.6} parent=39 // pred_region
        %p318 = scmp.lt.s32.totalorder %s22, 1
        %s319 = scalar_select %p318, %s22, 1
        %s320 = scalar_lea.vmem %s2, %s319
      $region52: #{model_forward.6} parent=39 // pred_fallthru
        _
    $region40: #{model_forward.6} parent=5 // pred_fallthru
      _
    %p321 = scmp.le.s32.totalorder 1, %s15
    %p322 = scmp.lt.s32.totalorder %s15, 3
    %p323 = pnand %p321, %p322
    %p324 = pneg %p323
    // Predicated region
    $region53: #{model_forward.6} parent=5 // pred_check
      _
    $region54: #{model_forward.6} parent=5 // pred_check_branch
      %326 = sbr.rel (%p323) target = $region56
    $region55: #{model_forward.6} parent=5 // pred_region
      %s327 = ssub.s32 %s15, 1
      %p328 = scmp.lt.s32.totalorder %s24, 1
      %s329 = scalar_select %p328, %s24, 1
      %p330 = scmp.lt.s32.totalorder %s25, 0
      %s331 = scalar_select %p330, %s25, 0
      %s332 = sadd.s32 %s331, %s329
      %s333 = smul.addr %s332, 8
      %s334 = scalar_lea.vmem %s0, %s333
      %p335 = pneg %p55
      %p336 = pneg %p52
      %p337 = scmp.lt.s32.totalorder %s24, 1
      %s338 = scalar_select %p337, %s24, 1
      %s339 = smul.addr %s338, 8
      %s340 = scalar_lea.vmem %s1, %s339
      %p341 = pneg %p81
      %p342 = pneg %p78
      %p343 = scmp.lt.s32.totalorder %s24, 1
      %s344 = scalar_select %p343, %s24, 1
      %s345 = scalar_lea.vmem %s2, %s344
      %p346 = pneg %p107
      %p347 = pneg %p104
      %p348 = pneg %p128
      %p349 = pneg %p125
      %p350 = pneg %p149
      %p351 = pneg %p146
      %p352 = pneg %p170
      %p353 = pneg %p167
      %p354 = pneg %p191
      %p355 = pneg %p188
      %p356 = pneg %p212
      %p357 = pneg %p209
      %p358 = pneg %p233
      %p359 = pneg %p230
      %p360 = pneg %p261
      %p361 = pneg %p258
      %p362 = scmp.lt.s32.totalorder %s24, 1
      %s363 = scalar_select %p362, %s24, 1
      %p364 = scmp.lt.s32.totalorder %s25, 0
      %s365 = scalar_select %p364, %s25, 0
      %s366 = sadd.s32 %s365, %s363
      %s367 = smul.addr %s366, 8
      %s368 = scalar_lea.vmem %s9, %s367
      %p369 = scmp.lt.s32.totalorder %s24, 1
      %s370 = scalar_select %p369, %s24, 1
      %p371 = scmp.lt.s32.totalorder %s25, 0
      %s372 = scalar_select %p371, %s25, 0
      %s373 = sadd.s32 %s372, %s370
      %s374 = smul.addr %s373, 8
      %s375 = scalar_lea.vmem %s0, %s374
      %p376 = scmp.lt.s32.totalorder %s24, 1
      %s377 = scalar_select %p376, %s24, 1
      %s378 = smul.addr %s377, 8
      %s379 = scalar_lea.vmem %s1, %s378
      %p380 = scmp.lt.s32.totalorder %s24, 1
      %s381 = scalar_select %p380, %s24, 1
      %s382 = scalar_lea.vmem %s2, %s381
      %p383 = scmp.lt.s32.totalorder %s24, 1
      %s384 = scalar_select %p383, %s24, 1
      %p385 = scmp.lt.s32.totalorder %s25, 0
      %s386 = scalar_select %p385, %s25, 0
      %s387 = sadd.s32 %s386, %s384
      %s388 = smul.addr %s387, 8
      %s389 = scalar_lea.vmem %s9, %s388
      %v391 = vld [vmem:[%s375] sm:$0xff]
      %v392 = vld [vmem:[%s379] sm:$0xff]
      %v393 = vld [vmem:[%s382] sm:$0x1]
      %v394 = vpack.c.bf16 %v391, %v391
      %v395 = vpack.c.bf16 %v392, %v392
      %v396 = vld [vmem:[%s3] sm:$0xf]
      %v397 = vld [vmem:[%s3 + $0x4] sm:$0xf]
      %v398 = vld [vmem:[%s3 + $0x8] sm:$0xf]
      %v399 = vld [vmem:[%s3 + $0xc] sm:$0xf]
      %v400 = vld [vmem:[%s4] sm:$0x1]
      %v402 = vlaneseq
      %v403 = vshrl.u32 %v402, 7
      %v404 = vsub.s32 0, %v403
      %v405 = vrot.slane %v400, %v404
      %v411 = vunpack.c.l.b16 %v396
      %v412 = vunpack.c.l.b16 %v397
      %v413 = vunpack.c.l.b16 %v398
      %v414 = vunpack.c.l.b16 %v399
      %v415 = vpack.c.b16 %v412, %v411
      %v416 = vpack.c.b16 %v414, %v413
      %vm419 = vcmask 261120
      %v421 = vsel %vm419, %v394, 0
      %423 = vmatprep.subr.bf16.mxu0 0
      %424 = vmatpush1.bf16.msra.mxu0 %v415
      %425 = vmatprep.subr.bf16.mxu0 0
      %426 = vmatpush1.bf16.msra.mxu0 %v416
      %427 = vmatprep.subr.bf16.mxu0 0
      %428 = vmatpush1.bf16.msra.mxu0 0
      %429 = vmatprep.subr.bf16.mxu0 0
      %430 = vmatpush1.bf16.msra.mxu0 0
      %431 = vmatprep.subr.bf16.mxu0 0
      %432 = vmatpush1.bf16.msra.mxu0 0
      %433 = vmatprep.subr.bf16.mxu0 0
      %434 = vmatpush1.bf16.msra.mxu0 0
      %435 = vmatprep.subr.bf16.mxu0 0
      %436 = vmatpush1.bf16.msra.mxu0 0
      %437 = vmatprep.subr.bf16.mxu0 0
      %438 = vmatpush1.bf16.msra.mxu0 0
      %439 = vmatprep.subr.bf16.mxu0 0
      %440 = vmatpush1.bf16.msra.mxu0 0
      %441 = vmatprep.subr.bf16.mxu0 0
      %442 = vmatpush1.bf16.msra.mxu0 0
      %443 = vmatprep.subr.bf16.mxu0 0
      %444 = vmatpush1.bf16.msra.mxu0 0
      %445 = vmatprep.subr.bf16.mxu0 0
      %446 = vmatpush1.bf16.msra.mxu0 0
      %447 = vmatprep.subr.bf16.mxu0 0
      %448 = vmatpush1.bf16.msra.mxu0 0
      %449 = vmatprep.subr.bf16.mxu0 0
      %450 = vmatpush1.bf16.msra.mxu0 0
      %451 = vmatprep.subr.bf16.mxu0 0
      %452 = vmatpush1.bf16.msra.mxu0 0
      %453 = vmatprep.subr.bf16.mxu0 0
      %454 = vmatpush1.bf16.msra.mxu0 0
      %455 = vmatprep.mubr.bf16.mxu0 0
      %456 = vmatmul.mubr.bf16.gmra.mrb[0].mxu0 %v421
      %v457 = vpop.f32.mrb[0].mxu0
      %v458 = vadd.f32 %v405, %v457
      %v459 = vpop.f32.mrb[0].mxu0
      %v460 = vpop.f32.mrb[0].mxu0
      %v461 = vpop.f32.mrb[0].mxu0
      %462 = vdwg.mxu0
      %s463 = scalar_lea.vmem %s3, 64
      %v464 = vld [vmem:[%s463] sm:$0xf]
      %v465 = vld [vmem:[%s463 + $0x4] sm:$0xf]
      %v466 = vld [vmem:[%s463 + $0x8] sm:$0xf]
      %v467 = vld [vmem:[%s463 + $0xc] sm:$0xf]
      %s468 = scalar_lea.vmem %s4, 4
      %v469 = vld [vmem:[%s468] sm:$0x1]
      %v471 = vlaneseq
      %v472 = vshrl.u32 %v471, 7
      %v473 = vsub.s32 0, %v472
      %v474 = vrot.slane %v469, %v473
      %v480 = vunpack.c.l.b16 %v464
      %v481 = vunpack.c.l.b16 %v465
      %v482 = vunpack.c.l.b16 %v466
      %v483 = vunpack.c.l.b16 %v467
      %v484 = vpack.c.b16 %v481, %v480
      %v485 = vpack.c.b16 %v483, %v482
      %v489 = vsel %vm419, %v395, 0
      %491 = vmatprep.subr.bf16.mxu0 0
      %492 = vmatpush1.bf16.msra.mxu0 %v484
      %493 = vmatprep.subr.bf16.mxu0 0
      %494 = vmatpush1.bf16.msra.mxu0 %v485
      %495 = vmatprep.subr.bf16.mxu0 0
      %496 = vmatpush1.bf16.msra.mxu0 0
      %497 = vmatprep.subr.bf16.mxu0 0
      %498 = vmatpush1.bf16.msra.mxu0 0
      %499 = vmatprep.subr.bf16.mxu0 0
      %500 = vmatpush1.bf16.msra.mxu0 0
      %501 = vmatprep.subr.bf16.mxu0 0
      %502 = vmatpush1.bf16.msra.mxu0 0
      %503 = vmatprep.subr.bf16.mxu0 0
      %504 = vmatpush1.bf16.msra.mxu0 0
      %505 = vmatprep.subr.bf16.mxu0 0
      %506 = vmatpush1.bf16.msra.mxu0 0
      %507 = vmatprep.subr.bf16.mxu0 0
      %508 = vmatpush1.bf16.msra.mxu0 0
      %509 = vmatprep.subr.bf16.mxu0 0
      %510 = vmatpush1.bf16.msra.mxu0 0
      %511 = vmatprep.subr.bf16.mxu0 0
      %512 = vmatpush1.bf16.msra.mxu0 0
      %513 = vmatprep.subr.bf16.mxu0 0
      %514 = vmatpush1.bf16.msra.mxu0 0
      %515 = vmatprep.subr.bf16.mxu0 0
      %516 = vmatpush1.bf16.msra.mxu0 0
      %517 = vmatprep.subr.bf16.mxu0 0
      %518 = vmatpush1.bf16.msra.mxu0 0
      %519 = vmatprep.subr.bf16.mxu0 0
      %520 = vmatpush1.bf16.msra.mxu0 0
      %521 = vmatprep.subr.bf16.mxu0 0
      %522 = vmatpush1.bf16.msra.mxu0 0
      %523 = vmatprep.mubr.bf16.mxu0 0
      %524 = vmatmul.mubr.bf16.gmra.mrb[0].mxu0 %v489
      %v525 = vpop.f32.mrb[0].mxu0
      %v526 = vadd.f32 %v474, %v525
      %v527 = vpop.f32.mrb[0].mxu0
      %v528 = vpop.f32.mrb[0].mxu0
      %v529 = vpop.f32.mrb[0].mxu0
      %530 = vdwg.mxu0
      %s531 = scalar_lea.vmem %s3, 128
      %v532 = vld [vmem:[%s531] sm:$0xf]
      %v533 = vld [vmem:[%s531 + $0x4] sm:$0xf]
      %v534 = vld [vmem:[%s531 + $0x8] sm:$0xf]
      %v535 = vld [vmem:[%s531 + $0xc] sm:$0xf]
      %s536 = scalar_lea.vmem %s4, 8
      %v537 = vld [vmem:[%s536] sm:$0x1]
      %v539 = vlaneseq
      %v540 = vshrl.u32 %v539, 7
      %v541 = vsub.s32 0, %v540
      %v542 = vrot.slane %v537, %v541
      %v548 = vunpack.c.l.b16 %v532
      %v549 = vunpack.c.l.b16 %v533
      %v550 = vunpack.c.l.b16 %v534
      %v551 = vunpack.c.l.b16 %v535
      %v552 = vpack.c.b16 %v549, %v548
      %v553 = vpack.c.b16 %v551, %v550
      %556 = vmatprep.subr.bf16.mxu0 0
      %557 = vmatpush1.bf16.msra.mxu0 %v552
      %558 = vmatprep.subr.bf16.mxu0 0
      %559 = vmatpush1.bf16.msra.mxu0 %v553
      %560 = vmatprep.subr.bf16.mxu0 0
      %561 = vmatpush1.bf16.msra.mxu0 0
      %562 = vmatprep.subr.bf16.mxu0 0
      %563 = vmatpush1.bf16.msra.mxu0 0
      %564 = vmatprep.subr.bf16.mxu0 0
      %565 = vmatpush1.bf16.msra.mxu0 0
      %566 = vmatprep.subr.bf16.mxu0 0
      %567 = vmatpush1.bf16.msra.mxu0 0
      %568 = vmatprep.subr.bf16.mxu0 0
      %569 = vmatpush1.bf16.msra.mxu0 0
      %570 = vmatprep.subr.bf16.mxu0 0
      %571 = vmatpush1.bf16.msra.mxu0 0
      %572 = vmatprep.subr.bf16.mxu0 0
      %573 = vmatpush1.bf16.msra.mxu0 0
      %574 = vmatprep.subr.bf16.mxu0 0
      %575 = vmatpush1.bf16.msra.mxu0 0
      %576 = vmatprep.subr.bf16.mxu0 0
      %577 = vmatpush1.bf16.msra.mxu0 0
      %578 = vmatprep.subr.bf16.mxu0 0
      %579 = vmatpush1.bf16.msra.mxu0 0
      %580 = vmatprep.subr.bf16.mxu0 0
      %581 = vmatpush1.bf16.msra.mxu0 0
      %582 = vmatprep.subr.bf16.mxu0 0
      %583 = vmatpush1.bf16.msra.mxu0 0
      %584 = vmatprep.subr.bf16.mxu0 0
      %585 = vmatpush1.bf16.msra.mxu0 0
      %586 = vmatprep.subr.bf16.mxu0 0
      %587 = vmatpush1.bf16.msra.mxu0 0
      %588 = vmatprep.mubr.bf16.mxu0 0
      %589 = vmatmul.mubr.bf16.gmra.mrb[0].mxu0 %v489
      %v590 = vpop.f32.mrb[0].mxu0
      %v591 = vadd.f32 %v542, %v590
      %v592 = vpop.f32.mrb[0].mxu0
      %v593 = vpop.f32.mrb[0].mxu0
      %v594 = vpop.f32.mrb[0].mxu0
      %595 = vdwg.mxu0
      %v596 = vpack.c.bf16 %v458, %v458
      %v597 = vpack.c.bf16 %v526, %v526
      %vm598 = vcmask 64512
      %v600 = vsel %vm598, %v596, 0
      %v603 = vsel %vm598, %v597, 0
      %605 = vmatprep.subr.bf16.mxu0 0
      %606 = vmatpush1.bf16.xpose.msra.mxu0 %v603
      %607 = vmatprep.subr.bf16.mxu0 0
      %608 = vmatpush1.bf16.xpose.msra.mxu0 0
      %609 = vmatprep.subr.bf16.mxu0 0
      %610 = vmatpush1.bf16.xpose.msra.mxu0 0
      %611 = vmatprep.subr.bf16.mxu0 0
      %612 = vmatpush1.bf16.xpose.msra.mxu0 0
      %613 = vmatprep.subr.bf16.mxu0 0
      %614 = vmatpush1.bf16.xpose.msra.mxu0 0
      %615 = vmatprep.subr.bf16.mxu0 0
      %616 = vmatpush1.bf16.xpose.msra.mxu0 0
      %617 = vmatprep.subr.bf16.mxu0 0
      %618 = vmatpush1.bf16.xpose.msra.mxu0 0
      %619 = vmatprep.subr.bf16.mxu0 0
      %620 = vmatpush1.bf16.xpose.msra.mxu0 0
      %621 = vmatprep.subr.bf16.mxu0 0
      %622 = vmatpush1.bf16.xpose.msra.mxu0 0
      %623 = vmatprep.subr.bf16.mxu0 0
      %624 = vmatpush1.bf16.xpose.msra.mxu0 0
      %625 = vmatprep.subr.bf16.mxu0 0
      %626 = vmatpush1.bf16.xpose.msra.mxu0 0
      %627 = vmatprep.subr.bf16.mxu0 0
      %628 = vmatpush1.bf16.xpose.msra.mxu0 0
      %629 = vmatprep.subr.bf16.mxu0 0
      %630 = vmatpush1.bf16.xpose.msra.mxu0 0
      %631 = vmatprep.subr.bf16.mxu0 0
      %632 = vmatpush1.bf16.xpose.msra.mxu0 0
      %633 = vmatprep.subr.bf16.mxu0 0
      %634 = vmatpush1.bf16.xpose.msra.mxu0 0
      %635 = vmatprep.subr.bf16.mxu0 0
      %636 = vmatpush1.bf16.xpose.msra.mxu0 0
      %637 = vmatprep.mubr.bf16.mxu0 0
      %638 = vmatmul.mubr.bf16.gmra.mrb[0].mxu0 %v600
      %v639 = vpop.f32.mrb[0].mxu0
      %v640 = vadd.f32 0.0, %v639
      %v641 = vpop.f32.mrb[0].mxu0
      %v642 = vpop.f32.mrb[0].mxu0
      %v643 = vpop.f32.mrb[0].mxu0
      %644 = vdwg.mxu0
      %v645 = vmul.f32 %v640, 0.35355338
      %v647 = vlaneseq
      %v648 = vshrl.u32 %v647, 7
      %v649 = vsub.s32 0, %v648
      %v650 = vrot.slane %v393, %v649
      %v652 = vadd.f32 %v645, %v650
      %v653 = vsel %vm598, %v652, -inf
      %654 = vmax.xlane.f32.xlu0 %v653
      %v655 = vpop.xlane.xlu0 %654
      %v656 = vsub.f32 %v652, %v655
      %v657 = vmul.f32 %v656, 1.442695
      %v658 = vpow.pop %v657
      %v659 = vsel %vm598, %v658, 0.0
      %660 = vadd.xlane.f32.xlu0 %v659
      %v661 = vpop.xlane.xlu0 %660
      %v662 = vrcp.pop %v661
      %v663 = vmul.f32 %v658, %v662
      %v664 = vpack.c.bf16 %v663, %v663
      %v665 = vpack.c.bf16 %v591, %v591
      %v667 = vsel %vm598, %v664, 0
      %vm669 = vcmask 1043456
      %v671 = vsel %vm669, %v665, 0
      %673 = vmatprep.subr.bf16.mxu0 0
      %674 = vmatpush1.bf16.msra.mxu0 %v671
      %675 = vmatprep.subr.bf16.mxu0 0
      %676 = vmatpush1.bf16.msra.mxu0 0
      %677 = vmatprep.subr.bf16.mxu0 0
      %678 = vmatpush1.bf16.msra.mxu0 0
      %679 = vmatprep.subr.bf16.mxu0 0
      %680 = vmatpush1.bf16.msra.mxu0 0
      %681 = vmatprep.subr.bf16.mxu0 0
      %682 = vmatpush1.bf16.msra.mxu0 0
      %683 = vmatprep.subr.bf16.mxu0 0
      %684 = vmatpush1.bf16.msra.mxu0 0
      %685 = vmatprep.subr.bf16.mxu0 0
      %686 = vmatpush1.bf16.msra.mxu0 0
      %687 = vmatprep.subr.bf16.mxu0 0
      %688 = vmatpush1.bf16.msra.mxu0 0
      %689 = vmatprep.subr.bf16.mxu0 0
      %690 = vmatpush1.bf16.msra.mxu0 0
      %691 = vmatprep.subr.bf16.mxu0 0
      %692 = vmatpush1.bf16.msra.mxu0 0
      %693 = vmatprep.subr.bf16.mxu0 0
      %694 = vmatpush1.bf16.msra.mxu0 0
      %695 = vmatprep.subr.bf16.mxu0 0
      %696 = vmatpush1.bf16.msra.mxu0 0
      %697 = vmatprep.subr.bf16.mxu0 0
      %698 = vmatpush1.bf16.msra.mxu0 0
      %699 = vmatprep.subr.bf16.mxu0 0
      %700 = vmatpush1.bf16.msra.mxu0 0
      %701 = vmatprep.subr.bf16.mxu0 0
      %702 = vmatpush1.bf16.msra.mxu0 0
      %703 = vmatprep.subr.bf16.mxu0 0
      %704 = vmatpush1.bf16.msra.mxu0 0
      %705 = vmatprep.mubr.bf16.mxu0 0
      %706 = vmatmul.mubr.bf16.gmra.mrb[0].mxu0 %v667
      %v707 = vpop.f32.mrb[0].mxu0
      %v708 = vadd.f32 0.0, %v707
      %v709 = vpop.f32.mrb[0].mxu0
      %v710 = vpop.f32.mrb[0].mxu0
      %v711 = vpop.f32.mrb[0].mxu0
      %712 = vdwg.mxu0
      %s713 = scalar_lea.vmem %s3, 16
      %v714 = vld [vmem:[%s713] sm:$0xf]
      %v715 = vld [vmem:[%s713 + $0x4] sm:$0xf]
      %v716 = vld [vmem:[%s713 + $0x8] sm:$0xf]
      %v717 = vld [vmem:[%s713 + $0xc] sm:$0xf]
      %s718 = scalar_lea.vmem %s4, 1
      %v719 = vld [vmem:[%s718] sm:$0x1]
      %v721 = vlaneseq
      %v722 = vshrl.u32 %v721, 7
      %v723 = vsub.s32 0, %v722
      %v724 = vrot.slane %v719, %v723
      %v730 = vunpack.c.l.b16 %v714
      %v731 = vunpack.c.l.b16 %v715
      %v732 = vunpack.c.l.b16 %v716
      %v733 = vunpack.c.l.b16 %v717
      %v734 = vpack.c.b16 %v731, %v730
      %v735 = vpack.c.b16 %v733, %v732
      %738 = vmatprep.subr.bf16.mxu0 0
      %739 = vmatpush1.bf16.msra.mxu0 %v734
      %740 = vmatprep.subr.bf16.mxu0 0
      %741 = vmatpush1.bf16.msra.mxu0 %v735
      %742 = vmatprep.subr.bf16.mxu0 0
      %743 = vmatpush1.bf16.msra.mxu0 0
      %744 = vmatprep.subr.bf16.mxu0 0
      %745 = vmatpush1.bf16.msra.mxu0 0
      %746 = vmatprep.subr.bf16.mxu0 0
      %747 = vmatpush1.bf16.msra.mxu0 0
      %748 = vmatprep.subr.bf16.mxu0 0
      %749 = vmatpush1.bf16.msra.mxu0 0
      %750 = vmatprep.subr.bf16.mxu0 0
      %751 = vmatpush1.bf16.msra.mxu0 0
      %752 = vmatprep.subr.bf16.mxu0 0
      %753 = vmatpush1.bf16.msra.mxu0 0
      %754 = vmatprep.subr.bf16.mxu0 0
      %755 = vmatpush1.bf16.msra.mxu0 0
      %756 = vmatprep.subr.bf16.mxu0 0
      %757 = vmatpush1.bf16.msra.mxu0 0
      %758 = vmatprep.subr.bf16.mxu0 0
      %759 = vmatpush1.bf16.msra.mxu0 0
      %760 = vmatprep.subr.bf16.mxu0 0
      %761 = vmatpush1.bf16.msra.mxu0 0
      %762 = vmatprep.subr.bf16.mxu0 0
      %763 = vmatpush1.bf16.msra.mxu0 0
      %764 = vmatprep.subr.bf16.mxu0 0
      %765 = vmatpush1.bf16.msra.mxu0 0
      %766 = vmatprep.subr.bf16.mxu0 0
      %767 = vmatpush1.bf16.msra.mxu0 0
      %768 = vmatprep.subr.bf16.mxu0 0
      %769 = vmatpush1.bf16.msra.mxu0 0
      %770 = vmatprep.mubr.bf16.mxu0 0
      %771 = vmatmul.mubr.bf16.gmra.mrb[0].mxu0 %v421
      %v772 = vpop.f32.mrb[0].mxu0
      %v773 = vadd.f32 %v724, %v772
      %v774 = vpop.f32.mrb[0].mxu0
      %v775 = vpop.f32.mrb[0].mxu0
      %v776 = vpop.f32.mrb[0].mxu0
      %777 = vdwg.mxu0
      %s778 = scalar_lea.vmem %s3, 80
      %v779 = vld [vmem:[%s778] sm:$0xf]
      %v780 = vld [vmem:[%s778 + $0x4] sm:$0xf]
      %v781 = vld [vmem:[%s778 + $0x8] sm:$0xf]
      %v782 = vld [vmem:[%s778 + $0xc] sm:$0xf]
      %s783 = scalar_lea.vmem %s4, 5
      %v784 = vld [vmem:[%s783] sm:$0x1]
      %v786 = vlaneseq
      %v787 = vshrl.u32 %v786, 7
      %v788 = vsub.s32 0, %v787
      %v789 = vrot.slane %v784, %v788
      %v795 = vunpack.c.l.b16 %v779
      %v796 = vunpack.c.l.b16 %v780
      %v797 = vunpack.c.l.b16 %v781
      %v798 = vunpack.c.l.b16 %v782
      %v799 = vpack.c.b16 %v796, %v795
      %v800 = vpack.c.b16 %v798, %v797
      %803 = vmatprep.subr.bf16.mxu0 0
      %804 = vmatpush1.bf16.msra.mxu0 %v799
      %805 = vmatprep.subr.bf16.mxu0 0
      %806 = vmatpush1.bf16.msra.mxu0 %v800
      %807 = vmatprep.subr.bf16.mxu0 0
      %808 = vmatpush1.bf16.msra.mxu0 0
      %809 = vmatprep.subr.bf16.mxu0 0
      %810 = vmatpush1.bf16.msra.mxu0 0
      %811 = vmatprep.subr.bf16.mxu0 0
      %812 = vmatpush1.bf16.msra.mxu0 0
      %813 = vmatprep.subr.bf16.mxu0 0
      %814 = vmatpush1.bf16.msra.mxu0 0
      %815 = vmatprep.subr.bf16.mxu0 0
      %816 = vmatpush1.bf16.msra.mxu0 0
      %817 = vmatprep.subr.bf16.mxu0 0
      %818 = vmatpush1.bf16.msra.mxu0 0
      %819 = vmatprep.subr.bf16.mxu0 0
      %820 = vmatpush1.bf16.msra.mxu0 0
      %821 = vmatprep.subr.bf16.mxu0 0
      %822 = vmatpush1.bf16.msra.mxu0 0
      %823 = vmatprep.subr.bf16.mxu0 0
      %824 = vmatpush1.bf16.msra.mxu0 0
      %825 = vmatprep.subr.bf16.mxu0 0
      %826 = vmatpush1.bf16.msra.mxu0 0
      %827 = vmatprep.subr.bf16.mxu0 0
      %828 = vmatpush1.bf16.msra.mxu0 0
      %829 = vmatprep.subr.bf16.mxu0 0
      %830 = vmatpush1.bf16.msra.mxu0 0
      %831 = vmatprep.subr.bf16.mxu0 0
      %832 = vmatpush1.bf16.msra.mxu0 0
      %833 = vmatprep.subr.bf16.mxu0 0
      %834 = vmatpush1.bf16.msra.mxu0 0
      %835 = vmatprep.mubr.bf16.mxu0 0
      %836 = vmatmul.mubr.bf16.gmra.mrb[0].mxu0 %v489
      %v837 = vpop.f32.mrb[0].mxu0
      %v838 = vadd.f32 %v789, %v837
      %v839 = vpop.f32.mrb[0].mxu0
      %v840 = vpop.f32.mrb[0].mxu0
      %v841 = vpop.f32.mrb[0].mxu0
      %842 = vdwg.mxu0
      %s843 = scalar_lea.vmem %s3, 144
      %v844 = vld [vmem:[%s843] sm:$0xf]
      %v845 = vld [vmem:[%s843 + $0x4] sm:$0xf]
      %v846 = vld [vmem:[%s843 + $0x8] sm:$0xf]
      %v847 = vld [vmem:[%s843 + $0xc] sm:$0xf]
      %s848 = scalar_lea.vmem %s4, 9
      %v849 = vld [vmem:[%s848] sm:$0x1]
      %v851 = vlaneseq
      %v852 = vshrl.u32 %v851, 7
      %v853 = vsub.s32 0, %v852
      %v854 = vrot.slane %v849, %v853
      %v860 = vunpack.c.l.b16 %v844
      %v861 = vunpack.c.l.b16 %v845
      %v862 = vunpack.c.l.b16 %v846
      %v863 = vunpack.c.l.b16 %v847
      %v864 = vpack.c.b16 %v861, %v860
      %v865 = vpack.c.b16 %v863, %v862
      %868 = vmatprep.subr.bf16.mxu0 0
      %869 = vmatpush1.bf16.msra.mxu0 %v864
      %870 = vmatprep.subr.bf16.mxu0 0
      %871 = vmatpush1.bf16.msra.mxu0 %v865
      %872 = vmatprep.subr.bf16.mxu0 0
      %873 = vmatpush1.bf16.msra.mxu0 0
      %874 = vmatprep.subr.bf16.mxu0 0
      %875 = vmatpush1.bf16.msra.mxu0 0
      %876 = vmatprep.subr.bf16.mxu0 0
      %877 = vmatpush1.bf16.msra.mxu0 0
      %878 = vmatprep.subr.bf16.mxu0 0
      %879 = vmatpush1.bf16.msra.mxu0 0
      %880 = vmatprep.subr.bf16.mxu0 0
      %881 = vmatpush1.bf16.msra.mxu0 0
      %882 = vmatprep.subr.bf16.mxu0 0
      %883 = vmatpush1.bf16.msra.mxu0 0
      %884 = vmatprep.subr.bf16.mxu0 0
      %885 = vmatpush1.bf16.msra.mxu0 0
      %886 = vmatprep.subr.bf16.mxu0 0
      %887 = vmatpush1.bf16.msra.mxu0 0
      %888 = vmatprep.subr.bf16.mxu0 0
      %889 = vmatpush1.bf16.msra.mxu0 0
      %890 = vmatprep.subr.bf16.mxu0 0
      %891 = vmatpush1.bf16.msra.mxu0 0
      %892 = vmatprep.subr.bf16.mxu0 0
      %893 = vmatpush1.bf16.msra.mxu0 0
      %894 = vmatprep.subr.bf16.mxu0 0
      %895 = vmatpush1.bf16.msra.mxu0 0
      %896 = vmatprep.subr.bf16.mxu0 0
      %897 = vmatpush1.bf16.msra.mxu0 0
      %898 = vmatprep.subr.bf16.mxu0 0
      %899 = vmatpush1.bf16.msra.mxu0 0
      %900 = vmatprep.mubr.bf16.mxu0 0
      %901 = vmatmul.mubr.bf16.gmra.mrb[0].mxu0 %v489
      %v902 = vpop.f32.mrb[0].mxu0
      %v903 = vadd.f32 %v854, %v902
      %v904 = vpop.f32.mrb[0].mxu0
      %v905 = vpop.f32.mrb[0].mxu0
      %v906 = vpop.f32.mrb[0].mxu0
      %907 = vdwg.mxu0
      %v908 = vpack.c.bf16 %v773, %v773
      %v909 = vpack.c.bf16 %v838, %v838
      %v911 = vsel %vm598, %v908, 0
      %v914 = vsel %vm598, %v909, 0
      %916 = vmatprep.subr.bf16.mxu0 0
      %917 = vmatpush1.bf16.xpose.msra.mxu0 %v914
      %918 = vmatprep.subr.bf16.mxu0 0
      %919 = vmatpush1.bf16.xpose.msra.mxu0 0
      %920 = vmatprep.subr.bf16.mxu0 0
      %921 = vmatpush1.bf16.xpose.msra.mxu0 0
      %922 = vmatprep.subr.bf16.mxu0 0
      %923 = vmatpush1.bf16.xpose.msra.mxu0 0
      %924 = vmatprep.subr.bf16.mxu0 0
      %925 = vmatpush1.bf16.xpose.msra.mxu0 0
      %926 = vmatprep.subr.bf16.mxu0 0
      %927 = vmatpush1.bf16.xpose.msra.mxu0 0
      %928 = vmatprep.subr.bf16.mxu0 0
      %929 = vmatpush1.bf16.xpose.msra.mxu0 0
      %930 = vmatprep.subr.bf16.mxu0 0
      %931 = vmatpush1.bf16.xpose.msra.mxu0 0
      %932 = vmatprep.subr.bf16.mxu0 0
      %933 = vmatpush1.bf16.xpose.msra.mxu0 0
      %934 = vmatprep.subr.bf16.mxu0 0
      %935 = vmatpush1.bf16.xpose.msra.mxu0 0
      %936 = vmatprep.subr.bf16.mxu0 0
      %937 = vmatpush1.bf16.xpose.msra.mxu0 0
      %938 = vmatprep.subr.bf16.mxu0 0
      %939 = vmatpush1.bf16.xpose.msra.mxu0 0
      %940 = vmatprep.subr.bf16.mxu0 0
      %941 = vmatpush1.bf16.xpose.msra.mxu0 0
      %942 = vmatprep.subr.bf16.mxu0 0
      %943 = vmatpush1.bf16.xpose.msra.mxu0 0
      %944 = vmatprep.subr.bf16.mxu0 0
      %945 = vmatpush1.bf16.xpose.msra.mxu0 0
      %946 = vmatprep.subr.bf16.mxu0 0
      %947 = vmatpush1.bf16.xpose.msra.mxu0 0
      %948 = vmatprep.mubr.bf16.mxu0 0
      %949 = vmatmul.mubr.bf16.gmra.mrb[0].mxu0 %v911
      %v950 = vpop.f32.mrb[0].mxu0
      %v951 = vadd.f32 0.0, %v950
      %v952 = vpop.f32.mrb[0].mxu0
      %v953 = vpop.f32.mrb[0].mxu0
      %v954 = vpop.f32.mrb[0].mxu0
      %955 = vdwg.mxu0
      %v956 = vmul.f32 %v951, 0.35355338
      %v957 = vadd.f32 %v956, %v650
      %v958 = vsel %vm598, %v957, -inf
      %959 = vmax.xlane.f32.xlu0 %v958
      %v960 = vpop.xlane.xlu0 %959
      %v961 = vsub.f32 %v957, %v960
      %v962 = vmul.f32 %v961, 1.442695
      %v963 = vpow.pop %v962
      %v964 = vsel %vm598, %v963, 0.0
      %965 = vadd.xlane.f32.xlu0 %v964
      %v966 = vpop.xlane.xlu0 %965
      %v967 = vrcp.pop %v966
      %v968 = vmul.f32 %v963, %v967
      %v969 = vpack.c.bf16 %v968, %v968
      %v970 = vpack.c.bf16 %v903, %v903
      %v972 = vsel %vm598, %v969, 0
      %v975 = vsel %vm669, %v970, 0
      %977 = vmatprep.subr.bf16.mxu0 0
      %978 = vmatpush1.bf16.msra.mxu0 %v975
      %979 = vmatprep.subr.bf16.mxu0 0
      %980 = vmatpush1.bf16.msra.mxu0 0
      %981 = vmatprep.subr.bf16.mxu0 0
      %982 = vmatpush1.bf16.msra.mxu0 0
      %983 = vmatprep.subr.bf16.mxu0 0
      %984 = vmatpush1.bf16.msra.mxu0 0
      %985 = vmatprep.subr.bf16.mxu0 0
      %986 = vmatpush1.bf16.msra.mxu0 0
      %987 = vmatprep.subr.bf16.mxu0 0
      %988 = vmatpush1.bf16.msra.mxu0 0
      %989 = vmatprep.subr.bf16.mxu0 0
      %990 = vmatpush1.bf16.msra.mxu0 0
      %991 = vmatprep.subr.bf16.mxu0 0
      %992 = vmatpush1.bf16.msra.mxu0 0
      %993 = vmatprep.subr.bf16.mxu0 0
      %994 = vmatpush1.bf16.msra.mxu0 0
      %995 = vmatprep.subr.bf16.mxu0 0
      %996 = vmatpush1.bf16.msra.mxu0 0
      %997 = vmatprep.subr.bf16.mxu0 0
      %998 = vmatpush1.bf16.msra.mxu0 0
      %999 = vmatprep.subr.bf16.mxu0 0
      %1000 = vmatpush1.bf16.msra.mxu0 0
      %1001 = vmatprep.subr.bf16.mxu0 0
      %1002 = vmatpush1.bf16.msra.mxu0 0
      %1003 = vmatprep.subr.bf16.mxu0 0
      %1004 = vmatpush1.bf16.msra.mxu0 0
      %1005 = vmatprep.subr.bf16.mxu0 0
      %1006 = vmatpush1.bf16.msra.mxu0 0
      %1007 = vmatprep.subr.bf16.mxu0 0
      %1008 = vmatpush1.bf16.msra.mxu0 0
      %1009 = vmatprep.mubr.bf16.mxu0 0
      %1010 = vmatmul.mubr.bf16.gmra.mrb[0].mxu0 %v972
      %v1011 = vpop.f32.mrb[0].mxu0
      %v1012 = vadd.f32 0.0, %v1011
      %v1013 = vpop.f32.mrb[0].mxu0
      %v1014 = vpop.f32.mrb[0].mxu0
      %v1015 = vpop.f32.mrb[0].mxu0
      %1016 = vdwg.mxu0
      %s1017 = scalar_lea.vmem %s3, 32
      %v1018 = vld [vmem:[%s1017] sm:$0xf]
      %v1019 = vld [vmem:[%s1017 + $0x4] sm:$0xf]
      %v1020 = vld [vmem:[%s1017 + $0x8] sm:$0xf]
      %v1021 = vld [vmem:[%s1017 + $0xc] sm:$0xf]
      %s1022 = scalar_lea.vmem %s4, 2
      %v1023 = vld [vmem:[%s1022] sm:$0x1]
      %v1025 = vlaneseq
      %v1026 = vshrl.u32 %v1025, 7
      %v1027 = vsub.s32 0, %v1026
      %v1028 = vrot.slane %v1023, %v1027
      %v1034 = vunpack.c.l.b16 %v1018
      %v1035 = vunpack.c.l.b16 %v1019
      %v1036 = vunpack.c.l.b16 %v1020
      %v1037 = vunpack.c.l.b16 %v1021
      %v1038 = vpack.c.b16 %v1035, %v1034
      %v1039 = vpack.c.b16 %v1037, %v1036
      %1042 = vmatprep.subr.bf16.mxu0 0
      %1043 = vmatpush1.bf16.msra.mxu0 %v1038
      %1044 = vmatprep.subr.bf16.mxu0 0
      %1045 = vmatpush1.bf16.msra.mxu0 %v1039
      %1046 = vmatprep.subr.bf16.mxu0 0
      %1047 = vmatpush1.bf16.msra.mxu0 0
      %1048 = vmatprep.subr.bf16.mxu0 0
      %1049 = vmatpush1.bf16.msra.mxu0 0
      %1050 = vmatprep.subr.bf16.mxu0 0
      %1051 = vmatpush1.bf16.msra.mxu0 0
      %1052 = vmatprep.subr.bf16.mxu0 0
      %1053 = vmatpush1.bf16.msra.mxu0 0
      %1054 = vmatprep.subr.bf16.mxu0 0
      %1055 = vmatpush1.bf16.msra.mxu0 0
      %1056 = vmatprep.subr.bf16.mxu0 0
      %1057 = vmatpush1.bf16.msra.mxu0 0
      %1058 = vmatprep.subr.bf16.mxu0 0
      %1059 = vmatpush1.bf16.msra.mxu0 0
      %1060 = vmatprep.subr.bf16.mxu0 0
      %1061 = vmatpush1.bf16.msra.mxu0 0
      %1062 = vmatprep.subr.bf16.mxu0 0
      %1063 = vmatpush1.bf16.msra.mxu0 0
      %1064 = vmatprep.subr.bf16.mxu0 0
      %1065 = vmatpush1.bf16.msra.mxu0 0
      %1066 = vmatprep.subr.bf16.mxu0 0
      %1067 = vmatpush1.bf16.msra.mxu0 0
      %1068 = vmatprep.subr.bf16.mxu0 0
      %1069 = vmatpush1.bf16.msra.mxu0 0
      %1070 = vmatprep.subr.bf16.mxu0 0
      %1071 = vmatpush1.bf16.msra.mxu0 0
      %1072 = vmatprep.subr.bf16.mxu0 0
      %1073 = vmatpush1.bf16.msra.mxu0 0
      %1074 = vmatprep.mubr.bf16.mxu0 0
      %1075 = vmatmul.mubr.bf16.gmra.mrb[0].mxu0 %v421
      %v1076 = vpop.f32.mrb[0].mxu0
      %v1077 = vadd.f32 %v1028, %v1076
      %v1078 = vpop.f32.mrb[0].mxu0
      %v1079 = vpop.f32.mrb[0].mxu0
      %v1080 = vpop.f32.mrb[0].mxu0
      %1081 = vdwg.mxu0
      %s1082 = scalar_lea.vmem %s3, 96
      %v1083 = vld [vmem:[%s1082] sm:$0xf]
      %v1084 = vld [vmem:[%s1082 + $0x4] sm:$0xf]
      %v1085 = vld [vmem:[%s1082 + $0x8] sm:$0xf]
      %v1086 = vld [vmem:[%s1082 + $0xc] sm:$0xf]
      %s1087 = scalar_lea.vmem %s4, 6
      %v1088 = vld [vmem:[%s1087] sm:$0x1]
      %v1090 = vlaneseq
      %v1091 = vshrl.u32 %v1090, 7
      %v1092 = vsub.s32 0, %v1091
      %v1093 = vrot.slane %v1088, %v1092
      %v1099 = vunpack.c.l.b16 %v1083
      %v1100 = vunpack.c.l.b16 %v1084
      %v1101 = vunpack.c.l.b16 %v1085
      %v1102 = vunpack.c.l.b16 %v1086
      %v1103 = vpack.c.b16 %v1100, %v1099
      %v1104 = vpack.c.b16 %v1102, %v1101
      %1107 = vmatprep.subr.bf16.mxu0 0
      %1108 = vmatpush1.bf16.msra.mxu0 %v1103
      %1109 = vmatprep.subr.bf16.mxu0 0
      %1110 = vmatpush1.bf16.msra.mxu0 %v1104
      %1111 = vmatprep.subr.bf16.mxu0 0
      %1112 = vmatpush1.bf16.msra.mxu0 0
      %1113 = vmatprep.subr.bf16.mxu0 0
      %1114 = vmatpush1.bf16.msra.mxu0 0
      %1115 = vmatprep.subr.bf16.mxu0 0
      %1116 = vmatpush1.bf16.msra.mxu0 0
      %1117 = vmatprep.subr.bf16.mxu0 0
      %1118 = vmatpush1.bf16.msra.mxu0 0
      %1119 = vmatprep.subr.bf16.mxu0 0
      %1120 = vmatpush1.bf16.msra.mxu0 0
      %1121 = vmatprep.subr.bf16.mxu0 0
      %1122 = vmatpush1.bf16.msra.mxu0 0
      %1123 = vmatprep.subr.bf16.mxu0 0
      %1124 = vmatpush1.bf16.msra.mxu0 0
      %1125 = vmatprep.subr.bf16.mxu0 0
      %1126 = vmatpush1.bf16.msra.mxu0 0
      %1127 = vmatprep.subr.bf16.mxu0 0
      %1128 = vmatpush1.bf16.msra.mxu0 0
      %1129 = vmatprep.subr.bf16.mxu0 0
      %1130 = vmatpush1.bf16.msra.mxu0 0
      %1131 = vmatprep.subr.bf16.mxu0 0
      %1132 = vmatpush1.bf16.msra.mxu0 0
      %1133 = vmatprep.subr.bf16.mxu0 0
      %1134 = vmatpush1.bf16.msra.mxu0 0
      %1135 = vmatprep.subr.bf16.mxu0 0
      %1136 = vmatpush1.bf16.msra.mxu0 0
      %1137 = vmatprep.subr.bf16.mxu0 0
      %1138 = vmatpush1.bf16.msra.mxu0 0
      %1139 = vmatprep.mubr.bf16.mxu0 0
      %1140 = vmatmul.mubr.bf16.gmra.mrb[0].mxu0 %v489
      %v1141 = vpop.f32.mrb[0].mxu0
      %v1142 = vadd.f32 %v1093, %v1141
      %v1143 = vpop.f32.mrb[0].mxu0
      %v1144 = vpop.f32.mrb[0].mxu0
      %v1145 = vpop.f32.mrb[0].mxu0
      %1146 = vdwg.mxu0
      %s1147 = scalar_lea.vmem %s3, 160
      %v1148 = vld [vmem:[%s1147] sm:$0xf]
      %v1149 = vld [vmem:[%s1147 + $0x4] sm:$0xf]
      %v1150 = vld [vmem:[%s1147 + $0x8] sm:$0xf]
      %v1151 = vld [vmem:[%s1147 + $0xc] sm:$0xf]
      %s1152 = scalar_lea.vmem %s4, 10
      %v1153 = vld [vmem:[%s1152] sm:$0x1]
      %v1155 = vlaneseq
      %v1156 = vshrl.u32 %v1155, 7
      %v1157 = vsub.s32 0, %v1156
      %v1158 = vrot.slane %v1153, %v1157
      %v1164 = vunpack.c.l.b16 %v1148
      %v1165 = vunpack.c.l.b16 %v1149
      %v1166 = vunpack.c.l.b16 %v1150
      %v1167 = vunpack.c.l.b16 %v1151
      %v1168 = vpack.c.b16 %v1165, %v1164
      %v1169 = vpack.c.b16 %v1167, %v1166
      %1172 = vmatprep.subr.bf16.mxu0 0
      %1173 = vmatpush1.bf16.msra.mxu0 %v1168
      %1174 = vmatprep.subr.bf16.mxu0 0
      %1175 = vmatpush1.bf16.msra.mxu0 %v1169
      %1176 = vmatprep.subr.bf16.mxu0 0
      %1177 = vmatpush1.bf16.msra.mxu0 0
      %1178 = vmatprep.subr.bf16.mxu0 0
      %1179 = vmatpush1.bf16.msra.mxu0 0
      %1180 = vmatprep.subr.bf16.mxu0 0
      %1181 = vmatpush1.bf16.msra.mxu0 0
      %1182 = vmatprep.subr.bf16.mxu0 0
      %1183 = vmatpush1.bf16.msra.mxu0 0
      %1184 = vmatprep.subr.bf16.mxu0 0
      %1185 = vmatpush1.bf16.msra.mxu0 0
      %1186 = vmatprep.subr.bf16.mxu0 0
      %1187 = vmatpush1.bf16.msra.mxu0 0
      %1188 = vmatprep.subr.bf16.mxu0 0
      %1189 = vmatpush1.bf16.msra.mxu0 0
      %1190 = vmatprep.subr.bf16.mxu0 0
      %1191 = vmatpush1.bf16.msra.mxu0 0
      %1192 = vmatprep.subr.bf16.mxu0 0
      %1193 = vmatpush1.bf16.msra.mxu0 0
      %1194 = vmatprep.subr.bf16.mxu0 0
      %1195 = vmatpush1.bf16.msra.mxu0 0
      %1196 = vmatprep.subr.bf16.mxu0 0
      %1197 = vmatpush1.bf16.msra.mxu0 0
      %1198 = vmatprep.subr.bf16.mxu0 0
      %1199 = vmatpush1.bf16.msra.mxu0 0
      %1200 = vmatprep.subr.bf16.mxu0 0
      %1201 = vmatpush1.bf16.msra.mxu0 0
      %1202 = vmatprep.subr.bf16.mxu0 0
      %1203 = vmatpush1.bf16.msra.mxu0 0
      %1204 = vmatprep.mubr.bf16.mxu0 0
      %1205 = vmatmul.mubr.bf16.gmra.mrb[0].mxu0 %v489
      %v1206 = vpop.f32.mrb[0].mxu0
      %v1207 = vadd.f32 %v1158, %v1206
      %v1208 = vpop.f32.mrb[0].mxu0
      %v1209 = vpop.f32.mrb[0].mxu0
      %v1210 = vpop.f32.mrb[0].mxu0
      %1211 = vdwg.mxu0
      %v1212 = vpack.c.bf16 %v1077, %v1077
      %v1213 = vpack.c.bf16 %v1142, %v1142
      %v1215 = vsel %vm598, %v1212, 0
      %v1218 = vsel %vm598, %v1213, 0
      %1220 = vmatprep.subr.bf16.mxu0 0
      %1221 = vmatpush1.bf16.xpose.msra.mxu0 %v1218
      %1222 = vmatprep.subr.bf16.mxu0 0
      %1223 = vmatpush1.bf16.xpose.msra.mxu0 0
      %1224 = vmatprep.subr.bf16.mxu0 0
      %1225 = vmatpush1.bf16.xpose.msra.mxu0 0
      %1226 = vmatprep.subr.bf16.mxu0 0
      %1227 = vmatpush1.bf16.xpose.msra.mxu0 0
      %1228 = vmatprep.subr.bf16.mxu0 0
      %1229 = vmatpush1.bf16.xpose.msra.mxu0 0
      %1230 = vmatprep.subr.bf16.mxu0 0
      %1231 = vmatpush1.bf16.xpose.msra.mxu0 0
      %1232 = vmatprep.subr.bf16.mxu0 0
      %1233 = vmatpush1.bf16.xpose.msra.mxu0 0
      %1234 = vmatprep.subr.bf16.mxu0 0
      %1235 = vmatpush1.bf16.xpose.msra.mxu0 0
      %1236 = vmatprep.subr.bf16.mxu0 0
      %1237 = vmatpush1.bf16.xpose.msra.mxu0 0
      %1238 = vmatprep.subr.bf16.mxu0 0
      %1239 = vmatpush1.bf16.xpose.msra.mxu0 0
      %1240 = vmatprep.subr.bf16.mxu0 0
      %1241 = vmatpush1.bf16.xpose.msra.mxu0 0
      %1242 = vmatprep.subr.bf16.mxu0 0
      %1243 = vmatpush1.bf16.xpose.msra.mxu0 0
      %1244 = vmatprep.subr.bf16.mxu0 0
      %1245 = vmatpush1.bf16.xpose.msra.mxu0 0
      %1246 = vmatprep.subr.bf16.mxu0 0
      %1247 = vmatpush1.bf16.xpose.msra.mxu0 0
      %1248 = vmatprep.subr.bf16.mxu0 0
      %1249 = vmatpush1.bf16.xpose.msra.mxu0 0
      %1250 = vmatprep.subr.bf16.mxu0 0
      %1251 = vmatpush1.bf16.xpose.msra.mxu0 0
      %1252 = vmatprep.mubr.bf16.mxu0 0
      %1253 = vmatmul.mubr.bf16.gmra.mrb[0].mxu0 %v1215
      %v1254 = vpop.f32.mrb[0].mxu0
      %v1255 = vadd.f32 0.0, %v1254
      %v1256 = vpop.f32.mrb[0].mxu0
      %v1257 = vpop.f32.mrb[0].mxu0
      %v1258 = vpop.f32.mrb[0].mxu0
      %1259 = vdwg.mxu0
      %v1260 = vmul.f32 %v1255, 0.35355338
      %v1261 = vadd.f32 %v1260, %v650
      %v1262 = vsel %vm598, %v1261, -inf
      %1263 = vmax.xlane.f32.xlu0 %v1262
      %v1264 = vpop.xlane.xlu0 %1263
      %v1265 = vsub.f32 %v1261, %v1264
      %v1266 = vmul.f32 %v1265, 1.442695
      %v1267 = vpow.pop %v1266
      %v1268 = vsel %vm598, %v1267, 0.0
      %1269 = vadd.xlane.f32.xlu0 %v1268
      %v1270 = vpop.xlane.xlu0 %1269
      %v1271 = vrcp.pop %v1270
      %v1272 = vmul.f32 %v1267, %v1271
      %v1273 = vpack.c.bf16 %v1272, %v1272
      %v1274 = vpack.c.bf16 %v1207, %v1207
      %v1276 = vsel %vm598, %v1273, 0
      %v1279 = vsel %vm669, %v1274, 0
      %1281 = vmatprep.subr.bf16.mxu0 0
      %1282 = vmatpush1.bf16.msra.mxu0 %v1279
      %1283 = vmatprep.subr.bf16.mxu0 0
      %1284 = vmatpush1.bf16.msra.mxu0 0
      %1285 = vmatprep.subr.bf16.mxu0 0
      %1286 = vmatpush1.bf16.msra.mxu0 0
      %1287 = vmatprep.subr.bf16.mxu0 0
      %1288 = vmatpush1.bf16.msra.mxu0 0
      %1289 = vmatprep.subr.bf16.mxu0 0
      %1290 = vmatpush1.bf16.msra.mxu0 0
      %1291 = vmatprep.subr.bf16.mxu0 0
      %1292 = vmatpush1.bf16.msra.mxu0 0
      %1293 = vmatprep.subr.bf16.mxu0 0
      %1294 = vmatpush1.bf16.msra.mxu0 0
      %1295 = vmatprep.subr.bf16.mxu0 0
      %1296 = vmatpush1.bf16.msra.mxu0 0
      %1297 = vmatprep.subr.bf16.mxu0 0
      %1298 = vmatpush1.bf16.msra.mxu0 0
      %1299 = vmatprep.subr.bf16.mxu0 0
      %1300 = vmatpush1.bf16.msra.mxu0 0
      %1301 = vmatprep.subr.bf16.mxu0 0
      %1302 = vmatpush1.bf16.msra.mxu0 0
      %1303 = vmatprep.subr.bf16.mxu0 0
      %1304 = vmatpush1.bf16.msra.mxu0 0
      %1305 = vmatprep.subr.bf16.mxu0 0
      %1306 = vmatpush1.bf16.msra.mxu0 0
      %1307 = vmatprep.subr.bf16.mxu0 0
      %1308 = vmatpush1.bf16.msra.mxu0 0
      %1309 = vmatprep.subr.bf16.mxu0 0
      %1310 = vmatpush1.bf16.msra.mxu0 0
      %1311 = vmatprep.subr.bf16.mxu0 0
      %1312 = vmatpush1.bf16.msra.mxu0 0
      %1313 = vmatprep.mubr.bf16.mxu0 0
      %1314 = vmatmul.mubr.bf16.gmra.mrb[0].mxu0 %v1276
      %v1315 = vpop.f32.mrb[0].mxu0
      %v1316 = vadd.f32 0.0, %v1315
      %v1317 = vpop.f32.mrb[0].mxu0
      %v1318 = vpop.f32.mrb[0].mxu0
      %v1319 = vpop.f32.mrb[0].mxu0
      %1320 = vdwg.mxu0
      %s1321 = scalar_lea.vmem %s3, 48
      %v1322 = vld [vmem:[%s1321] sm:$0xf]
      %v1323 = vld [vmem:[%s1321 + $0x4] sm:$0xf]
      %v1324 = vld [vmem:[%s1321 + $0x8] sm:$0xf]
      %v1325 = vld [vmem:[%s1321 + $0xc] sm:$0xf]
      %s1326 = scalar_lea.vmem %s4, 3
      %v1327 = vld [vmem:[%s1326] sm:$0x1]
      %v1329 = vlaneseq
      %v1330 = vshrl.u32 %v1329, 7
      %v1331 = vsub.s32 0, %v1330
      %v1332 = vrot.slane %v1327, %v1331
      %v1338 = vunpack.c.l.b16 %v1322
      %v1339 = vunpack.c.l.b16 %v1323
      %v1340 = vunpack.c.l.b16 %v1324
      %v1341 = vunpack.c.l.b16 %v1325
      %v1342 = vpack.c.b16 %v1339, %v1338
      %v1343 = vpack.c.b16 %v1341, %v1340
      %1346 = vmatprep.subr.bf16.mxu0 0
      %1347 = vmatpush1.bf16.msra.mxu0 %v1342
      %1348 = vmatprep.subr.bf16.mxu0 0
      %1349 = vmatpush1.bf16.msra.mxu0 %v1343
      %1350 = vmatprep.subr.bf16.mxu0 0
      %1351 = vmatpush1.bf16.msra.mxu0 0
      %1352 = vmatprep.subr.bf16.mxu0 0
      %1353 = vmatpush1.bf16.msra.mxu0 0
      %1354 = vmatprep.subr.bf16.mxu0 0
      %1355 = vmatpush1.bf16.msra.mxu0 0
      %1356 = vmatprep.subr.bf16.mxu0 0
      %1357 = vmatpush1.bf16.msra.mxu0 0
      %1358 = vmatprep.subr.bf16.mxu0 0
      %1359 = vmatpush1.bf16.msra.mxu0 0
      %1360 = vmatprep.subr.bf16.mxu0 0
      %1361 = vmatpush1.bf16.msra.mxu0 0
      %1362 = vmatprep.subr.bf16.mxu0 0
      %1363 = vmatpush1.bf16.msra.mxu0 0
      %1364 = vmatprep.subr.bf16.mxu0 0
      %1365 = vmatpush1.bf16.msra.mxu0 0
      %1366 = vmatprep.subr.bf16.mxu0 0
      %1367 = vmatpush1.bf16.msra.mxu0 0
      %1368 = vmatprep.subr.bf16.mxu0 0
      %1369 = vmatpush1.bf16.msra.mxu0 0
      %1370 = vmatprep.subr.bf16.mxu0 0
      %1371 = vmatpush1.bf16.msra.mxu0 0
      %1372 = vmatprep.subr.bf16.mxu0 0
      %1373 = vmatpush1.bf16.msra.mxu0 0
      %1374 = vmatprep.subr.bf16.mxu0 0
      %1375 = vmatpush1.bf16.msra.mxu0 0
      %1376 = vmatprep.subr.bf16.mxu0 0
      %1377 = vmatpush1.bf16.msra.mxu0 0
      %1378 = vmatprep.mubr.bf16.mxu0 0
      %1379 = vmatmul.mubr.bf16.gmra.mrb[0].mxu0 %v421
      %v1380 = vpop.f32.mrb[0].mxu0
      %v1381 = vadd.f32 %v1332, %v1380
      %v1382 = vpop.f32.mrb[0].mxu0
      %v1383 = vpop.f32.mrb[0].mxu0
      %v1384 = vpop.f32.mrb[0].mxu0
      %1385 = vdwg.mxu0
      %s1386 = scalar_lea.vmem %s3, 112
      %v1387 = vld [vmem:[%s1386] sm:$0xf]
      %v1388 = vld [vmem:[%s1386 + $0x4] sm:$0xf]
      %v1389 = vld [vmem:[%s1386 + $0x8] sm:$0xf]
      %v1390 = vld [vmem:[%s1386 + $0xc] sm:$0xf]
      %s1391 = scalar_lea.vmem %s4, 7
      %v1392 = vld [vmem:[%s1391] sm:$0x1]
      %v1394 = vlaneseq
      %v1395 = vshrl.u32 %v1394, 7
      %v1396 = vsub.s32 0, %v1395
      %v1397 = vrot.slane %v1392, %v1396
      %v1403 = vunpack.c.l.b16 %v1387
      %v1404 = vunpack.c.l.b16 %v1388
      %v1405 = vunpack.c.l.b16 %v1389
      %v1406 = vunpack.c.l.b16 %v1390
      %v1407 = vpack.c.b16 %v1404, %v1403
      %v1408 = vpack.c.b16 %v1406, %v1405
      %1411 = vmatprep.subr.bf16.mxu0 0
      %1412 = vmatpush1.bf16.msra.mxu0 %v1407
      %1413 = vmatprep.subr.bf16.mxu0 0
      %1414 = vmatpush1.bf16.msra.mxu0 %v1408
      %1415 = vmatprep.subr.bf16.mxu0 0
      %1416 = vmatpush1.bf16.msra.mxu0 0
      %1417 = vmatprep.subr.bf16.mxu0 0
      %1418 = vmatpush1.bf16.msra.mxu0 0
      %1419 = vmatprep.subr.bf16.mxu0 0
      %1420 = vmatpush1.bf16.msra.mxu0 0
      %1421 = vmatprep.subr.bf16.mxu0 0
      %1422 = vmatpush1.bf16.msra.mxu0 0
      %1423 = vmatprep.subr.bf16.mxu0 0
      %1424 = vmatpush1.bf16.msra.mxu0 0
      %1425 = vmatprep.subr.bf16.mxu0 0
      %1426 = vmatpush1.bf16.msra.mxu0 0
      %1427 = vmatprep.subr.bf16.mxu0 0
      %1428 = vmatpush1.bf16.msra.mxu0 0
      %1429 = vmatprep.subr.bf16.mxu0 0
      %1430 = vmatpush1.bf16.msra.mxu0 0
      %1431 = vmatprep.subr.bf16.mxu0 0
      %1432 = vmatpush1.bf16.msra.mxu0 0
      %1433 = vmatprep.subr.bf16.mxu0 0
      %1434 = vmatpush1.bf16.msra.mxu0 0
      %1435 = vmatprep.subr.bf16.mxu0 0
      %1436 = vmatpush1.bf16.msra.mxu0 0
      %1437 = vmatprep.subr.bf16.mxu0 0
      %1438 = vmatpush1.bf16.msra.mxu0 0
      %1439 = vmatprep.subr.bf16.mxu0 0
      %1440 = vmatpush1.bf16.msra.mxu0 0
      %1441 = vmatprep.subr.bf16.mxu0 0
      %1442 = vmatpush1.bf16.msra.mxu0 0
      %1443 = vmatprep.mubr.bf16.mxu0 0
      %1444 = vmatmul.mubr.bf16.gmra.mrb[0].mxu0 %v489
      %v1445 = vpop.f32.mrb[0].mxu0
      %v1446 = vadd.f32 %v1397, %v1445
      %v1447 = vpop.f32.mrb[0].mxu0
      %v1448 = vpop.f32.mrb[0].mxu0
      %v1449 = vpop.f32.mrb[0].mxu0
      %1450 = vdwg.mxu0
      %s1451 = scalar_lea.vmem %s3, 176
      %v1452 = vld [vmem:[%s1451] sm:$0xf]
      %v1453 = vld [vmem:[%s1451 + $0x4] sm:$0xf]
      %v1454 = vld [vmem:[%s1451 + $0x8] sm:$0xf]
      %v1455 = vld [vmem:[%s1451 + $0xc] sm:$0xf]
      %s1456 = scalar_lea.vmem %s4, 11
      %v1457 = vld [vmem:[%s1456] sm:$0x1]
      %v1459 = vlaneseq
      %v1460 = vshrl.u32 %v1459, 7
      %v1461 = vsub.s32 0, %v1460
      %v1462 = vrot.slane %v1457, %v1461
      %v1468 = vunpack.c.l.b16 %v1452
      %v1469 = vunpack.c.l.b16 %v1453
      %v1470 = vunpack.c.l.b16 %v1454
      %v1471 = vunpack.c.l.b16 %v1455
      %v1472 = vpack.c.b16 %v1469, %v1468
      %v1473 = vpack.c.b16 %v1471, %v1470
      %1476 = vmatprep.subr.bf16.mxu0 0
      %1477 = vmatpush1.bf16.msra.mxu0 %v1472
      %1478 = vmatprep.subr.bf16.mxu0 0
      %1479 = vmatpush1.bf16.msra.mxu0 %v1473
      %1480 = vmatprep.subr.bf16.mxu0 0
      %1481 = vmatpush1.bf16.msra.mxu0 0
      %1482 = vmatprep.subr.bf16.mxu0 0
      %1483 = vmatpush1.bf16.msra.mxu0 0
      %1484 = vmatprep.subr.bf16.mxu0 0
      %1485 = vmatpush1.bf16.msra.mxu0 0
      %1486 = vmatprep.subr.bf16.mxu0 0
      %1487 = vmatpush1.bf16.msra.mxu0 0
      %1488 = vmatprep.subr.bf16.mxu0 0
      %1489 = vmatpush1.bf16.msra.mxu0 0
      %1490 = vmatprep.subr.bf16.mxu0 0
      %1491 = vmatpush1.bf16.msra.mxu0 0
      %1492 = vmatprep.subr.bf16.mxu0 0
      %1493 = vmatpush1.bf16.msra.mxu0 0
      %1494 = vmatprep.subr.bf16.mxu0 0
      %1495 = vmatpush1.bf16.msra.mxu0 0
      %1496 = vmatprep.subr.bf16.mxu0 0
      %1497 = vmatpush1.bf16.msra.mxu0 0
      %1498 = vmatprep.subr.bf16.mxu0 0
      %1499 = vmatpush1.bf16.msra.mxu0 0
      %1500 = vmatprep.subr.bf16.mxu0 0
      %1501 = vmatpush1.bf16.msra.mxu0 0
      %1502 = vmatprep.subr.bf16.mxu0 0
      %1503 = vmatpush1.bf16.msra.mxu0 0
      %1504 = vmatprep.subr.bf16.mxu0 0
      %1505 = vmatpush1.bf16.msra.mxu0 0
      %1506 = vmatprep.subr.bf16.mxu0 0
      %1507 = vmatpush1.bf16.msra.mxu0 0
      %1508 = vmatprep.mubr.bf16.mxu0 0
      %1509 = vmatmul.mubr.bf16.gmra.mrb[0].mxu0 %v489
      %v1510 = vpop.f32.mrb[0].mxu0
      %v1511 = vadd.f32 %v1462, %v1510
      %v1512 = vpop.f32.mrb[0].mxu0
      %v1513 = vpop.f32.mrb[0].mxu0
      %v1514 = vpop.f32.mrb[0].mxu0
      %1515 = vdwg.mxu0
      %v1516 = vpack.c.bf16 %v1381, %v1381
      %v1517 = vpack.c.bf16 %v1446, %v1446
      %v1519 = vsel %vm598, %v1516, 0
      %v1522 = vsel %vm598, %v1517, 0
      %1524 = vmatprep.subr.bf16.mxu0 0
      %1525 = vmatpush1.bf16.xpose.msra.mxu0 %v1522
      %1526 = vmatprep.subr.bf16.mxu0 0
      %1527 = vmatpush1.bf16.xpose.msra.mxu0 0
      %1528 = vmatprep.subr.bf16.mxu0 0
      %1529 = vmatpush1.bf16.xpose.msra.mxu0 0
      %1530 = vmatprep.subr.bf16.mxu0 0
      %1531 = vmatpush1.bf16.xpose.msra.mxu0 0
      %1532 = vmatprep.subr.bf16.mxu0 0
      %1533 = vmatpush1.bf16.xpose.msra.mxu0 0
      %1534 = vmatprep.subr.bf16.mxu0 0
      %1535 = vmatpush1.bf16.xpose.msra.mxu0 0
      %1536 = vmatprep.subr.bf16.mxu0 0
      %1537 = vmatpush1.bf16.xpose.msra.mxu0 0
      %1538 = vmatprep.subr.bf16.mxu0 0
      %1539 = vmatpush1.bf16.xpose.msra.mxu0 0
      %1540 = vmatprep.subr.bf16.mxu0 0
      %1541 = vmatpush1.bf16.xpose.msra.mxu0 0
      %1542 = vmatprep.subr.bf16.mxu0 0
      %1543 = vmatpush1.bf16.xpose.msra.mxu0 0
      %1544 = vmatprep.subr.bf16.mxu0 0
      %1545 = vmatpush1.bf16.xpose.msra.mxu0 0
      %1546 = vmatprep.subr.bf16.mxu0 0
      %1547 = vmatpush1.bf16.xpose.msra.mxu0 0
      %1548 = vmatprep.subr.bf16.mxu0 0
      %1549 = vmatpush1.bf16.xpose.msra.mxu0 0
      %1550 = vmatprep.subr.bf16.mxu0 0
      %1551 = vmatpush1.bf16.xpose.msra.mxu0 0
      %1552 = vmatprep.subr.bf16.mxu0 0
      %1553 = vmatpush1.bf16.xpose.msra.mxu0 0
      %1554 = vmatprep.subr.bf16.mxu0 0
      %1555 = vmatpush1.bf16.xpose.msra.mxu0 0
      %1556 = vmatprep.mubr.bf16.mxu0 0
      %1557 = vmatmul.mubr.bf16.gmra.mrb[0].mxu0 %v1519
      %v1558 = vpop.f32.mrb[0].mxu0
      %v1559 = vadd.f32 0.0, %v1558
      %v1560 = vpop.f32.mrb[0].mxu0
      %v1561 = vpop.f32.mrb[0].mxu0
      %v1562 = vpop.f32.mrb[0].mxu0
      %1563 = vdwg.mxu0
      %v1564 = vmul.f32 %v1559, 0.35355338
      %v1565 = vadd.f32 %v1564, %v650
      %v1566 = vsel %vm598, %v1565, -inf
      %1567 = vmax.xlane.f32.xlu0 %v1566
      %v1568 = vpop.xlane.xlu0 %1567
      %v1569 = vsub.f32 %v1565, %v1568
      %v1570 = vmul.f32 %v1569, 1.442695
      %v1571 = vpow.pop %v1570
      %v1572 = vsel %vm598, %v1571, 0.0
      %1573 = vadd.xlane.f32.xlu0 %v1572
      %v1574 = vpop.xlane.xlu0 %1573
      %v1575 = vrcp.pop %v1574
      %v1576 = vmul.f32 %v1571, %v1575
      %v1577 = vpack.c.bf16 %v1576, %v1576
      %v1578 = vpack.c.bf16 %v1511, %v1511
      %v1580 = vsel %vm598, %v1577, 0
      %v1583 = vsel %vm669, %v1578, 0
      %1585 = vmatprep.subr.bf16.mxu0 0
      %1586 = vmatpush1.bf16.msra.mxu0 %v1583
      %1587 = vmatprep.subr.bf16.mxu0 0
      %1588 = vmatpush1.bf16.msra.mxu0 0
      %1589 = vmatprep.subr.bf16.mxu0 0
      %1590 = vmatpush1.bf16.msra.mxu0 0
      %1591 = vmatprep.subr.bf16.mxu0 0
      %1592 = vmatpush1.bf16.msra.mxu0 0
      %1593 = vmatprep.subr.bf16.mxu0 0
      %1594 = vmatpush1.bf16.msra.mxu0 0
      %1595 = vmatprep.subr.bf16.mxu0 0
      %1596 = vmatpush1.bf16.msra.mxu0 0
      %1597 = vmatprep.subr.bf16.mxu0 0
      %1598 = vmatpush1.bf16.msra.mxu0 0
      %1599 = vmatprep.subr.bf16.mxu0 0
      %1600 = vmatpush1.bf16.msra.mxu0 0
      %1601 = vmatprep.subr.bf16.mxu0 0
      %1602 = vmatpush1.bf16.msra.mxu0 0
      %1603 = vmatprep.subr.bf16.mxu0 0
      %1604 = vmatpush1.bf16.msra.mxu0 0
      %1605 = vmatprep.subr.bf16.mxu0 0
      %1606 = vmatpush1.bf16.msra.mxu0 0
      %1607 = vmatprep.subr.bf16.mxu0 0
      %1608 = vmatpush1.bf16.msra.mxu0 0
      %1609 = vmatprep.subr.bf16.mxu0 0
      %1610 = vmatpush1.bf16.msra.mxu0 0
      %1611 = vmatprep.subr.bf16.mxu0 0
      %1612 = vmatpush1.bf16.msra.mxu0 0
      %1613 = vmatprep.subr.bf16.mxu0 0
      %1614 = vmatpush1.bf16.msra.mxu0 0
      %1615 = vmatprep.subr.bf16.mxu0 0
      %1616 = vmatpush1.bf16.msra.mxu0 0
      %1617 = vmatprep.mubr.bf16.mxu0 0
      %1618 = vmatmul.mubr.bf16.gmra.mrb[0].mxu0 %v1580
      %v1619 = vpop.f32.mrb[0].mxu0
      %v1620 = vadd.f32 0.0, %v1619
      %v1621 = vpop.f32.mrb[0].mxu0
      %v1622 = vpop.f32.mrb[0].mxu0
      %v1623 = vpop.f32.mrb[0].mxu0
      %1624 = vdwg.mxu0
      %1626 = vrot.lane.b32.xlu0 %v1012, 8
      %v1627 = vpop.permute.xlu0 %1626
      %1630 = vrot.lane.b32.xlu0 %v1316, 16
      %v1631 = vpop.permute.xlu0 %1630
      %1634 = vrot.lane.b32.xlu0 %v1620, 24
      %v1635 = vpop.permute.xlu0 %1634
      %v1637 = vsel %vm598, %v708, %v1627
      %vm1638 = vcmask 130048
      %v1639 = vsel %vm1638, %v1637, %v1631
      %vm1640 = vcmask 195584
      %v1641 = vsel %vm1640, %v1639, %v1635
      %v1642 = vpack.c.bf16 %v1641, %v1641
      %v1643 = vld [vmem:[%s5] sm:$0xf]
      %v1644 = vld [vmem:[%s5 + $0x4] sm:$0xf]
      %v1645 = vld [vmem:[%s5 + $0x8] sm:$0xf]
      %v1646 = vld [vmem:[%s5 + $0xc] sm:$0xf]
      %v1647 = vld [vmem:[%s6] sm:$0x1]
      %v1649 = vlaneseq
      %v1650 = vshrl.u32 %v1649, 7
      %v1651 = vsub.s32 0, %v1650
      %v1652 = vrot.slane %v1647, %v1651
      %v1658 = vunpack.c.l.b16 %v1643
      %v1659 = vunpack.c.l.b16 %v1644
      %v1660 = vunpack.c.l.b16 %v1645
      %v1661 = vunpack.c.l.b16 %v1646
      %v1662 = vpack.c.b16 %v1659, %v1658
      %v1663 = vpack.c.b16 %v1661, %v1660
      %v1667 = vsel %vm419, %v1642, 0
      %1669 = vmatprep.subr.bf16.mxu0 0
      %1670 = vmatpush1.bf16.msra.mxu0 %v1662
      %1671 = vmatprep.subr.bf16.mxu0 0
      %1672 = vmatpush1.bf16.msra.mxu0 %v1663
      %1673 = vmatprep.subr.bf16.mxu0 0
      %1674 = vmatpush1.bf16.msra.mxu0 0
      %1675 = vmatprep.subr.bf16.mxu0 0
      %1676 = vmatpush1.bf16.msra.mxu0 0
      %1677 = vmatprep.subr.bf16.mxu0 0
      %1678 = vmatpush1.bf16.msra.mxu0 0
      %1679 = vmatprep.subr.bf16.mxu0 0
      %1680 = vmatpush1.bf16.msra.mxu0 0
      %1681 = vmatprep.subr.bf16.mxu0 0
      %1682 = vmatpush1.bf16.msra.mxu0 0
      %1683 = vmatprep.subr.bf16.mxu0 0
      %1684 = vmatpush1.bf16.msra.mxu0 0
      %1685 = vmatprep.subr.bf16.mxu0 0
      %1686 = vmatpush1.bf16.msra.mxu0 0
      %1687 = vmatprep.subr.bf16.mxu0 0
      %1688 = vmatpush1.bf16.msra.mxu0 0
      %1689 = vmatprep.subr.bf16.mxu0 0
      %1690 = vmatpush1.bf16.msra.mxu0 0
      %1691 = vmatprep.subr.bf16.mxu0 0
      %1692 = vmatpush1.bf16.msra.mxu0 0
      %1693 = vmatprep.subr.bf16.mxu0 0
      %1694 = vmatpush1.bf16.msra.mxu0 0
      %1695 = vmatprep.subr.bf16.mxu0 0
      %1696 = vmatpush1.bf16.msra.mxu0 0
      %1697 = vmatprep.subr.bf16.mxu0 0
      %1698 = vmatpush1.bf16.msra.mxu0 0
      %1699 = vmatprep.subr.bf16.mxu0 0
      %1700 = vmatpush1.bf16.msra.mxu0 0
      %1701 = vmatprep.mubr.bf16.mxu0 0
      %1702 = vmatmul.mubr.bf16.gmra.mrb[0].mxu0 %v1667
      %v1703 = vpop.f32.mrb[0].mxu0
      %v1704 = vadd.f32 %v1652, %v1703
      %v1705 = vpop.f32.mrb[0].mxu0
      %v1706 = vpop.f32.mrb[0].mxu0
      %v1707 = vpop.f32.mrb[0].mxu0
      %1708 = vdwg.mxu0
      %v1709 = vadd.f32 %v391, %v1704
      %v1710 = vsel %vm419, %v1709, 0.0
      %1711 = vadd.xlane.f32.xlu0 %v1710
      %v1712 = vpop.xlane.xlu0 %1711
      %v1713 = vrcp.pop 32.0
      %v1714 = vmul.f32 %v1712, %v1713
      %v1715 = vsub.f32 %v1709, %v1714
      %v1716 = vmul.f32 %v1715, %v1715
      %v1717 = vsel %vm419, %v1716, 0.0
      %1718 = vadd.xlane.f32.xlu0 %v1717
      %v1719 = vpop.xlane.xlu0 %1718
      %v1720 = vmul.f32 %v1719, %v1713
      %v1721 = vadd.f32 %v1720, 1e-05
      %v1722 = vrsqrt.pop %v1721
      %v1723 = vmul.f32 %v1715, %v1722
      %v1724 = vld [vmem:[%s7] sm:$0x1]
      %v1726 = vlaneseq
      %v1727 = vshrl.u32 %v1726, 7
      %v1728 = vsub.s32 0, %v1727
      %v1729 = vrot.slane %v1724, %v1728
      %v1731 = vmul.f32 %v1723, %v1729
      %v1732 = vld [vmem:[%s8] sm:$0x1]
      %v1734 = vlaneseq
      %v1735 = vshrl.u32 %v1734, 7
      %v1736 = vsub.s32 0, %v1735
      %v1737 = vrot.slane %v1732, %v1736
      %v1739 = vadd.f32 %v1731, %v1737
      %1740 = vst.msk [vmem:[%s389] sm:$0xff] %vm419, %v1739
      %p1741 = scmp.lt.s32.totalorder %s24, 1
      %s1742 = scalar_select %p1741, %s24, 1
      %p1743 = scmp.lt.s32.totalorder %s25, 0
      %s1744 = scalar_select %p1743, %s25, 0
      %s1745 = sadd.s32 %s1744, %s1742
      %s1746 = smul.addr %s1745, 8
      %s1747 = scalar_lea.vmem %s9, %s1746
      // Predicated region
      $region57: #{model_forward.6} parent=55 // pred_check
        %p1748 = pneg %p258
      $region58: #{model_forward.6} parent=55 // pred_check_branch
        %1750 = sbr.rel (%p1748) target = $region60
      $region59: #{model_forward.6} parent=55 // pred_region
        _
      $region60: #{model_forward.6} parent=55 // pred_fallthru
        _
    $region56: #{model_forward.6} parent=5 // pred_fallthru
      _
    %p1751 = scmp.le.s32.totalorder 2, %s15
    // Predicated region
    $region61: #{model_forward.6} parent=5 // pred_check
      %p1752 = pneg %p1751
    $region62: #{model_forward.6} parent=5 // pred_check_branch
      %1754 = sbr.rel (%p1752) target = $region64
    $region63: #{model_forward.6} parent=5 // pred_region
      %s1755 = ssub.s32 %s15, 2
      // Predicated region
      $region65: #{model_forward.6} parent=63 // pred_check
        %p1756 = pneg %p264
      $region66: #{model_forward.6} parent=63 // pred_check_branch
        %1758 = sbr.rel (%p1756) target = $region68
      $region67: #{model_forward.6} parent=63 // pred_region
        %p1759 = scmp.lt.s32.totalorder %s26, 1
        %s1760 = scalar_select %p1759, %s26, 1
        %p1761 = scmp.lt.s32.totalorder %s27, 0
        %s1762 = scalar_select %p1761, %s27, 0
        %s1763 = sadd.s32 %s1762, %s1760
        %s1764 = smul.addr %s1763, 8
        %s1765 = scalar_lea.vmem %s9, %s1764
      $region68: #{model_forward.6} parent=63 // pred_fallthru
        _
    $region64: #{model_forward.6} parent=5 // pred_fallthru
      _
  $region6: #{model_forward.6} parent=0 // loop_footer
    %s19 = sadd.s32 1, %s15
  $region7: #{model_forward.6} parent=0 // loop_footer_branch
    %14 = sbr.rel target = $region3
  $region8: #{model_forward.6} parent=0 // loop_exit
    _

// kernel: model_forward.5
$region0: #{model_forward.5}
  #allocation0 [shape = 'u32[]', space=smem, size = 0x4, offset = 0x4, fixed_abs, tag = 'smem constant byte address 0x4 - core index']
  #allocation1 [shape = 'u32[144,128]{1,0:T(1,128)}', space=vmem, size = 0x12000, scoped, tag = 'internal scratch']
  %s0 = inlined_call_operand.vmem [shape: f32[2,8,32], index: 0, kind: input, shape index: {}]
  %s1 = inlined_call_operand.vmem [shape: f32[2,1,8], index: 1, kind: input, shape index: {}]
  %s2 = inlined_call_operand.vmem [shape: bf16[12,32,8], index: 2, kind: input, shape index: {}]
  %s3 = inlined_call_operand.vmem [shape: f32[12,1,8], index: 3, kind: input, shape index: {}]
  %s4 = inlined_call_operand.vmem [shape: bf16[32,32], index: 4, kind: input, shape index: {}]
  %s5 = inlined_call_operand.vmem [shape: f32[1,32], index: 5, kind: input, shape index: {}]
  %s6 = inlined_call_operand.vmem [shape: f32[1,32], index: 6, kind: input, shape index: {}]
  %s7 = inlined_call_operand.vmem [shape: f32[1,32], index: 7, kind: input, shape index: {}]
  %s8 = inlined_call_operand.vmem [shape: bf16[32,64], index: 8, kind: input, shape index: {}]
  %s9 = inlined_call_operand.vmem [shape: f32[1,64], index: 9, kind: input, shape index: {}]
  %s10 = inlined_call_operand.vmem [shape: bf16[64,32], index: 10, kind: input, shape index: {}]
  %s11 = inlined_call_operand.vmem [shape: f32[1,32], index: 11, kind: input, shape index: {}]
  %s12 = inlined_call_operand.vmem [shape: f32[1,32], index: 12, kind: input, shape index: {}]
  %s13 = inlined_call_operand.vmem [shape: f32[1,32], index: 13, kind: input, shape index: {}]
  %s14 = inlined_call_operand.vmem [shape: f32[2,8,32], index: 14, kind: output, shape index: {}]
  %s15 = sld [smem:[#allocation0]]
  $region89: #{model_forward.5} parent=0
    _
  %s17 = ssub.s32 1, %s15
  %s18 = scalar_select 0, %s17, %s15
  loop: start=0, step=1, limit=4
  $region2: #{model_forward.5} parent=0 // loop_pre_header
    _
  $region3: #{model_forward.5} parent=0 // loop_header
    %s20 = sphi 0, %s24
    %p21 = scmp.ge.s32.totalorder %s20, 4
    %s30 = sphi 0, %s32
    %s33 = sphi 0, %s30
    %s34 = sphi 0, %s33
    %s50 = sphi 0, %s34
    %s56 = sphi 0, %s58
    %s59 = sphi 0, %s56
    %s60 = sphi 0, %s59
    %s76 = sphi 0, %s60
    %s80 = sphi 0, %s80
    %s82 = sphi 0, %s80
    %s83 = sphi 0, %s82
    %s97 = sphi 0, %s83
    %s101 = sphi 0, %s101
    %s103 = sphi 0, %s101
    %s104 = sphi 0, %s103
    %s118 = sphi 0, %s104
    %s122 = sphi 0, %s122
    %s124 = sphi 0, %s122
    %s125 = sphi 0, %s124
    %s139 = sphi 0, %s125
    %s143 = sphi 0, %s143
    %s145 = sphi 0, %s143
    %s146 = sphi 0, %s145
    %s160 = sphi 0, %s146
    %s164 = sphi 0, %s164
    %s166 = sphi 0, %s164
    %s167 = sphi 0, %s166
    %s181 = sphi 0, %s167
    %s185 = sphi 0, %s185
    %s187 = sphi 0, %s185
    %s188 = sphi 0, %s187
    %s202 = sphi 0, %s188
    %s206 = sphi 0, %s206
    %s208 = sphi 0, %s206
    %s209 = sphi 0, %s208
    %s223 = sphi 0, %s209
    %s227 = sphi 0, %s227
    %s229 = sphi 0, %s227
    %s230 = sphi 0, %s229
    %s244 = sphi 0, %s230
    %s248 = sphi 0, %s248
    %s250 = sphi 0, %s248
    %s251 = sphi 0, %s250
    %s265 = sphi 0, %s251
    %s269 = sphi 0, %s269
    %s271 = sphi 0, %s269
    %s272 = sphi 0, %s271
    %s286 = sphi 0, %s272
    %s290 = sphi 0, %s290
    %s292 = sphi 0, %s290
    %s293 = sphi 0, %s292
    %s307 = sphi 0, %s293
    %s311 = sphi 0, %s311
    %s313 = sphi 0, %s311
    %s314 = sphi 0, %s313
    %s328 = sphi 0, %s314
    %s334 = sphi 0, %s336
    %s337 = sphi 0, %s334
    %s338 = sphi 0, %s337
    %s354 = sphi 0, %s338
  $region4: #{model_forward.5} parent=0 // loop_header_branch
    %23 = sbr.rel (%p21) target = $region8
  $region5: #{model_forward.5} parent=0 // loop_body
    %s25 = ssub.s32 %s20, 1
    %s26 = ssub.s32 %s20, 2
    %s27 = sadd.s32 %s20, 1
    %s28 = ssub.s32 %s20, %s27
    %p29 = scmp.eq.s32.totalorder %s28, 0
    %s31 = sadd.s32 %s30, 1
    %s32 = scalar_select %p29, %s30, %s31
    %p35 = pneg %p29
    %p36 = scmp.eq.s32.totalorder %s20, 1
    %p37 = por %p35, %p36
    %p38 = scmp.ne.s32.totalorder %s30, %s33
    %p39 = scmp.eq.s32.totalorder %s20, 0
    %p40 = por %p38, %p39
    %p41 = scmp.ne.s32.totalorder %s30, %s33
    %p42 = scmp.eq.s32.totalorder %s25, 1
    %p43 = por %p41, %p42
    %p44 = scmp.ne.s32.totalorder %s33, %s34
    %p45 = scmp.eq.s32.totalorder %s25, 0
    %p46 = por %p44, %p45
    %p47 = scmp.ne.s32.totalorder %s33, %s34
    %p48 = scmp.eq.s32.totalorder %s26, 1
    %p49 = por %p47, %p48
    %p51 = scmp.ne.s32.totalorder %s34, %s50
    %p52 = scmp.eq.s32.totalorder %s26, 0
    %p53 = por %p51, %p52
    %s54 = ssub.s32 %s20, %s27
    %p55 = scmp.eq.s32.totalorder %s54, 0
    %s57 = sadd.s32 %s56, 1
    %s58 = scalar_select %p55, %s56, %s57
    %p61 = pneg %p55
    %p62 = scmp.eq.s32.totalorder %s20, 1
    %p63 = por %p61, %p62
    %p64 = scmp.ne.s32.totalorder %s56, %s59
    %p65 = scmp.eq.s32.totalorder %s20, 0
    %p66 = por %p64, %p65
    %p67 = scmp.ne.s32.totalorder %s56, %s59
    %p68 = scmp.eq.s32.totalorder %s25, 1
    %p69 = por %p67, %p68
    %p70 = scmp.ne.s32.totalorder %s59, %s60
    %p71 = scmp.eq.s32.totalorder %s25, 0
    %p72 = por %p70, %p71
    %p73 = scmp.ne.s32.totalorder %s59, %s60
    %p74 = scmp.eq.s32.totalorder %s26, 1
    %p75 = por %p73, %p74
    %p77 = scmp.ne.s32.totalorder %s60, %s76
    %p78 = scmp.eq.s32.totalorder %s26, 0
    %p79 = por %p77, %p78
    %s81 = sadd.s32 %s80, 1
    %p84 = scmp.eq.s32.totalorder %s20, 1
    %p85 = scmp.ne.s32.totalorder %s80, %s82
    %p86 = scmp.eq.s32.totalorder %s20, 0
    %p87 = por %p85, %p86
    %p88 = scmp.ne.s32.totalorder %s80, %s82
    %p89 = scmp.eq.s32.totalorder %s25, 1
    %p90 = por %p88, %p89
    %p91 = scmp.ne.s32.totalorder %s82, %s83
    %p92 = scmp.eq.s32.totalorder %s25, 0
    %p93 = por %p91, %p92
    %p94 = scmp.ne.s32.totalorder %s82, %s83
    %p95 = scmp.eq.s32.totalorder %s26, 1
    %p96 = por %p94, %p95
    %p98 = scmp.ne.s32.totalorder %s83, %s97
    %p99 = scmp.eq.s32.totalorder %s26, 0
    %p100 = por %p98, %p99
    %s102 = sadd.s32 %s101, 1
    %p105 = scmp.eq.s32.totalorder %s20, 1
    %p106 = scmp.ne.s32.totalorder %s101, %s103
    %p107 = scmp.eq.s32.totalorder %s20, 0
    %p108 = por %p106, %p107
    %p109 = scmp.ne.s32.totalorder %s101, %s103
    %p110 = scmp.eq.s32.totalorder %s25, 1
    %p111 = por %p109, %p110
    %p112 = scmp.ne.s32.totalorder %s103, %s104
    %p113 = scmp.eq.s32.totalorder %s25, 0
    %p114 = por %p112, %p113
    %p115 = scmp.ne.s32.totalorder %s103, %s104
    %p116 = scmp.eq.s32.totalorder %s26, 1
    %p117 = por %p115, %p116
    %p119 = scmp.ne.s32.totalorder %s104, %s118
    %p120 = scmp.eq.s32.totalorder %s26, 0
    %p121 = por %p119, %p120
    %s123 = sadd.s32 %s122, 1
    %p126 = scmp.eq.s32.totalorder %s20, 1
    %p127 = scmp.ne.s32.totalorder %s122, %s124
    %p128 = scmp.eq.s32.totalorder %s20, 0
    %p129 = por %p127, %p128
    %p130 = scmp.ne.s32.totalorder %s122, %s124
    %p131 = scmp.eq.s32.totalorder %s25, 1
    %p132 = por %p130, %p131
    %p133 = scmp.ne.s32.totalorder %s124, %s125
    %p134 = scmp.eq.s32.totalorder %s25, 0
    %p135 = por %p133, %p134
    %p136 = scmp.ne.s32.totalorder %s124, %s125
    %p137 = scmp.eq.s32.totalorder %s26, 1
    %p138 = por %p136, %p137
    %p140 = scmp.ne.s32.totalorder %s125, %s139
    %p141 = scmp.eq.s32.totalorder %s26, 0
    %p142 = por %p140, %p141
    %s144 = sadd.s32 %s143, 1
    %p147 = scmp.eq.s32.totalorder %s20, 1
    %p148 = scmp.ne.s32.totalorder %s143, %s145
    %p149 = scmp.eq.s32.totalorder %s20, 0
    %p150 = por %p148, %p149
    %p151 = scmp.ne.s32.totalorder %s143, %s145
    %p152 = scmp.eq.s32.totalorder %s25, 1
    %p153 = por %p151, %p152
    %p154 = scmp.ne.s32.totalorder %s145, %s146
    %p155 = scmp.eq.s32.totalorder %s25, 0
    %p156 = por %p154, %p155
    %p157 = scmp.ne.s32.totalorder %s145, %s146
    %p158 = scmp.eq.s32.totalorder %s26, 1
    %p159 = por %p157, %p158
    %p161 = scmp.ne.s32.totalorder %s146, %s160
    %p162 = scmp.eq.s32.totalorder %s26, 0
    %p163 = por %p161, %p162
    %s165 = sadd.s32 %s164, 1
    %p168 = scmp.eq.s32.totalorder %s20, 1
    %p169 = scmp.ne.s32.totalorder %s164, %s166
    %p170 = scmp.eq.s32.totalorder %s20, 0
    %p171 = por %p169, %p170
    %p172 = scmp.ne.s32.totalorder %s164, %s166
    %p173 = scmp.eq.s32.totalorder %s25, 1
    %p174 = por %p172, %p173
    %p175 = scmp.ne.s32.totalorder %s166, %s167
    %p176 = scmp.eq.s32.totalorder %s25, 0
    %p177 = por %p175, %p176
    %p178 = scmp.ne.s32.totalorder %s166, %s167
    %p179 = scmp.eq.s32.totalorder %s26, 1
    %p180 = por %p178, %p179
    %p182 = scmp.ne.s32.totalorder %s167, %s181
    %p183 = scmp.eq.s32.totalorder %s26, 0
    %p184 = por %p182, %p183
    %s186 = sadd.s32 %s185, 1
    %p189 = scmp.eq.s32.totalorder %s20, 1
    %p190 = scmp.ne.s32.totalorder %s185, %s187
    %p191 = scmp.eq.s32.totalorder %s20, 0
    %p192 = por %p190, %p191
    %p193 = scmp.ne.s32.totalorder %s185, %s187
    %p194 = scmp.eq.s32.totalorder %s25, 1
    %p195 = por %p193, %p194
    %p196 = scmp.ne.s32.totalorder %s187, %s188
    %p197 = scmp.eq.s32.totalorder %s25, 0
    %p198 = por %p196, %p197
    %p199 = scmp.ne.s32.totalorder %s187, %s188
    %p200 = scmp.eq.s32.totalorder %s26, 1
    %p201 = por %p199, %p200
    %p203 = scmp.ne.s32.totalorder %s188, %s202
    %p204 = scmp.eq.s32.totalorder %s26, 0
    %p205 = por %p203, %p204
    %s207 = sadd.s32 %s206, 1
    %p210 = scmp.eq.s32.totalorder %s20, 1
    %p211 = scmp.ne.s32.totalorder %s206, %s208
    %p212 = scmp.eq.s32.totalorder %s20, 0
    %p213 = por %p211, %p212
    %p214 = scmp.ne.s32.totalorder %s206, %s208
    %p215 = scmp.eq.s32.totalorder %s25, 1
    %p216 = por %p214, %p215
    %p217 = scmp.ne.s32.totalorder %s208, %s209
    %p218 = scmp.eq.s32.totalorder %s25, 0
    %p219 = por %p217, %p218
    %p220 = scmp.ne.s32.totalorder %s208, %s209
    %p221 = scmp.eq.s32.totalorder %s26, 1
    %p222 = por %p220, %p221
    %p224 = scmp.ne.s32.totalorder %s209, %s223
    %p225 = scmp.eq.s32.totalorder %s26, 0
    %p226 = por %p224, %p225
    %s228 = sadd.s32 %s227, 1
    %p231 = scmp.eq.s32.totalorder %s20, 1
    %p232 = scmp.ne.s32.totalorder %s227, %s229
    %p233 = scmp.eq.s32.totalorder %s20, 0
    %p234 = por %p232, %p233
    %p235 = scmp.ne.s32.totalorder %s227, %s229
    %p236 = scmp.eq.s32.totalorder %s25, 1
    %p237 = por %p235, %p236
    %p238 = scmp.ne.s32.totalorder %s229, %s230
    %p239 = scmp.eq.s32.totalorder %s25, 0
    %p240 = por %p238, %p239
    %p241 = scmp.ne.s32.totalorder %s229, %s230
    %p242 = scmp.eq.s32.totalorder %s26, 1
    %p243 = por %p241, %p242
    %p245 = scmp.ne.s32.totalorder %s230, %s244
    %p246 = scmp.eq.s32.totalorder %s26, 0
    %p247 = por %p245, %p246
    %s249 = sadd.s32 %s248, 1
    %p252 = scmp.eq.s32.totalorder %s20, 1
    %p253 = scmp.ne.s32.totalorder %s248, %s250
    %p254 = scmp.eq.s32.totalorder %s20, 0
    %p255 = por %p253, %p254
    %p256 = scmp.ne.s32.totalorder %s248, %s250
    %p257 = scmp.eq.s32.totalorder %s25, 1
    %p258 = por %p256, %p257
    %p259 = scmp.ne.s32.totalorder %s250, %s251
    %p260 = scmp.eq.s32.totalorder %s25, 0
    %p261 = por %p259, %p260
    %p262 = scmp.ne.s32.totalorder %s250, %s251
    %p263 = scmp.eq.s32.totalorder %s26, 1
    %p264 = por %p262, %p263
    %p266 = scmp.ne.s32.totalorder %s251, %s265
    %p267 = scmp.eq.s32.totalorder %s26, 0
    %p268 = por %p266, %p267
    %s270 = sadd.s32 %s269, 1
    %p273 = scmp.eq.s32.totalorder %s20, 1
    %p274 = scmp.ne.s32.totalorder %s269, %s271
    %p275 = scmp.eq.s32.totalorder %s20, 0
    %p276 = por %p274, %p275
    %p277 = scmp.ne.s32.totalorder %s269, %s271
    %p278 = scmp.eq.s32.totalorder %s25, 1
    %p279 = por %p277, %p278
    %p280 = scmp.ne.s32.totalorder %s271, %s272
    %p281 = scmp.eq.s32.totalorder %s25, 0
    %p282 = por %p280, %p281
    %p283 = scmp.ne.s32.totalorder %s271, %s272
    %p284 = scmp.eq.s32.totalorder %s26, 1
    %p285 = por %p283, %p284
    %p287 = scmp.ne.s32.totalorder %s272, %s286
    %p288 = scmp.eq.s32.totalorder %s26, 0
    %p289 = por %p287, %p288
    %s291 = sadd.s32 %s290, 1
    %p294 = scmp.eq.s32.totalorder %s20, 1
    %p295 = scmp.ne.s32.totalorder %s290, %s292
    %p296 = scmp.eq.s32.totalorder %s20, 0
    %p297 = por %p295, %p296
    %p298 = scmp.ne.s32.totalorder %s290, %s292
    %p299 = scmp.eq.s32.totalorder %s25, 1
    %p300 = por %p298, %p299
    %p301 = scmp.ne.s32.totalorder %s292, %s293
    %p302 = scmp.eq.s32.totalorder %s25, 0
    %p303 = por %p301, %p302
    %p304 = scmp.ne.s32.totalorder %s292, %s293
    %p305 = scmp.eq.s32.totalorder %s26, 1
    %p306 = por %p304, %p305
    %p308 = scmp.ne.s32.totalorder %s293, %s307
    %p309 = scmp.eq.s32.totalorder %s26, 0
    %p310 = por %p308, %p309
    %s312 = sadd.s32 %s311, 1
    %p315 = scmp.eq.s32.totalorder %s20, 1
    %p316 = scmp.ne.s32.totalorder %s311, %s313
    %p317 = scmp.eq.s32.totalorder %s20, 0
    %p318 = por %p316, %p317
    %p319 = scmp.ne.s32.totalorder %s311, %s313
    %p320 = scmp.eq.s32.totalorder %s25, 1
    %p321 = por %p319, %p320
    %p322 = scmp.ne.s32.totalorder %s313, %s314
    %p323 = scmp.eq.s32.totalorder %s25, 0
    %p324 = por %p322, %p323
    %p325 = scmp.ne.s32.totalorder %s313, %s314
    %p326 = scmp.eq.s32.totalorder %s26, 1
    %p327 = por %p325, %p326
    %p329 = scmp.ne.s32.totalorder %s314, %s328
    %p330 = scmp.eq.s32.totalorder %s26, 0
    %p331 = por %p329, %p330
    %s332 = ssub.s32 %s20, %s27
    %p333 = scmp.eq.s32.totalorder %s332, 0
    %s335 = sadd.s32 %s334, 1
    %s336 = scalar_select %p333, %s334, %s335
    %p339 = pneg %p333
    %p340 = scmp.eq.s32.totalorder %s20, 1
    %p341 = por %p339, %p340
    %p342 = scmp.ne.s32.totalorder %s334, %s337
    %p343 = scmp.eq.s32.totalorder %s20, 0
    %p344 = por %p342, %p343
    %p345 = scmp.ne.s32.totalorder %s334, %s337
    %p346 = scmp.eq.s32.totalorder %s25, 1
    %p347 = por %p345, %p346
    %p348 = scmp.ne.s32.totalorder %s337, %s338
    %p349 = scmp.eq.s32.totalorder %s25, 0
    %p350 = por %p348, %p349
    %p351 = scmp.ne.s32.totalorder %s337, %s338
    %p352 = scmp.eq.s32.totalorder %s26, 1
    %p353 = por %p351, %p352
    %p355 = scmp.ne.s32.totalorder %s338, %s354
    %p356 = scmp.eq.s32.totalorder %s26, 0
    %p357 = por %p355, %p356
    %p358 = scmp.le.s32.totalorder 1, %s20
    %p359 = scmp.lt.s32.totalorder %s20, 3
    %p360 = pnand %p358, %p359
    %p361 = pneg %p360
    // Predicated region
    $region9: #{model_forward.5} parent=5 // pred_check
      _
    $region10: #{model_forward.5} parent=5 // pred_check_branch
      %363 = sbr.rel (%p360) target = $region12
    $region11: #{model_forward.5} parent=5 // pred_region
      %s364 = ssub.s32 %s20, 1
      // Predicated region
      $region13: #{model_forward.5} parent=11 // pred_check
        %p365 = pneg %p93
      $region14: #{model_forward.5} parent=11 // pred_check_branch
        %367 = sbr.rel (%p365) target = $region16
      $region15: #{model_forward.5} parent=11 // pred_region
        _
      $region16: #{model_forward.5} parent=11 // pred_fallthru
        _
      // Predicated region
      $region17: #{model_forward.5} parent=11 // pred_check
        %p368 = pneg %p114
      $region18: #{model_forward.5} parent=11 // pred_check_branch
        %370 = sbr.rel (%p368) target = $region20
      $region19: #{model_forward.5} parent=11 // pred_region
        _
      $region20: #{model_forward.5} parent=11 // pred_fallthru
        _
      // Predicated region
      $region21: #{model_forward.5} parent=11 // pred_check
        %p371 = pneg %p135
      $region22: #{model_forward.5} parent=11 // pred_check_branch
        %373 = sbr.rel (%p371) target = $region24
      $region23: #{model_forward.5} parent=11 // pred_region
        _
      $region24: #{model_forward.5} parent=11 // pred_fallthru
        _
      // Predicated region
      $region25: #{model_forward.5} parent=11 // pred_check
        %p374 = pneg %p156
      $region26: #{model_forward.5} parent=11 // pred_check_branch
        %376 = sbr.rel (%p374) target = $region28
      $region27: #{model_forward.5} parent=11 // pred_region
        _
      $region28: #{model_forward.5} parent=11 // pred_fallthru
        _
      // Predicated region
      $region29: #{model_forward.5} parent=11 // pred_check
        %p377 = pneg %p177
      $region30: #{model_forward.5} parent=11 // pred_check_branch
        %379 = sbr.rel (%p377) target = $region32
      $region31: #{model_forward.5} parent=11 // pred_region
        _
      $region32: #{model_forward.5} parent=11 // pred_fallthru
        _
      // Predicated region
      $region33: #{model_forward.5} parent=11 // pred_check
        %p380 = pneg %p198
      $region34: #{model_forward.5} parent=11 // pred_check_branch
        %382 = sbr.rel (%p380) target = $region36
      $region35: #{model_forward.5} parent=11 // pred_region
        _
      $region36: #{model_forward.5} parent=11 // pred_fallthru
        _
      // Predicated region
      $region37: #{model_forward.5} parent=11 // pred_check
        %p383 = pneg %p219
      $region38: #{model_forward.5} parent=11 // pred_check_branch
        %385 = sbr.rel (%p383) target = $region40
      $region39: #{model_forward.5} parent=11 // pred_region
        _
      $region40: #{model_forward.5} parent=11 // pred_fallthru
        _
      // Predicated region
      $region41: #{model_forward.5} parent=11 // pred_check
        %p386 = pneg %p240
      $region42: #{model_forward.5} parent=11 // pred_check_branch
        %388 = sbr.rel (%p386) target = $region44
      $region43: #{model_forward.5} parent=11 // pred_region
        _
      $region44: #{model_forward.5} parent=11 // pred_fallthru
        _
      // Predicated region
      $region45: #{model_forward.5} parent=11 // pred_check
        %p389 = pneg %p261
      $region46: #{model_forward.5} parent=11 // pred_check_branch
        %391 = sbr.rel (%p389) target = $region48
      $region47: #{model_forward.5} parent=11 // pred_region
        _
      $region48: #{model_forward.5} parent=11 // pred_fallthru
        _
      // Predicated region
      $region49: #{model_forward.5} parent=11 // pred_check
        %p392 = pneg %p282
      $region50: #{model_forward.5} parent=11 // pred_check_branch
        %394 = sbr.rel (%p392) target = $region52
      $region51: #{model_forward.5} parent=11 // pred_region
        _
      $region52: #{model_forward.5} parent=11 // pred_fallthru
        _
      // Predicated region
      $region53: #{model_forward.5} parent=11 // pred_check
        %p395 = pneg %p303
      $region54: #{model_forward.5} parent=11 // pred_check_branch
        %397 = sbr.rel (%p395) target = $region56
      $region55: #{model_forward.5} parent=11 // pred_region
        _
      $region56: #{model_forward.5} parent=11 // pred_fallthru
        _
      // Predicated region
      $region57: #{model_forward.5} parent=11 // pred_check
        %p398 = pneg %p324
      $region58: #{model_forward.5} parent=11 // pred_check_branch
        %400 = sbr.rel (%p398) target = $region60
      $region59: #{model_forward.5} parent=11 // pred_region
        _
      $region60: #{model_forward.5} parent=11 // pred_fallthru
        _
    $region12: #{model_forward.5} parent=5 // pred_fallthru
      _
    %p401 = scmp.lt.s32.totalorder %s20, 2
    // Predicated region
    $region61: #{model_forward.5} parent=5 // pred_check
      %p402 = pneg %p401
    $region62: #{model_forward.5} parent=5 // pred_check_branch
      %404 = sbr.rel (%p402) target = $region64
    $region63: #{model_forward.5} parent=5 // pred_region
      // Predicated region
      $region65: #{model_forward.5} parent=63 // pred_check
        %p405 = pneg %p40
      $region66: #{model_forward.5} parent=63 // pred_check_branch
        %407 = sbr.rel (%p405) target = $region68
      $region67: #{model_forward.5} parent=63 // pred_region
        %p408 = scmp.lt.s32.totalorder %s20, 1
        %s409 = scalar_select %p408, %s20, 1
        %s410 = smul.addr %s409, 8
        %s411 = scalar_lea.vmem %s0, %s410
      $region68: #{model_forward.5} parent=63 // pred_fallthru
        _
      // Predicated region
      $region69: #{model_forward.5} parent=63 // pred_check
        %p412 = pneg %p66
      $region70: #{model_forward.5} parent=63 // pred_check_branch
        %414 = sbr.rel (%p412) target = $region72
      $region71: #{model_forward.5} parent=63 // pred_region
        %p415 = scmp.lt.s32.totalorder %s20, 1
        %s416 = scalar_select %p415, %s20, 1
        %s417 = scalar_lea.vmem %s1, %s416
      $region72: #{model_forward.5} parent=63 // pred_fallthru
        _
    $region64: #{model_forward.5} parent=5 // pred_fallthru
      _
    %p418 = scmp.le.s32.totalorder 1, %s20
    %p419 = scmp.lt.s32.totalorder %s20, 3
    %p420 = pnand %p418, %p419
    %p421 = pneg %p420
    // Predicated region
    $region73: #{model_forward.5} parent=5 // pred_check
      _
    $region74: #{model_forward.5} parent=5 // pred_check_branch
      %423 = sbr.rel (%p420) target = $region76
    $region75: #{model_forward.5} parent=5 // pred_region
      %s424 = ssub.s32 %s20, 1
      %p425 = scmp.lt.s32.totalorder %s25, 1
      %s426 = scalar_select %p425, %s25, 1
      %s427 = smul.addr %s426, 8
      %s428 = scalar_lea.vmem %s0, %s427
      %p429 = pneg %p46
      %p430 = pneg %p43
      %p431 = scmp.lt.s32.totalorder %s25, 1
      %s432 = scalar_select %p431, %s25, 1
      %s433 = scalar_lea.vmem %s1, %s432
      %p434 = pneg %p72
      %p435 = pneg %p69
      %p436 = pneg %p93
      %p437 = pneg %p90
      %p438 = pneg %p114
      %p439 = pneg %p111
      %p440 = pneg %p135
      %p441 = pneg %p132
      %p442 = pneg %p156
      %p443 = pneg %p153
      %p444 = pneg %p177
      %p445 = pneg %p174
      %p446 = pneg %p198
      %p447 = pneg %p195
      %p448 = pneg %p219
      %p449 = pneg %p216
      %p450 = pneg %p240
      %p451 = pneg %p237
      %p452 = pneg %p261
      %p453 = pneg %p258
      %p454 = pneg %p282
      %p455 = pneg %p279
      %p456 = pneg %p303
      %p457 = pneg %p300
      %p458 = pneg %p324
      %p459 = pneg %p321
      %p460 = pneg %p350
      %p461 = pneg %p347
      %p462 = scmp.lt.s32.totalorder %s25, 1
      %s463 = scalar_select %p462, %s25, 1
      %s464 = smul.addr %s463, 8
      %s465 = scalar_lea.vmem %s14, %s464
      %p466 = scmp.lt.s32.totalorder %s25, 1
      %s467 = scalar_select %p466, %s25, 1
      %s468 = smul.addr %s467, 8
      %s469 = scalar_lea.vmem %s0, %s468
      %p470 = scmp.lt.s32.totalorder %s25, 1
      %s471 = scalar_select %p470, %s25, 1
      %s472 = scalar_lea.vmem %s1, %s471
      %p473 = scmp.lt.s32.totalorder %s25, 1
      %s474 = scalar_select %p473, %s25, 1
      %s475 = smul.addr %s474, 8
      %s476 = scalar_lea.vmem %s14, %s475
      %v478 = vld [vmem:[%s469] sm:$0xff]
      %v479 = vld [vmem:[%s472] sm:$0x1]
      %v480 = vpack.c.bf16 %v478, %v478
      %v481 = vld [vmem:[%s2] sm:$0xf]
      %v482 = vld [vmem:[%s2 + $0x4] sm:$0xf]
      %v483 = vld [vmem:[%s2 + $0x8] sm:$0xf]
      %v484 = vld [vmem:[%s2 + $0xc] sm:$0xf]
      %v485 = vld [vmem:[%s3] sm:$0x1]
      %v487 = vlaneseq
      %v488 = vshrl.u32 %v487, 7
      %v489 = vsub.s32 0, %v488
      %v490 = vrot.slane %v485, %v489
      %v496 = vunpack.c.l.b16 %v481
      %v497 = vunpack.c.l.b16 %v482
      %v498 = vunpack.c.l.b16 %v483
      %v499 = vunpack.c.l.b16 %v484
      %v500 = vpack.c.b16 %v497, %v496
      %v501 = vpack.c.b16 %v499, %v498
      %vm504 = vcmask 261120
      %v506 = vsel %vm504, %v480, 0
      %508 = vmatprep.subr.bf16.mxu0 0
      %509 = vmatpush1.bf16.msra.mxu0 %v500
      %510 = vmatprep.subr.bf16.mxu0 0
      %511 = vmatpush1.bf16.msra.mxu0 %v501
      %512 = vmatprep.subr.bf16.mxu0 0
      %513 = vmatpush1.bf16.msra.mxu0 0
      %514 = vmatprep.subr.bf16.mxu0 0
      %515 = vmatpush1.bf16.msra.mxu0 0
      %516 = vmatprep.subr.bf16.mxu0 0
      %517 = vmatpush1.bf16.msra.mxu0 0
      %518 = vmatprep.subr.bf16.mxu0 0
      %519 = vmatpush1.bf16.msra.mxu0 0
      %520 = vmatprep.subr.bf16.mxu0 0
      %521 = vmatpush1.bf16.msra.mxu0 0
      %522 = vmatprep.subr.bf16.mxu0 0
      %523 = vmatpush1.bf16.msra.mxu0 0
      %524 = vmatprep.subr.bf16.mxu0 0
      %525 = vmatpush1.bf16.msra.mxu0 0
      %526 = vmatprep.subr.bf16.mxu0 0
      %527 = vmatpush1.bf16.msra.mxu0 0
      %528 = vmatprep.subr.bf16.mxu0 0
      %529 = vmatpush1.bf16.msra.mxu0 0
      %530 = vmatprep.subr.bf16.mxu0 0
      %531 = vmatpush1.bf16.msra.mxu0 0
      %532 = vmatprep.subr.bf16.mxu0 0
      %533 = vmatpush1.bf16.msra.mxu0 0
      %534 = vmatprep.subr.bf16.mxu0 0
      %535 = vmatpush1.bf16.msra.mxu0 0
      %536 = vmatprep.subr.bf16.mxu0 0
      %537 = vmatpush1.bf16.msra.mxu0 0
      %538 = vmatprep.subr.bf16.mxu0 0
      %539 = vmatpush1.bf16.msra.mxu0 0
      %540 = vmatprep.mubr.bf16.mxu0 0
      %541 = vmatmul.mubr.bf16.gmra.mrb[0].mxu0 %v506
      %v542 = vpop.f32.mrb[0].mxu0
      %v543 = vadd.f32 %v490, %v542
      %v544 = vpop.f32.mrb[0].mxu0
      %v545 = vpop.f32.mrb[0].mxu0
      %v546 = vpop.f32.mrb[0].mxu0
      %547 = vdwg.mxu0
      %s548 = scalar_lea.vmem %s2, 64
      %v549 = vld [vmem:[%s548] sm:$0xf]
      %v550 = vld [vmem:[%s548 + $0x4] sm:$0xf]
      %v551 = vld [vmem:[%s548 + $0x8] sm:$0xf]
      %v552 = vld [vmem:[%s548 + $0xc] sm:$0xf]
      %s553 = scalar_lea.vmem %s3, 4
      %v554 = vld [vmem:[%s553] sm:$0x1]
      %v556 = vlaneseq
      %v557 = vshrl.u32 %v556, 7
      %v558 = vsub.s32 0, %v557
      %v559 = vrot.slane %v554, %v558
      %v565 = vunpack.c.l.b16 %v549
      %v566 = vunpack.c.l.b16 %v550
      %v567 = vunpack.c.l.b16 %v551
      %v568 = vunpack.c.l.b16 %v552
      %v569 = vpack.c.b16 %v566, %v565
      %v570 = vpack.c.b16 %v568, %v567
      %573 = vmatprep.subr.bf16.mxu0 0
      %574 = vmatpush1.bf16.msra.mxu0 %v569
      %575 = vmatprep.subr.bf16.mxu0 0
      %576 = vmatpush1.bf16.msra.mxu0 %v570
      %577 = vmatprep.subr.bf16.mxu0 0
      %578 = vmatpush1.bf16.msra.mxu0 0
      %579 = vmatprep.subr.bf16.mxu0 0
      %580 = vmatpush1.bf16.msra.mxu0 0
      %581 = vmatprep.subr.bf16.mxu0 0
      %582 = vmatpush1.bf16.msra.mxu0 0
      %583 = vmatprep.subr.bf16.mxu0 0
      %584 = vmatpush1.bf16.msra.mxu0 0
      %585 = vmatprep.subr.bf16.mxu0 0
      %586 = vmatpush1.bf16.msra.mxu0 0
      %587 = vmatprep.subr.bf16.mxu0 0
      %588 = vmatpush1.bf16.msra.mxu0 0
      %589 = vmatprep.subr.bf16.mxu0 0
      %590 = vmatpush1.bf16.msra.mxu0 0
      %591 = vmatprep.subr.bf16.mxu0 0
      %592 = vmatpush1.bf16.msra.mxu0 0
      %593 = vmatprep.subr.bf16.mxu0 0
      %594 = vmatpush1.bf16.msra.mxu0 0
      %595 = vmatprep.subr.bf16.mxu0 0
      %596 = vmatpush1.bf16.msra.mxu0 0
      %597 = vmatprep.subr.bf16.mxu0 0
      %598 = vmatpush1.bf16.msra.mxu0 0
      %599 = vmatprep.subr.bf16.mxu0 0
      %600 = vmatpush1.bf16.msra.mxu0 0
      %601 = vmatprep.subr.bf16.mxu0 0
      %602 = vmatpush1.bf16.msra.mxu0 0
      %603 = vmatprep.subr.bf16.mxu0 0
      %604 = vmatpush1.bf16.msra.mxu0 0
      %605 = vmatprep.mubr.bf16.mxu0 0
      %606 = vmatmul.mubr.bf16.gmra.mrb[0].mxu0 %v506
      %v607 = vpop.f32.mrb[0].mxu0
      %v608 = vadd.f32 %v559, %v607
      %v609 = vpop.f32.mrb[0].mxu0
      %v610 = vpop.f32.mrb[0].mxu0
      %v611 = vpop.f32.mrb[0].mxu0
      %612 = vdwg.mxu0
      %s613 = scalar_lea.vmem %s2, 128
      %v614 = vld [vmem:[%s613] sm:$0xf]
      %v615 = vld [vmem:[%s613 + $0x4] sm:$0xf]
      %v616 = vld [vmem:[%s613 + $0x8] sm:$0xf]
      %v617 = vld [vmem:[%s613 + $0xc] sm:$0xf]
      %s618 = scalar_lea.vmem %s3, 8
      %v619 = vld [vmem:[%s618] sm:$0x1]
      %v621 = vlaneseq
      %v622 = vshrl.u32 %v621, 7
      %v623 = vsub.s32 0, %v622
      %v624 = vrot.slane %v619, %v623
      %v630 = vunpack.c.l.b16 %v614
      %v631 = vunpack.c.l.b16 %v615
      %v632 = vunpack.c.l.b16 %v616
      %v633 = vunpack.c.l.b16 %v617
      %v634 = vpack.c.b16 %v631, %v630
      %v635 = vpack.c.b16 %v633, %v632
      %638 = vmatprep.subr.bf16.mxu0 0
      %639 = vmatpush1.bf16.msra.mxu0 %v634
      %640 = vmatprep.subr.bf16.mxu0 0
      %641 = vmatpush1.bf16.msra.mxu0 %v635
      %642 = vmatprep.subr.bf16.mxu0 0
      %643 = vmatpush1.bf16.msra.mxu0 0
      %644 = vmatprep.subr.bf16.mxu0 0
      %645 = vmatpush1.bf16.msra.mxu0 0
      %646 = vmatprep.subr.bf16.mxu0 0
      %647 = vmatpush1.bf16.msra.mxu0 0
      %648 = vmatprep.subr.bf16.mxu0 0
      %649 = vmatpush1.bf16.msra.mxu0 0
      %650 = vmatprep.subr.bf16.mxu0 0
      %651 = vmatpush1.bf16.msra.mxu0 0
      %652 = vmatprep.subr.bf16.mxu0 0
      %653 = vmatpush1.bf16.msra.mxu0 0
      %654 = vmatprep.subr.bf16.mxu0 0
      %655 = vmatpush1.bf16.msra.mxu0 0
      %656 = vmatprep.subr.bf16.mxu0 0
      %657 = vmatpush1.bf16.msra.mxu0 0
      %658 = vmatprep.subr.bf16.mxu0 0
      %659 = vmatpush1.bf16.msra.mxu0 0
      %660 = vmatprep.subr.bf16.mxu0 0
      %661 = vmatpush1.bf16.msra.mxu0 0
      %662 = vmatprep.subr.bf16.mxu0 0
      %663 = vmatpush1.bf16.msra.mxu0 0
      %664 = vmatprep.subr.bf16.mxu0 0
      %665 = vmatpush1.bf16.msra.mxu0 0
      %666 = vmatprep.subr.bf16.mxu0 0
      %667 = vmatpush1.bf16.msra.mxu0 0
      %668 = vmatprep.subr.bf16.mxu0 0
      %669 = vmatpush1.bf16.msra.mxu0 0
      %670 = vmatprep.mubr.bf16.mxu0 0
      %671 = vmatmul.mubr.bf16.gmra.mrb[0].mxu0 %v506
      %v672 = vpop.f32.mrb[0].mxu0
      %v673 = vadd.f32 %v624, %v672
      %v674 = vpop.f32.mrb[0].mxu0
      %v675 = vpop.f32.mrb[0].mxu0
      %v676 = vpop.f32.mrb[0].mxu0
      %677 = vdwg.mxu0
      %v678 = vpack.c.bf16 %v543, %v543
      %v679 = vpack.c.bf16 %v608, %v608
      %vm680 = vcmask 64512
      %v682 = vsel %vm680, %v678, 0
      %v685 = vsel %vm680, %v679, 0
      %687 = vmatprep.subr.bf16.mxu0 0
      %688 = vmatpush1.bf16.xpose.msra.mxu0 %v685
      %689 = vmatprep.subr.bf16.mxu0 0
      %690 = vmatpush1.bf16.xpose.msra.mxu0 0
      %691 = vmatprep.subr.bf16.mxu0 0
      %692 = vmatpush1.bf16.xpose.msra.mxu0 0
      %693 = vmatprep.subr.bf16.mxu0 0
      %694 = vmatpush1.bf16.xpose.msra.mxu0 0
      %695 = vmatprep.subr.bf16.mxu0 0
      %696 = vmatpush1.bf16.xpose.msra.mxu0 0
      %697 = vmatprep.subr.bf16.mxu0 0
      %698 = vmatpush1.bf16.xpose.msra.mxu0 0
      %699 = vmatprep.subr.bf16.mxu0 0
      %700 = vmatpush1.bf16.xpose.msra.mxu0 0
      %701 = vmatprep.subr.bf16.mxu0 0
      %702 = vmatpush1.bf16.xpose.msra.mxu0 0
      %703 = vmatprep.subr.bf16.mxu0 0
      %704 = vmatpush1.bf16.xpose.msra.mxu0 0
      %705 = vmatprep.subr.bf16.mxu0 0
      %706 = vmatpush1.bf16.xpose.msra.mxu0 0
      %707 = vmatprep.subr.bf16.mxu0 0
      %708 = vmatpush1.bf16.xpose.msra.mxu0 0
      %709 = vmatprep.subr.bf16.mxu0 0
      %710 = vmatpush1.bf16.xpose.msra.mxu0 0
      %711 = vmatprep.subr.bf16.mxu0 0
      %712 = vmatpush1.bf16.xpose.msra.mxu0 0
      %713 = vmatprep.subr.bf16.mxu0 0
      %714 = vmatpush1.bf16.xpose.msra.mxu0 0
      %715 = vmatprep.subr.bf16.mxu0 0
      %716 = vmatpush1.bf16.xpose.msra.mxu0 0
      %717 = vmatprep.subr.bf16.mxu0 0
      %718 = vmatpush1.bf16.xpose.msra.mxu0 0
      %719 = vmatprep.mubr.bf16.mxu0 0
      %720 = vmatmul.mubr.bf16.gmra.mrb[0].mxu0 %v682
      %v721 = vpop.f32.mrb[0].mxu0
      %v722 = vadd.f32 0.0, %v721
      %v723 = vpop.f32.mrb[0].mxu0
      %v724 = vpop.f32.mrb[0].mxu0
      %v725 = vpop.f32.mrb[0].mxu0
      %726 = vdwg.mxu0
      %v727 = vmul.f32 %v722, 0.35355338
      %v729 = vlaneseq
      %v730 = vshrl.u32 %v729, 7
      %v731 = vsub.s32 0, %v730
      %v732 = vrot.slane %v479, %v731
      %v734 = vadd.f32 %v727, %v732
      %v735 = vsel %vm680, %v734, -inf
      %736 = vmax.xlane.f32.xlu0 %v735
      %v737 = vpop.xlane.xlu0 %736
      %v738 = vsub.f32 %v734, %v737
      %v739 = vmul.f32 %v738, 1.442695
      %v740 = vpow.pop %v739
      %v741 = vsel %vm680, %v740, 0.0
      %742 = vadd.xlane.f32.xlu0 %v741
      %v743 = vpop.xlane.xlu0 %742
      %v744 = vrcp.pop %v743
      %v745 = vmul.f32 %v740, %v744
      %v746 = vpack.c.bf16 %v745, %v745
      %v747 = vpack.c.bf16 %v673, %v673
      %v749 = vsel %vm680, %v746, 0
      %vm751 = vcmask 1043456
      %v753 = vsel %vm751, %v747, 0
      %755 = vmatprep.subr.bf16.mxu0 0
      %756 = vmatpush1.bf16.msra.mxu0 %v753
      %757 = vmatprep.subr.bf16.mxu0 0
      %758 = vmatpush1.bf16.msra.mxu0 0
      %759 = vmatprep.subr.bf16.mxu0 0
      %760 = vmatpush1.bf16.msra.mxu0 0
      %761 = vmatprep.subr.bf16.mxu0 0
      %762 = vmatpush1.bf16.msra.mxu0 0
      %763 = vmatprep.subr.bf16.mxu0 0
      %764 = vmatpush1.bf16.msra.mxu0 0
      %765 = vmatprep.subr.bf16.mxu0 0
      %766 = vmatpush1.bf16.msra.mxu0 0
      %767 = vmatprep.subr.bf16.mxu0 0
      %768 = vmatpush1.bf16.msra.mxu0 0
      %769 = vmatprep.subr.bf16.mxu0 0
      %770 = vmatpush1.bf16.msra.mxu0 0
      %771 = vmatprep.subr.bf16.mxu0 0
      %772 = vmatpush1.bf16.msra.mxu0 0
      %773 = vmatprep.subr.bf16.mxu0 0
      %774 = vmatpush1.bf16.msra.mxu0 0
      %775 = vmatprep.subr.bf16.mxu0 0
      %776 = vmatpush1.bf16.msra.mxu0 0
      %777 = vmatprep.subr.bf16.mxu0 0
      %778 = vmatpush1.bf16.msra.mxu0 0
      %779 = vmatprep.subr.bf16.mxu0 0
      %780 = vmatpush1.bf16.msra.mxu0 0
      %781 = vmatprep.subr.bf16.mxu0 0
      %782 = vmatpush1.bf16.msra.mxu0 0
      %783 = vmatprep.subr.bf16.mxu0 0
      %784 = vmatpush1.bf16.msra.mxu0 0
      %785 = vmatprep.subr.bf16.mxu0 0
      %786 = vmatpush1.bf16.msra.mxu0 0
      %787 = vmatprep.mubr.bf16.mxu0 0
      %788 = vmatmul.mubr.bf16.gmra.mrb[0].mxu0 %v749
      %v789 = vpop.f32.mrb[0].mxu0
      %v790 = vadd.f32 0.0, %v789
      %v791 = vpop.f32.mrb[0].mxu0
      %v792 = vpop.f32.mrb[0].mxu0
      %v793 = vpop.f32.mrb[0].mxu0
      %794 = vdwg.mxu0
      %s795 = scalar_lea.vmem %s2, 16
      %v796 = vld [vmem:[%s795] sm:$0xf]
      %v797 = vld [vmem:[%s795 + $0x4] sm:$0xf]
      %v798 = vld [vmem:[%s795 + $0x8] sm:$0xf]
      %v799 = vld [vmem:[%s795 + $0xc] sm:$0xf]
      %s800 = scalar_lea.vmem %s3, 1
      %v801 = vld [vmem:[%s800] sm:$0x1]
      %v803 = vlaneseq
      %v804 = vshrl.u32 %v803, 7
      %v805 = vsub.s32 0, %v804
      %v806 = vrot.slane %v801, %v805
      %v812 = vunpack.c.l.b16 %v796
      %v813 = vunpack.c.l.b16 %v797
      %v814 = vunpack.c.l.b16 %v798
      %v815 = vunpack.c.l.b16 %v799
      %v816 = vpack.c.b16 %v813, %v812
      %v817 = vpack.c.b16 %v815, %v814
      %820 = vmatprep.subr.bf16.mxu0 0
      %821 = vmatpush1.bf16.msra.mxu0 %v816
      %822 = vmatprep.subr.bf16.mxu0 0
      %823 = vmatpush1.bf16.msra.mxu0 %v817
      %824 = vmatprep.subr.bf16.mxu0 0
      %825 = vmatpush1.bf16.msra.mxu0 0
      %826 = vmatprep.subr.bf16.mxu0 0
      %827 = vmatpush1.bf16.msra.mxu0 0
      %828 = vmatprep.subr.bf16.mxu0 0
      %829 = vmatpush1.bf16.msra.mxu0 0
      %830 = vmatprep.subr.bf16.mxu0 0
      %831 = vmatpush1.bf16.msra.mxu0 0
      %832 = vmatprep.subr.bf16.mxu0 0
      %833 = vmatpush1.bf16.msra.mxu0 0
      %834 = vmatprep.subr.bf16.mxu0 0
      %835 = vmatpush1.bf16.msra.mxu0 0
      %836 = vmatprep.subr.bf16.mxu0 0
      %837 = vmatpush1.bf16.msra.mxu0 0
      %838 = vmatprep.subr.bf16.mxu0 0
      %839 = vmatpush1.bf16.msra.mxu0 0
      %840 = vmatprep.subr.bf16.mxu0 0
      %841 = vmatpush1.bf16.msra.mxu0 0
      %842 = vmatprep.subr.bf16.mxu0 0
      %843 = vmatpush1.bf16.msra.mxu0 0
      %844 = vmatprep.subr.bf16.mxu0 0
      %845 = vmatpush1.bf16.msra.mxu0 0
      %846 = vmatprep.subr.bf16.mxu0 0
      %847 = vmatpush1.bf16.msra.mxu0 0
      %848 = vmatprep.subr.bf16.mxu0 0
      %849 = vmatpush1.bf16.msra.mxu0 0
      %850 = vmatprep.subr.bf16.mxu0 0
      %851 = vmatpush1.bf16.msra.mxu0 0
      %852 = vmatprep.mubr.bf16.mxu0 0
      %853 = vmatmul.mubr.bf16.gmra.mrb[0].mxu0 %v506
      %v854 = vpop.f32.mrb[0].mxu0
      %v855 = vadd.f32 %v806, %v854
      %v856 = vpop.f32.mrb[0].mxu0
      %v857 = vpop.f32.mrb[0].mxu0
      %v858 = vpop.f32.mrb[0].mxu0
      %859 = vdwg.mxu0
      %s860 = scalar_lea.vmem %s2, 80
      %v861 = vld [vmem:[%s860] sm:$0xf]
      %v862 = vld [vmem:[%s860 + $0x4] sm:$0xf]
      %v863 = vld [vmem:[%s860 + $0x8] sm:$0xf]
      %v864 = vld [vmem:[%s860 + $0xc] sm:$0xf]
      %s865 = scalar_lea.vmem %s3, 5
      %v866 = vld [vmem:[%s865] sm:$0x1]
      %v868 = vlaneseq
      %v869 = vshrl.u32 %v868, 7
      %v870 = vsub.s32 0, %v869
      %v871 = vrot.slane %v866, %v870
      %v877 = vunpack.c.l.b16 %v861
      %v878 = vunpack.c.l.b16 %v862
      %v879 = vunpack.c.l.b16 %v863
      %v880 = vunpack.c.l.b16 %v864
      %v881 = vpack.c.b16 %v878, %v877
      %v882 = vpack.c.b16 %v880, %v879
      %885 = vmatprep.subr.bf16.mxu0 0
      %886 = vmatpush1.bf16.msra.mxu0 %v881
      %887 = vmatprep.subr.bf16.mxu0 0
      %888 = vmatpush1.bf16.msra.mxu0 %v882
      %889 = vmatprep.subr.bf16.mxu0 0
      %890 = vmatpush1.bf16.msra.mxu0 0
      %891 = vmatprep.subr.bf16.mxu0 0
      %892 = vmatpush1.bf16.msra.mxu0 0
      %893 = vmatprep.subr.bf16.mxu0 0
      %894 = vmatpush1.bf16.msra.mxu0 0
      %895 = vmatprep.subr.bf16.mxu0 0
      %896 = vmatpush1.bf16.msra.mxu0 0
      %897 = vmatprep.subr.bf16.mxu0 0
      %898 = vmatpush1.bf16.msra.mxu0 0
      %899 = vmatprep.subr.bf16.mxu0 0
      %900 = vmatpush1.bf16.msra.mxu0 0
      %901 = vmatprep.subr.bf16.mxu0 0
      %902 = vmatpush1.bf16.msra.mxu0 0
      %903 = vmatprep.subr.bf16.mxu0 0
      %904 = vmatpush1.bf16.msra.mxu0 0
      %905 = vmatprep.subr.bf16.mxu0 0
      %906 = vmatpush1.bf16.msra.mxu0 0
      %907 = vmatprep.subr.bf16.mxu0 0
      %908 = vmatpush1.bf16.msra.mxu0 0
      %909 = vmatprep.subr.bf16.mxu0 0
      %910 = vmatpush1.bf16.msra.mxu0 0
      %911 = vmatprep.subr.bf16.mxu0 0
      %912 = vmatpush1.bf16.msra.mxu0 0
      %913 = vmatprep.subr.bf16.mxu0 0
      %914 = vmatpush1.bf16.msra.mxu0 0
      %915 = vmatprep.subr.bf16.mxu0 0
      %916 = vmatpush1.bf16.msra.mxu0 0
      %917 = vmatprep.mubr.bf16.mxu0 0
      %918 = vmatmul.mubr.bf16.gmra.mrb[0].mxu0 %v506
      %v919 = vpop.f32.mrb[0].mxu0
      %v920 = vadd.f32 %v871, %v919
      %v921 = vpop.f32.mrb[0].mxu0
      %v922 = vpop.f32.mrb[0].mxu0
      %v923 = vpop.f32.mrb[0].mxu0
      %924 = vdwg.mxu0
      %s925 = scalar_lea.vmem %s2, 144
      %v926 = vld [vmem:[%s925] sm:$0xf]
      %v927 = vld [vmem:[%s925 + $0x4] sm:$0xf]
      %v928 = vld [vmem:[%s925 + $0x8] sm:$0xf]
      %v929 = vld [vmem:[%s925 + $0xc] sm:$0xf]
      %s930 = scalar_lea.vmem %s3, 9
      %v931 = vld [vmem:[%s930] sm:$0x1]
      %v933 = vlaneseq
      %v934 = vshrl.u32 %v933, 7
      %v935 = vsub.s32 0, %v934
      %v936 = vrot.slane %v931, %v935
      %v942 = vunpack.c.l.b16 %v926
      %v943 = vunpack.c.l.b16 %v927
      %v944 = vunpack.c.l.b16 %v928
      %v945 = vunpack.c.l.b16 %v929
      %v946 = vpack.c.b16 %v943, %v942
      %v947 = vpack.c.b16 %v945, %v944
      %950 = vmatprep.subr.bf16.mxu0 0
      %951 = vmatpush1.bf16.msra.mxu0 %v946
      %952 = vmatprep.subr.bf16.mxu0 0
      %953 = vmatpush1.bf16.msra.mxu0 %v947
      %954 = vmatprep.subr.bf16.mxu0 0
      %955 = vmatpush1.bf16.msra.mxu0 0
      %956 = vmatprep.subr.bf16.mxu0 0
      %957 = vmatpush1.bf16.msra.mxu0 0
      %958 = vmatprep.subr.bf16.mxu0 0
      %959 = vmatpush1.bf16.msra.mxu0 0
      %960 = vmatprep.subr.bf16.mxu0 0
      %961 = vmatpush1.bf16.msra.mxu0 0
      %962 = vmatprep.subr.bf16.mxu0 0
      %963 = vmatpush1.bf16.msra.mxu0 0
      %964 = vmatprep.subr.bf16.mxu0 0
      %965 = vmatpush1.bf16.msra.mxu0 0
      %966 = vmatprep.subr.bf16.mxu0 0
      %967 = vmatpush1.bf16.msra.mxu0 0
      %968 = vmatprep.subr.bf16.mxu0 0
      %969 = vmatpush1.bf16.msra.mxu0 0
      %970 = vmatprep.subr.bf16.mxu0 0
      %971 = vmatpush1.bf16.msra.mxu0 0
      %972 = vmatprep.subr.bf16.mxu0 0
      %973 = vmatpush1.bf16.msra.mxu0 0
      %974 = vmatprep.subr.bf16.mxu0 0
      %975 = vmatpush1.bf16.msra.mxu0 0
      %976 = vmatprep.subr.bf16.mxu0 0
      %977 = vmatpush1.bf16.msra.mxu0 0
      %978 = vmatprep.subr.bf16.mxu0 0
      %979 = vmatpush1.bf16.msra.mxu0 0
      %980 = vmatprep.subr.bf16.mxu0 0
      %981 = vmatpush1.bf16.msra.mxu0 0
      %982 = vmatprep.mubr.bf16.mxu0 0
      %983 = vmatmul.mubr.bf16.gmra.mrb[0].mxu0 %v506
      %v984 = vpop.f32.mrb[0].mxu0
      %v985 = vadd.f32 %v936, %v984
      %v986 = vpop.f32.mrb[0].mxu0
      %v987 = vpop.f32.mrb[0].mxu0
      %v988 = vpop.f32.mrb[0].mxu0
      %989 = vdwg.mxu0
      %v990 = vpack.c.bf16 %v855, %v855
      %v991 = vpack.c.bf16 %v920, %v920
      %v993 = vsel %vm680, %v990, 0
      %v996 = vsel %vm680, %v991, 0
      %998 = vmatprep.subr.bf16.mxu0 0
      %999 = vmatpush1.bf16.xpose.msra.mxu0 %v996
      %1000 = vmatprep.subr.bf16.mxu0 0
      %1001 = vmatpush1.bf16.xpose.msra.mxu0 0
      %1002 = vmatprep.subr.bf16.mxu0 0
      %1003 = vmatpush1.bf16.xpose.msra.mxu0 0
      %1004 = vmatprep.subr.bf16.mxu0 0
      %1005 = vmatpush1.bf16.xpose.msra.mxu0 0
      %1006 = vmatprep.subr.bf16.mxu0 0
      %1007 = vmatpush1.bf16.xpose.msra.mxu0 0
      %1008 = vmatprep.subr.bf16.mxu0 0
      %1009 = vmatpush1.bf16.xpose.msra.mxu0 0
      %1010 = vmatprep.subr.bf16.mxu0 0
      %1011 = vmatpush1.bf16.xpose.msra.mxu0 0
      %1012 = vmatprep.subr.bf16.mxu0 0
      %1013 = vmatpush1.bf16.xpose.msra.mxu0 0
      %1014 = vmatprep.subr.bf16.mxu0 0
      %1015 = vmatpush1.bf16.xpose.msra.mxu0 0
      %1016 = vmatprep.subr.bf16.mxu0 0
      %1017 = vmatpush1.bf16.xpose.msra.mxu0 0
      %1018 = vmatprep.subr.bf16.mxu0 0
      %1019 = vmatpush1.bf16.xpose.msra.mxu0 0
      %1020 = vmatprep.subr.bf16.mxu0 0
      %1021 = vmatpush1.bf16.xpose.msra.mxu0 0
      %1022 = vmatprep.subr.bf16.mxu0 0
      %1023 = vmatpush1.bf16.xpose.msra.mxu0 0
      %1024 = vmatprep.subr.bf16.mxu0 0
      %1025 = vmatpush1.bf16.xpose.msra.mxu0 0
      %1026 = vmatprep.subr.bf16.mxu0 0
      %1027 = vmatpush1.bf16.xpose.msra.mxu0 0
      %1028 = vmatprep.subr.bf16.mxu0 0
      %1029 = vmatpush1.bf16.xpose.msra.mxu0 0
      %1030 = vmatprep.mubr.bf16.mxu0 0
      %1031 = vmatmul.mubr.bf16.gmra.mrb[0].mxu0 %v993
      %v1032 = vpop.f32.mrb[0].mxu0
      %v1033 = vadd.f32 0.0, %v1032
      %v1034 = vpop.f32.mrb[0].mxu0
      %v1035 = vpop.f32.mrb[0].mxu0
      %v1036 = vpop.f32.mrb[0].mxu0
      %1037 = vdwg.mxu0
      %v1038 = vmul.f32 %v1033, 0.35355338
      %v1039 = vadd.f32 %v1038, %v732
      %v1040 = vsel %vm680, %v1039, -inf
      %1041 = vmax.xlane.f32.xlu0 %v1040
      %v1042 = vpop.xlane.xlu0 %1041
      %v1043 = vsub.f32 %v1039, %v1042
      %v1044 = vmul.f32 %v1043, 1.442695
      %v1045 = vpow.pop %v1044
      %v1046 = vsel %vm680, %v1045, 0.0
      %1047 = vadd.xlane.f32.xlu0 %v1046
      %v1048 = vpop.xlane.xlu0 %1047
      %v1049 = vrcp.pop %v1048
      %v1050 = vmul.f32 %v1045, %v1049
      %v1051 = vpack.c.bf16 %v1050, %v1050
      %v1052 = vpack.c.bf16 %v985, %v985
      %v1054 = vsel %vm680, %v1051, 0
      %v1057 = vsel %vm751, %v1052, 0
      %1059 = vmatprep.subr.bf16.mxu0 0
      %1060 = vmatpush1.bf16.msra.mxu0 %v1057
      %1061 = vmatprep.subr.bf16.mxu0 0
      %1062 = vmatpush1.bf16.msra.mxu0 0
      %1063 = vmatprep.subr.bf16.mxu0 0
      %1064 = vmatpush1.bf16.msra.mxu0 0
      %1065 = vmatprep.subr.bf16.mxu0 0
      %1066 = vmatpush1.bf16.msra.mxu0 0
      %1067 = vmatprep.subr.bf16.mxu0 0
      %1068 = vmatpush1.bf16.msra.mxu0 0
      %1069 = vmatprep.subr.bf16.mxu0 0
      %1070 = vmatpush1.bf16.msra.mxu0 0
      %1071 = vmatprep.subr.bf16.mxu0 0
      %1072 = vmatpush1.bf16.msra.mxu0 0
      %1073 = vmatprep.subr.bf16.mxu0 0
      %1074 = vmatpush1.bf16.msra.mxu0 0
      %1075 = vmatprep.subr.bf16.mxu0 0
      %1076 = vmatpush1.bf16.msra.mxu0 0
      %1077 = vmatprep.subr.bf16.mxu0 0
      %1078 = vmatpush1.bf16.msra.mxu0 0
      %1079 = vmatprep.subr.bf16.mxu0 0
      %1080 = vmatpush1.bf16.msra.mxu0 0
      %1081 = vmatprep.subr.bf16.mxu0 0
      %1082 = vmatpush1.bf16.msra.mxu0 0
      %1083 = vmatprep.subr.bf16.mxu0 0
      %1084 = vmatpush1.bf16.msra.mxu0 0
      %1085 = vmatprep.subr.bf16.mxu0 0
      %1086 = vmatpush1.bf16.msra.mxu0 0
      %1087 = vmatprep.subr.bf16.mxu0 0
      %1088 = vmatpush1.bf16.msra.mxu0 0
      %1089 = vmatprep.subr.bf16.mxu0 0
      %1090 = vmatpush1.bf16.msra.mxu0 0
      %1091 = vmatprep.mubr.bf16.mxu0 0
      %1092 = vmatmul.mubr.bf16.gmra.mrb[0].mxu0 %v1054
      %v1093 = vpop.f32.mrb[0].mxu0
      %v1094 = vadd.f32 0.0, %v1093
      %v1095 = vpop.f32.mrb[0].mxu0
      %v1096 = vpop.f32.mrb[0].mxu0
      %v1097 = vpop.f32.mrb[0].mxu0
      %1098 = vdwg.mxu0
      %s1099 = scalar_lea.vmem %s2, 32
      %v1100 = vld [vmem:[%s1099] sm:$0xf]
      %v1101 = vld [vmem:[%s1099 + $0x4] sm:$0xf]
      %v1102 = vld [vmem:[%s1099 + $0x8] sm:$0xf]
      %v1103 = vld [vmem:[%s1099 + $0xc] sm:$0xf]
      %s1104 = scalar_lea.vmem %s3, 2
      %v1105 = vld [vmem:[%s1104] sm:$0x1]
      %v1107 = vlaneseq
      %v1108 = vshrl.u32 %v1107, 7
      %v1109 = vsub.s32 0, %v1108
      %v1110 = vrot.slane %v1105, %v1109
      %v1116 = vunpack.c.l.b16 %v1100
      %v1117 = vunpack.c.l.b16 %v1101
      %v1118 = vunpack.c.l.b16 %v1102
      %v1119 = vunpack.c.l.b16 %v1103
      %v1120 = vpack.c.b16 %v1117, %v1116
      %v1121 = vpack.c.b16 %v1119, %v1118
      %1124 = vmatprep.subr.bf16.mxu0 0
      %1125 = vmatpush1.bf16.msra.mxu0 %v1120
      %1126 = vmatprep.subr.bf16.mxu0 0
      %1127 = vmatpush1.bf16.msra.mxu0 %v1121
      %1128 = vmatprep.subr.bf16.mxu0 0
      %1129 = vmatpush1.bf16.msra.mxu0 0
      %1130 = vmatprep.subr.bf16.mxu0 0
      %1131 = vmatpush1.bf16.msra.mxu0 0
      %1132 = vmatprep.subr.bf16.mxu0 0
      %1133 = vmatpush1.bf16.msra.mxu0 0
      %1134 = vmatprep.subr.bf16.mxu0 0
      %1135 = vmatpush1.bf16.msra.mxu0 0
      %1136 = vmatprep.subr.bf16.mxu0 0
      %1137 = vmatpush1.bf16.msra.mxu0 0
      %1138 = vmatprep.subr.bf16.mxu0 0
      %1139 = vmatpush1.bf16.msra.mxu0 0
      %1140 = vmatprep.subr.bf16.mxu0 0
      %1141 = vmatpush1.bf16.msra.mxu0 0
      %1142 = vmatprep.subr.bf16.mxu0 0
      %1143 = vmatpush1.bf16.msra.mxu0 0
      %1144 = vmatprep.subr.bf16.mxu0 0
      %1145 = vmatpush1.bf16.msra.mxu0 0
      %1146 = vmatprep.subr.bf16.mxu0 0
      %1147 = vmatpush1.bf16.msra.mxu0 0
      %1148 = vmatprep.subr.bf16.mxu0 0
      %1149 = vmatpush1.bf16.msra.mxu0 0
      %1150 = vmatprep.subr.bf16.mxu0 0
      %1151 = vmatpush1.bf16.msra.mxu0 0
      %1152 = vmatprep.subr.bf16.mxu0 0
      %1153 = vmatpush1.bf16.msra.mxu0 0
      %1154 = vmatprep.subr.bf16.mxu0 0
      %1155 = vmatpush1.bf16.msra.mxu0 0
      %1156 = vmatprep.mubr.bf16.mxu0 0
      %1157 = vmatmul.mubr.bf16.gmra.mrb[0].mxu0 %v506
      %v1158 = vpop.f32.mrb[0].mxu0
      %v1159 = vadd.f32 %v1110, %v1158
      %v1160 = vpop.f32.mrb[0].mxu0
      %v1161 = vpop.f32.mrb[0].mxu0
      %v1162 = vpop.f32.mrb[0].mxu0
      %1163 = vdwg.mxu0
      %s1164 = scalar_lea.vmem %s2, 96
      %v1165 = vld [vmem:[%s1164] sm:$0xf]
      %v1166 = vld [vmem:[%s1164 + $0x4] sm:$0xf]
      %v1167 = vld [vmem:[%s1164 + $0x8] sm:$0xf]
      %v1168 = vld [vmem:[%s1164 + $0xc] sm:$0xf]
      %s1169 = scalar_lea.vmem %s3, 6
      %v1170 = vld [vmem:[%s1169] sm:$0x1]
      %v1172 = vlaneseq
      %v1173 = vshrl.u32 %v1172, 7
      %v1174 = vsub.s32 0, %v1173
      %v1175 = vrot.slane %v1170, %v1174
      %v1181 = vunpack.c.l.b16 %v1165
      %v1182 = vunpack.c.l.b16 %v1166
      %v1183 = vunpack.c.l.b16 %v1167
      %v1184 = vunpack.c.l.b16 %v1168
      %v1185 = vpack.c.b16 %v1182, %v1181
      %v1186 = vpack.c.b16 %v1184, %v1183
      %1189 = vmatprep.subr.bf16.mxu0 0
      %1190 = vmatpush1.bf16.msra.mxu0 %v1185
      %1191 = vmatprep.subr.bf16.mxu0 0
      %1192 = vmatpush1.bf16.msra.mxu0 %v1186
      %1193 = vmatprep.subr.bf16.mxu0 0
      %1194 = vmatpush1.bf16.msra.mxu0 0
      %1195 = vmatprep.subr.bf16.mxu0 0
      %1196 = vmatpush1.bf16.msra.mxu0 0
      %1197 = vmatprep.subr.bf16.mxu0 0
      %1198 = vmatpush1.bf16.msra.mxu0 0
      %1199 = vmatprep.subr.bf16.mxu0 0
      %1200 = vmatpush1.bf16.msra.mxu0 0
      %1201 = vmatprep.subr.bf16.mxu0 0
      %1202 = vmatpush1.bf16.msra.mxu0 0
      %1203 = vmatprep.subr.bf16.mxu0 0
      %1204 = vmatpush1.bf16.msra.mxu0 0
      %1205 = vmatprep.subr.bf16.mxu0 0
      %1206 = vmatpush1.bf16.msra.mxu0 0
      %1207 = vmatprep.subr.bf16.mxu0 0
      %1208 = vmatpush1.bf16.msra.mxu0 0
      %1209 = vmatprep.subr.bf16.mxu0 0
      %1210 = vmatpush1.bf16.msra.mxu0 0
      %1211 = vmatprep.subr.bf16.mxu0 0
      %1212 = vmatpush1.bf16.msra.mxu0 0
      %1213 = vmatprep.subr.bf16.mxu0 0
      %1214 = vmatpush1.bf16.msra.mxu0 0
      %1215 = vmatprep.subr.bf16.mxu0 0
      %1216 = vmatpush1.bf16.msra.mxu0 0
      %1217 = vmatprep.subr.bf16.mxu0 0
      %1218 = vmatpush1.bf16.msra.mxu0 0
      %1219 = vmatprep.subr.bf16.mxu0 0
      %1220 = vmatpush1.bf16.msra.mxu0 0
      %1221 = vmatprep.mubr.bf16.mxu0 0
      %1222 = vmatmul.mubr.bf16.gmra.mrb[0].mxu0 %v506
      %v1223 = vpop.f32.mrb[0].mxu0
      %v1224 = vadd.f32 %v1175, %v1223
      %v1225 = vpop.f32.mrb[0].mxu0
      %v1226 = vpop.f32.mrb[0].mxu0
      %v1227 = vpop.f32.mrb[0].mxu0
      %1228 = vdwg.mxu0
      %s1229 = scalar_lea.vmem %s2, 160
      %v1230 = vld [vmem:[%s1229] sm:$0xf]
      %v1231 = vld [vmem:[%s1229 + $0x4] sm:$0xf]
      %v1232 = vld [vmem:[%s1229 + $0x8] sm:$0xf]
      %v1233 = vld [vmem:[%s1229 + $0xc] sm:$0xf]
      %s1234 = scalar_lea.vmem %s3, 10
      %v1235 = vld [vmem:[%s1234] sm:$0x1]
      %v1237 = vlaneseq
      %v1238 = vshrl.u32 %v1237, 7
      %v1239 = vsub.s32 0, %v1238
      %v1240 = vrot.slane %v1235, %v1239
      %v1246 = vunpack.c.l.b16 %v1230
      %v1247 = vunpack.c.l.b16 %v1231
      %v1248 = vunpack.c.l.b16 %v1232
      %v1249 = vunpack.c.l.b16 %v1233
      %v1250 = vpack.c.b16 %v1247, %v1246
      %v1251 = vpack.c.b16 %v1249, %v1248
      %1254 = vmatprep.subr.bf16.mxu0 0
      %1255 = vmatpush1.bf16.msra.mxu0 %v1250
      %1256 = vmatprep.subr.bf16.mxu0 0
      %1257 = vmatpush1.bf16.msra.mxu0 %v1251
      %1258 = vmatprep.subr.bf16.mxu0 0
      %1259 = vmatpush1.bf16.msra.mxu0 0
      %1260 = vmatprep.subr.bf16.mxu0 0
      %1261 = vmatpush1.bf16.msra.mxu0 0
      %1262 = vmatprep.subr.bf16.mxu0 0
      %1263 = vmatpush1.bf16.msra.mxu0 0
      %1264 = vmatprep.subr.bf16.mxu0 0
      %1265 = vmatpush1.bf16.msra.mxu0 0
      %1266 = vmatprep.subr.bf16.mxu0 0
      %1267 = vmatpush1.bf16.msra.mxu0 0
      %1268 = vmatprep.subr.bf16.mxu0 0
      %1269 = vmatpush1.bf16.msra.mxu0 0
      %1270 = vmatprep.subr.bf16.mxu0 0
      %1271 = vmatpush1.bf16.msra.mxu0 0
      %1272 = vmatprep.subr.bf16.mxu0 0
      %1273 = vmatpush1.bf16.msra.mxu0 0
      %1274 = vmatprep.subr.bf16.mxu0 0
      %1275 = vmatpush1.bf16.msra.mxu0 0
      %1276 = vmatprep.subr.bf16.mxu0 0
      %1277 = vmatpush1.bf16.msra.mxu0 0
      %1278 = vmatprep.subr.bf16.mxu0 0
      %1279 = vmatpush1.bf16.msra.mxu0 0
      %1280 = vmatprep.subr.bf16.mxu0 0
      %1281 = vmatpush1.bf16.msra.mxu0 0
      %1282 = vmatprep.subr.bf16.mxu0 0
      %1283 = vmatpush1.bf16.msra.mxu0 0
      %1284 = vmatprep.subr.bf16.mxu0 0
      %1285 = vmatpush1.bf16.msra.mxu0 0
      %1286 = vmatprep.mubr.bf16.mxu0 0
      %1287 = vmatmul.mubr.bf16.gmra.mrb[0].mxu0 %v506
      %v1288 = vpop.f32.mrb[0].mxu0
      %v1289 = vadd.f32 %v1240, %v1288
      %v1290 = vpop.f32.mrb[0].mxu0
      %v1291 = vpop.f32.mrb[0].mxu0
      %v1292 = vpop.f32.mrb[0].mxu0
      %1293 = vdwg.mxu0
      %v1294 = vpack.c.bf16 %v1159, %v1159
      %v1295 = vpack.c.bf16 %v1224, %v1224
      %v1297 = vsel %vm680, %v1294, 0
      %v1300 = vsel %vm680, %v1295, 0
      %1302 = vmatprep.subr.bf16.mxu0 0
      %1303 = vmatpush1.bf16.xpose.msra.mxu0 %v1300
      %1304 = vmatprep.subr.bf16.mxu0 0
      %1305 = vmatpush1.bf16.xpose.msra.mxu0 0
      %1306 = vmatprep.subr.bf16.mxu0 0
      %1307 = vmatpush1.bf16.xpose.msra.mxu0 0
      %1308 = vmatprep.subr.bf16.mxu0 0
      %1309 = vmatpush1.bf16.xpose.msra.mxu0 0
      %1310 = vmatprep.subr.bf16.mxu0 0
      %1311 = vmatpush1.bf16.xpose.msra.mxu0 0
      %1312 = vmatprep.subr.bf16.mxu0 0
      %1313 = vmatpush1.bf16.xpose.msra.mxu0 0
      %1314 = vmatprep.subr.bf16.mxu0 0
      %1315 = vmatpush1.bf16.xpose.msra.mxu0 0
      %1316 = vmatprep.subr.bf16.mxu0 0
      %1317 = vmatpush1.bf16.xpose.msra.mxu0 0
      %1318 = vmatprep.subr.bf16.mxu0 0
      %1319 = vmatpush1.bf16.xpose.msra.mxu0 0
      %1320 = vmatprep.subr.bf16.mxu0 0
      %1321 = vmatpush1.bf16.xpose.msra.mxu0 0
      %1322 = vmatprep.subr.bf16.mxu0 0
      %1323 = vmatpush1.bf16.xpose.msra.mxu0 0
      %1324 = vmatprep.subr.bf16.mxu0 0
      %1325 = vmatpush1.bf16.xpose.msra.mxu0 0
      %1326 = vmatprep.subr.bf16.mxu0 0
      %1327 = vmatpush1.bf16.xpose.msra.mxu0 0
      %1328 = vmatprep.subr.bf16.mxu0 0
      %1329 = vmatpush1.bf16.xpose.msra.mxu0 0
      %1330 = vmatprep.subr.bf16.mxu0 0
      %1331 = vmatpush1.bf16.xpose.msra.mxu0 0
      %1332 = vmatprep.subr.bf16.mxu0 0
      %1333 = vmatpush1.bf16.xpose.msra.mxu0 0
      %1334 = vmatprep.mubr.bf16.mxu0 0
      %1335 = vmatmul.mubr.bf16.gmra.mrb[0].mxu0 %v1297
      %v1336 = vpop.f32.mrb[0].mxu0
      %v1337 = vadd.f32 0.0, %v1336
      %v1338 = vpop.f32.mrb[0].mxu0
      %v1339 = vpop.f32.mrb[0].mxu0
      %v1340 = vpop.f32.mrb[0].mxu0
      %1341 = vdwg.mxu0
      %v1342 = vmul.f32 %v1337, 0.35355338
      %v1343 = vadd.f32 %v1342, %v732
      %v1344 = vsel %vm680, %v1343, -inf
      %1345 = vmax.xlane.f32.xlu0 %v1344
      %v1346 = vpop.xlane.xlu0 %1345
      %v1347 = vsub.f32 %v1343, %v1346
      %v1348 = vmul.f32 %v1347, 1.442695
      %v1349 = vpow.pop %v1348
      %v1350 = vsel %vm680, %v1349, 0.0
      %1351 = vadd.xlane.f32.xlu0 %v1350
      %v1352 = vpop.xlane.xlu0 %1351
      %v1353 = vrcp.pop %v1352
      %v1354 = vmul.f32 %v1349, %v1353
      %v1355 = vpack.c.bf16 %v1354, %v1354
      %v1356 = vpack.c.bf16 %v1289, %v1289
      %v1358 = vsel %vm680, %v1355, 0
      %v1361 = vsel %vm751, %v1356, 0
      %1363 = vmatprep.subr.bf16.mxu0 0
      %1364 = vmatpush1.bf16.msra.mxu0 %v1361
      %1365 = vmatprep.subr.bf16.mxu0 0
      %1366 = vmatpush1.bf16.msra.mxu0 0
      %1367 = vmatprep.subr.bf16.mxu0 0
      %1368 = vmatpush1.bf16.msra.mxu0 0
      %1369 = vmatprep.subr.bf16.mxu0 0
      %1370 = vmatpush1.bf16.msra.mxu0 0
      %1371 = vmatprep.subr.bf16.mxu0 0
      %1372 = vmatpush1.bf16.msra.mxu0 0
      %1373 = vmatprep.subr.bf16.mxu0 0
      %1374 = vmatpush1.bf16.msra.mxu0 0
      %1375 = vmatprep.subr.bf16.mxu0 0
      %1376 = vmatpush1.bf16.msra.mxu0 0
      %1377 = vmatprep.subr.bf16.mxu0 0
      %1378 = vmatpush1.bf16.msra.mxu0 0
      %1379 = vmatprep.subr.bf16.mxu0 0
      %1380 = vmatpush1.bf16.msra.mxu0 0
      %1381 = vmatprep.subr.bf16.mxu0 0
      %1382 = vmatpush1.bf16.msra.mxu0 0
      %1383 = vmatprep.subr.bf16.mxu0 0
      %1384 = vmatpush1.bf16.msra.mxu0 0
      %1385 = vmatprep.subr.bf16.mxu0 0
      %1386 = vmatpush1.bf16.msra.mxu0 0
      %1387 = vmatprep.subr.bf16.mxu0 0
      %1388 = vmatpush1.bf16.msra.mxu0 0
      %1389 = vmatprep.subr.bf16.mxu0 0
      %1390 = vmatpush1.bf16.msra.mxu0 0
      %1391 = vmatprep.subr.bf16.mxu0 0
      %1392 = vmatpush1.bf16.msra.mxu0 0
      %1393 = vmatprep.subr.bf16.mxu0 0
      %1394 = vmatpush1.bf16.msra.mxu0 0
      %1395 = vmatprep.mubr.bf16.mxu0 0
      %1396 = vmatmul.mubr.bf16.gmra.mrb[0].mxu0 %v1358
      %v1397 = vpop.f32.mrb[0].mxu0
      %v1398 = vadd.f32 0.0, %v1397
      %v1399 = vpop.f32.mrb[0].mxu0
      %v1400 = vpop.f32.mrb[0].mxu0
      %v1401 = vpop.f32.mrb[0].mxu0
      %1402 = vdwg.mxu0
      %s1403 = scalar_lea.vmem %s2, 48
      %v1404 = vld [vmem:[%s1403] sm:$0xf]
      %v1405 = vld [vmem:[%s1403 + $0x4] sm:$0xf]
      %v1406 = vld [vmem:[%s1403 + $0x8] sm:$0xf]
      %v1407 = vld [vmem:[%s1403 + $0xc] sm:$0xf]
      %s1408 = scalar_lea.vmem %s3, 3
      %v1409 = vld [vmem:[%s1408] sm:$0x1]
      %v1411 = vlaneseq
      %v1412 = vshrl.u32 %v1411, 7
      %v1413 = vsub.s32 0, %v1412
      %v1414 = vrot.slane %v1409, %v1413
      %v1420 = vunpack.c.l.b16 %v1404
      %v1421 = vunpack.c.l.b16 %v1405
      %v1422 = vunpack.c.l.b16 %v1406
      %v1423 = vunpack.c.l.b16 %v1407
      %v1424 = vpack.c.b16 %v1421, %v1420
      %v1425 = vpack.c.b16 %v1423, %v1422
      %1428 = vmatprep.subr.bf16.mxu0 0
      %1429 = vmatpush1.bf16.msra.mxu0 %v1424
      %1430 = vmatprep.subr.bf16.mxu0 0
      %1431 = vmatpush1.bf16.msra.mxu0 %v1425
      %1432 = vmatprep.subr.bf16.mxu0 0
      %1433 = vmatpush1.bf16.msra.mxu0 0
      %1434 = vmatprep.subr.bf16.mxu0 0
      %1435 = vmatpush1.bf16.msra.mxu0 0
      %1436 = vmatprep.subr.bf16.mxu0 0
      %1437 = vmatpush1.bf16.msra.mxu0 0
      %1438 = vmatprep.subr.bf16.mxu0 0
      %1439 = vmatpush1.bf16.msra.mxu0 0
      %1440 = vmatprep.subr.bf16.mxu0 0
      %1441 = vmatpush1.bf16.msra.mxu0 0
      %1442 = vmatprep.subr.bf16.mxu0 0
      %1443 = vmatpush1.bf16.msra.mxu0 0
      %1444 = vmatprep.subr.bf16.mxu0 0
      %1445 = vmatpush1.bf16.msra.mxu0 0
      %1446 = vmatprep.subr.bf16.mxu0 0
      %1447 = vmatpush1.bf16.msra.mxu0 0
      %1448 = vmatprep.subr.bf16.mxu0 0
      %1449 = vmatpush1.bf16.msra.mxu0 0
      %1450 = vmatprep.subr.bf16.mxu0 0
      %1451 = vmatpush1.bf16.msra.mxu0 0
      %1452 = vmatprep.subr.bf16.mxu0 0
      %1453 = vmatpush1.bf16.msra.mxu0 0
      %1454 = vmatprep.subr.bf16.mxu0 0
      %1455 = vmatpush1.bf16.msra.mxu0 0
      %1456 = vmatprep.subr.bf16.mxu0 0
      %1457 = vmatpush1.bf16.msra.mxu0 0
      %1458 = vmatprep.subr.bf16.mxu0 0
      %1459 = vmatpush1.bf16.msra.mxu0 0
      %1460 = vmatprep.mubr.bf16.mxu0 0
      %1461 = vmatmul.mubr.bf16.gmra.mrb[0].mxu0 %v506
      %v1462 = vpop.f32.mrb[0].mxu0
      %v1463 = vadd.f32 %v1414, %v1462
      %v1464 = vpop.f32.mrb[0].mxu0
      %v1465 = vpop.f32.mrb[0].mxu0
      %v1466 = vpop.f32.mrb[0].mxu0
      %1467 = vdwg.mxu0
      %s1468 = scalar_lea.vmem %s2, 112
      %v1469 = vld [vmem:[%s1468] sm:$0xf]
      %v1470 = vld [vmem:[%s1468 + $0x4] sm:$0xf]
      %v1471 = vld [vmem:[%s1468 + $0x8] sm:$0xf]
      %v1472 = vld [vmem:[%s1468 + $0xc] sm:$0xf]
      %s1473 = scalar_lea.vmem %s3, 7
      %v1474 = vld [vmem:[%s1473] sm:$0x1]
      %v1476 = vlaneseq
      %v1477 = vshrl.u32 %v1476, 7
      %v1478 = vsub.s32 0, %v1477
      %v1479 = vrot.slane %v1474, %v1478
      %v1485 = vunpack.c.l.b16 %v1469
      %v1486 = vunpack.c.l.b16 %v1470
      %v1487 = vunpack.c.l.b16 %v1471
      %v1488 = vunpack.c.l.b16 %v1472
      %v1489 = vpack.c.b16 %v1486, %v1485
      %v1490 = vpack.c.b16 %v1488, %v1487
      %1493 = vmatprep.subr.bf16.mxu0 0
      %1494 = vmatpush1.bf16.msra.mxu0 %v1489
      %1495 = vmatprep.subr.bf16.mxu0 0
      %1496 = vmatpush1.bf16.msra.mxu0 %v1490
      %1497 = vmatprep.subr.bf16.mxu0 0
      %1498 = vmatpush1.bf16.msra.mxu0 0
      %1499 = vmatprep.subr.bf16.mxu0 0
      %1500 = vmatpush1.bf16.msra.mxu0 0
      %1501 = vmatprep.subr.bf16.mxu0 0
      %1502 = vmatpush1.bf16.msra.mxu0 0
      %1503 = vmatprep.subr.bf16.mxu0 0
      %1504 = vmatpush1.bf16.msra.mxu0 0
      %1505 = vmatprep.subr.bf16.mxu0 0
      %1506 = vmatpush1.bf16.msra.mxu0 0
      %1507 = vmatprep.subr.bf16.mxu0 0
      %1508 = vmatpush1.bf16.msra.mxu0 0
      %1509 = vmatprep.subr.bf16.mxu0 0
      %1510 = vmatpush1.bf16.msra.mxu0 0
      %1511 = vmatprep.subr.bf16.mxu0 0
      %1512 = vmatpush1.bf16.msra.mxu0 0
      %1513 = vmatprep.subr.bf16.mxu0 0
      %1514 = vmatpush1.bf16.msra.mxu0 0
      %1515 = vmatprep.subr.bf16.mxu0 0
      %1516 = vmatpush1.bf16.msra.mxu0 0
      %1517 = vmatprep.subr.bf16.mxu0 0
      %1518 = vmatpush1.bf16.msra.mxu0 0
      %1519 = vmatprep.subr.bf16.mxu0 0
      %1520 = vmatpush1.bf16.msra.mxu0 0
      %1521 = vmatprep.subr.bf16.mxu0 0
      %1522 = vmatpush1.bf16.msra.mxu0 0
      %1523 = vmatprep.subr.bf16.mxu0 0
      %1524 = vmatpush1.bf16.msra.mxu0 0
      %1525 = vmatprep.mubr.bf16.mxu0 0
      %1526 = vmatmul.mubr.bf16.gmra.mrb[0].mxu0 %v506
      %v1527 = vpop.f32.mrb[0].mxu0
      %v1528 = vadd.f32 %v1479, %v1527
      %v1529 = vpop.f32.mrb[0].mxu0
      %v1530 = vpop.f32.mrb[0].mxu0
      %v1531 = vpop.f32.mrb[0].mxu0
      %1532 = vdwg.mxu0
      %s1533 = scalar_lea.vmem %s2, 176
      %v1534 = vld [vmem:[%s1533] sm:$0xf]
      %v1535 = vld [vmem:[%s1533 + $0x4] sm:$0xf]
      %v1536 = vld [vmem:[%s1533 + $0x8] sm:$0xf]
      %v1537 = vld [vmem:[%s1533 + $0xc] sm:$0xf]
      %s1538 = scalar_lea.vmem %s3, 11
      %v1539 = vld [vmem:[%s1538] sm:$0x1]
      %v1541 = vlaneseq
      %v1542 = vshrl.u32 %v1541, 7
      %v1543 = vsub.s32 0, %v1542
      %v1544 = vrot.slane %v1539, %v1543
      %v1550 = vunpack.c.l.b16 %v1534
      %v1551 = vunpack.c.l.b16 %v1535
      %v1552 = vunpack.c.l.b16 %v1536
      %v1553 = vunpack.c.l.b16 %v1537
      %v1554 = vpack.c.b16 %v1551, %v1550
      %v1555 = vpack.c.b16 %v1553, %v1552
      %1558 = vmatprep.subr.bf16.mxu0 0
      %1559 = vmatpush1.bf16.msra.mxu0 %v1554
      %1560 = vmatprep.subr.bf16.mxu0 0
      %1561 = vmatpush1.bf16.msra.mxu0 %v1555
      %1562 = vmatprep.subr.bf16.mxu0 0
      %1563 = vmatpush1.bf16.msra.mxu0 0
      %1564 = vmatprep.subr.bf16.mxu0 0
      %1565 = vmatpush1.bf16.msra.mxu0 0
      %1566 = vmatprep.subr.bf16.mxu0 0
      %1567 = vmatpush1.bf16.msra.mxu0 0
      %1568 = vmatprep.subr.bf16.mxu0 0
      %1569 = vmatpush1.bf16.msra.mxu0 0
      %1570 = vmatprep.subr.bf16.mxu0 0
      %1571 = vmatpush1.bf16.msra.mxu0 0
      %1572 = vmatprep.subr.bf16.mxu0 0
      %1573 = vmatpush1.bf16.msra.mxu0 0
      %1574 = vmatprep.subr.bf16.mxu0 0
      %1575 = vmatpush1.bf16.msra.mxu0 0
      %1576 = vmatprep.subr.bf16.mxu0 0
      %1577 = vmatpush1.bf16.msra.mxu0 0
      %1578 = vmatprep.subr.bf16.mxu0 0
      %1579 = vmatpush1.bf16.msra.mxu0 0
      %1580 = vmatprep.subr.bf16.mxu0 0
      %1581 = vmatpush1.bf16.msra.mxu0 0
      %1582 = vmatprep.subr.bf16.mxu0 0
      %1583 = vmatpush1.bf16.msra.mxu0 0
      %1584 = vmatprep.subr.bf16.mxu0 0
      %1585 = vmatpush1.bf16.msra.mxu0 0
      %1586 = vmatprep.subr.bf16.mxu0 0
      %1587 = vmatpush1.bf16.msra.mxu0 0
      %1588 = vmatprep.subr.bf16.mxu0 0
      %1589 = vmatpush1.bf16.msra.mxu0 0
      %1590 = vmatprep.mubr.bf16.mxu0 0
      %1591 = vmatmul.mubr.bf16.gmra.mrb[0].mxu0 %v506
      %v1592 = vpop.f32.mrb[0].mxu0
      %v1593 = vadd.f32 %v1544, %v1592
      %v1594 = vpop.f32.mrb[0].mxu0
      %v1595 = vpop.f32.mrb[0].mxu0
      %v1596 = vpop.f32.mrb[0].mxu0
      %1597 = vdwg.mxu0
      %v1598 = vpack.c.bf16 %v1463, %v1463
      %v1599 = vpack.c.bf16 %v1528, %v1528
      %v1601 = vsel %vm680, %v1598, 0
      %v1604 = vsel %vm680, %v1599, 0
      %1606 = vmatprep.subr.bf16.mxu0 0
      %1607 = vmatpush1.bf16.xpose.msra.mxu0 %v1604
      %1608 = vmatprep.subr.bf16.mxu0 0
      %1609 = vmatpush1.bf16.xpose.msra.mxu0 0
      %1610 = vmatprep.subr.bf16.mxu0 0
      %1611 = vmatpush1.bf16.xpose.msra.mxu0 0
      %1612 = vmatprep.subr.bf16.mxu0 0
      %1613 = vmatpush1.bf16.xpose.msra.mxu0 0
      %1614 = vmatprep.subr.bf16.mxu0 0
      %1615 = vmatpush1.bf16.xpose.msra.mxu0 0
      %1616 = vmatprep.subr.bf16.mxu0 0
      %1617 = vmatpush1.bf16.xpose.msra.mxu0 0
      %1618 = vmatprep.subr.bf16.mxu0 0
      %1619 = vmatpush1.bf16.xpose.msra.mxu0 0
      %1620 = vmatprep.subr.bf16.mxu0 0
      %1621 = vmatpush1.bf16.xpose.msra.mxu0 0
      %1622 = vmatprep.subr.bf16.mxu0 0
      %1623 = vmatpush1.bf16.xpose.msra.mxu0 0
      %1624 = vmatprep.subr.bf16.mxu0 0
      %1625 = vmatpush1.bf16.xpose.msra.mxu0 0
      %1626 = vmatprep.subr.bf16.mxu0 0
      %1627 = vmatpush1.bf16.xpose.msra.mxu0 0
      %1628 = vmatprep.subr.bf16.mxu0 0
      %1629 = vmatpush1.bf16.xpose.msra.mxu0 0
      %1630 = vmatprep.subr.bf16.mxu0 0
      %1631 = vmatpush1.bf16.xpose.msra.mxu0 0
      %1632 = vmatprep.subr.bf16.mxu0 0
      %1633 = vmatpush1.bf16.xpose.msra.mxu0 0
      %1634 = vmatprep.subr.bf16.mxu0 0
      %1635 = vmatpush1.bf16.xpose.msra.mxu0 0
      %1636 = vmatprep.subr.bf16.mxu0 0
      %1637 = vmatpush1.bf16.xpose.msra.mxu0 0
      %1638 = vmatprep.mubr.bf16.mxu0 0
      %1639 = vmatmul.mubr.bf16.gmra.mrb[0].mxu0 %v1601
      %v1640 = vpop.f32.mrb[0].mxu0
      %v1641 = vadd.f32 0.0, %v1640
      %v1642 = vpop.f32.mrb[0].mxu0
      %v1643 = vpop.f32.mrb[0].mxu0
      %v1644 = vpop.f32.mrb[0].mxu0
      %1645 = vdwg.mxu0
      %v1646 = vmul.f32 %v1641, 0.35355338
      %v1647 = vadd.f32 %v1646, %v732
      %v1648 = vsel %vm680, %v1647, -inf
      %1649 = vmax.xlane.f32.xlu0 %v1648
      %v1650 = vpop.xlane.xlu0 %1649
      %v1651 = vsub.f32 %v1647, %v1650
      %v1652 = vmul.f32 %v1651, 1.442695
      %v1653 = vpow.pop %v1652
      %v1654 = vsel %vm680, %v1653, 0.0
      %1655 = vadd.xlane.f32.xlu0 %v1654
      %v1656 = vpop.xlane.xlu0 %1655
      %v1657 = vrcp.pop %v1656
      %v1658 = vmul.f32 %v1653, %v1657
      %v1659 = vpack.c.bf16 %v1658, %v1658
      %v1660 = vpack.c.bf16 %v1593, %v1593
      %v1662 = vsel %vm680, %v1659, 0
      %v1665 = vsel %vm751, %v1660, 0
      %1667 = vmatprep.subr.bf16.mxu0 0
      %1668 = vmatpush1.bf16.msra.mxu0 %v1665
      %1669 = vmatprep.subr.bf16.mxu0 0
      %1670 = vmatpush1.bf16.msra.mxu0 0
      %1671 = vmatprep.subr.bf16.mxu0 0
      %1672 = vmatpush1.bf16.msra.mxu0 0
      %1673 = vmatprep.subr.bf16.mxu0 0
      %1674 = vmatpush1.bf16.msra.mxu0 0
      %1675 = vmatprep.subr.bf16.mxu0 0
      %1676 = vmatpush1.bf16.msra.mxu0 0
      %1677 = vmatprep.subr.bf16.mxu0 0
      %1678 = vmatpush1.bf16.msra.mxu0 0
      %1679 = vmatprep.subr.bf16.mxu0 0
      %1680 = vmatpush1.bf16.msra.mxu0 0
      %1681 = vmatprep.subr.bf16.mxu0 0
      %1682 = vmatpush1.bf16.msra.mxu0 0
      %1683 = vmatprep.subr.bf16.mxu0 0
      %1684 = vmatpush1.bf16.msra.mxu0 0
      %1685 = vmatprep.subr.bf16.mxu0 0
      %1686 = vmatpush1.bf16.msra.mxu0 0
      %1687 = vmatprep.subr.bf16.mxu0 0
      %1688 = vmatpush1.bf16.msra.mxu0 0
      %1689 = vmatprep.subr.bf16.mxu0 0
      %1690 = vmatpush1.bf16.msra.mxu0 0
      %1691 = vmatprep.subr.bf16.mxu0 0
      %1692 = vmatpush1.bf16.msra.mxu0 0
      %1693 = vmatprep.subr.bf16.mxu0 0
      %1694 = vmatpush1.bf16.msra.mxu0 0
      %1695 = vmatprep.subr.bf16.mxu0 0
      %1696 = vmatpush1.bf16.msra.mxu0 0
      %1697 = vmatprep.subr.bf16.mxu0 0
      %1698 = vmatpush1.bf16.msra.mxu0 0
      %1699 = vmatprep.mubr.bf16.mxu0 0
      %1700 = vmatmul.mubr.bf16.gmra.mrb[0].mxu0 %v1662
      %v1701 = vpop.f32.mrb[0].mxu0
      %v1702 = vadd.f32 0.0, %v1701
      %v1703 = vpop.f32.mrb[0].mxu0
      %v1704 = vpop.f32.mrb[0].mxu0
      %v1705 = vpop.f32.mrb[0].mxu0
      %1706 = vdwg.mxu0
      %1708 = vrot.lane.b32.xlu0 %v1094, 8
      %v1709 = vpop.permute.xlu0 %1708
      %1712 = vrot.lane.b32.xlu0 %v1398, 16
      %v1713 = vpop.permute.xlu0 %1712
      %1716 = vrot.lane.b32.xlu0 %v1702, 24
      %v1717 = vpop.permute.xlu0 %1716
      %v1719 = vsel %vm680, %v790, %v1709
      %vm1720 = vcmask 130048
      %v1721 = vsel %vm1720, %v1719, %v1713
      %vm1722 = vcmask 195584
      %v1723 = vsel %vm1722, %v1721, %v1717
      %v1724 = vpack.c.bf16 %v1723, %v1723
      %v1725 = vld [vmem:[%s4] sm:$0xf]
      %v1726 = vld [vmem:[%s4 + $0x4] sm:$0xf]
      %v1727 = vld [vmem:[%s4 + $0x8] sm:$0xf]
      %v1728 = vld [vmem:[%s4 + $0xc] sm:$0xf]
      %v1729 = vld [vmem:[%s5] sm:$0x1]
      %v1731 = vlaneseq
      %v1732 = vshrl.u32 %v1731, 7
      %v1733 = vsub.s32 0, %v1732
      %v1734 = vrot.slane %v1729, %v1733
      %v1740 = vunpack.c.l.b16 %v1725
      %v1741 = vunpack.c.l.b16 %v1726
      %v1742 = vunpack.c.l.b16 %v1727
      %v1743 = vunpack.c.l.b16 %v1728
      %v1744 = vpack.c.b16 %v1741, %v1740
      %v1745 = vpack.c.b16 %v1743, %v1742
      %v1749 = vsel %vm504, %v1724, 0
      %1751 = vmatprep.subr.bf16.mxu0 0
      %1752 = vmatpush1.bf16.msra.mxu0 %v1744
      %1753 = vmatprep.subr.bf16.mxu0 0
      %1754 = vmatpush1.bf16.msra.mxu0 %v1745
      %1755 = vmatprep.subr.bf16.mxu0 0
      %1756 = vmatpush1.bf16.msra.mxu0 0
      %1757 = vmatprep.subr.bf16.mxu0 0
      %1758 = vmatpush1.bf16.msra.mxu0 0
      %1759 = vmatprep.subr.bf16.mxu0 0
      %1760 = vmatpush1.bf16.msra.mxu0 0
      %1761 = vmatprep.subr.bf16.mxu0 0
      %1762 = vmatpush1.bf16.msra.mxu0 0
      %1763 = vmatprep.subr.bf16.mxu0 0
      %1764 = vmatpush1.bf16.msra.mxu0 0
      %1765 = vmatprep.subr.bf16.mxu0 0
      %1766 = vmatpush1.bf16.msra.mxu0 0
      %1767 = vmatprep.subr.bf16.mxu0 0
      %1768 = vmatpush1.bf16.msra.mxu0 0
      %1769 = vmatprep.subr.bf16.mxu0 0
      %1770 = vmatpush1.bf16.msra.mxu0 0
      %1771 = vmatprep.subr.bf16.mxu0 0
      %1772 = vmatpush1.bf16.msra.mxu0 0
      %1773 = vmatprep.subr.bf16.mxu0 0
      %1774 = vmatpush1.bf16.msra.mxu0 0
      %1775 = vmatprep.subr.bf16.mxu0 0
      %1776 = vmatpush1.bf16.msra.mxu0 0
      %1777 = vmatprep.subr.bf16.mxu0 0
      %1778 = vmatpush1.bf16.msra.mxu0 0
      %1779 = vmatprep.subr.bf16.mxu0 0
      %1780 = vmatpush1.bf16.msra.mxu0 0
      %1781 = vmatprep.subr.bf16.mxu0 0
      %1782 = vmatpush1.bf16.msra.mxu0 0
      %1783 = vmatprep.mubr.bf16.mxu0 0
      %1784 = vmatmul.mubr.bf16.gmra.mrb[0].mxu0 %v1749
      %v1785 = vpop.f32.mrb[0].mxu0
      %v1786 = vadd.f32 %v1734, %v1785
      %v1787 = vpop.f32.mrb[0].mxu0
      %v1788 = vpop.f32.mrb[0].mxu0
      %v1789 = vpop.f32.mrb[0].mxu0
      %1790 = vdwg.mxu0
      %v1791 = vadd.f32 %v478, %v1786
      %v1792 = vsel %vm504, %v1791, 0.0
      %1793 = vadd.xlane.f32.xlu0 %v1792
      %v1794 = vpop.xlane.xlu0 %1793
      %v1795 = vrcp.pop 32.0
      %v1796 = vmul.f32 %v1794, %v1795
      %v1797 = vsub.f32 %v1791, %v1796
      %v1798 = vmul.f32 %v1797, %v1797
      %v1799 = vsel %vm504, %v1798, 0.0
      %1800 = vadd.xlane.f32.xlu0 %v1799
      %v1801 = vpop.xlane.xlu0 %1800
      %v1802 = vmul.f32 %v1801, %v1795
      %v1803 = vadd.f32 %v1802, 1e-05
      %v1804 = vrsqrt.pop %v1803
      %v1805 = vmul.f32 %v1797, %v1804
      %v1806 = vld [vmem:[%s6] sm:$0x1]
      %v1808 = vlaneseq
      %v1809 = vshrl.u32 %v1808, 7
      %v1810 = vsub.s32 0, %v1809
      %v1811 = vrot.slane %v1806, %v1810
      %v1813 = vmul.f32 %v1805, %v1811
      %v1814 = vld [vmem:[%s7] sm:$0x1]
      %v1816 = vlaneseq
      %v1817 = vshrl.u32 %v1816, 7
      %v1818 = vsub.s32 0, %v1817
      %v1819 = vrot.slane %v1814, %v1818
      %v1821 = vadd.f32 %v1813, %v1819
      %v1822 = vpack.c.bf16 %v1821, %v1821
      %v1823 = vld [vmem:[%s8] sm:$0xf]
      %v1824 = vld [vmem:[%s8 + $0x4] sm:$0xf]
      %v1825 = vld [vmem:[%s8 + $0x8] sm:$0xf]
      %v1826 = vld [vmem:[%s8 + $0xc] sm:$0xf]
      %v1827 = vld [vmem:[%s9] sm:$0x1]
      %v1829 = vlaneseq
      %v1830 = vshrl.u32 %v1829, 7
      %v1831 = vsub.s32 0, %v1830
      %v1832 = vrot.slane %v1827, %v1831
      %v1838 = vunpack.c.l.b16 %v1823
      %v1839 = vunpack.c.l.b16 %v1824
      %v1840 = vunpack.c.l.b16 %v1825
      %v1841 = vunpack.c.l.b16 %v1826
      %v1842 = vpack.c.b16 %v1839, %v1838
      %v1843 = vpack.c.b16 %v1841, %v1840
      %v1847 = vsel %vm504, %v1822, 0
      %1849 = vmatprep.subr.bf16.mxu0 0
      %1850 = vmatpush1.bf16.msra.mxu0 %v1842
      %1851 = vmatprep.subr.bf16.mxu0 0
      %1852 = vmatpush1.bf16.msra.mxu0 %v1843
      %1853 = vmatprep.subr.bf16.mxu0 0
      %1854 = vmatpush1.bf16.msra.mxu0 0
      %1855 = vmatprep.subr.bf16.mxu0 0
      %1856 = vmatpush1.bf16.msra.mxu0 0
      %1857 = vmatprep.subr.bf16.mxu0 0
      %1858 = vmatpush1.bf16.msra.mxu0 0
      %1859 = vmatprep.subr.bf16.mxu0 0
      %1860 = vmatpush1.bf16.msra.mxu0 0
      %1861 = vmatprep.subr.bf16.mxu0 0
      %1862 = vmatpush1.bf16.msra.mxu0 0
      %1863 = vmatprep.subr.bf16.mxu0 0
      %1864 = vmatpush1.bf16.msra.mxu0 0
      %1865 = vmatprep.subr.bf16.mxu0 0
      %1866 = vmatpush1.bf16.msra.mxu0 0
      %1867 = vmatprep.subr.bf16.mxu0 0
      %1868 = vmatpush1.bf16.msra.mxu0 0
      %1869 = vmatprep.subr.bf16.mxu0 0
      %1870 = vmatpush1.bf16.msra.mxu0 0
      %1871 = vmatprep.subr.bf16.mxu0 0
      %1872 = vmatpush1.bf16.msra.mxu0 0
      %1873 = vmatprep.subr.bf16.mxu0 0
      %1874 = vmatpush1.bf16.msra.mxu0 0
      %1875 = vmatprep.subr.bf16.mxu0 0
      %1876 = vmatpush1.bf16.msra.mxu0 0
      %1877 = vmatprep.subr.bf16.mxu0 0
      %1878 = vmatpush1.bf16.msra.mxu0 0
      %1879 = vmatprep.subr.bf16.mxu0 0
      %1880 = vmatpush1.bf16.msra.mxu0 0
      %1881 = vmatprep.mubr.bf16.mxu0 0
      %1882 = vmatmul.mubr.bf16.gmra.mrb[0].mxu0 %v1847
      %v1883 = vpop.f32.mrb[0].mxu0
      %v1884 = vadd.f32 %v1832, %v1883
      %v1885 = vpop.f32.mrb[0].mxu0
      %v1886 = vpop.f32.mrb[0].mxu0
      %v1887 = vpop.f32.mrb[0].mxu0
      %1888 = vdwg.mxu0
      %v1889 = vmax.f32 %v1884, 0.0
      %v1890 = vpack.c.bf16 %v1889, %v1889
      %v1891 = vld [vmem:[%s10] sm:$0xf]
      %v1892 = vld [vmem:[%s10 + $0x4] sm:$0xf]
      %v1893 = vld [vmem:[%s10 + $0x8] sm:$0xf]
      %v1894 = vld [vmem:[%s10 + $0xc] sm:$0xf]
      %v1895 = vld [vmem:[%s10 + $0x10] sm:$0xf]
      %v1896 = vld [vmem:[%s10 + $0x14] sm:$0xf]
      %v1897 = vld [vmem:[%s10 + $0x18] sm:$0xf]
      %v1898 = vld [vmem:[%s10 + $0x1c] sm:$0xf]
      %v1899 = vld [vmem:[%s11] sm:$0x1]
      %v1901 = vlaneseq
      %v1902 = vshrl.u32 %v1901, 7
      %v1903 = vsub.s32 0, %v1902
      %v1904 = vrot.slane %v1899, %v1903
      %v1914 = vunpack.c.l.b16 %v1891
      %v1915 = vunpack.c.l.b16 %v1892
      %v1916 = vunpack.c.l.b16 %v1893
      %v1917 = vunpack.c.l.b16 %v1894
      %v1918 = vunpack.c.l.b16 %v1895
      %v1919 = vunpack.c.l.b16 %v1896
      %v1920 = vunpack.c.l.b16 %v1897
      %v1921 = vunpack.c.l.b16 %v1898
      %v1922 = vpack.c.b16 %v1915, %v1914
      %v1923 = vpack.c.b16 %v1917, %v1916
      %v1924 = vpack.c.b16 %v1919, %v1918
      %v1925 = vpack.c.b16 %v1921, %v1920
      %vm1930 = vcmask 523264
      %v1932 = vsel %vm1930, %v1890, 0
      %1934 = vmatprep.subr.bf16.mxu0 0
      %1935 = vmatpush1.bf16.msra.mxu0 %v1922
      %1936 = vmatprep.subr.bf16.mxu0 0
      %1937 = vmatpush1.bf16.msra.mxu0 %v1923
      %1938 = vmatprep.subr.bf16.mxu0 0
      %1939 = vmatpush1.bf16.msra.mxu0 %v1924
      %1940 = vmatprep.subr.bf16.mxu0 0
      %1941 = vmatpush1.bf16.msra.mxu0 %v1925
      %1942 = vmatprep.subr.bf16.mxu0 0
      %1943 = vmatpush1.bf16.msra.mxu0 0
      %1944 = vmatprep.subr.bf16.mxu0 0
      %1945 = vmatpush1.bf16.msra.mxu0 0
      %1946 = vmatprep.subr.bf16.mxu0 0
      %1947 = vmatpush1.bf16.msra.mxu0 0
      %1948 = vmatprep.subr.bf16.mxu0 0
      %1949 = vmatpush1.bf16.msra.mxu0 0
      %1950 = vmatprep.subr.bf16.mxu0 0
      %1951 = vmatpush1.bf16.msra.mxu0 0
      %1952 = vmatprep.subr.bf16.mxu0 0
      %1953 = vmatpush1.bf16.msra.mxu0 0
      %1954 = vmatprep.subr.bf16.mxu0 0
      %1955 = vmatpush1.bf16.msra.mxu0 0
      %1956 = vmatprep.subr.bf16.mxu0 0
      %1957 = vmatpush1.bf16.msra.mxu0 0
      %1958 = vmatprep.subr.bf16.mxu0 0
      %1959 = vmatpush1.bf16.msra.mxu0 0
      %1960 = vmatprep.subr.bf16.mxu0 0
      %1961 = vmatpush1.bf16.msra.mxu0 0
      %1962 = vmatprep.subr.bf16.mxu0 0
      %1963 = vmatpush1.bf16.msra.mxu0 0
      %1964 = vmatprep.subr.bf16.mxu0 0
      %1965 = vmatpush1.bf16.msra.mxu0 0
      %1966 = vmatprep.mubr.bf16.mxu0 0
      %1967 = vmatmul.mubr.bf16.gmra.mrb[0].mxu0 %v1932
      %v1968 = vpop.f32.mrb[0].mxu0
      %v1969 = vadd.f32 %v1904, %v1968
      %v1970 = vpop.f32.mrb[0].mxu0
      %v1971 = vpop.f32.mrb[0].mxu0
      %v1972 = vpop.f32.mrb[0].mxu0
      %1973 = vdwg.mxu0
      %v1974 = vadd.f32 %v1821, %v1969
      %v1975 = vsel %vm504, %v1974, 0.0
      %1976 = vadd.xlane.f32.xlu0 %v1975
      %v1977 = vpop.xlane.xlu0 %1976
      %v1978 = vmul.f32 %v1977, %v1795
      %v1979 = vsub.f32 %v1974, %v1978
      %v1980 = vmul.f32 %v1979, %v1979
      %v1981 = vsel %vm504, %v1980, 0.0
      %1982 = vadd.xlane.f32.xlu0 %v1981
      %v1983 = vpop.xlane.xlu0 %1982
      %v1984 = vmul.f32 %v1983, %v1795
      %v1985 = vadd.f32 %v1984, 1e-05
      %v1986 = vrsqrt.pop %v1985
      %v1987 = vmul.f32 %v1979, %v1986
      %v1988 = vld [vmem:[%s12] sm:$0x1]
      %v1990 = vlaneseq
      %v1991 = vshrl.u32 %v1990, 7
      %v1992 = vsub.s32 0, %v1991
      %v1993 = vrot.slane %v1988, %v1992
      %v1995 = vmul.f32 %v1987, %v1993
      %v1996 = vld [vmem:[%s13] sm:$0x1]
      %v1998 = vlaneseq
      %v1999 = vshrl.u32 %v1998, 7
      %v2000 = vsub.s32 0, %v1999
      %v2001 = vrot.slane %v1996, %v2000
      %v2003 = vadd.f32 %v1995, %v2001
      %2004 = vst.msk [vmem:[%s476] sm:$0xff] %vm504, %v2003
      %p2005 = scmp.lt.s32.totalorder %s25, 1
      %s2006 = scalar_select %p2005, %s25, 1
      %s2007 = smul.addr %s2006, 8
      %s2008 = scalar_lea.vmem %s14, %s2007
      // Predicated region
      $region77: #{model_forward.5} parent=75 // pred_check
        %p2009 = pneg %p347
      $region78: #{model_forward.5} parent=75 // pred_check_branch
        %2011 = sbr.rel (%p2009) target = $region80
      $region79: #{model_forward.5} parent=75 // pred_region
        _
      $region80: #{model_forward.5} parent=75 // pred_fallthru
        _
    $region76: #{model_forward.5} parent=5 // pred_fallthru
      _
    %p2012 = scmp.le.s32.totalorder 2, %s20
    // Predicated region
    $region81: #{model_forward.5} parent=5 // pred_check
      %p2013 = pneg %p2012
    $region82: #{model_forward.5} parent=5 // pred_check_branch
      %2015 = sbr.rel (%p2013) target = $region84
    $region83: #{model_forward.5} parent=5 // pred_region
      %s2016 = ssub.s32 %s20, 2
      // Predicated region
      $region85: #{model_forward.5} parent=83 // pred_check
        %p2017 = pneg %p353
      $region86: #{model_forward.5} parent=83 // pred_check_branch
        %2019 = sbr.rel (%p2017) target = $region88
      $region87: #{model_forward.5} parent=83 // pred_region
        %p2020 = scmp.lt.s32.totalorder %s26, 1
        %s2021 = scalar_select %p2020, %s26, 1
        %s2022 = smul.addr %s2021, 8
        %s2023 = scalar_lea.vmem %s14, %s2022
      $region88: #{model_forward.5} parent=83 // pred_fallthru
        _
    $region84: #{model_forward.5} parent=5 // pred_fallthru
      _
  $region6: #{model_forward.5} parent=0 // loop_footer
    %s24 = sadd.s32 1, %s20
  $region7: #{model_forward.5} parent=0 // loop_footer_branch
    %19 = sbr.rel target = $region3
  $region8: #{model_forward.5} parent=0 // loop_exit
    _

// kernel: model_forward.7
$region0: #{model_forward.7}
  #allocation0 [shape = 'u32[]', space=smem, size = 0x4, offset = 0x4, fixed_abs, tag = 'smem constant byte address 0x4 - core index']
  #allocation1 [shape = 'u32[144,128]{1,0:T(1,128)}', space=vmem, size = 0x12000, scoped, tag = 'internal scratch']
  %s0 = inlined_call_operand.vmem [shape: f32[2,8,32], index: 0, kind: input, shape index: {}]
  %s1 = inlined_call_operand.vmem [shape: f32[2,8,32], index: 1, kind: input, shape index: {}]
  %s2 = inlined_call_operand.vmem [shape: f32[2,1,8], index: 2, kind: input, shape index: {}]
  %s3 = inlined_call_operand.vmem [shape: bf16[12,32,8], index: 3, kind: input, shape index: {}]
  %s4 = inlined_call_operand.vmem [shape: f32[12,1,8], index: 4, kind: input, shape index: {}]
  %s5 = inlined_call_operand.vmem [shape: bf16[32,32], index: 5, kind: input, shape index: {}]
  %s6 = inlined_call_operand.vmem [shape: f32[1,32], index: 6, kind: input, shape index: {}]
  %s7 = inlined_call_operand.vmem [shape: f32[1,32], index: 7, kind: input, shape index: {}]
  %s8 = inlined_call_operand.vmem [shape: f32[1,32], index: 8, kind: input, shape index: {}]
  %s9 = inlined_call_operand.vmem [shape: bf16[12,32,8], index: 9, kind: input, shape index: {}]
  %s10 = inlined_call_operand.vmem [shape: f32[12,1,8], index: 10, kind: input, shape index: {}]
  %s11 = inlined_call_operand.vmem [shape: bf16[32,32], index: 11, kind: input, shape index: {}]
  %s12 = inlined_call_operand.vmem [shape: f32[1,32], index: 12, kind: input, shape index: {}]
  %s13 = inlined_call_operand.vmem [shape: f32[1,32], index: 13, kind: input, shape index: {}]
  %s14 = inlined_call_operand.vmem [shape: f32[1,32], index: 14, kind: input, shape index: {}]
  %s15 = inlined_call_operand.vmem [shape: bf16[32,64], index: 15, kind: input, shape index: {}]
  %s16 = inlined_call_operand.vmem [shape: f32[1,64], index: 16, kind: input, shape index: {}]
  %s17 = inlined_call_operand.vmem [shape: bf16[64,32], index: 17, kind: input, shape index: {}]
  %s18 = inlined_call_operand.vmem [shape: f32[1,32], index: 18, kind: input, shape index: {}]
  %s19 = inlined_call_operand.vmem [shape: f32[1,32], index: 19, kind: input, shape index: {}]
  %s20 = inlined_call_operand.vmem [shape: f32[1,32], index: 20, kind: input, shape index: {}]
  %s21 = inlined_call_operand.vmem [shape: f32[2,8,32], index: 21, kind: output, shape index: {}]
  %s22 = sld [smem:[#allocation0]]
  $region117: #{model_forward.7} parent=0
    _
  %s24 = ssub.s32 1, %s22
  %s25 = scalar_select 0, %s24, %s22
  loop: start=0, step=1, limit=4
  $region2: #{model_forward.7} parent=0 // loop_pre_header
    _
  $region3: #{model_forward.7} parent=0 // loop_header
    %s27 = sphi 0, %s31
    %p28 = scmp.ge.s32.totalorder %s27, 4
    %s37 = sphi 0, %s39
    %s40 = sphi 0, %s37
    %s41 = sphi 0, %s40
    %s57 = sphi 0, %s41
    %s63 = sphi 0, %s65
    %s66 = sphi 0, %s63
    %s67 = sphi 0, %s66
    %s83 = sphi 0, %s67
    %s89 = sphi 0, %s91
    %s92 = sphi 0, %s89
    %s93 = sphi 0, %s92
    %s109 = sphi 0, %s93
    %s113 = sphi 0, %s113
    %s115 = sphi 0, %s113
    %s116 = sphi 0, %s115
    %s130 = sphi 0, %s116
    %s134 = sphi 0, %s134
    %s136 = sphi 0, %s134
    %s137 = sphi 0, %s136
    %s151 = sphi 0, %s137
    %s155 = sphi 0, %s155
    %s157 = sphi 0, %s155
    %s158 = sphi 0, %s157
    %s172 = sphi 0, %s158
    %s176 = sphi 0, %s176
    %s178 = sphi 0, %s176
    %s179 = sphi 0, %s178
    %s193 = sphi 0, %s179
    %s197 = sphi 0, %s197
    %s199 = sphi 0, %s197
    %s200 = sphi 0, %s199
    %s214 = sphi 0, %s200
    %s218 = sphi 0, %s218
    %s220 = sphi 0, %s218
    %s221 = sphi 0, %s220
    %s235 = sphi 0, %s221
    %s239 = sphi 0, %s239
    %s241 = sphi 0, %s239
    %s242 = sphi 0, %s241
    %s256 = sphi 0, %s242
    %s260 = sphi 0, %s260
    %s262 = sphi 0, %s260
    %s263 = sphi 0, %s262
    %s277 = sphi 0, %s263
    %s281 = sphi 0, %s281
    %s283 = sphi 0, %s281
    %s284 = sphi 0, %s283
    %s298 = sphi 0, %s284
    %s302 = sphi 0, %s302
    %s304 = sphi 0, %s302
    %s305 = sphi 0, %s304
    %s319 = sphi 0, %s305
    %s323 = sphi 0, %s323
    %s325 = sphi 0, %s323
    %s326 = sphi 0, %s325
    %s340 = sphi 0, %s326
    %s344 = sphi 0, %s344
    %s346 = sphi 0, %s344
    %s347 = sphi 0, %s346
    %s361 = sphi 0, %s347
    %s365 = sphi 0, %s365
    %s367 = sphi 0, %s365
    %s368 = sphi 0, %s367
    %s382 = sphi 0, %s368
    %s386 = sphi 0, %s386
    %s388 = sphi 0, %s386
    %s389 = sphi 0, %s388
    %s403 = sphi 0, %s389
    %s407 = sphi 0, %s407
    %s409 = sphi 0, %s407
    %s410 = sphi 0, %s409
    %s424 = sphi 0, %s410
    %s428 = sphi 0, %s428
    %s430 = sphi 0, %s428
    %s431 = sphi 0, %s430
    %s445 = sphi 0, %s431
    %s449 = sphi 0, %s449
    %s451 = sphi 0, %s449
    %s452 = sphi 0, %s451
    %s466 = sphi 0, %s452
    %s470 = sphi 0, %s470
    %s472 = sphi 0, %s470
    %s473 = sphi 0, %s472
    %s487 = sphi 0, %s473
    %s493 = sphi 0, %s495
    %s496 = sphi 0, %s493
    %s497 = sphi 0, %s496
    %s513 = sphi 0, %s497
  $region4: #{model_forward.7} parent=0 // loop_header_branch
    %30 = sbr.rel (%p28) target = $region8
  $region5: #{model_forward.7} parent=0 // loop_body
    %s32 = ssub.s32 %s27, 1
    %s33 = ssub.s32 %s27, 2
    %s34 = sadd.s32 %s27, 1
    %s35 = ssub.s32 %s27, %s34
    %p36 = scmp.eq.s32.totalorder %s35, 0
    %s38 = sadd.s32 %s37, 1
    %s39 = scalar_select %p36, %s37, %s38
    %p42 = pneg %p36
    %p43 = scmp.eq.s32.totalorder %s27, 1
    %p44 = por %p42, %p43
    %p45 = scmp.ne.s32.totalorder %s37, %s40
    %p46 = scmp.eq.s32.totalorder %s27, 0
    %p47 = por %p45, %p46
    %p48 = scmp.ne.s32.totalorder %s37, %s40
    %p49 = scmp.eq.s32.totalorder %s32, 1
    %p50 = por %p48, %p49
    %p51 = scmp.ne.s32.totalorder %s40, %s41
    %p52 = scmp.eq.s32.totalorder %s32, 0
    %p53 = por %p51, %p52
    %p54 = scmp.ne.s32.totalorder %s40, %s41
    %p55 = scmp.eq.s32.totalorder %s33, 1
    %p56 = por %p54, %p55
    %p58 = scmp.ne.s32.totalorder %s41, %s57
    %p59 = scmp.eq.s32.totalorder %s33, 0
    %p60 = por %p58, %p59
    %s61 = ssub.s32 %s27, %s34
    %p62 = scmp.eq.s32.totalorder %s61, 0
    %s64 = sadd.s32 %s63, 1
    %s65 = scalar_select %p62, %s63, %s64
    %p68 = pneg %p62
    %p69 = scmp.eq.s32.totalorder %s27, 1
    %p70 = por %p68, %p69
    %p71 = scmp.ne.s32.totalorder %s63, %s66
    %p72 = scmp.eq.s32.totalorder %s27, 0
    %p73 = por %p71, %p72
    %p74 = scmp.ne.s32.totalorder %s63, %s66
    %p75 = scmp.eq.s32.totalorder %s32, 1
    %p76 = por %p74, %p75
    %p77 = scmp.ne.s32.totalorder %s66, %s67
    %p78 = scmp.eq.s32.totalorder %s32, 0
    %p79 = por %p77, %p78
    %p80 = scmp.ne.s32.totalorder %s66, %s67
    %p81 = scmp.eq.s32.totalorder %s33, 1
    %p82 = por %p80, %p81
    %p84 = scmp.ne.s32.totalorder %s67, %s83
    %p85 = scmp.eq.s32.totalorder %s33, 0
    %p86 = por %p84, %p85
    %s87 = ssub.s32 %s27, %s34
    %p88 = scmp.eq.s32.totalorder %s87, 0
    %s90 = sadd.s32 %s89, 1
    %s91 = scalar_select %p88, %s89, %s90
    %p94 = pneg %p88
    %p95 = scmp.eq.s32.totalorder %s27, 1
    %p96 = por %p94, %p95
    %p97 = scmp.ne.s32.totalorder %s89, %s92
    %p98 = scmp.eq.s32.totalorder %s27, 0
    %p99 = por %p97, %p98
    %p100 = scmp.ne.s32.totalorder %s89, %s92
    %p101 = scmp.eq.s32.totalorder %s32, 1
    %p102 = por %p100, %p101
    %p103 = scmp.ne.s32.totalorder %s92, %s93
    %p104 = scmp.eq.s32.totalorder %s32, 0
    %p105 = por %p103, %p104
    %p106 = scmp.ne.s32.totalorder %s92, %s93
    %p107 = scmp.eq.s32.totalorder %s33, 1
    %p108 = por %p106, %p107
    %p110 = scmp.ne.s32.totalorder %s93, %s109
    %p111 = scmp.eq.s32.totalorder %s33, 0
    %p112 = por %p110, %p111
    %s114 = sadd.s32 %s113, 1
    %p117 = scmp.eq.s32.totalorder %s27, 1
    %p118 = scmp.ne.s32.totalorder %s113, %s115
    %p119 = scmp.eq.s32.totalorder %s27, 0
    %p120 = por %p118, %p119
    %p121 = scmp.ne.s32.totalorder %s113, %s115
    %p122 = scmp.eq.s32.totalorder %s32, 1
    %p123 = por %p121, %p122
    %p124 = scmp.ne.s32.totalorder %s115, %s116
    %p125 = scmp.eq.s32.totalorder %s32, 0
    %p126 = por %p124, %p125
    %p127 = scmp.ne.s32.totalorder %s115, %s116
    %p128 = scmp.eq.s32.totalorder %s33, 1
    %p129 = por %p127, %p128
    %p131 = scmp.ne.s32.totalorder %s116, %s130
    %p132 = scmp.eq.s32.totalorder %s33, 0
    %p133 = por %p131, %p132
    %s135 = sadd.s32 %s134, 1
    %p138 = scmp.eq.s32.totalorder %s27, 1
    %p139 = scmp.ne.s32.totalorder %s134, %s136
    %p140 = scmp.eq.s32.totalorder %s27, 0
    %p141 = por %p139, %p140
    %p142 = scmp.ne.s32.totalorder %s134, %s136
    %p143 = scmp.eq.s32.totalorder %s32, 1
    %p144 = por %p142, %p143
    %p145 = scmp.ne.s32.totalorder %s136, %s137
    %p146 = scmp.eq.s32.totalorder %s32, 0
    %p147 = por %p145, %p146
    %p148 = scmp.ne.s32.totalorder %s136, %s137
    %p149 = scmp.eq.s32.totalorder %s33, 1
    %p150 = por %p148, %p149
    %p152 = scmp.ne.s32.totalorder %s137, %s151
    %p153 = scmp.eq.s32.totalorder %s33, 0
    %p154 = por %p152, %p153
    %s156 = sadd.s32 %s155, 1
    %p159 = scmp.eq.s32.totalorder %s27, 1
    %p160 = scmp.ne.s32.totalorder %s155, %s157
    %p161 = scmp.eq.s32.totalorder %s27, 0
    %p162 = por %p160, %p161
    %p163 = scmp.ne.s32.totalorder %s155, %s157
    %p164 = scmp.eq.s32.totalorder %s32, 1
    %p165 = por %p163, %p164
    %p166 = scmp.ne.s32.totalorder %s157, %s158
    %p167 = scmp.eq.s32.totalorder %s32, 0
    %p168 = por %p166, %p167
    %p169 = scmp.ne.s32.totalorder %s157, %s158
    %p170 = scmp.eq.s32.totalorder %s33, 1
    %p171 = por %p169, %p170
    %p173 = scmp.ne.s32.totalorder %s158, %s172
    %p174 = scmp.eq.s32.totalorder %s33, 0
    %p175 = por %p173, %p174
    %s177 = sadd.s32 %s176, 1
    %p180 = scmp.eq.s32.totalorder %s27, 1
    %p181 = scmp.ne.s32.totalorder %s176, %s178
    %p182 = scmp.eq.s32.totalorder %s27, 0
    %p183 = por %p181, %p182
    %p184 = scmp.ne.s32.totalorder %s176, %s178
    %p185 = scmp.eq.s32.totalorder %s32, 1
    %p186 = por %p184, %p185
    %p187 = scmp.ne.s32.totalorder %s178, %s179
    %p188 = scmp.eq.s32.totalorder %s32, 0
    %p189 = por %p187, %p188
    %p190 = scmp.ne.s32.totalorder %s178, %s179
    %p191 = scmp.eq.s32.totalorder %s33, 1
    %p192 = por %p190, %p191
    %p194 = scmp.ne.s32.totalorder %s179, %s193
    %p195 = scmp.eq.s32.totalorder %s33, 0
    %p196 = por %p194, %p195
    %s198 = sadd.s32 %s197, 1
    %p201 = scmp.eq.s32.totalorder %s27, 1
    %p202 = scmp.ne.s32.totalorder %s197, %s199
    %p203 = scmp.eq.s32.totalorder %s27, 0
    %p204 = por %p202, %p203
    %p205 = scmp.ne.s32.totalorder %s197, %s199
    %p206 = scmp.eq.s32.totalorder %s32, 1
    %p207 = por %p205, %p206
    %p208 = scmp.ne.s32.totalorder %s199, %s200
    %p209 = scmp.eq.s32.totalorder %s32, 0
    %p210 = por %p208, %p209
    %p211 = scmp.ne.s32.totalorder %s199, %s200
    %p212 = scmp.eq.s32.totalorder %s33, 1
    %p213 = por %p211, %p212
    %p215 = scmp.ne.s32.totalorder %s200, %s214
    %p216 = scmp.eq.s32.totalorder %s33, 0
    %p217 = por %p215, %p216
    %s219 = sadd.s32 %s218, 1
    %p222 = scmp.eq.s32.totalorder %s27, 1
    %p223 = scmp.ne.s32.totalorder %s218, %s220
    %p224 = scmp.eq.s32.totalorder %s27, 0
    %p225 = por %p223, %p224
    %p226 = scmp.ne.s32.totalorder %s218, %s220
    %p227 = scmp.eq.s32.totalorder %s32, 1
    %p228 = por %p226, %p227
    %p229 = scmp.ne.s32.totalorder %s220, %s221
    %p230 = scmp.eq.s32.totalorder %s32, 0
    %p231 = por %p229, %p230
    %p232 = scmp.ne.s32.totalorder %s220, %s221
    %p233 = scmp.eq.s32.totalorder %s33, 1
    %p234 = por %p232, %p233
    %p236 = scmp.ne.s32.totalorder %s221, %s235
    %p237 = scmp.eq.s32.totalorder %s33, 0
    %p238 = por %p236, %p237
    %s240 = sadd.s32 %s239, 1
    %p243 = scmp.eq.s32.totalorder %s27, 1
    %p244 = scmp.ne.s32.totalorder %s239, %s241
    %p245 = scmp.eq.s32.totalorder %s27, 0
    %p246 = por %p244, %p245
    %p247 = scmp.ne.s32.totalorder %s239, %s241
    %p248 = scmp.eq.s32.totalorder %s32, 1
    %p249 = por %p247, %p248
    %p250 = scmp.ne.s32.totalorder %s241, %s242
    %p251 = scmp.eq.s32.totalorder %s32, 0
    %p252 = por %p250, %p251
    %p253 = scmp.ne.s32.totalorder %s241, %s242
    %p254 = scmp.eq.s32.totalorder %s33, 1
    %p255 = por %p253, %p254
    %p257 = scmp.ne.s32.totalorder %s242, %s256
    %p258 = scmp.eq.s32.totalorder %s33, 0
    %p259 = por %p257, %p258
    %s261 = sadd.s32 %s260, 1
    %p264 = scmp.eq.s32.totalorder %s27, 1
    %p265 = scmp.ne.s32.totalorder %s260, %s262
    %p266 = scmp.eq.s32.totalorder %s27, 0
    %p267 = por %p265, %p266
    %p268 = scmp.ne.s32.totalorder %s260, %s262
    %p269 = scmp.eq.s32.totalorder %s32, 1
    %p270 = por %p268, %p269
    %p271 = scmp.ne.s32.totalorder %s262, %s263
    %p272 = scmp.eq.s32.totalorder %s32, 0
    %p273 = por %p271, %p272
    %p274 = scmp.ne.s32.totalorder %s262, %s263
    %p275 = scmp.eq.s32.totalorder %s33, 1
    %p276 = por %p274, %p275
    %p278 = scmp.ne.s32.totalorder %s263, %s277
    %p279 = scmp.eq.s32.totalorder %s33, 0
    %p280 = por %p278, %p279
    %s282 = sadd.s32 %s281, 1
    %p285 = scmp.eq.s32.totalorder %s27, 1
    %p286 = scmp.ne.s32.totalorder %s281, %s283
    %p287 = scmp.eq.s32.totalorder %s27, 0
    %p288 = por %p286, %p287
    %p289 = scmp.ne.s32.totalorder %s281, %s283
    %p290 = scmp.eq.s32.totalorder %s32, 1
    %p291 = por %p289, %p290
    %p292 = scmp.ne.s32.totalorder %s283, %s284
    %p293 = scmp.eq.s32.totalorder %s32, 0
    %p294 = por %p292, %p293
    %p295 = scmp.ne.s32.totalorder %s283, %s284
    %p296 = scmp.eq.s32.totalorder %s33, 1
    %p297 = por %p295, %p296
    %p299 = scmp.ne.s32.totalorder %s284, %s298
    %p300 = scmp.eq.s32.totalorder %s33, 0
    %p301 = por %p299, %p300
    %s303 = sadd.s32 %s302, 1
    %p306 = scmp.eq.s32.totalorder %s27, 1
    %p307 = scmp.ne.s32.totalorder %s302, %s304
    %p308 = scmp.eq.s32.totalorder %s27, 0
    %p309 = por %p307, %p308
    %p310 = scmp.ne.s32.totalorder %s302, %s304
    %p311 = scmp.eq.s32.totalorder %s32, 1
    %p312 = por %p310, %p311
    %p313 = scmp.ne.s32.totalorder %s304, %s305
    %p314 = scmp.eq.s32.totalorder %s32, 0
    %p315 = por %p313, %p314
    %p316 = scmp.ne.s32.totalorder %s304, %s305
    %p317 = scmp.eq.s32.totalorder %s33, 1
    %p318 = por %p316, %p317
    %p320 = scmp.ne.s32.totalorder %s305, %s319
    %p321 = scmp.eq.s32.totalorder %s33, 0
    %p322 = por %p320, %p321
    %s324 = sadd.s32 %s323, 1
    %p327 = scmp.eq.s32.totalorder %s27, 1
    %p328 = scmp.ne.s32.totalorder %s323, %s325
    %p329 = scmp.eq.s32.totalorder %s27, 0
    %p330 = por %p328, %p329
    %p331 = scmp.ne.s32.totalorder %s323, %s325
    %p332 = scmp.eq.s32.totalorder %s32, 1
    %p333 = por %p331, %p332
    %p334 = scmp.ne.s32.totalorder %s325, %s326
    %p335 = scmp.eq.s32.totalorder %s32, 0
    %p336 = por %p334, %p335
    %p337 = scmp.ne.s32.totalorder %s325, %s326
    %p338 = scmp.eq.s32.totalorder %s33, 1
    %p339 = por %p337, %p338
    %p341 = scmp.ne.s32.totalorder %s326, %s340
    %p342 = scmp.eq.s32.totalorder %s33, 0
    %p343 = por %p341, %p342
    %s345 = sadd.s32 %s344, 1
    %p348 = scmp.eq.s32.totalorder %s27, 1
    %p349 = scmp.ne.s32.totalorder %s344, %s346
    %p350 = scmp.eq.s32.totalorder %s27, 0
    %p351 = por %p349, %p350
    %p352 = scmp.ne.s32.totalorder %s344, %s346
    %p353 = scmp.eq.s32.totalorder %s32, 1
    %p354 = por %p352, %p353
    %p355 = scmp.ne.s32.totalorder %s346, %s347
    %p356 = scmp.eq.s32.totalorder %s32, 0
    %p357 = por %p355, %p356
    %p358 = scmp.ne.s32.totalorder %s346, %s347
    %p359 = scmp.eq.s32.totalorder %s33, 1
    %p360 = por %p358, %p359
    %p362 = scmp.ne.s32.totalorder %s347, %s361
    %p363 = scmp.eq.s32.totalorder %s33, 0
    %p364 = por %p362, %p363
    %s366 = sadd.s32 %s365, 1
    %p369 = scmp.eq.s32.totalorder %s27, 1
    %p370 = scmp.ne.s32.totalorder %s365, %s367
    %p371 = scmp.eq.s32.totalorder %s27, 0
    %p372 = por %p370, %p371
    %p373 = scmp.ne.s32.totalorder %s365, %s367
    %p374 = scmp.eq.s32.totalorder %s32, 1
    %p375 = por %p373, %p374
    %p376 = scmp.ne.s32.totalorder %s367, %s368
    %p377 = scmp.eq.s32.totalorder %s32, 0
    %p378 = por %p376, %p377
    %p379 = scmp.ne.s32.totalorder %s367, %s368
    %p380 = scmp.eq.s32.totalorder %s33, 1
    %p381 = por %p379, %p380
    %p383 = scmp.ne.s32.totalorder %s368, %s382
    %p384 = scmp.eq.s32.totalorder %s33, 0
    %p385 = por %p383, %p384
    %s387 = sadd.s32 %s386, 1
    %p390 = scmp.eq.s32.totalorder %s27, 1
    %p391 = scmp.ne.s32.totalorder %s386, %s388
    %p392 = scmp.eq.s32.totalorder %s27, 0
    %p393 = por %p391, %p392
    %p394 = scmp.ne.s32.totalorder %s386, %s388
    %p395 = scmp.eq.s32.totalorder %s32, 1
    %p396 = por %p394, %p395
    %p397 = scmp.ne.s32.totalorder %s388, %s389
    %p398 = scmp.eq.s32.totalorder %s32, 0
    %p399 = por %p397, %p398
    %p400 = scmp.ne.s32.totalorder %s388, %s389
    %p401 = scmp.eq.s32.totalorder %s33, 1
    %p402 = por %p400, %p401
    %p404 = scmp.ne.s32.totalorder %s389, %s403
    %p405 = scmp.eq.s32.totalorder %s33, 0
    %p406 = por %p404, %p405
    %s408 = sadd.s32 %s407, 1
    %p411 = scmp.eq.s32.totalorder %s27, 1
    %p412 = scmp.ne.s32.totalorder %s407, %s409
    %p413 = scmp.eq.s32.totalorder %s27, 0
    %p414 = por %p412, %p413
    %p415 = scmp.ne.s32.totalorder %s407, %s409
    %p416 = scmp.eq.s32.totalorder %s32, 1
    %p417 = por %p415, %p416
    %p418 = scmp.ne.s32.totalorder %s409, %s410
    %p419 = scmp.eq.s32.totalorder %s32, 0
    %p420 = por %p418, %p419
    %p421 = scmp.ne.s32.totalorder %s409, %s410
    %p422 = scmp.eq.s32.totalorder %s33, 1
    %p423 = por %p421, %p422
    %p425 = scmp.ne.s32.totalorder %s410, %s424
    %p426 = scmp.eq.s32.totalorder %s33, 0
    %p427 = por %p425, %p426
    %s429 = sadd.s32 %s428, 1
    %p432 = scmp.eq.s32.totalorder %s27, 1
    %p433 = scmp.ne.s32.totalorder %s428, %s430
    %p434 = scmp.eq.s32.totalorder %s27, 0
    %p435 = por %p433, %p434
    %p436 = scmp.ne.s32.totalorder %s428, %s430
    %p437 = scmp.eq.s32.totalorder %s32, 1
    %p438 = por %p436, %p437
    %p439 = scmp.ne.s32.totalorder %s430, %s431
    %p440 = scmp.eq.s32.totalorder %s32, 0
    %p441 = por %p439, %p440
    %p442 = scmp.ne.s32.totalorder %s430, %s431
    %p443 = scmp.eq.s32.totalorder %s33, 1
    %p444 = por %p442, %p443
    %p446 = scmp.ne.s32.totalorder %s431, %s445
    %p447 = scmp.eq.s32.totalorder %s33, 0
    %p448 = por %p446, %p447
    %s450 = sadd.s32 %s449, 1
    %p453 = scmp.eq.s32.totalorder %s27, 1
    %p454 = scmp.ne.s32.totalorder %s449, %s451
    %p455 = scmp.eq.s32.totalorder %s27, 0
    %p456 = por %p454, %p455
    %p457 = scmp.ne.s32.totalorder %s449, %s451
    %p458 = scmp.eq.s32.totalorder %s32, 1
    %p459 = por %p457, %p458
    %p460 = scmp.ne.s32.totalorder %s451, %s452
    %p461 = scmp.eq.s32.totalorder %s32, 0
    %p462 = por %p460, %p461
    %p463 = scmp.ne.s32.totalorder %s451, %s452
    %p464 = scmp.eq.s32.totalorder %s33, 1
    %p465 = por %p463, %p464
    %p467 = scmp.ne.s32.totalorder %s452, %s466
    %p468 = scmp.eq.s32.totalorder %s33, 0
    %p469 = por %p467, %p468
    %s471 = sadd.s32 %s470, 1
    %p474 = scmp.eq.s32.totalorder %s27, 1
    %p475 = scmp.ne.s32.totalorder %s470, %s472
    %p476 = scmp.eq.s32.totalorder %s27, 0
    %p477 = por %p475, %p476
    %p478 = scmp.ne.s32.totalorder %s470, %s472
    %p479 = scmp.eq.s32.totalorder %s32, 1
    %p480 = por %p478, %p479
    %p481 = scmp.ne.s32.totalorder %s472, %s473
    %p482 = scmp.eq.s32.totalorder %s32, 0
    %p483 = por %p481, %p482
    %p484 = scmp.ne.s32.totalorder %s472, %s473
    %p485 = scmp.eq.s32.totalorder %s33, 1
    %p486 = por %p484, %p485
    %p488 = scmp.ne.s32.totalorder %s473, %s487
    %p489 = scmp.eq.s32.totalorder %s33, 0
    %p490 = por %p488, %p489
    %s491 = ssub.s32 %s27, %s34
    %p492 = scmp.eq.s32.totalorder %s491, 0
    %s494 = sadd.s32 %s493, 1
    %s495 = scalar_select %p492, %s493, %s494
    %p498 = pneg %p492
    %p499 = scmp.eq.s32.totalorder %s27, 1
    %p500 = por %p498, %p499
    %p501 = scmp.ne.s32.totalorder %s493, %s496
    %p502 = scmp.eq.s32.totalorder %s27, 0
    %p503 = por %p501, %p502
    %p504 = scmp.ne.s32.totalorder %s493, %s496
    %p505 = scmp.eq.s32.totalorder %s32, 1
    %p506 = por %p504, %p505
    %p507 = scmp.ne.s32.totalorder %s496, %s497
    %p508 = scmp.eq.s32.totalorder %s32, 0
    %p509 = por %p507, %p508
    %p510 = scmp.ne.s32.totalorder %s496, %s497
    %p511 = scmp.eq.s32.totalorder %s33, 1
    %p512 = por %p510, %p511
    %p514 = scmp.ne.s32.totalorder %s497, %s513
    %p515 = scmp.eq.s32.totalorder %s33, 0
    %p516 = por %p514, %p515
    %p517 = scmp.le.s32.totalorder 1, %s27
    %p518 = scmp.lt.s32.totalorder %s27, 3
    %p519 = pnand %p517, %p518
    %p520 = pneg %p519
    // Predicated region
    $region9: #{model_forward.7} parent=5 // pred_check
      _
    $region10: #{model_forward.7} parent=5 // pred_check_branch
      %522 = sbr.rel (%p519) target = $region12
    $region11: #{model_forward.7} parent=5 // pred_region
      %s523 = ssub.s32 %s27, 1
      // Predicated region
      $region13: #{model_forward.7} parent=11 // pred_check
        %p524 = pneg %p126
      $region14: #{model_forward.7} parent=11 // pred_check_branch
        %526 = sbr.rel (%p524) target = $region16
      $region15: #{model_forward.7} parent=11 // pred_region
        _
      $region16: #{model_forward.7} parent=11 // pred_fallthru
        _
      // Predicated region
      $region17: #{model_forward.7} parent=11 // pred_check
        %p527 = pneg %p147
      $region18: #{model_forward.7} parent=11 // pred_check_branch
        %529 = sbr.rel (%p527) target = $region20
      $region19: #{model_forward.7} parent=11 // pred_region
        _
      $region20: #{model_forward.7} parent=11 // pred_fallthru
        _
      // Predicated region
      $region21: #{model_forward.7} parent=11 // pred_check
        %p530 = pneg %p168
      $region22: #{model_forward.7} parent=11 // pred_check_branch
        %532 = sbr.rel (%p530) target = $region24
      $region23: #{model_forward.7} parent=11 // pred_region
        _
      $region24: #{model_forward.7} parent=11 // pred_fallthru
        _
      // Predicated region
      $region25: #{model_forward.7} parent=11 // pred_check
        %p533 = pneg %p189
      $region26: #{model_forward.7} parent=11 // pred_check_branch
        %535 = sbr.rel (%p533) target = $region28
      $region27: #{model_forward.7} parent=11 // pred_region
        _
      $region28: #{model_forward.7} parent=11 // pred_fallthru
        _
      // Predicated region
      $region29: #{model_forward.7} parent=11 // pred_check
        %p536 = pneg %p210
      $region30: #{model_forward.7} parent=11 // pred_check_branch
        %538 = sbr.rel (%p536) target = $region32
      $region31: #{model_forward.7} parent=11 // pred_region
        _
      $region32: #{model_forward.7} parent=11 // pred_fallthru
        _
      // Predicated region
      $region33: #{model_forward.7} parent=11 // pred_check
        %p539 = pneg %p231
      $region34: #{model_forward.7} parent=11 // pred_check_branch
        %541 = sbr.rel (%p539) target = $region36
      $region35: #{model_forward.7} parent=11 // pred_region
        _
      $region36: #{model_forward.7} parent=11 // pred_fallthru
        _
      // Predicated region
      $region37: #{model_forward.7} parent=11 // pred_check
        %p542 = pneg %p252
      $region38: #{model_forward.7} parent=11 // pred_check_branch
        %544 = sbr.rel (%p542) target = $region40
      $region39: #{model_forward.7} parent=11 // pred_region
        _
      $region40: #{model_forward.7} parent=11 // pred_fallthru
        _
      // Predicated region
      $region41: #{model_forward.7} parent=11 // pred_check
        %p545 = pneg %p273
      $region42: #{model_forward.7} parent=11 // pred_check_branch
        %547 = sbr.rel (%p545) target = $region44
      $region43: #{model_forward.7} parent=11 // pred_region
        _
      $region44: #{model_forward.7} parent=11 // pred_fallthru
        _
      // Predicated region
      $region45: #{model_forward.7} parent=11 // pred_check
        %p548 = pneg %p294
      $region46: #{model_forward.7} parent=11 // pred_check_branch
        %550 = sbr.rel (%p548) target = $region48
      $region47: #{model_forward.7} parent=11 // pred_region
        _
      $region48: #{model_forward.7} parent=11 // pred_fallthru
        _
      // Predicated region
      $region49: #{model_forward.7} parent=11 // pred_check
        %p551 = pneg %p315
      $region50: #{model_forward.7} parent=11 // pred_check_branch
        %553 = sbr.rel (%p551) target = $region52
      $region51: #{model_forward.7} parent=11 // pred_region
        _
      $region52: #{model_forward.7} parent=11 // pred_fallthru
        _
      // Predicated region
      $region53: #{model_forward.7} parent=11 // pred_check
        %p554 = pneg %p336
      $region54: #{model_forward.7} parent=11 // pred_check_branch
        %556 = sbr.rel (%p554) target = $region56
      $region55: #{model_forward.7} parent=11 // pred_region
        _
      $region56: #{model_forward.7} parent=11 // pred_fallthru
        _
      // Predicated region
      $region57: #{model_forward.7} parent=11 // pred_check
        %p557 = pneg %p357
      $region58: #{model_forward.7} parent=11 // pred_check_branch
        %559 = sbr.rel (%p557) target = $region60
      $region59: #{model_forward.7} parent=11 // pred_region
        _
      $region60: #{model_forward.7} parent=11 // pred_fallthru
        _
      // Predicated region
      $region61: #{model_forward.7} parent=11 // pred_check
        %p560 = pneg %p378
      $region62: #{model_forward.7} parent=11 // pred_check_branch
        %562 = sbr.rel (%p560) target = $region64
      $region63: #{model_forward.7} parent=11 // pred_region
        _
      $region64: #{model_forward.7} parent=11 // pred_fallthru
        _
      // Predicated region
      $region65: #{model_forward.7} parent=11 // pred_check
        %p563 = pneg %p399
      $region66: #{model_forward.7} parent=11 // pred_check_branch
        %565 = sbr.rel (%p563) target = $region68
      $region67: #{model_forward.7} parent=11 // pred_region
        _
      $region68: #{model_forward.7} parent=11 // pred_fallthru
        _
      // Predicated region
      $region69: #{model_forward.7} parent=11 // pred_check
        %p566 = pneg %p420
      $region70: #{model_forward.7} parent=11 // pred_check_branch
        %568 = sbr.rel (%p566) target = $region72
      $region71: #{model_forward.7} parent=11 // pred_region
        _
      $region72: #{model_forward.7} parent=11 // pred_fallthru
        _
      // Predicated region
      $region73: #{model_forward.7} parent=11 // pred_check
        %p569 = pneg %p441
      $region74: #{model_forward.7} parent=11 // pred_check_branch
        %571 = sbr.rel (%p569) target = $region76
      $region75: #{model_forward.7} parent=11 // pred_region
        _
      $region76: #{model_forward.7} parent=11 // pred_fallthru
        _
      // Predicated region
      $region77: #{model_forward.7} parent=11 // pred_check
        %p572 = pneg %p462
      $region78: #{model_forward.7} parent=11 // pred_check_branch
        %574 = sbr.rel (%p572) target = $region80
      $region79: #{model_forward.7} parent=11 // pred_region
        _
      $region80: #{model_forward.7} parent=11 // pred_fallthru
        _
      // Predicated region
      $region81: #{model_forward.7} parent=11 // pred_check
        %p575 = pneg %p483
      $region82: #{model_forward.7} parent=11 // pred_check_branch
        %577 = sbr.rel (%p575) target = $region84
      $region83: #{model_forward.7} parent=11 // pred_region
        _
      $region84: #{model_forward.7} parent=11 // pred_fallthru
        _
    $region12: #{model_forward.7} parent=5 // pred_fallthru
      _
    %p578 = scmp.lt.s32.totalorder %s27, 2
    // Predicated region
    $region85: #{model_forward.7} parent=5 // pred_check
      %p579 = pneg %p578
    $region86: #{model_forward.7} parent=5 // pred_check_branch
      %581 = sbr.rel (%p579) target = $region88
    $region87: #{model_forward.7} parent=5 // pred_region
      // Predicated region
      $region89: #{model_forward.7} parent=87 // pred_check
        %p582 = pneg %p47
      $region90: #{model_forward.7} parent=87 // pred_check_branch
        %584 = sbr.rel (%p582) target = $region92
      $region91: #{model_forward.7} parent=87 // pred_region
        %p585 = scmp.lt.s32.totalorder %s27, 1
        %s586 = scalar_select %p585, %s27, 1
        %s587 = smul.addr %s586, 8
        %s588 = scalar_lea.vmem %s0, %s587
      $region92: #{model_forward.7} parent=87 // pred_fallthru
        _
      // Predicated region
      $region93: #{model_forward.7} parent=87 // pred_check
        %p589 = pneg %p73
      $region94: #{model_forward.7} parent=87 // pred_check_branch
        %591 = sbr.rel (%p589) target = $region96
      $region95: #{model_forward.7} parent=87 // pred_region
        %p592 = scmp.lt.s32.totalorder %s27, 1
        %s593 = scalar_select %p592, %s27, 1
        %s594 = smul.addr %s593, 8
        %s595 = scalar_lea.vmem %s1, %s594
      $region96: #{model_forward.7} parent=87 // pred_fallthru
        _
      // Predicated region
      $region97: #{model_forward.7} parent=87 // pred_check
        %p596 = pneg %p99
      $region98: #{model_forward.7} parent=87 // pred_check_branch
        %598 = sbr.rel (%p596) target = $region100
      $region99: #{model_forward.7} parent=87 // pred_region
        %p599 = scmp.lt.s32.totalorder %s27, 1
        %s600 = scalar_select %p599, %s27, 1
        %s601 = scalar_lea.vmem %s2, %s600
      $region100: #{model_forward.7} parent=87 // pred_fallthru
        _
    $region88: #{model_forward.7} parent=5 // pred_fallthru
      _
    %p602 = scmp.le.s32.totalorder 1, %s27
    %p603 = scmp.lt.s32.totalorder %s27, 3
    %p604 = pnand %p602, %p603
    %p605 = pneg %p604
    // Predicated region
    $region101: #{model_forward.7} parent=5 // pred_check
      _
    $region102: #{model_forward.7} parent=5 // pred_check_branch
      %607 = sbr.rel (%p604) target = $region104
    $region103: #{model_forward.7} parent=5 // pred_region
      %s608 = ssub.s32 %s27, 1
      %p609 = scmp.lt.s32.totalorder %s32, 1
      %s610 = scalar_select %p609, %s32, 1
      %s611 = smul.addr %s610, 8
      %s612 = scalar_lea.vmem %s0, %s611
      %p613 = pneg %p53
      %p614 = pneg %p50
      %p615 = scmp.lt.s32.totalorder %s32, 1
      %s616 = scalar_select %p615, %s32, 1
      %s617 = smul.addr %s616, 8
      %s618 = scalar_lea.vmem %s1, %s617
      %p619 = pneg %p79
      %p620 = pneg %p76
      %p621 = scmp.lt.s32.totalorder %s32, 1
      %s622 = scalar_select %p621, %s32, 1
      %s623 = scalar_lea.vmem %s2, %s622
      %p624 = pneg %p105
      %p625 = pneg %p102
      %p626 = pneg %p126
      %p627 = pneg %p123
      %p628 = pneg %p147
      %p629 = pneg %p144
      %p630 = pneg %p168
      %p631 = pneg %p165
      %p632 = pneg %p189
      %p633 = pneg %p186
      %p634 = pneg %p210
      %p635 = pneg %p207
      %p636 = pneg %p231
      %p637 = pneg %p228
      %p638 = pneg %p252
      %p639 = pneg %p249
      %p640 = pneg %p273
      %p641 = pneg %p270
      %p642 = pneg %p294
      %p643 = pneg %p291
      %p644 = pneg %p315
      %p645 = pneg %p312
      %p646 = pneg %p336
      %p647 = pneg %p333
      %p648 = pneg %p357
      %p649 = pneg %p354
      %p650 = pneg %p378
      %p651 = pneg %p375
      %p652 = pneg %p399
      %p653 = pneg %p396
      %p654 = pneg %p420
      %p655 = pneg %p417
      %p656 = pneg %p441
      %p657 = pneg %p438
      %p658 = pneg %p462
      %p659 = pneg %p459
      %p660 = pneg %p483
      %p661 = pneg %p480
      %p662 = pneg %p509
      %p663 = pneg %p506
      %p664 = scmp.lt.s32.totalorder %s32, 1
      %s665 = scalar_select %p664, %s32, 1
      %s666 = smul.addr %s665, 8
      %s667 = scalar_lea.vmem %s21, %s666
      %p668 = scmp.lt.s32.totalorder %s32, 1
      %s669 = scalar_select %p668, %s32, 1
      %s670 = smul.addr %s669, 8
      %s671 = scalar_lea.vmem %s0, %s670
      %p672 = scmp.lt.s32.totalorder %s32, 1
      %s673 = scalar_select %p672, %s32, 1
      %s674 = smul.addr %s673, 8
      %s675 = scalar_lea.vmem %s1, %s674
      %p676 = scmp.lt.s32.totalorder %s32, 1
      %s677 = scalar_select %p676, %s32, 1
      %s678 = scalar_lea.vmem %s2, %s677
      %p679 = scmp.lt.s32.totalorder %s32, 1
      %s680 = scalar_select %p679, %s32, 1
      %s681 = smul.addr %s680, 8
      %s682 = scalar_lea.vmem %s21, %s681
      %v684 = vld [vmem:[%s671] sm:$0xff]
      %v685 = vld [vmem:[%s675] sm:$0xff]
      %v686 = vpack.c.bf16 %v684, %v684
      %v687 = vld [vmem:[%s3] sm:$0xf]
      %v688 = vld [vmem:[%s3 + $0x4] sm:$0xf]
      %v689 = vld [vmem:[%s3 + $0x8] sm:$0xf]
      %v690 = vld [vmem:[%s3 + $0xc] sm:$0xf]
      %v691 = vld [vmem:[%s4] sm:$0x1]
      %v693 = vlaneseq
      %v694 = vshrl.u32 %v693, 7
      %v695 = vsub.s32 0, %v694
      %v696 = vrot.slane %v691, %v695
      %v702 = vunpack.c.l.b16 %v687
      %v703 = vunpack.c.l.b16 %v688
      %v704 = vunpack.c.l.b16 %v689
      %v705 = vunpack.c.l.b16 %v690
      %v706 = vpack.c.b16 %v703, %v702
      %v707 = vpack.c.b16 %v705, %v704
      %vm710 = vcmask 261120
      %v712 = vsel %vm710, %v686, 0
      %714 = vmatprep.subr.bf16.mxu0 0
      %715 = vmatpush1.bf16.msra.mxu0 %v706
      %716 = vmatprep.subr.bf16.mxu0 0
      %717 = vmatpush1.bf16.msra.mxu0 %v707
      %718 = vmatprep.subr.bf16.mxu0 0
      %719 = vmatpush1.bf16.msra.mxu0 0
      %720 = vmatprep.subr.bf16.mxu0 0
      %721 = vmatpush1.bf16.msra.mxu0 0
      %722 = vmatprep.subr.bf16.mxu0 0
      %723 = vmatpush1.bf16.msra.mxu0 0
      %724 = vmatprep.subr.bf16.mxu0 0
      %725 = vmatpush1.bf16.msra.mxu0 0
      %726 = vmatprep.subr.bf16.mxu0 0
      %727 = vmatpush1.bf16.msra.mxu0 0
      %728 = vmatprep.subr.bf16.mxu0 0
      %729 = vmatpush1.bf16.msra.mxu0 0
      %730 = vmatprep.subr.bf16.mxu0 0
      %731 = vmatpush1.bf16.msra.mxu0 0
      %732 = vmatprep.subr.bf16.mxu0 0
      %733 = vmatpush1.bf16.msra.mxu0 0
      %734 = vmatprep.subr.bf16.mxu0 0
      %735 = vmatpush1.bf16.msra.mxu0 0
      %736 = vmatprep.subr.bf16.mxu0 0
      %737 = vmatpush1.bf16.msra.mxu0 0
      %738 = vmatprep.subr.bf16.mxu0 0
      %739 = vmatpush1.bf16.msra.mxu0 0
      %740 = vmatprep.subr.bf16.mxu0 0
      %741 = vmatpush1.bf16.msra.mxu0 0
      %742 = vmatprep.subr.bf16.mxu0 0
      %743 = vmatpush1.bf16.msra.mxu0 0
      %744 = vmatprep.subr.bf16.mxu0 0
      %745 = vmatpush1.bf16.msra.mxu0 0
      %746 = vmatprep.mubr.bf16.mxu0 0
      %747 = vmatmul.mubr.bf16.gmra.mrb[0].mxu0 %v712
      %v748 = vpop.f32.mrb[0].mxu0
      %v749 = vadd.f32 %v696, %v748
      %v750 = vpop.f32.mrb[0].mxu0
      %v751 = vpop.f32.mrb[0].mxu0
      %v752 = vpop.f32.mrb[0].mxu0
      %753 = vdwg.mxu0
      %s754 = scalar_lea.vmem %s3, 64
      %v755 = vld [vmem:[%s754] sm:$0xf]
      %v756 = vld [vmem:[%s754 + $0x4] sm:$0xf]
      %v757 = vld [vmem:[%s754 + $0x8] sm:$0xf]
      %v758 = vld [vmem:[%s754 + $0xc] sm:$0xf]
      %s759 = scalar_lea.vmem %s4, 4
      %v760 = vld [vmem:[%s759] sm:$0x1]
      %v762 = vlaneseq
      %v763 = vshrl.u32 %v762, 7
      %v764 = vsub.s32 0, %v763
      %v765 = vrot.slane %v760, %v764
      %v771 = vunpack.c.l.b16 %v755
      %v772 = vunpack.c.l.b16 %v756
      %v773 = vunpack.c.l.b16 %v757
      %v774 = vunpack.c.l.b16 %v758
      %v775 = vpack.c.b16 %v772, %v771
      %v776 = vpack.c.b16 %v774, %v773
      %779 = vmatprep.subr.bf16.mxu0 0
      %780 = vmatpush1.bf16.msra.mxu0 %v775
      %781 = vmatprep.subr.bf16.mxu0 0
      %782 = vmatpush1.bf16.msra.mxu0 %v776
      %783 = vmatprep.subr.bf16.mxu0 0
      %784 = vmatpush1.bf16.msra.mxu0 0
      %785 = vmatprep.subr.bf16.mxu0 0
      %786 = vmatpush1.bf16.msra.mxu0 0
      %787 = vmatprep.subr.bf16.mxu0 0
      %788 = vmatpush1.bf16.msra.mxu0 0
      %789 = vmatprep.subr.bf16.mxu0 0
      %790 = vmatpush1.bf16.msra.mxu0 0
      %791 = vmatprep.subr.bf16.mxu0 0
      %792 = vmatpush1.bf16.msra.mxu0 0
      %793 = vmatprep.subr.bf16.mxu0 0
      %794 = vmatpush1.bf16.msra.mxu0 0
      %795 = vmatprep.subr.bf16.mxu0 0
      %796 = vmatpush1.bf16.msra.mxu0 0
      %797 = vmatprep.subr.bf16.mxu0 0
      %798 = vmatpush1.bf16.msra.mxu0 0
      %799 = vmatprep.subr.bf16.mxu0 0
      %800 = vmatpush1.bf16.msra.mxu0 0
      %801 = vmatprep.subr.bf16.mxu0 0
      %802 = vmatpush1.bf16.msra.mxu0 0
      %803 = vmatprep.subr.bf16.mxu0 0
      %804 = vmatpush1.bf16.msra.mxu0 0
      %805 = vmatprep.subr.bf16.mxu0 0
      %806 = vmatpush1.bf16.msra.mxu0 0
      %807 = vmatprep.subr.bf16.mxu0 0
      %808 = vmatpush1.bf16.msra.mxu0 0
      %809 = vmatprep.subr.bf16.mxu0 0
      %810 = vmatpush1.bf16.msra.mxu0 0
      %811 = vmatprep.mubr.bf16.mxu0 0
      %812 = vmatmul.mubr.bf16.gmra.mrb[0].mxu0 %v712
      %v813 = vpop.f32.mrb[0].mxu0
      %v814 = vadd.f32 %v765, %v813
      %v815 = vpop.f32.mrb[0].mxu0
      %v816 = vpop.f32.mrb[0].mxu0
      %v817 = vpop.f32.mrb[0].mxu0
      %818 = vdwg.mxu0
      %s819 = scalar_lea.vmem %s3, 128
      %v820 = vld [vmem:[%s819] sm:$0xf]
      %v821 = vld [vmem:[%s819 + $0x4] sm:$0xf]
      %v822 = vld [vmem:[%s819 + $0x8] sm:$0xf]
      %v823 = vld [vmem:[%s819 + $0xc] sm:$0xf]
      %s824 = scalar_lea.vmem %s4, 8
      %v825 = vld [vmem:[%s824] sm:$0x1]
      %v827 = vlaneseq
      %v828 = vshrl.u32 %v827, 7
      %v829 = vsub.s32 0, %v828
      %v830 = vrot.slane %v825, %v829
      %v836 = vunpack.c.l.b16 %v820
      %v837 = vunpack.c.l.b16 %v821
      %v838 = vunpack.c.l.b16 %v822
      %v839 = vunpack.c.l.b16 %v823
      %v840 = vpack.c.b16 %v837, %v836
      %v841 = vpack.c.b16 %v839, %v838
      %844 = vmatprep.subr.bf16.mxu0 0
      %845 = vmatpush1.bf16.msra.mxu0 %v840
      %846 = vmatprep.subr.bf16.mxu0 0
      %847 = vmatpush1.bf16.msra.mxu0 %v841
      %848 = vmatprep.subr.bf16.mxu0 0
      %849 = vmatpush1.bf16.msra.mxu0 0
      %850 = vmatprep.subr.bf16.mxu0 0
      %851 = vmatpush1.bf16.msra.mxu0 0
      %852 = vmatprep.subr.bf16.mxu0 0
      %853 = vmatpush1.bf16.msra.mxu0 0
      %854 = vmatprep.subr.bf16.mxu0 0
      %855 = vmatpush1.bf16.msra.mxu0 0
      %856 = vmatprep.subr.bf16.mxu0 0
      %857 = vmatpush1.bf16.msra.mxu0 0
      %858 = vmatprep.subr.bf16.mxu0 0
      %859 = vmatpush1.bf16.msra.mxu0 0
      %860 = vmatprep.subr.bf16.mxu0 0
      %861 = vmatpush1.bf16.msra.mxu0 0
      %862 = vmatprep.subr.bf16.mxu0 0
      %863 = vmatpush1.bf16.msra.mxu0 0
      %864 = vmatprep.subr.bf16.mxu0 0
      %865 = vmatpush1.bf16.msra.mxu0 0
      %866 = vmatprep.subr.bf16.mxu0 0
      %867 = vmatpush1.bf16.msra.mxu0 0
      %868 = vmatprep.subr.bf16.mxu0 0
      %869 = vmatpush1.bf16.msra.mxu0 0
      %870 = vmatprep.subr.bf16.mxu0 0
      %871 = vmatpush1.bf16.msra.mxu0 0
      %872 = vmatprep.subr.bf16.mxu0 0
      %873 = vmatpush1.bf16.msra.mxu0 0
      %874 = vmatprep.subr.bf16.mxu0 0
      %875 = vmatpush1.bf16.msra.mxu0 0
      %876 = vmatprep.mubr.bf16.mxu0 0
      %877 = vmatmul.mubr.bf16.gmra.mrb[0].mxu0 %v712
      %v878 = vpop.f32.mrb[0].mxu0
      %v879 = vadd.f32 %v830, %v878
      %v880 = vpop.f32.mrb[0].mxu0
      %v881 = vpop.f32.mrb[0].mxu0
      %v882 = vpop.f32.mrb[0].mxu0
      %883 = vdwg.mxu0
      %v884 = vpack.c.bf16 %v749, %v749
      %v885 = vpack.c.bf16 %v814, %v814
      %vm886 = vcmask 64512
      %v888 = vsel %vm886, %v884, 0
      %v891 = vsel %vm886, %v885, 0
      %893 = vmatprep.subr.bf16.mxu0 0
      %894 = vmatpush1.bf16.xpose.msra.mxu0 %v891
      %895 = vmatprep.subr.bf16.mxu0 0
      %896 = vmatpush1.bf16.xpose.msra.mxu0 0
      %897 = vmatprep.subr.bf16.mxu0 0
      %898 = vmatpush1.bf16.xpose.msra.mxu0 0
      %899 = vmatprep.subr.bf16.mxu0 0
      %900 = vmatpush1.bf16.xpose.msra.mxu0 0
      %901 = vmatprep.subr.bf16.mxu0 0
      %902 = vmatpush1.bf16.xpose.msra.mxu0 0
      %903 = vmatprep.subr.bf16.mxu0 0
      %904 = vmatpush1.bf16.xpose.msra.mxu0 0
      %905 = vmatprep.subr.bf16.mxu0 0
      %906 = vmatpush1.bf16.xpose.msra.mxu0 0
      %907 = vmatprep.subr.bf16.mxu0 0
      %908 = vmatpush1.bf16.xpose.msra.mxu0 0
      %909 = vmatprep.subr.bf16.mxu0 0
      %910 = vmatpush1.bf16.xpose.msra.mxu0 0
      %911 = vmatprep.subr.bf16.mxu0 0
      %912 = vmatpush1.bf16.xpose.msra.mxu0 0
      %913 = vmatprep.subr.bf16.mxu0 0
      %914 = vmatpush1.bf16.xpose.msra.mxu0 0
      %915 = vmatprep.subr.bf16.mxu0 0
      %916 = vmatpush1.bf16.xpose.msra.mxu0 0
      %917 = vmatprep.subr.bf16.mxu0 0
      %918 = vmatpush1.bf16.xpose.msra.mxu0 0
      %919 = vmatprep.subr.bf16.mxu0 0
      %920 = vmatpush1.bf16.xpose.msra.mxu0 0
      %921 = vmatprep.subr.bf16.mxu0 0
      %922 = vmatpush1.bf16.xpose.msra.mxu0 0
      %923 = vmatprep.subr.bf16.mxu0 0
      %924 = vmatpush1.bf16.xpose.msra.mxu0 0
      %925 = vmatprep.mubr.bf16.mxu0 0
      %926 = vmatmul.mubr.bf16.gmra.mrb[0].mxu0 %v888
      %v927 = vpop.f32.mrb[0].mxu0
      %v928 = vadd.f32 0.0, %v927
      %v929 = vpop.f32.mrb[0].mxu0
      %v930 = vpop.f32.mrb[0].mxu0
      %v931 = vpop.f32.mrb[0].mxu0
      %932 = vdwg.mxu0
      %v933 = vmul.f32 %v928, 0.35355338
      %v934 = vlaneseq
      %v935 = vshrl.u32 %v934, 7
      %v936 = vlaneseq
      %v937 = vand.u32 %v936, 127
      %vm938 = vcmp.le.s32.totalorder %v937, %v935
      %v939 = vsel %vm938, %v933, -1e+09
      %v940 = vsel %vm886, %v939, -inf
      %941 = vmax.xlane.f32.xlu0 %v940
      %v942 = vpop.xlane.xlu0 %941
      %v943 = vsub.f32 %v939, %v942
      %v944 = vmul.f32 %v943, 1.442695
      %v945 = vpow.pop %v944
      %v946 = vsel %vm886, %v945, 0.0
      %947 = vadd.xlane.f32.xlu0 %v946
      %v948 = vpop.xlane.xlu0 %947
      %v949 = vrcp.pop %v948
      %v950 = vmul.f32 %v945, %v949
      %v951 = vpack.c.bf16 %v950, %v950
      %v952 = vpack.c.bf16 %v879, %v879
      %v954 = vsel %vm886, %v951, 0
      %vm956 = vcmask 1043456
      %v958 = vsel %vm956, %v952, 0
      %960 = vmatprep.subr.bf16.mxu0 0
      %961 = vmatpush1.bf16.msra.mxu0 %v958
      %962 = vmatprep.subr.bf16.mxu0 0
      %963 = vmatpush1.bf16.msra.mxu0 0
      %964 = vmatprep.subr.bf16.mxu0 0
      %965 = vmatpush1.bf16.msra.mxu0 0
      %966 = vmatprep.subr.bf16.mxu0 0
      %967 = vmatpush1.bf16.msra.mxu0 0
      %968 = vmatprep.subr.bf16.mxu0 0
      %969 = vmatpush1.bf16.msra.mxu0 0
      %970 = vmatprep.subr.bf16.mxu0 0
      %971 = vmatpush1.bf16.msra.mxu0 0
      %972 = vmatprep.subr.bf16.mxu0 0
      %973 = vmatpush1.bf16.msra.mxu0 0
      %974 = vmatprep.subr.bf16.mxu0 0
      %975 = vmatpush1.bf16.msra.mxu0 0
      %976 = vmatprep.subr.bf16.mxu0 0
      %977 = vmatpush1.bf16.msra.mxu0 0
      %978 = vmatprep.subr.bf16.mxu0 0
      %979 = vmatpush1.bf16.msra.mxu0 0
      %980 = vmatprep.subr.bf16.mxu0 0
      %981 = vmatpush1.bf16.msra.mxu0 0
      %982 = vmatprep.subr.bf16.mxu0 0
      %983 = vmatpush1.bf16.msra.mxu0 0
      %984 = vmatprep.subr.bf16.mxu0 0
      %985 = vmatpush1.bf16.msra.mxu0 0
      %986 = vmatprep.subr.bf16.mxu0 0
      %987 = vmatpush1.bf16.msra.mxu0 0
      %988 = vmatprep.subr.bf16.mxu0 0
      %989 = vmatpush1.bf16.msra.mxu0 0
      %990 = vmatprep.subr.bf16.mxu0 0
      %991 = vmatpush1.bf16.msra.mxu0 0
      %992 = vmatprep.mubr.bf16.mxu0 0
      %993 = vmatmul.mubr.bf16.gmra.mrb[0].mxu0 %v954
      %v994 = vpop.f32.mrb[0].mxu0
      %v995 = vadd.f32 0.0, %v994
      %v996 = vpop.f32.mrb[0].mxu0
      %v997 = vpop.f32.mrb[0].mxu0
      %v998 = vpop.f32.mrb[0].mxu0
      %999 = vdwg.mxu0
      %s1000 = scalar_lea.vmem %s3, 16
      %v1001 = vld [vmem:[%s1000] sm:$0xf]
      %v1002 = vld [vmem:[%s1000 + $0x4] sm:$0xf]
      %v1003 = vld [vmem:[%s1000 + $0x8] sm:$0xf]
      %v1004 = vld [vmem:[%s1000 + $0xc] sm:$0xf]
      %s1005 = scalar_lea.vmem %s4, 1
      %v1006 = vld [vmem:[%s1005] sm:$0x1]
      %v1008 = vlaneseq
      %v1009 = vshrl.u32 %v1008, 7
      %v1010 = vsub.s32 0, %v1009
      %v1011 = vrot.slane %v1006, %v1010
      %v1017 = vunpack.c.l.b16 %v1001
      %v1018 = vunpack.c.l.b16 %v1002
      %v1019 = vunpack.c.l.b16 %v1003
      %v1020 = vunpack.c.l.b16 %v1004
      %v1021 = vpack.c.b16 %v1018, %v1017
      %v1022 = vpack.c.b16 %v1020, %v1019
      %1025 = vmatprep.subr.bf16.mxu0 0
      %1026 = vmatpush1.bf16.msra.mxu0 %v1021
      %1027 = vmatprep.subr.bf16.mxu0 0
      %1028 = vmatpush1.bf16.msra.mxu0 %v1022
      %1029 = vmatprep.subr.bf16.mxu0 0
      %1030 = vmatpush1.bf16.msra.mxu0 0
      %1031 = vmatprep.subr.bf16.mxu0 0
      %1032 = vmatpush1.bf16.msra.mxu0 0
      %1033 = vmatprep.subr.bf16.mxu0 0
      %1034 = vmatpush1.bf16.msra.mxu0 0
      %1035 = vmatprep.subr.bf16.mxu0 0
      %1036 = vmatpush1.bf16.msra.mxu0 0
      %1037 = vmatprep.subr.bf16.mxu0 0
      %1038 = vmatpush1.bf16.msra.mxu0 0
      %1039 = vmatprep.subr.bf16.mxu0 0
      %1040 = vmatpush1.bf16.msra.mxu0 0
      %1041 = vmatprep.subr.bf16.mxu0 0
      %1042 = vmatpush1.bf16.msra.mxu0 0
      %1043 = vmatprep.subr.bf16.mxu0 0
      %1044 = vmatpush1.bf16.msra.mxu0 0
      %1045 = vmatprep.subr.bf16.mxu0 0
      %1046 = vmatpush1.bf16.msra.mxu0 0
      %1047 = vmatprep.subr.bf16.mxu0 0
      %1048 = vmatpush1.bf16.msra.mxu0 0
      %1049 = vmatprep.subr.bf16.mxu0 0
      %1050 = vmatpush1.bf16.msra.mxu0 0
      %1051 = vmatprep.subr.bf16.mxu0 0
      %1052 = vmatpush1.bf16.msra.mxu0 0
      %1053 = vmatprep.subr.bf16.mxu0 0
      %1054 = vmatpush1.bf16.msra.mxu0 0
      %1055 = vmatprep.subr.bf16.mxu0 0
      %1056 = vmatpush1.bf16.msra.mxu0 0
      %1057 = vmatprep.mubr.bf16.mxu0 0
      %1058 = vmatmul.mubr.bf16.gmra.mrb[0].mxu0 %v712
      %v1059 = vpop.f32.mrb[0].mxu0
      %v1060 = vadd.f32 %v1011, %v1059
      %v1061 = vpop.f32.mrb[0].mxu0
      %v1062 = vpop.f32.mrb[0].mxu0
      %v1063 = vpop.f32.mrb[0].mxu0
      %1064 = vdwg.mxu0
      %s1065 = scalar_lea.vmem %s3, 80
      %v1066 = vld [vmem:[%s1065] sm:$0xf]
      %v1067 = vld [vmem:[%s1065 + $0x4] sm:$0xf]
      %v1068 = vld [vmem:[%s1065 + $0x8] sm:$0xf]
      %v1069 = vld [vmem:[%s1065 + $0xc] sm:$0xf]
      %s1070 = scalar_lea.vmem %s4, 5
      %v1071 = vld [vmem:[%s1070] sm:$0x1]
      %v1073 = vlaneseq
      %v1074 = vshrl.u32 %v1073, 7
      %v1075 = vsub.s32 0, %v1074
      %v1076 = vrot.slane %v1071, %v1075
      %v1082 = vunpack.c.l.b16 %v1066
      %v1083 = vunpack.c.l.b16 %v1067
      %v1084 = vunpack.c.l.b16 %v1068
      %v1085 = vunpack.c.l.b16 %v1069
      %v1086 = vpack.c.b16 %v1083, %v1082
      %v1087 = vpack.c.b16 %v1085, %v1084
      %1090 = vmatprep.subr.bf16.mxu0 0
      %1091 = vmatpush1.bf16.msra.mxu0 %v1086
      %1092 = vmatprep.subr.bf16.mxu0 0
      %1093 = vmatpush1.bf16.msra.mxu0 %v1087
      %1094 = vmatprep.subr.bf16.mxu0 0
      %1095 = vmatpush1.bf16.msra.mxu0 0
      %1096 = vmatprep.subr.bf16.mxu0 0
      %1097 = vmatpush1.bf16.msra.mxu0 0
      %1098 = vmatprep.subr.bf16.mxu0 0
      %1099 = vmatpush1.bf16.msra.mxu0 0
      %1100 = vmatprep.subr.bf16.mxu0 0
      %1101 = vmatpush1.bf16.msra.mxu0 0
      %1102 = vmatprep.subr.bf16.mxu0 0
      %1103 = vmatpush1.bf16.msra.mxu0 0
      %1104 = vmatprep.subr.bf16.mxu0 0
      %1105 = vmatpush1.bf16.msra.mxu0 0
      %1106 = vmatprep.subr.bf16.mxu0 0
      %1107 = vmatpush1.bf16.msra.mxu0 0
      %1108 = vmatprep.subr.bf16.mxu0 0
      %1109 = vmatpush1.bf16.msra.mxu0 0
      %1110 = vmatprep.subr.bf16.mxu0 0
      %1111 = vmatpush1.bf16.msra.mxu0 0
      %1112 = vmatprep.subr.bf16.mxu0 0
      %1113 = vmatpush1.bf16.msra.mxu0 0
      %1114 = vmatprep.subr.bf16.mxu0 0
      %1115 = vmatpush1.bf16.msra.mxu0 0
      %1116 = vmatprep.subr.bf16.mxu0 0
      %1117 = vmatpush1.bf16.msra.mxu0 0
      %1118 = vmatprep.subr.bf16.mxu0 0
      %1119 = vmatpush1.bf16.msra.mxu0 0
      %1120 = vmatprep.subr.bf16.mxu0 0
      %1121 = vmatpush1.bf16.msra.mxu0 0
      %1122 = vmatprep.mubr.bf16.mxu0 0
      %1123 = vmatmul.mubr.bf16.gmra.mrb[0].mxu0 %v712
      %v1124 = vpop.f32.mrb[0].mxu0
      %v1125 = vadd.f32 %v1076, %v1124
      %v1126 = vpop.f32.mrb[0].mxu0
      %v1127 = vpop.f32.mrb[0].mxu0
      %v1128 = vpop.f32.mrb[0].mxu0
      %1129 = vdwg.mxu0
      %s1130 = scalar_lea.vmem %s3, 144
      %v1131 = vld [vmem:[%s1130] sm:$0xf]
      %v1132 = vld [vmem:[%s1130 + $0x4] sm:$0xf]
      %v1133 = vld [vmem:[%s1130 + $0x8] sm:$0xf]
      %v1134 = vld [vmem:[%s1130 + $0xc] sm:$0xf]
      %s1135 = scalar_lea.vmem %s4, 9
      %v1136 = vld [vmem:[%s1135] sm:$0x1]
      %v1138 = vlaneseq
      %v1139 = vshrl.u32 %v1138, 7
      %v1140 = vsub.s32 0, %v1139
      %v1141 = vrot.slane %v1136, %v1140
      %v1147 = vunpack.c.l.b16 %v1131
      %v1148 = vunpack.c.l.b16 %v1132
      %v1149 = vunpack.c.l.b16 %v1133
      %v1150 = vunpack.c.l.b16 %v1134
      %v1151 = vpack.c.b16 %v1148, %v1147
      %v1152 = vpack.c.b16 %v1150, %v1149
      %1155 = vmatprep.subr.bf16.mxu0 0
      %1156 = vmatpush1.bf16.msra.mxu0 %v1151
      %1157 = vmatprep.subr.bf16.mxu0 0
      %1158 = vmatpush1.bf16.msra.mxu0 %v1152
      %1159 = vmatprep.subr.bf16.mxu0 0
      %1160 = vmatpush1.bf16.msra.mxu0 0
      %1161 = vmatprep.subr.bf16.mxu0 0
      %1162 = vmatpush1.bf16.msra.mxu0 0
      %1163 = vmatprep.subr.bf16.mxu0 0
      %1164 = vmatpush1.bf16.msra.mxu0 0
      %1165 = vmatprep.subr.bf16.mxu0 0
      %1166 = vmatpush1.bf16.msra.mxu0 0
      %1167 = vmatprep.subr.bf16.mxu0 0
      %1168 = vmatpush1.bf16.msra.mxu0 0
      %1169 = vmatprep.subr.bf16.mxu0 0
      %1170 = vmatpush1.bf16.msra.mxu0 0
      %1171 = vmatprep.subr.bf16.mxu0 0
      %1172 = vmatpush1.bf16.msra.mxu0 0
      %1173 = vmatprep.subr.bf16.mxu0 0
      %1174 = vmatpush1.bf16.msra.mxu0 0
      %1175 = vmatprep.subr.bf16.mxu0 0
      %1176 = vmatpush1.bf16.msra.mxu0 0
      %1177 = vmatprep.subr.bf16.mxu0 0
      %1178 = vmatpush1.bf16.msra.mxu0 0
      %1179 = vmatprep.subr.bf16.mxu0 0
      %1180 = vmatpush1.bf16.msra.mxu0 0
      %1181 = vmatprep.subr.bf16.mxu0 0
      %1182 = vmatpush1.bf16.msra.mxu0 0
      %1183 = vmatprep.subr.bf16.mxu0 0
      %1184 = vmatpush1.bf16.msra.mxu0 0
      %1185 = vmatprep.subr.bf16.mxu0 0
      %1186 = vmatpush1.bf16.msra.mxu0 0
      %1187 = vmatprep.mubr.bf16.mxu0 0
      %1188 = vmatmul.mubr.bf16.gmra.mrb[0].mxu0 %v712
      %v1189 = vpop.f32.mrb[0].mxu0
      %v1190 = vadd.f32 %v1141, %v1189
      %v1191 = vpop.f32.mrb[0].mxu0
      %v1192 = vpop.f32.mrb[0].mxu0
      %v1193 = vpop.f32.mrb[0].mxu0
      %1194 = vdwg.mxu0
      %v1195 = vpack.c.bf16 %v1060, %v1060
      %v1196 = vpack.c.bf16 %v1125, %v1125
      %v1198 = vsel %vm886, %v1195, 0
      %v1201 = vsel %vm886, %v1196, 0
      %1203 = vmatprep.subr.bf16.mxu0 0
      %1204 = vmatpush1.bf16.xpose.msra.mxu0 %v1201
      %1205 = vmatprep.subr.bf16.mxu0 0
      %1206 = vmatpush1.bf16.xpose.msra.mxu0 0
      %1207 = vmatprep.subr.bf16.mxu0 0
      %1208 = vmatpush1.bf16.xpose.msra.mxu0 0
      %1209 = vmatprep.subr.bf16.mxu0 0
      %1210 = vmatpush1.bf16.xpose.msra.mxu0 0
      %1211 = vmatprep.subr.bf16.mxu0 0
      %1212 = vmatpush1.bf16.xpose.msra.mxu0 0
      %1213 = vmatprep.subr.bf16.mxu0 0
      %1214 = vmatpush1.bf16.xpose.msra.mxu0 0
      %1215 = vmatprep.subr.bf16.mxu0 0
      %1216 = vmatpush1.bf16.xpose.msra.mxu0 0
      %1217 = vmatprep.subr.bf16.mxu0 0
      %1218 = vmatpush1.bf16.xpose.msra.mxu0 0
      %1219 = vmatprep.subr.bf16.mxu0 0
      %1220 = vmatpush1.bf16.xpose.msra.mxu0 0
      %1221 = vmatprep.subr.bf16.mxu0 0
      %1222 = vmatpush1.bf16.xpose.msra.mxu0 0
      %1223 = vmatprep.subr.bf16.mxu0 0
      %1224 = vmatpush1.bf16.xpose.msra.mxu0 0
      %1225 = vmatprep.subr.bf16.mxu0 0
      %1226 = vmatpush1.bf16.xpose.msra.mxu0 0
      %1227 = vmatprep.subr.bf16.mxu0 0
      %1228 = vmatpush1.bf16.xpose.msra.mxu0 0
      %1229 = vmatprep.subr.bf16.mxu0 0
      %1230 = vmatpush1.bf16.xpose.msra.mxu0 0
      %1231 = vmatprep.subr.bf16.mxu0 0
      %1232 = vmatpush1.bf16.xpose.msra.mxu0 0
      %1233 = vmatprep.subr.bf16.mxu0 0
      %1234 = vmatpush1.bf16.xpose.msra.mxu0 0
      %1235 = vmatprep.mubr.bf16.mxu0 0
      %1236 = vmatmul.mubr.bf16.gmra.mrb[0].mxu0 %v1198
      %v1237 = vpop.f32.mrb[0].mxu0
      %v1238 = vadd.f32 0.0, %v1237
      %v1239 = vpop.f32.mrb[0].mxu0
      %v1240 = vpop.f32.mrb[0].mxu0
      %v1241 = vpop.f32.mrb[0].mxu0
      %1242 = vdwg.mxu0
      %v1243 = vmul.f32 %v1238, 0.35355338
      %v1244 = vsel %vm938, %v1243, -1e+09
      %v1245 = vsel %vm886, %v1244, -inf
      %1246 = vmax.xlane.f32.xlu0 %v1245
      %v1247 = vpop.xlane.xlu0 %1246
      %v1248 = vsub.f32 %v1244, %v1247
      %v1249 = vmul.f32 %v1248, 1.442695
      %v1250 = vpow.pop %v1249
      %v1251 = vsel %vm886, %v1250, 0.0
      %1252 = vadd.xlane.f32.xlu0 %v1251
      %v1253 = vpop.xlane.xlu0 %1252
      %v1254 = vrcp.pop %v1253
      %v1255 = vmul.f32 %v1250, %v1254
      %v1256 = vpack.c.bf16 %v1255, %v1255
      %v1257 = vpack.c.bf16 %v1190, %v1190
      %v1259 = vsel %vm886, %v1256, 0
      %v1262 = vsel %vm956, %v1257, 0
      %1264 = vmatprep.subr.bf16.mxu0 0
      %1265 = vmatpush1.bf16.msra.mxu0 %v1262
      %1266 = vmatprep.subr.bf16.mxu0 0
      %1267 = vmatpush1.bf16.msra.mxu0 0
      %1268 = vmatprep.subr.bf16.mxu0 0
      %1269 = vmatpush1.bf16.msra.mxu0 0
      %1270 = vmatprep.subr.bf16.mxu0 0
      %1271 = vmatpush1.bf16.msra.mxu0 0
      %1272 = vmatprep.subr.bf16.mxu0 0
      %1273 = vmatpush1.bf16.msra.mxu0 0
      %1274 = vmatprep.subr.bf16.mxu0 0
      %1275 = vmatpush1.bf16.msra.mxu0 0
      %1276 = vmatprep.subr.bf16.mxu0 0
      %1277 = vmatpush1.bf16.msra.mxu0 0
      %1278 = vmatprep.subr.bf16.mxu0 0
      %1279 = vmatpush1.bf16.msra.mxu0 0
      %1280 = vmatprep.subr.bf16.mxu0 0
      %1281 = vmatpush1.bf16.msra.mxu0 0
      %1282 = vmatprep.subr.bf16.mxu0 0
      %1283 = vmatpush1.bf16.msra.mxu0 0
      %1284 = vmatprep.subr.bf16.mxu0 0
      %1285 = vmatpush1.bf16.msra.mxu0 0
      %1286 = vmatprep.subr.bf16.mxu0 0
      %1287 = vmatpush1.bf16.msra.mxu0 0
      %1288 = vmatprep.subr.bf16.mxu0 0
      %1289 = vmatpush1.bf16.msra.mxu0 0
      %1290 = vmatprep.subr.bf16.mxu0 0
      %1291 = vmatpush1.bf16.msra.mxu0 0
      %1292 = vmatprep.subr.bf16.mxu0 0
      %1293 = vmatpush1.bf16.msra.mxu0 0
      %1294 = vmatprep.subr.bf16.mxu0 0
      %1295 = vmatpush1.bf16.msra.mxu0 0
      %1296 = vmatprep.mubr.bf16.mxu0 0
      %1297 = vmatmul.mubr.bf16.gmra.mrb[0].mxu0 %v1259
      %v1298 = vpop.f32.mrb[0].mxu0
      %v1299 = vadd.f32 0.0, %v1298
      %v1300 = vpop.f32.mrb[0].mxu0
      %v1301 = vpop.f32.mrb[0].mxu0
      %v1302 = vpop.f32.mrb[0].mxu0
      %1303 = vdwg.mxu0
      %s1304 = scalar_lea.vmem %s3, 32
      %v1305 = vld [vmem:[%s1304] sm:$0xf]
      %v1306 = vld [vmem:[%s1304 + $0x4] sm:$0xf]
      %v1307 = vld [vmem:[%s1304 + $0x8] sm:$0xf]
      %v1308 = vld [vmem:[%s1304 + $0xc] sm:$0xf]
      %s1309 = scalar_lea.vmem %s4, 2
      %v1310 = vld [vmem:[%s1309] sm:$0x1]
      %v1312 = vlaneseq
      %v1313 = vshrl.u32 %v1312, 7
      %v1314 = vsub.s32 0, %v1313
      %v1315 = vrot.slane %v1310, %v1314
      %v1321 = vunpack.c.l.b16 %v1305
      %v1322 = vunpack.c.l.b16 %v1306
      %v1323 = vunpack.c.l.b16 %v1307
      %v1324 = vunpack.c.l.b16 %v1308
      %v1325 = vpack.c.b16 %v1322, %v1321
      %v1326 = vpack.c.b16 %v1324, %v1323
      %1329 = vmatprep.subr.bf16.mxu0 0
      %1330 = vmatpush1.bf16.msra.mxu0 %v1325
      %1331 = vmatprep.subr.bf16.mxu0 0
      %1332 = vmatpush1.bf16.msra.mxu0 %v1326
      %1333 = vmatprep.subr.bf16.mxu0 0
      %1334 = vmatpush1.bf16.msra.mxu0 0
      %1335 = vmatprep.subr.bf16.mxu0 0
      %1336 = vmatpush1.bf16.msra.mxu0 0
      %1337 = vmatprep.subr.bf16.mxu0 0
      %1338 = vmatpush1.bf16.msra.mxu0 0
      %1339 = vmatprep.subr.bf16.mxu0 0
      %1340 = vmatpush1.bf16.msra.mxu0 0
      %1341 = vmatprep.subr.bf16.mxu0 0
      %1342 = vmatpush1.bf16.msra.mxu0 0
      %1343 = vmatprep.subr.bf16.mxu0 0
      %1344 = vmatpush1.bf16.msra.mxu0 0
      %1345 = vmatprep.subr.bf16.mxu0 0
      %1346 = vmatpush1.bf16.msra.mxu0 0
      %1347 = vmatprep.subr.bf16.mxu0 0
      %1348 = vmatpush1.bf16.msra.mxu0 0
      %1349 = vmatprep.subr.bf16.mxu0 0
      %1350 = vmatpush1.bf16.msra.mxu0 0
      %1351 = vmatprep.subr.bf16.mxu0 0
      %1352 = vmatpush1.bf16.msra.mxu0 0
      %1353 = vmatprep.subr.bf16.mxu0 0
      %1354 = vmatpush1.bf16.msra.mxu0 0
      %1355 = vmatprep.subr.bf16.mxu0 0
      %1356 = vmatpush1.bf16.msra.mxu0 0
      %1357 = vmatprep.subr.bf16.mxu0 0
      %1358 = vmatpush1.bf16.msra.mxu0 0
      %1359 = vmatprep.subr.bf16.mxu0 0
      %1360 = vmatpush1.bf16.msra.mxu0 0
      %1361 = vmatprep.mubr.bf16.mxu0 0
      %1362 = vmatmul.mubr.bf16.gmra.mrb[0].mxu0 %v712
      %v1363 = vpop.f32.mrb[0].mxu0
      %v1364 = vadd.f32 %v1315, %v1363
      %v1365 = vpop.f32.mrb[0].mxu0
      %v1366 = vpop.f32.mrb[0].mxu0
      %v1367 = vpop.f32.mrb[0].mxu0
      %1368 = vdwg.mxu0
      %s1369 = scalar_lea.vmem %s3, 96
      %v1370 = vld [vmem:[%s1369] sm:$0xf]
      %v1371 = vld [vmem:[%s1369 + $0x4] sm:$0xf]
      %v1372 = vld [vmem:[%s1369 + $0x8] sm:$0xf]
      %v1373 = vld [vmem:[%s1369 + $0xc] sm:$0xf]
      %s1374 = scalar_lea.vmem %s4, 6
      %v1375 = vld [vmem:[%s1374] sm:$0x1]
      %v1377 = vlaneseq
      %v1378 = vshrl.u32 %v1377, 7
      %v1379 = vsub.s32 0, %v1378
      %v1380 = vrot.slane %v1375, %v1379
      %v1386 = vunpack.c.l.b16 %v1370
      %v1387 = vunpack.c.l.b16 %v1371
      %v1388 = vunpack.c.l.b16 %v1372
      %v1389 = vunpack.c.l.b16 %v1373
      %v1390 = vpack.c.b16 %v1387, %v1386
      %v1391 = vpack.c.b16 %v1389, %v1388
      %1394 = vmatprep.subr.bf16.mxu0 0
      %1395 = vmatpush1.bf16.msra.mxu0 %v1390
      %1396 = vmatprep.subr.bf16.mxu0 0
      %1397 = vmatpush1.bf16.msra.mxu0 %v1391
      %1398 = vmatprep.subr.bf16.mxu0 0
      %1399 = vmatpush1.bf16.msra.mxu0 0
      %1400 = vmatprep.subr.bf16.mxu0 0
      %1401 = vmatpush1.bf16.msra.mxu0 0
      %1402 = vmatprep.subr.bf16.mxu0 0
      %1403 = vmatpush1.bf16.msra.mxu0 0
      %1404 = vmatprep.subr.bf16.mxu0 0
      %1405 = vmatpush1.bf16.msra.mxu0 0
      %1406 = vmatprep.subr.bf16.mxu0 0
      %1407 = vmatpush1.bf16.msra.mxu0 0
      %1408 = vmatprep.subr.bf16.mxu0 0
      %1409 = vmatpush1.bf16.msra.mxu0 0
      %1410 = vmatprep.subr.bf16.mxu0 0
      %1411 = vmatpush1.bf16.msra.mxu0 0
      %1412 = vmatprep.subr.bf16.mxu0 0
      %1413 = vmatpush1.bf16.msra.mxu0 0
      %1414 = vmatprep.subr.bf16.mxu0 0
      %1415 = vmatpush1.bf16.msra.mxu0 0
      %1416 = vmatprep.subr.bf16.mxu0 0
      %1417 = vmatpush1.bf16.msra.mxu0 0
      %1418 = vmatprep.subr.bf16.mxu0 0
      %1419 = vmatpush1.bf16.msra.mxu0 0
      %1420 = vmatprep.subr.bf16.mxu0 0
      %1421 = vmatpush1.bf16.msra.mxu0 0
      %1422 = vmatprep.subr.bf16.mxu0 0
      %1423 = vmatpush1.bf16.msra.mxu0 0
      %1424 = vmatprep.subr.bf16.mxu0 0
      %1425 = vmatpush1.bf16.msra.mxu0 0
      %1426 = vmatprep.mubr.bf16.mxu0 0
      %1427 = vmatmul.mubr.bf16.gmra.mrb[0].mxu0 %v712
      %v1428 = vpop.f32.mrb[0].mxu0
      %v1429 = vadd.f32 %v1380, %v1428
      %v1430 = vpop.f32.mrb[0].mxu0
      %v1431 = vpop.f32.mrb[0].mxu0
      %v1432 = vpop.f32.mrb[0].mxu0
      %1433 = vdwg.mxu0
      %s1434 = scalar_lea.vmem %s3, 160
      %v1435 = vld [vmem:[%s1434] sm:$0xf]
      %v1436 = vld [vmem:[%s1434 + $0x4] sm:$0xf]
      %v1437 = vld [vmem:[%s1434 + $0x8] sm:$0xf]
      %v1438 = vld [vmem:[%s1434 + $0xc] sm:$0xf]
      %s1439 = scalar_lea.vmem %s4, 10
      %v1440 = vld [vmem:[%s1439] sm:$0x1]
      %v1442 = vlaneseq
      %v1443 = vshrl.u32 %v1442, 7
      %v1444 = vsub.s32 0, %v1443
      %v1445 = vrot.slane %v1440, %v1444
      %v1451 = vunpack.c.l.b16 %v1435
      %v1452 = vunpack.c.l.b16 %v1436
      %v1453 = vunpack.c.l.b16 %v1437
      %v1454 = vunpack.c.l.b16 %v1438
      %v1455 = vpack.c.b16 %v1452, %v1451
      %v1456 = vpack.c.b16 %v1454, %v1453
      %1459 = vmatprep.subr.bf16.mxu0 0
      %1460 = vmatpush1.bf16.msra.mxu0 %v1455
      %1461 = vmatprep.subr.bf16.mxu0 0
      %1462 = vmatpush1.bf16.msra.mxu0 %v1456
      %1463 = vmatprep.subr.bf16.mxu0 0
      %1464 = vmatpush1.bf16.msra.mxu0 0
      %1465 = vmatprep.subr.bf16.mxu0 0
      %1466 = vmatpush1.bf16.msra.mxu0 0
      %1467 = vmatprep.subr.bf16.mxu0 0
      %1468 = vmatpush1.bf16.msra.mxu0 0
      %1469 = vmatprep.subr.bf16.mxu0 0
      %1470 = vmatpush1.bf16.msra.mxu0 0
      %1471 = vmatprep.subr.bf16.mxu0 0
      %1472 = vmatpush1.bf16.msra.mxu0 0
      %1473 = vmatprep.subr.bf16.mxu0 0
      %1474 = vmatpush1.bf16.msra.mxu0 0
      %1475 = vmatprep.subr.bf16.mxu0 0
      %1476 = vmatpush1.bf16.msra.mxu0 0
      %1477 = vmatprep.subr.bf16.mxu0 0
      %1478 = vmatpush1.bf16.msra.mxu0 0
      %1479 = vmatprep.subr.bf16.mxu0 0
      %1480 = vmatpush1.bf16.msra.mxu0 0
      %1481 = vmatprep.subr.bf16.mxu0 0
      %1482 = vmatpush1.bf16.msra.mxu0 0
      %1483 = vmatprep.subr.bf16.mxu0 0
      %1484 = vmatpush1.bf16.msra.mxu0 0
      %1485 = vmatprep.subr.bf16.mxu0 0
      %1486 = vmatpush1.bf16.msra.mxu0 0
      %1487 = vmatprep.subr.bf16.mxu0 0
      %1488 = vmatpush1.bf16.msra.mxu0 0
      %1489 = vmatprep.subr.bf16.mxu0 0
      %1490 = vmatpush1.bf16.msra.mxu0 0
      %1491 = vmatprep.mubr.bf16.mxu0 0
      %1492 = vmatmul.mubr.bf16.gmra.mrb[0].mxu0 %v712
      %v1493 = vpop.f32.mrb[0].mxu0
      %v1494 = vadd.f32 %v1445, %v1493
      %v1495 = vpop.f32.mrb[0].mxu0
      %v1496 = vpop.f32.mrb[0].mxu0
      %v1497 = vpop.f32.mrb[0].mxu0
      %1498 = vdwg.mxu0
      %v1499 = vpack.c.bf16 %v1364, %v1364
      %v1500 = vpack.c.bf16 %v1429, %v1429
      %v1502 = vsel %vm886, %v1499, 0
      %v1505 = vsel %vm886, %v1500, 0
      %1507 = vmatprep.subr.bf16.mxu0 0
      %1508 = vmatpush1.bf16.xpose.msra.mxu0 %v1505
      %1509 = vmatprep.subr.bf16.mxu0 0
      %1510 = vmatpush1.bf16.xpose.msra.mxu0 0
      %1511 = vmatprep.subr.bf16.mxu0 0
      %1512 = vmatpush1.bf16.xpose.msra.mxu0 0
      %1513 = vmatprep.subr.bf16.mxu0 0
      %1514 = vmatpush1.bf16.xpose.msra.mxu0 0
      %1515 = vmatprep.subr.bf16.mxu0 0
      %1516 = vmatpush1.bf16.xpose.msra.mxu0 0
      %1517 = vmatprep.subr.bf16.mxu0 0
      %1518 = vmatpush1.bf16.xpose.msra.mxu0 0
      %1519 = vmatprep.subr.bf16.mxu0 0
      %1520 = vmatpush1.bf16.xpose.msra.mxu0 0
      %1521 = vmatprep.subr.bf16.mxu0 0
      %1522 = vmatpush1.bf16.xpose.msra.mxu0 0
      %1523 = vmatprep.subr.bf16.mxu0 0
      %1524 = vmatpush1.bf16.xpose.msra.mxu0 0
      %1525 = vmatprep.subr.bf16.mxu0 0
      %1526 = vmatpush1.bf16.xpose.msra.mxu0 0
      %1527 = vmatprep.subr.bf16.mxu0 0
      %1528 = vmatpush1.bf16.xpose.msra.mxu0 0
      %1529 = vmatprep.subr.bf16.mxu0 0
      %1530 = vmatpush1.bf16.xpose.msra.mxu0 0
      %1531 = vmatprep.subr.bf16.mxu0 0
      %1532 = vmatpush1.bf16.xpose.msra.mxu0 0
      %1533 = vmatprep.subr.bf16.mxu0 0
      %1534 = vmatpush1.bf16.xpose.msra.mxu0 0
      %1535 = vmatprep.subr.bf16.mxu0 0
      %1536 = vmatpush1.bf16.xpose.msra.mxu0 0
      %1537 = vmatprep.subr.bf16.mxu0 0
      %1538 = vmatpush1.bf16.xpose.msra.mxu0 0
      %1539 = vmatprep.mubr.bf16.mxu0 0
      %1540 = vmatmul.mubr.bf16.gmra.mrb[0].mxu0 %v1502
      %v1541 = vpop.f32.mrb[0].mxu0
      %v1542 = vadd.f32 0.0, %v1541
      %v1543 = vpop.f32.mrb[0].mxu0
      %v1544 = vpop.f32.mrb[0].mxu0
      %v1545 = vpop.f32.mrb[0].mxu0
      %1546 = vdwg.mxu0
      %v1547 = vmul.f32 %v1542, 0.35355338
      %v1548 = vsel %vm938, %v1547, -1e+09
      %v1549 = vsel %vm886, %v1548, -inf
      %1550 = vmax.xlane.f32.xlu0 %v1549
      %v1551 = vpop.xlane.xlu0 %1550
      %v1552 = vsub.f32 %v1548, %v1551
      %v1553 = vmul.f32 %v1552, 1.442695
      %v1554 = vpow.pop %v1553
      %v1555 = vsel %vm886, %v1554, 0.0
      %1556 = vadd.xlane.f32.xlu0 %v1555
      %v1557 = vpop.xlane.xlu0 %1556
      %v1558 = vrcp.pop %v1557
      %v1559 = vmul.f32 %v1554, %v1558
      %v1560 = vpack.c.bf16 %v1559, %v1559
      %v1561 = vpack.c.bf16 %v1494, %v1494
      %v1563 = vsel %vm886, %v1560, 0
      %v1566 = vsel %vm956, %v1561, 0
      %1568 = vmatprep.subr.bf16.mxu0 0
      %1569 = vmatpush1.bf16.msra.mxu0 %v1566
      %1570 = vmatprep.subr.bf16.mxu0 0
      %1571 = vmatpush1.bf16.msra.mxu0 0
      %1572 = vmatprep.subr.bf16.mxu0 0
      %1573 = vmatpush1.bf16.msra.mxu0 0
      %1574 = vmatprep.subr.bf16.mxu0 0
      %1575 = vmatpush1.bf16.msra.mxu0 0
      %1576 = vmatprep.subr.bf16.mxu0 0
      %1577 = vmatpush1.bf16.msra.mxu0 0
      %1578 = vmatprep.subr.bf16.mxu0 0
      %1579 = vmatpush1.bf16.msra.mxu0 0
      %1580 = vmatprep.subr.bf16.mxu0 0
      %1581 = vmatpush1.bf16.msra.mxu0 0
      %1582 = vmatprep.subr.bf16.mxu0 0
      %1583 = vmatpush1.bf16.msra.mxu0 0
      %1584 = vmatprep.subr.bf16.mxu0 0
      %1585 = vmatpush1.bf16.msra.mxu0 0
      %1586 = vmatprep.subr.bf16.mxu0 0
      %1587 = vmatpush1.bf16.msra.mxu0 0
      %1588 = vmatprep.subr.bf16.mxu0 0
      %1589 = vmatpush1.bf16.msra.mxu0 0
      %1590 = vmatprep.subr.bf16.mxu0 0
      %1591 = vmatpush1.bf16.msra.mxu0 0
      %1592 = vmatprep.subr.bf16.mxu0 0
      %1593 = vmatpush1.bf16.msra.mxu0 0
      %1594 = vmatprep.subr.bf16.mxu0 0
      %1595 = vmatpush1.bf16.msra.mxu0 0
      %1596 = vmatprep.subr.bf16.mxu0 0
      %1597 = vmatpush1.bf16.msra.mxu0 0
      %1598 = vmatprep.subr.bf16.mxu0 0
      %1599 = vmatpush1.bf16.msra.mxu0 0
      %1600 = vmatprep.mubr.bf16.mxu0 0
      %1601 = vmatmul.mubr.bf16.gmra.mrb[0].mxu0 %v1563
      %v1602 = vpop.f32.mrb[0].mxu0
      %v1603 = vadd.f32 0.0, %v1602
      %v1604 = vpop.f32.mrb[0].mxu0
      %v1605 = vpop.f32.mrb[0].mxu0
      %v1606 = vpop.f32.mrb[0].mxu0
      %1607 = vdwg.mxu0
      %s1608 = scalar_lea.vmem %s3, 48
      %v1609 = vld [vmem:[%s1608] sm:$0xf]
      %v1610 = vld [vmem:[%s1608 + $0x4] sm:$0xf]
      %v1611 = vld [vmem:[%s1608 + $0x8] sm:$0xf]
      %v1612 = vld [vmem:[%s1608 + $0xc] sm:$0xf]
      %s1613 = scalar_lea.vmem %s4, 3
      %v1614 = vld [vmem:[%s1613] sm:$0x1]
      %v1616 = vlaneseq
      %v1617 = vshrl.u32 %v1616, 7
      %v1618 = vsub.s32 0, %v1617
      %v1619 = vrot.slane %v1614, %v1618
      %v1625 = vunpack.c.l.b16 %v1609
      %v1626 = vunpack.c.l.b16 %v1610
      %v1627 = vunpack.c.l.b16 %v1611
      %v1628 = vunpack.c.l.b16 %v1612
      %v1629 = vpack.c.b16 %v1626, %v1625
      %v1630 = vpack.c.b16 %v1628, %v1627
      %1633 = vmatprep.subr.bf16.mxu0 0
      %1634 = vmatpush1.bf16.msra.mxu0 %v1629
      %1635 = vmatprep.subr.bf16.mxu0 0
      %1636 = vmatpush1.bf16.msra.mxu0 %v1630
      %1637 = vmatprep.subr.bf16.mxu0 0
      %1638 = vmatpush1.bf16.msra.mxu0 0
      %1639 = vmatprep.subr.bf16.mxu0 0
      %1640 = vmatpush1.bf16.msra.mxu0 0
      %1641 = vmatprep.subr.bf16.mxu0 0
      %1642 = vmatpush1.bf16.msra.mxu0 0
      %1643 = vmatprep.subr.bf16.mxu0 0
      %1644 = vmatpush1.bf16.msra.mxu0 0
      %1645 = vmatprep.subr.bf16.mxu0 0
      %1646 = vmatpush1.bf16.msra.mxu0 0
      %1647 = vmatprep.subr.bf16.mxu0 0
      %1648 = vmatpush1.bf16.msra.mxu0 0
      %1649 = vmatprep.subr.bf16.mxu0 0
      %1650 = vmatpush1.bf16.msra.mxu0 0
      %1651 = vmatprep.subr.bf16.mxu0 0
      %1652 = vmatpush1.bf16.msra.mxu0 0
      %1653 = vmatprep.subr.bf16.mxu0 0
      %1654 = vmatpush1.bf16.msra.mxu0 0
      %1655 = vmatprep.subr.bf16.mxu0 0
      %1656 = vmatpush1.bf16.msra.mxu0 0
      %1657 = vmatprep.subr.bf16.mxu0 0
      %1658 = vmatpush1.bf16.msra.mxu0 0
      %1659 = vmatprep.subr.bf16.mxu0 0
      %1660 = vmatpush1.bf16.msra.mxu0 0
      %1661 = vmatprep.subr.bf16.mxu0 0
      %1662 = vmatpush1.bf16.msra.mxu0 0
      %1663 = vmatprep.subr.bf16.mxu0 0
      %1664 = vmatpush1.bf16.msra.mxu0 0
      %1665 = vmatprep.mubr.bf16.mxu0 0
      %1666 = vmatmul.mubr.bf16.gmra.mrb[0].mxu0 %v712
      %v1667 = vpop.f32.mrb[0].mxu0
      %v1668 = vadd.f32 %v1619, %v1667
      %v1669 = vpop.f32.mrb[0].mxu0
      %v1670 = vpop.f32.mrb[0].mxu0
      %v1671 = vpop.f32.mrb[0].mxu0
      %1672 = vdwg.mxu0
      %s1673 = scalar_lea.vmem %s3, 112
      %v1674 = vld [vmem:[%s1673] sm:$0xf]
      %v1675 = vld [vmem:[%s1673 + $0x4] sm:$0xf]
      %v1676 = vld [vmem:[%s1673 + $0x8] sm:$0xf]
      %v1677 = vld [vmem:[%s1673 + $0xc] sm:$0xf]
      %s1678 = scalar_lea.vmem %s4, 7
      %v1679 = vld [vmem:[%s1678] sm:$0x1]
      %v1681 = vlaneseq
      %v1682 = vshrl.u32 %v1681, 7
      %v1683 = vsub.s32 0, %v1682
      %v1684 = vrot.slane %v1679, %v1683
      %v1690 = vunpack.c.l.b16 %v1674
      %v1691 = vunpack.c.l.b16 %v1675
      %v1692 = vunpack.c.l.b16 %v1676
      %v1693 = vunpack.c.l.b16 %v1677
      %v1694 = vpack.c.b16 %v1691, %v1690
      %v1695 = vpack.c.b16 %v1693, %v1692
      %1698 = vmatprep.subr.bf16.mxu0 0
      %1699 = vmatpush1.bf16.msra.mxu0 %v1694
      %1700 = vmatprep.subr.bf16.mxu0 0
      %1701 = vmatpush1.bf16.msra.mxu0 %v1695
      %1702 = vmatprep.subr.bf16.mxu0 0
      %1703 = vmatpush1.bf16.msra.mxu0 0
      %1704 = vmatprep.subr.bf16.mxu0 0
      %1705 = vmatpush1.bf16.msra.mxu0 0
      %1706 = vmatprep.subr.bf16.mxu0 0
      %1707 = vmatpush1.bf16.msra.mxu0 0
      %1708 = vmatprep.subr.bf16.mxu0 0
      %1709 = vmatpush1.bf16.msra.mxu0 0
      %1710 = vmatprep.subr.bf16.mxu0 0
      %1711 = vmatpush1.bf16.msra.mxu0 0
      %1712 = vmatprep.subr.bf16.mxu0 0
      %1713 = vmatpush1.bf16.msra.mxu0 0
      %1714 = vmatprep.subr.bf16.mxu0 0
      %1715 = vmatpush1.bf16.msra.mxu0 0
      %1716 = vmatprep.subr.bf16.mxu0 0
      %1717 = vmatpush1.bf16.msra.mxu0 0
      %1718 = vmatprep.subr.bf16.mxu0 0
      %1719 = vmatpush1.bf16.msra.mxu0 0
      %1720 = vmatprep.subr.bf16.mxu0 0
      %1721 = vmatpush1.bf16.msra.mxu0 0
      %1722 = vmatprep.subr.bf16.mxu0 0
      %1723 = vmatpush1.bf16.msra.mxu0 0
      %1724 = vmatprep.subr.bf16.mxu0 0
      %1725 = vmatpush1.bf16.msra.mxu0 0
      %1726 = vmatprep.subr.bf16.mxu0 0
      %1727 = vmatpush1.bf16.msra.mxu0 0
      %1728 = vmatprep.subr.bf16.mxu0 0
      %1729 = vmatpush1.bf16.msra.mxu0 0
      %1730 = vmatprep.mubr.bf16.mxu0 0
      %1731 = vmatmul.mubr.bf16.gmra.mrb[0].mxu0 %v712
      %v1732 = vpop.f32.mrb[0].mxu0
      %v1733 = vadd.f32 %v1684, %v1732
      %v1734 = vpop.f32.mrb[0].mxu0
      %v1735 = vpop.f32.mrb[0].mxu0
      %v1736 = vpop.f32.mrb[0].mxu0
      %1737 = vdwg.mxu0
      %s1738 = scalar_lea.vmem %s3, 176
      %v1739 = vld [vmem:[%s1738] sm:$0xf]
      %v1740 = vld [vmem:[%s1738 + $0x4] sm:$0xf]
      %v1741 = vld [vmem:[%s1738 + $0x8] sm:$0xf]
      %v1742 = vld [vmem:[%s1738 + $0xc] sm:$0xf]
      %s1743 = scalar_lea.vmem %s4, 11
      %v1744 = vld [vmem:[%s1743] sm:$0x1]
      %v1746 = vlaneseq
      %v1747 = vshrl.u32 %v1746, 7
      %v1748 = vsub.s32 0, %v1747
      %v1749 = vrot.slane %v1744, %v1748
      %v1755 = vunpack.c.l.b16 %v1739
      %v1756 = vunpack.c.l.b16 %v1740
      %v1757 = vunpack.c.l.b16 %v1741
      %v1758 = vunpack.c.l.b16 %v1742
      %v1759 = vpack.c.b16 %v1756, %v1755
      %v1760 = vpack.c.b16 %v1758, %v1757
      %1763 = vmatprep.subr.bf16.mxu0 0
      %1764 = vmatpush1.bf16.msra.mxu0 %v1759
      %1765 = vmatprep.subr.bf16.mxu0 0
      %1766 = vmatpush1.bf16.msra.mxu0 %v1760
      %1767 = vmatprep.subr.bf16.mxu0 0
      %1768 = vmatpush1.bf16.msra.mxu0 0
      %1769 = vmatprep.subr.bf16.mxu0 0
      %1770 = vmatpush1.bf16.msra.mxu0 0
      %1771 = vmatprep.subr.bf16.mxu0 0
      %1772 = vmatpush1.bf16.msra.mxu0 0
      %1773 = vmatprep.subr.bf16.mxu0 0
      %1774 = vmatpush1.bf16.msra.mxu0 0
      %1775 = vmatprep.subr.bf16.mxu0 0
      %1776 = vmatpush1.bf16.msra.mxu0 0
      %1777 = vmatprep.subr.bf16.mxu0 0
      %1778 = vmatpush1.bf16.msra.mxu0 0
      %1779 = vmatprep.subr.bf16.mxu0 0
      %1780 = vmatpush1.bf16.msra.mxu0 0
      %1781 = vmatprep.subr.bf16.mxu0 0
      %1782 = vmatpush1.bf16.msra.mxu0 0
      %1783 = vmatprep.subr.bf16.mxu0 0
      %1784 = vmatpush1.bf16.msra.mxu0 0
      %1785 = vmatprep.subr.bf16.mxu0 0
      %1786 = vmatpush1.bf16.msra.mxu0 0
      %1787 = vmatprep.subr.bf16.mxu0 0
      %1788 = vmatpush1.bf16.msra.mxu0 0
      %1789 = vmatprep.subr.bf16.mxu0 0
      %1790 = vmatpush1.bf16.msra.mxu0 0
      %1791 = vmatprep.subr.bf16.mxu0 0
      %1792 = vmatpush1.bf16.msra.mxu0 0
      %1793 = vmatprep.subr.bf16.mxu0 0
      %1794 = vmatpush1.bf16.msra.mxu0 0
      %1795 = vmatprep.mubr.bf16.mxu0 0
      %1796 = vmatmul.mubr.bf16.gmra.mrb[0].mxu0 %v712
      %v1797 = vpop.f32.mrb[0].mxu0
      %v1798 = vadd.f32 %v1749, %v1797
      %v1799 = vpop.f32.mrb[0].mxu0
      %v1800 = vpop.f32.mrb[0].mxu0
      %v1801 = vpop.f32.mrb[0].mxu0
      %1802 = vdwg.mxu0
      %v1803 = vpack.c.bf16 %v1668, %v1668
      %v1804 = vpack.c.bf16 %v1733, %v1733
      %v1806 = vsel %vm886, %v1803, 0
      %v1809 = vsel %vm886, %v1804, 0
      %1811 = vmatprep.subr.bf16.mxu0 0
      %1812 = vmatpush1.bf16.xpose.msra.mxu0 %v1809
      %1813 = vmatprep.subr.bf16.mxu0 0
      %1814 = vmatpush1.bf16.xpose.msra.mxu0 0
      %1815 = vmatprep.subr.bf16.mxu0 0
      %1816 = vmatpush1.bf16.xpose.msra.mxu0 0
      %1817 = vmatprep.subr.bf16.mxu0 0
      %1818 = vmatpush1.bf16.xpose.msra.mxu0 0
      %1819 = vmatprep.subr.bf16.mxu0 0
      %1820 = vmatpush1.bf16.xpose.msra.mxu0 0
      %1821 = vmatprep.subr.bf16.mxu0 0
      %1822 = vmatpush1.bf16.xpose.msra.mxu0 0
      %1823 = vmatprep.subr.bf16.mxu0 0
      %1824 = vmatpush1.bf16.xpose.msra.mxu0 0
      %1825 = vmatprep.subr.bf16.mxu0 0
      %1826 = vmatpush1.bf16.xpose.msra.mxu0 0
      %1827 = vmatprep.subr.bf16.mxu0 0
      %1828 = vmatpush1.bf16.xpose.msra.mxu0 0
      %1829 = vmatprep.subr.bf16.mxu0 0
      %1830 = vmatpush1.bf16.xpose.msra.mxu0 0
      %1831 = vmatprep.subr.bf16.mxu0 0
      %1832 = vmatpush1.bf16.xpose.msra.mxu0 0
      %1833 = vmatprep.subr.bf16.mxu0 0
      %1834 = vmatpush1.bf16.xpose.msra.mxu0 0
      %1835 = vmatprep.subr.bf16.mxu0 0
      %1836 = vmatpush1.bf16.xpose.msra.mxu0 0
      %1837 = vmatprep.subr.bf16.mxu0 0
      %1838 = vmatpush1.bf16.xpose.msra.mxu0 0
      %1839 = vmatprep.subr.bf16.mxu0 0
      %1840 = vmatpush1.bf16.xpose.msra.mxu0 0
      %1841 = vmatprep.subr.bf16.mxu0 0
      %1842 = vmatpush1.bf16.xpose.msra.mxu0 0
      %1843 = vmatprep.mubr.bf16.mxu0 0
      %1844 = vmatmul.mubr.bf16.gmra.mrb[0].mxu0 %v1806
      %v1845 = vpop.f32.mrb[0].mxu0
      %v1846 = vadd.f32 0.0, %v1845
      %v1847 = vpop.f32.mrb[0].mxu0
      %v1848 = vpop.f32.mrb[0].mxu0
      %v1849 = vpop.f32.mrb[0].mxu0
      %1850 = vdwg.mxu0
      %v1851 = vmul.f32 %v1846, 0.35355338
      %v1852 = vsel %vm938, %v1851, -1e+09
      %v1853 = vsel %vm886, %v1852, -inf
      %1854 = vmax.xlane.f32.xlu0 %v1853
      %v1855 = vpop.xlane.xlu0 %1854
      %v1856 = vsub.f32 %v1852, %v1855
      %v1857 = vmul.f32 %v1856, 1.442695
      %v1858 = vpow.pop %v1857
      %v1859 = vsel %vm886, %v1858, 0.0
      %1860 = vadd.xlane.f32.xlu0 %v1859
      %v1861 = vpop.xlane.xlu0 %1860
      %v1862 = vrcp.pop %v1861
      %v1863 = vmul.f32 %v1858, %v1862
      %v1864 = vpack.c.bf16 %v1863, %v1863
      %v1865 = vpack.c.bf16 %v1798, %v1798
      %v1867 = vsel %vm886, %v1864, 0
      %v1870 = vsel %vm956, %v1865, 0
      %1872 = vmatprep.subr.bf16.mxu0 0
      %1873 = vmatpush1.bf16.msra.mxu0 %v1870
      %1874 = vmatprep.subr.bf16.mxu0 0
      %1875 = vmatpush1.bf16.msra.mxu0 0
      %1876 = vmatprep.subr.bf16.mxu0 0
      %1877 = vmatpush1.bf16.msra.mxu0 0
      %1878 = vmatprep.subr.bf16.mxu0 0
      %1879 = vmatpush1.bf16.msra.mxu0 0
      %1880 = vmatprep.subr.bf16.mxu0 0
      %1881 = vmatpush1.bf16.msra.mxu0 0
      %1882 = vmatprep.subr.bf16.mxu0 0
      %1883 = vmatpush1.bf16.msra.mxu0 0
      %1884 = vmatprep.subr.bf16.mxu0 0
      %1885 = vmatpush1.bf16.msra.mxu0 0
      %1886 = vmatprep.subr.bf16.mxu0 0
      %1887 = vmatpush1.bf16.msra.mxu0 0
      %1888 = vmatprep.subr.bf16.mxu0 0
      %1889 = vmatpush1.bf16.msra.mxu0 0
      %1890 = vmatprep.subr.bf16.mxu0 0
      %1891 = vmatpush1.bf16.msra.mxu0 0
      %1892 = vmatprep.subr.bf16.mxu0 0
      %1893 = vmatpush1.bf16.msra.mxu0 0
      %1894 = vmatprep.subr.bf16.mxu0 0
      %1895 = vmatpush1.bf16.msra.mxu0 0
      %1896 = vmatprep.subr.bf16.mxu0 0
      %1897 = vmatpush1.bf16.msra.mxu0 0
      %1898 = vmatprep.subr.bf16.mxu0 0
      %1899 = vmatpush1.bf16.msra.mxu0 0
      %1900 = vmatprep.subr.bf16.mxu0 0
      %1901 = vmatpush1.bf16.msra.mxu0 0
      %1902 = vmatprep.subr.bf16.mxu0 0
      %1903 = vmatpush1.bf16.msra.mxu0 0
      %1904 = vmatprep.mubr.bf16.mxu0 0
      %1905 = vmatmul.mubr.bf16.gmra.mrb[0].mxu0 %v1867
      %v1906 = vpop.f32.mrb[0].mxu0
      %v1907 = vadd.f32 0.0, %v1906
      %v1908 = vpop.f32.mrb[0].mxu0
      %v1909 = vpop.f32.mrb[0].mxu0
      %v1910 = vpop.f32.mrb[0].mxu0
      %1911 = vdwg.mxu0
      %1913 = vrot.lane.b32.xlu0 %v1299, 8
      %v1914 = vpop.permute.xlu0 %1913
      %1917 = vrot.lane.b32.xlu0 %v1603, 16
      %v1918 = vpop.permute.xlu0 %1917
      %1921 = vrot.lane.b32.xlu0 %v1907, 24
      %v1922 = vpop.permute.xlu0 %1921
      %v1924 = vsel %vm886, %v995, %v1914
      %vm1925 = vcmask 130048
      %v1926 = vsel %vm1925, %v1924, %v1918
      %vm1927 = vcmask 195584
      %v1928 = vsel %vm1927, %v1926, %v1922
      %v1929 = vpack.c.bf16 %v1928, %v1928
      %v1930 = vld [vmem:[%s5] sm:$0xf]
      %v1931 = vld [vmem:[%s5 + $0x4] sm:$0xf]
      %v1932 = vld [vmem:[%s5 + $0x8] sm:$0xf]
      %v1933 = vld [vmem:[%s5 + $0xc] sm:$0xf]
      %v1934 = vld [vmem:[%s6] sm:$0x1]
      %v1936 = vlaneseq
      %v1937 = vshrl.u32 %v1936, 7
      %v1938 = vsub.s32 0, %v1937
      %v1939 = vrot.slane %v1934, %v1938
      %v1945 = vunpack.c.l.b16 %v1930
      %v1946 = vunpack.c.l.b16 %v1931
      %v1947 = vunpack.c.l.b16 %v1932
      %v1948 = vunpack.c.l.b16 %v1933
      %v1949 = vpack.c.b16 %v1946, %v1945
      %v1950 = vpack.c.b16 %v1948, %v1947
      %v1954 = vsel %vm710, %v1929, 0
      %1956 = vmatprep.subr.bf16.mxu0 0
      %1957 = vmatpush1.bf16.msra.mxu0 %v1949
      %1958 = vmatprep.subr.bf16.mxu0 0
      %1959 = vmatpush1.bf16.msra.mxu0 %v1950
      %1960 = vmatprep.subr.bf16.mxu0 0
      %1961 = vmatpush1.bf16.msra.mxu0 0
      %1962 = vmatprep.subr.bf16.mxu0 0
      %1963 = vmatpush1.bf16.msra.mxu0 0
      %1964 = vmatprep.subr.bf16.mxu0 0
      %1965 = vmatpush1.bf16.msra.mxu0 0
      %1966 = vmatprep.subr.bf16.mxu0 0
      %1967 = vmatpush1.bf16.msra.mxu0 0
      %1968 = vmatprep.subr.bf16.mxu0 0
      %1969 = vmatpush1.bf16.msra.mxu0 0
      %1970 = vmatprep.subr.bf16.mxu0 0
      %1971 = vmatpush1.bf16.msra.mxu0 0
      %1972 = vmatprep.subr.bf16.mxu0 0
      %1973 = vmatpush1.bf16.msra.mxu0 0
      %1974 = vmatprep.subr.bf16.mxu0 0
      %1975 = vmatpush1.bf16.msra.mxu0 0
      %1976 = vmatprep.subr.bf16.mxu0 0
      %1977 = vmatpush1.bf16.msra.mxu0 0
      %1978 = vmatprep.subr.bf16.mxu0 0
      %1979 = vmatpush1.bf16.msra.mxu0 0
      %1980 = vmatprep.subr.bf16.mxu0 0
      %1981 = vmatpush1.bf16.msra.mxu0 0
      %1982 = vmatprep.subr.bf16.mxu0 0
      %1983 = vmatpush1.bf16.msra.mxu0 0
      %1984 = vmatprep.subr.bf16.mxu0 0
      %1985 = vmatpush1.bf16.msra.mxu0 0
      %1986 = vmatprep.subr.bf16.mxu0 0
      %1987 = vmatpush1.bf16.msra.mxu0 0
      %1988 = vmatprep.mubr.bf16.mxu0 0
      %1989 = vmatmul.mubr.bf16.gmra.mrb[0].mxu0 %v1954
      %v1990 = vpop.f32.mrb[0].mxu0
      %v1991 = vadd.f32 %v1939, %v1990
      %v1992 = vpop.f32.mrb[0].mxu0
      %v1993 = vpop.f32.mrb[0].mxu0
      %v1994 = vpop.f32.mrb[0].mxu0
      %1995 = vdwg.mxu0
      %v1996 = vadd.f32 %v684, %v1991
      %v1997 = vsel %vm710, %v1996, 0.0
      %1998 = vadd.xlane.f32.xlu0 %v1997
      %v1999 = vpop.xlane.xlu0 %1998
      %v2000 = vrcp.pop 32.0
      %v2001 = vmul.f32 %v1999, %v2000
      %v2002 = vsub.f32 %v1996, %v2001
      %v2003 = vmul.f32 %v2002, %v2002
      %v2004 = vsel %vm710, %v2003, 0.0
      %2005 = vadd.xlane.f32.xlu0 %v2004
      %v2006 = vpop.xlane.xlu0 %2005
      %v2007 = vmul.f32 %v2006, %v2000
      %v2008 = vadd.f32 %v2007, 1e-05
      %v2009 = vrsqrt.pop %v2008
      %v2010 = vmul.f32 %v2002, %v2009
      %v2011 = vld [vmem:[%s7] sm:$0x1]
      %v2013 = vlaneseq
      %v2014 = vshrl.u32 %v2013, 7
      %v2015 = vsub.s32 0, %v2014
      %v2016 = vrot.slane %v2011, %v2015
      %v2018 = vmul.f32 %v2010, %v2016
      %v2019 = vld [vmem:[%s8] sm:$0x1]
      %v2021 = vlaneseq
      %v2022 = vshrl.u32 %v2021, 7
      %v2023 = vsub.s32 0, %v2022
      %v2024 = vrot.slane %v2019, %v2023
      %v2026 = vadd.f32 %v2018, %v2024
      %v2027 = vld [vmem:[%s678] sm:$0x1]
      %v2028 = vpack.c.bf16 %v2026, %v2026
      %v2029 = vpack.c.bf16 %v685, %v685
      %v2030 = vld [vmem:[%s9] sm:$0xf]
      %v2031 = vld [vmem:[%s9 + $0x4] sm:$0xf]
      %v2032 = vld [vmem:[%s9 + $0x8] sm:$0xf]
      %v2033 = vld [vmem:[%s9 + $0xc] sm:$0xf]
      %v2034 = vld [vmem:[%s10] sm:$0x1]
      %v2036 = vlaneseq
      %v2037 = vshrl.u32 %v2036, 7
      %v2038 = vsub.s32 0, %v2037
      %v2039 = vrot.slane %v2034, %v2038
      %v2045 = vunpack.c.l.b16 %v2030
      %v2046 = vunpack.c.l.b16 %v2031
      %v2047 = vunpack.c.l.b16 %v2032
      %v2048 = vunpack.c.l.b16 %v2033
      %v2049 = vpack.c.b16 %v2046, %v2045
      %v2050 = vpack.c.b16 %v2048, %v2047
      %v2054 = vsel %vm710, %v2028, 0
      %2056 = vmatprep.subr.bf16.mxu0 0
      %2057 = vmatpush1.bf16.msra.mxu0 %v2049
      %2058 = vmatprep.subr.bf16.mxu0 0
      %2059 = vmatpush1.bf16.msra.mxu0 %v2050
      %2060 = vmatprep.subr.bf16.mxu0 0
      %2061 = vmatpush1.bf16.msra.mxu0 0
      %2062 = vmatprep.subr.bf16.mxu0 0
      %2063 = vmatpush1.bf16.msra.mxu0 0
      %2064 = vmatprep.subr.bf16.mxu0 0
      %2065 = vmatpush1.bf16.msra.mxu0 0
      %2066 = vmatprep.subr.bf16.mxu0 0
      %2067 = vmatpush1.bf16.msra.mxu0 0
      %2068 = vmatprep.subr.bf16.mxu0 0
      %2069 = vmatpush1.bf16.msra.mxu0 0
      %2070 = vmatprep.subr.bf16.mxu0 0
      %2071 = vmatpush1.bf16.msra.mxu0 0
      %2072 = vmatprep.subr.bf16.mxu0 0
      %2073 = vmatpush1.bf16.msra.mxu0 0
      %2074 = vmatprep.subr.bf16.mxu0 0
      %2075 = vmatpush1.bf16.msra.mxu0 0
      %2076 = vmatprep.subr.bf16.mxu0 0
      %2077 = vmatpush1.bf16.msra.mxu0 0
      %2078 = vmatprep.subr.bf16.mxu0 0
      %2079 = vmatpush1.bf16.msra.mxu0 0
      %2080 = vmatprep.subr.bf16.mxu0 0
      %2081 = vmatpush1.bf16.msra.mxu0 0
      %2082 = vmatprep.subr.bf16.mxu0 0
      %2083 = vmatpush1.bf16.msra.mxu0 0
      %2084 = vmatprep.subr.bf16.mxu0 0
      %2085 = vmatpush1.bf16.msra.mxu0 0
      %2086 = vmatprep.subr.bf16.mxu0 0
      %2087 = vmatpush1.bf16.msra.mxu0 0
      %2088 = vmatprep.mubr.bf16.mxu0 0
      %2089 = vmatmul.mubr.bf16.gmra.mrb[0].mxu0 %v2054
      %v2090 = vpop.f32.mrb[0].mxu0
      %v2091 = vadd.f32 %v2039, %v2090
      %v2092 = vpop.f32.mrb[0].mxu0
      %v2093 = vpop.f32.mrb[0].mxu0
      %v2094 = vpop.f32.mrb[0].mxu0
      %2095 = vdwg.mxu0
      %s2096 = scalar_lea.vmem %s9, 64
      %v2097 = vld [vmem:[%s2096] sm:$0xf]
      %v2098 = vld [vmem:[%s2096 + $0x4] sm:$0xf]
      %v2099 = vld [vmem:[%s2096 + $0x8] sm:$0xf]
      %v2100 = vld [vmem:[%s2096 + $0xc] sm:$0xf]
      %s2101 = scalar_lea.vmem %s10, 4
      %v2102 = vld [vmem:[%s2101] sm:$0x1]
      %v2104 = vlaneseq
      %v2105 = vshrl.u32 %v2104, 7
      %v2106 = vsub.s32 0, %v2105
      %v2107 = vrot.slane %v2102, %v2106
      %v2113 = vunpack.c.l.b16 %v2097
      %v2114 = vunpack.c.l.b16 %v2098
      %v2115 = vunpack.c.l.b16 %v2099
      %v2116 = vunpack.c.l.b16 %v2100
      %v2117 = vpack.c.b16 %v2114, %v2113
      %v2118 = vpack.c.b16 %v2116, %v2115
      %v2122 = vsel %vm710, %v2029, 0
      %2124 = vmatprep.subr.bf16.mxu0 0
      %2125 = vmatpush1.bf16.msra.mxu0 %v2117
      %2126 = vmatprep.subr.bf16.mxu0 0
      %2127 = vmatpush1.bf16.msra.mxu0 %v2118
      %2128 = vmatprep.subr.bf16.mxu0 0
      %2129 = vmatpush1.bf16.msra.mxu0 0
      %2130 = vmatprep.subr.bf16.mxu0 0
      %2131 = vmatpush1.bf16.msra.mxu0 0
      %2132 = vmatprep.subr.bf16.mxu0 0
      %2133 = vmatpush1.bf16.msra.mxu0 0
      %2134 = vmatprep.subr.bf16.mxu0 0
      %2135 = vmatpush1.bf16.msra.mxu0 0
      %2136 = vmatprep.subr.bf16.mxu0 0
      %2137 = vmatpush1.bf16.msra.mxu0 0
      %2138 = vmatprep.subr.bf16.mxu0 0
      %2139 = vmatpush1.bf16.msra.mxu0 0
      %2140 = vmatprep.subr.bf16.mxu0 0
      %2141 = vmatpush1.bf16.msra.mxu0 0
      %2142 = vmatprep.subr.bf16.mxu0 0
      %2143 = vmatpush1.bf16.msra.mxu0 0
      %2144 = vmatprep.subr.bf16.mxu0 0
      %2145 = vmatpush1.bf16.msra.mxu0 0
      %2146 = vmatprep.subr.bf16.mxu0 0
      %2147 = vmatpush1.bf16.msra.mxu0 0
      %2148 = vmatprep.subr.bf16.mxu0 0
      %2149 = vmatpush1.bf16.msra.mxu0 0
      %2150 = vmatprep.subr.bf16.mxu0 0
      %2151 = vmatpush1.bf16.msra.mxu0 0
      %2152 = vmatprep.subr.bf16.mxu0 0
      %2153 = vmatpush1.bf16.msra.mxu0 0
      %2154 = vmatprep.subr.bf16.mxu0 0
      %2155 = vmatpush1.bf16.msra.mxu0 0
      %2156 = vmatprep.mubr.bf16.mxu0 0
      %2157 = vmatmul.mubr.bf16.gmra.mrb[0].mxu0 %v2122
      %v2158 = vpop.f32.mrb[0].mxu0
      %v2159 = vadd.f32 %v2107, %v2158
      %v2160 = vpop.f32.mrb[0].mxu0
      %v2161 = vpop.f32.mrb[0].mxu0
      %v2162 = vpop.f32.mrb[0].mxu0
      %2163 = vdwg.mxu0
      %s2164 = scalar_lea.vmem %s9, 128
      %v2165 = vld [vmem:[%s2164] sm:$0xf]
      %v2166 = vld [vmem:[%s2164 + $0x4] sm:$0xf]
      %v2167 = vld [vmem:[%s2164 + $0x8] sm:$0xf]
      %v2168 = vld [vmem:[%s2164 + $0xc] sm:$0xf]
      %s2169 = scalar_lea.vmem %s10, 8
      %v2170 = vld [vmem:[%s2169] sm:$0x1]
      %v2172 = vlaneseq
      %v2173 = vshrl.u32 %v2172, 7
      %v2174 = vsub.s32 0, %v2173
      %v2175 = vrot.slane %v2170, %v2174
      %v2181 = vunpack.c.l.b16 %v2165
      %v2182 = vunpack.c.l.b16 %v2166
      %v2183 = vunpack.c.l.b16 %v2167
      %v2184 = vunpack.c.l.b16 %v2168
      %v2185 = vpack.c.b16 %v2182, %v2181
      %v2186 = vpack.c.b16 %v2184, %v2183
      %2189 = vmatprep.subr.bf16.mxu0 0
      %2190 = vmatpush1.bf16.msra.mxu0 %v2185
      %2191 = vmatprep.subr.bf16.mxu0 0
      %2192 = vmatpush1.bf16.msra.mxu0 %v2186
      %2193 = vmatprep.subr.bf16.mxu0 0
      %2194 = vmatpush1.bf16.msra.mxu0 0
      %2195 = vmatprep.subr.bf16.mxu0 0
      %2196 = vmatpush1.bf16.msra.mxu0 0
      %2197 = vmatprep.subr.bf16.mxu0 0
      %2198 = vmatpush1.bf16.msra.mxu0 0
      %2199 = vmatprep.subr.bf16.mxu0 0
      %2200 = vmatpush1.bf16.msra.mxu0 0
      %2201 = vmatprep.subr.bf16.mxu0 0
      %2202 = vmatpush1.bf16.msra.mxu0 0
      %2203 = vmatprep.subr.bf16.mxu0 0
      %2204 = vmatpush1.bf16.msra.mxu0 0
      %2205 = vmatprep.subr.bf16.mxu0 0
      %2206 = vmatpush1.bf16.msra.mxu0 0
      %2207 = vmatprep.subr.bf16.mxu0 0
      %2208 = vmatpush1.bf16.msra.mxu0 0
      %2209 = vmatprep.subr.bf16.mxu0 0
      %2210 = vmatpush1.bf16.msra.mxu0 0
      %2211 = vmatprep.subr.bf16.mxu0 0
      %2212 = vmatpush1.bf16.msra.mxu0 0
      %2213 = vmatprep.subr.bf16.mxu0 0
      %2214 = vmatpush1.bf16.msra.mxu0 0
      %2215 = vmatprep.subr.bf16.mxu0 0
      %2216 = vmatpush1.bf16.msra.mxu0 0
      %2217 = vmatprep.subr.bf16.mxu0 0
      %2218 = vmatpush1.bf16.msra.mxu0 0
      %2219 = vmatprep.subr.bf16.mxu0 0
      %2220 = vmatpush1.bf16.msra.mxu0 0
      %2221 = vmatprep.mubr.bf16.mxu0 0
      %2222 = vmatmul.mubr.bf16.gmra.mrb[0].mxu0 %v2122
      %v2223 = vpop.f32.mrb[0].mxu0
      %v2224 = vadd.f32 %v2175, %v2223
      %v2225 = vpop.f32.mrb[0].mxu0
      %v2226 = vpop.f32.mrb[0].mxu0
      %v2227 = vpop.f32.mrb[0].mxu0
      %2228 = vdwg.mxu0
      %v2229 = vpack.c.bf16 %v2091, %v2091
      %v2230 = vpack.c.bf16 %v2159, %v2159
      %v2232 = vsel %vm886, %v2229, 0
      %v2235 = vsel %vm886, %v2230, 0
      %2237 = vmatprep.subr.bf16.mxu0 0
      %2238 = vmatpush1.bf16.xpose.msra.mxu0 %v2235
      %2239 = vmatprep.subr.bf16.mxu0 0
      %2240 = vmatpush1.bf16.xpose.msra.mxu0 0
      %2241 = vmatprep.subr.bf16.mxu0 0
      %2242 = vmatpush1.bf16.xpose.msra.mxu0 0
      %2243 = vmatprep.subr.bf16.mxu0 0
      %2244 = vmatpush1.bf16.xpose.msra.mxu0 0
      %2245 = vmatprep.subr.bf16.mxu0 0
      %2246 = vmatpush1.bf16.xpose.msra.mxu0 0
      %2247 = vmatprep.subr.bf16.mxu0 0
      %2248 = vmatpush1.bf16.xpose.msra.mxu0 0
      %2249 = vmatprep.subr.bf16.mxu0 0
      %2250 = vmatpush1.bf16.xpose.msra.mxu0 0
      %2251 = vmatprep.subr.bf16.mxu0 0
      %2252 = vmatpush1.bf16.xpose.msra.mxu0 0
      %2253 = vmatprep.subr.bf16.mxu0 0
      %2254 = vmatpush1.bf16.xpose.msra.mxu0 0
      %2255 = vmatprep.subr.bf16.mxu0 0
      %2256 = vmatpush1.bf16.xpose.msra.mxu0 0
      %2257 = vmatprep.subr.bf16.mxu0 0
      %2258 = vmatpush1.bf16.xpose.msra.mxu0 0
      %2259 = vmatprep.subr.bf16.mxu0 0
      %2260 = vmatpush1.bf16.xpose.msra.mxu0 0
      %2261 = vmatprep.subr.bf16.mxu0 0
      %2262 = vmatpush1.bf16.xpose.msra.mxu0 0
      %2263 = vmatprep.subr.bf16.mxu0 0
      %2264 = vmatpush1.bf16.xpose.msra.mxu0 0
      %2265 = vmatprep.subr.bf16.mxu0 0
      %2266 = vmatpush1.bf16.xpose.msra.mxu0 0
      %2267 = vmatprep.subr.bf16.mxu0 0
      %2268 = vmatpush1.bf16.xpose.msra.mxu0 0
      %2269 = vmatprep.mubr.bf16.mxu0 0
      %2270 = vmatmul.mubr.bf16.gmra.mrb[0].mxu0 %v2232
      %v2271 = vpop.f32.mrb[0].mxu0
      %v2272 = vadd.f32 0.0, %v2271
      %v2273 = vpop.f32.mrb[0].mxu0
      %v2274 = vpop.f32.mrb[0].mxu0
      %v2275 = vpop.f32.mrb[0].mxu0
      %2276 = vdwg.mxu0
      %v2277 = vmul.f32 %v2272, 0.35355338
      %v2279 = vlaneseq
      %v2280 = vshrl.u32 %v2279, 7
      %v2281 = vsub.s32 0, %v2280
      %v2282 = vrot.slane %v2027, %v2281
      %v2284 = vadd.f32 %v2277, %v2282
      %v2285 = vsel %vm886, %v2284, -inf
      %2286 = vmax.xlane.f32.xlu0 %v2285
      %v2287 = vpop.xlane.xlu0 %2286
      %v2288 = vsub.f32 %v2284, %v2287
      %v2289 = vmul.f32 %v2288, 1.442695
      %v2290 = vpow.pop %v2289
      %v2291 = vsel %vm886, %v2290, 0.0
      %2292 = vadd.xlane.f32.xlu0 %v2291
      %v2293 = vpop.xlane.xlu0 %2292
      %v2294 = vrcp.pop %v2293
      %v2295 = vmul.f32 %v2290, %v2294
      %v2296 = vpack.c.bf16 %v2295, %v2295
      %v2297 = vpack.c.bf16 %v2224, %v2224
      %v2299 = vsel %vm886, %v2296, 0
      %v2302 = vsel %vm956, %v2297, 0
      %2304 = vmatprep.subr.bf16.mxu0 0
      %2305 = vmatpush1.bf16.msra.mxu0 %v2302
      %2306 = vmatprep.subr.bf16.mxu0 0
      %2307 = vmatpush1.bf16.msra.mxu0 0
      %2308 = vmatprep.subr.bf16.mxu0 0
      %2309 = vmatpush1.bf16.msra.mxu0 0
      %2310 = vmatprep.subr.bf16.mxu0 0
      %2311 = vmatpush1.bf16.msra.mxu0 0
      %2312 = vmatprep.subr.bf16.mxu0 0
      %2313 = vmatpush1.bf16.msra.mxu0 0
      %2314 = vmatprep.subr.bf16.mxu0 0
      %2315 = vmatpush1.bf16.msra.mxu0 0
      %2316 = vmatprep.subr.bf16.mxu0 0
      %2317 = vmatpush1.bf16.msra.mxu0 0
      %2318 = vmatprep.subr.bf16.mxu0 0
      %2319 = vmatpush1.bf16.msra.mxu0 0
      %2320 = vmatprep.subr.bf16.mxu0 0
      %2321 = vmatpush1.bf16.msra.mxu0 0
      %2322 = vmatprep.subr.bf16.mxu0 0
      %2323 = vmatpush1.bf16.msra.mxu0 0
      %2324 = vmatprep.subr.bf16.mxu0 0
      %2325 = vmatpush1.bf16.msra.mxu0 0
      %2326 = vmatprep.subr.bf16.mxu0 0
      %2327 = vmatpush1.bf16.msra.mxu0 0
      %2328 = vmatprep.subr.bf16.mxu0 0
      %2329 = vmatpush1.bf16.msra.mxu0 0
      %2330 = vmatprep.subr.bf16.mxu0 0
      %2331 = vmatpush1.bf16.msra.mxu0 0
      %2332 = vmatprep.subr.bf16.mxu0 0
      %2333 = vmatpush1.bf16.msra.mxu0 0
      %2334 = vmatprep.subr.bf16.mxu0 0
      %2335 = vmatpush1.bf16.msra.mxu0 0
      %2336 = vmatprep.mubr.bf16.mxu0 0
      %2337 = vmatmul.mubr.bf16.gmra.mrb[0].mxu0 %v2299
      %v2338 = vpop.f32.mrb[0].mxu0
      %v2339 = vadd.f32 0.0, %v2338
      %v2340 = vpop.f32.mrb[0].mxu0
      %v2341 = vpop.f32.mrb[0].mxu0
      %v2342 = vpop.f32.mrb[0].mxu0
      %2343 = vdwg.mxu0
      %s2344 = scalar_lea.vmem %s9, 16
      %v2345 = vld [vmem:[%s2344] sm:$0xf]
      %v2346 = vld [vmem:[%s2344 + $0x4] sm:$0xf]
      %v2347 = vld [vmem:[%s2344 + $0x8] sm:$0xf]
      %v2348 = vld [vmem:[%s2344 + $0xc] sm:$0xf]
      %s2349 = scalar_lea.vmem %s10, 1
      %v2350 = vld [vmem:[%s2349] sm:$0x1]
      %v2352 = vlaneseq
      %v2353 = vshrl.u32 %v2352, 7
      %v2354 = vsub.s32 0, %v2353
      %v2355 = vrot.slane %v2350, %v2354
      %v2361 = vunpack.c.l.b16 %v2345
      %v2362 = vunpack.c.l.b16 %v2346
      %v2363 = vunpack.c.l.b16 %v2347
      %v2364 = vunpack.c.l.b16 %v2348
      %v2365 = vpack.c.b16 %v2362, %v2361
      %v2366 = vpack.c.b16 %v2364, %v2363
      %2369 = vmatprep.subr.bf16.mxu0 0
      %2370 = vmatpush1.bf16.msra.mxu0 %v2365
      %2371 = vmatprep.subr.bf16.mxu0 0
      %2372 = vmatpush1.bf16.msra.mxu0 %v2366
      %2373 = vmatprep.subr.bf16.mxu0 0
      %2374 = vmatpush1.bf16.msra.mxu0 0
      %2375 = vmatprep.subr.bf16.mxu0 0
      %2376 = vmatpush1.bf16.msra.mxu0 0
      %2377 = vmatprep.subr.bf16.mxu0 0
      %2378 = vmatpush1.bf16.msra.mxu0 0
      %2379 = vmatprep.subr.bf16.mxu0 0
      %2380 = vmatpush1.bf16.msra.mxu0 0
      %2381 = vmatprep.subr.bf16.mxu0 0
      %2382 = vmatpush1.bf16.msra.mxu0 0
      %2383 = vmatprep.subr.bf16.mxu0 0
      %2384 = vmatpush1.bf16.msra.mxu0 0
      %2385 = vmatprep.subr.bf16.mxu0 0
      %2386 = vmatpush1.bf16.msra.mxu0 0
      %2387 = vmatprep.subr.bf16.mxu0 0
      %2388 = vmatpush1.bf16.msra.mxu0 0
      %2389 = vmatprep.subr.bf16.mxu0 0
      %2390 = vmatpush1.bf16.msra.mxu0 0
      %2391 = vmatprep.subr.bf16.mxu0 0
      %2392 = vmatpush1.bf16.msra.mxu0 0
      %2393 = vmatprep.subr.bf16.mxu0 0
      %2394 = vmatpush1.bf16.msra.mxu0 0
      %2395 = vmatprep.subr.bf16.mxu0 0
      %2396 = vmatpush1.bf16.msra.mxu0 0
      %2397 = vmatprep.subr.bf16.mxu0 0
      %2398 = vmatpush1.bf16.msra.mxu0 0
      %2399 = vmatprep.subr.bf16.mxu0 0
      %2400 = vmatpush1.bf16.msra.mxu0 0
      %2401 = vmatprep.mubr.bf16.mxu0 0
      %2402 = vmatmul.mubr.bf16.gmra.mrb[0].mxu0 %v2054
      %v2403 = vpop.f32.mrb[0].mxu0
      %v2404 = vadd.f32 %v2355, %v2403
      %v2405 = vpop.f32.mrb[0].mxu0
      %v2406 = vpop.f32.mrb[0].mxu0
      %v2407 = vpop.f32.mrb[0].mxu0
      %2408 = vdwg.mxu0
      %s2409 = scalar_lea.vmem %s9, 80
      %v2410 = vld [vmem:[%s2409] sm:$0xf]
      %v2411 = vld [vmem:[%s2409 + $0x4] sm:$0xf]
      %v2412 = vld [vmem:[%s2409 + $0x8] sm:$0xf]
      %v2413 = vld [vmem:[%s2409 + $0xc] sm:$0xf]
      %s2414 = scalar_lea.vmem %s10, 5
      %v2415 = vld [vmem:[%s2414] sm:$0x1]
      %v2417 = vlaneseq
      %v2418 = vshrl.u32 %v2417, 7
      %v2419 = vsub.s32 0, %v2418
      %v2420 = vrot.slane %v2415, %v2419
      %v2426 = vunpack.c.l.b16 %v2410
      %v2427 = vunpack.c.l.b16 %v2411
      %v2428 = vunpack.c.l.b16 %v2412
      %v2429 = vunpack.c.l.b16 %v2413
      %v2430 = vpack.c.b16 %v2427, %v2426
      %v2431 = vpack.c.b16 %v2429, %v2428
      %2434 = vmatprep.subr.bf16.mxu0 0
      %2435 = vmatpush1.bf16.msra.mxu0 %v2430
      %2436 = vmatprep.subr.bf16.mxu0 0
      %2437 = vmatpush1.bf16.msra.mxu0 %v2431
      %2438 = vmatprep.subr.bf16.mxu0 0
      %2439 = vmatpush1.bf16.msra.mxu0 0
      %2440 = vmatprep.subr.bf16.mxu0 0
      %2441 = vmatpush1.bf16.msra.mxu0 0
      %2442 = vmatprep.subr.bf16.mxu0 0
      %2443 = vmatpush1.bf16.msra.mxu0 0
      %2444 = vmatprep.subr.bf16.mxu0 0
      %2445 = vmatpush1.bf16.msra.mxu0 0
      %2446 = vmatprep.subr.bf16.mxu0 0
      %2447 = vmatpush1.bf16.msra.mxu0 0
      %2448 = vmatprep.subr.bf16.mxu0 0
      %2449 = vmatpush1.bf16.msra.mxu0 0
      %2450 = vmatprep.subr.bf16.mxu0 0
      %2451 = vmatpush1.bf16.msra.mxu0 0
      %2452 = vmatprep.subr.bf16.mxu0 0
      %2453 = vmatpush1.bf16.msra.mxu0 0
      %2454 = vmatprep.subr.bf16.mxu0 0
      %2455 = vmatpush1.bf16.msra.mxu0 0
      %2456 = vmatprep.subr.bf16.mxu0 0
      %2457 = vmatpush1.bf16.msra.mxu0 0
      %2458 = vmatprep.subr.bf16.mxu0 0
      %2459 = vmatpush1.bf16.msra.mxu0 0
      %2460 = vmatprep.subr.bf16.mxu0 0
      %2461 = vmatpush1.bf16.msra.mxu0 0
      %2462 = vmatprep.subr.bf16.mxu0 0
      %2463 = vmatpush1.bf16.msra.mxu0 0
      %2464 = vmatprep.subr.bf16.mxu0 0
      %2465 = vmatpush1.bf16.msra.mxu0 0
      %2466 = vmatprep.mubr.bf16.mxu0 0
      %2467 = vmatmul.mubr.bf16.gmra.mrb[0].mxu0 %v2122
      %v2468 = vpop.f32.mrb[0].mxu0
      %v2469 = vadd.f32 %v2420, %v2468
      %v2470 = vpop.f32.mrb[0].mxu0
      %v2471 = vpop.f32.mrb[0].mxu0
      %v2472 = vpop.f32.mrb[0].mxu0
      %2473 = vdwg.mxu0
      %s2474 = scalar_lea.vmem %s9, 144
      %v2475 = vld [vmem:[%s2474] sm:$0xf]
      %v2476 = vld [vmem:[%s2474 + $0x4] sm:$0xf]
      %v2477 = vld [vmem:[%s2474 + $0x8] sm:$0xf]
      %v2478 = vld [vmem:[%s2474 + $0xc] sm:$0xf]
      %s2479 = scalar_lea.vmem %s10, 9
      %v2480 = vld [vmem:[%s2479] sm:$0x1]
      %v2482 = vlaneseq
      %v2483 = vshrl.u32 %v2482, 7
      %v2484 = vsub.s32 0, %v2483
      %v2485 = vrot.slane %v2480, %v2484
      %v2491 = vunpack.c.l.b16 %v2475
      %v2492 = vunpack.c.l.b16 %v2476
      %v2493 = vunpack.c.l.b16 %v2477
      %v2494 = vunpack.c.l.b16 %v2478
      %v2495 = vpack.c.b16 %v2492, %v2491
      %v2496 = vpack.c.b16 %v2494, %v2493
      %2499 = vmatprep.subr.bf16.mxu0 0
      %2500 = vmatpush1.bf16.msra.mxu0 %v2495
      %2501 = vmatprep.subr.bf16.mxu0 0
      %2502 = vmatpush1.bf16.msra.mxu0 %v2496
      %2503 = vmatprep.subr.bf16.mxu0 0
      %2504 = vmatpush1.bf16.msra.mxu0 0
      %2505 = vmatprep.subr.bf16.mxu0 0
      %2506 = vmatpush1.bf16.msra.mxu0 0
      %2507 = vmatprep.subr.bf16.mxu0 0
      %2508 = vmatpush1.bf16.msra.mxu0 0
      %2509 = vmatprep.subr.bf16.mxu0 0
      %2510 = vmatpush1.bf16.msra.mxu0 0
      %2511 = vmatprep.subr.bf16.mxu0 0
      %2512 = vmatpush1.bf16.msra.mxu0 0
      %2513 = vmatprep.subr.bf16.mxu0 0
      %2514 = vmatpush1.bf16.msra.mxu0 0
      %2515 = vmatprep.subr.bf16.mxu0 0
      %2516 = vmatpush1.bf16.msra.mxu0 0
      %2517 = vmatprep.subr.bf16.mxu0 0
      %2518 = vmatpush1.bf16.msra.mxu0 0
      %2519 = vmatprep.subr.bf16.mxu0 0
      %2520 = vmatpush1.bf16.msra.mxu0 0
      %2521 = vmatprep.subr.bf16.mxu0 0
      %2522 = vmatpush1.bf16.msra.mxu0 0
      %2523 = vmatprep.subr.bf16.mxu0 0
      %2524 = vmatpush1.bf16.msra.mxu0 0
      %2525 = vmatprep.subr.bf16.mxu0 0
      %2526 = vmatpush1.bf16.msra.mxu0 0
      %2527 = vmatprep.subr.bf16.mxu0 0
      %2528 = vmatpush1.bf16.msra.mxu0 0
      %2529 = vmatprep.subr.bf16.mxu0 0
      %2530 = vmatpush1.bf16.msra.mxu0 0
      %2531 = vmatprep.mubr.bf16.mxu0 0
      %2532 = vmatmul.mubr.bf16.gmra.mrb[0].mxu0 %v2122
      %v2533 = vpop.f32.mrb[0].mxu0
      %v2534 = vadd.f32 %v2485, %v2533
      %v2535 = vpop.f32.mrb[0].mxu0
      %v2536 = vpop.f32.mrb[0].mxu0
      %v2537 = vpop.f32.mrb[0].mxu0
      %2538 = vdwg.mxu0
      %v2539 = vpack.c.bf16 %v2404, %v2404
      %v2540 = vpack.c.bf16 %v2469, %v2469
      %v2542 = vsel %vm886, %v2539, 0
      %v2545 = vsel %vm886, %v2540, 0
      %2547 = vmatprep.subr.bf16.mxu0 0
      %2548 = vmatpush1.bf16.xpose.msra.mxu0 %v2545
      %2549 = vmatprep.subr.bf16.mxu0 0
      %2550 = vmatpush1.bf16.xpose.msra.mxu0 0
      %2551 = vmatprep.subr.bf16.mxu0 0
      %2552 = vmatpush1.bf16.xpose.msra.mxu0 0
      %2553 = vmatprep.subr.bf16.mxu0 0
      %2554 = vmatpush1.bf16.xpose.msra.mxu0 0
      %2555 = vmatprep.subr.bf16.mxu0 0
      %2556 = vmatpush1.bf16.xpose.msra.mxu0 0
      %2557 = vmatprep.subr.bf16.mxu0 0
      %2558 = vmatpush1.bf16.xpose.msra.mxu0 0
      %2559 = vmatprep.subr.bf16.mxu0 0
      %2560 = vmatpush1.bf16.xpose.msra.mxu0 0
      %2561 = vmatprep.subr.bf16.mxu0 0
      %2562 = vmatpush1.bf16.xpose.msra.mxu0 0
      %2563 = vmatprep.subr.bf16.mxu0 0
      %2564 = vmatpush1.bf16.xpose.msra.mxu0 0
      %2565 = vmatprep.subr.bf16.mxu0 0
      %2566 = vmatpush1.bf16.xpose.msra.mxu0 0
      %2567 = vmatprep.subr.bf16.mxu0 0
      %2568 = vmatpush1.bf16.xpose.msra.mxu0 0
      %2569 = vmatprep.subr.bf16.mxu0 0
      %2570 = vmatpush1.bf16.xpose.msra.mxu0 0
      %2571 = vmatprep.subr.bf16.mxu0 0
      %2572 = vmatpush1.bf16.xpose.msra.mxu0 0
      %2573 = vmatprep.subr.bf16.mxu0 0
      %2574 = vmatpush1.bf16.xpose.msra.mxu0 0
      %2575 = vmatprep.subr.bf16.mxu0 0
      %2576 = vmatpush1.bf16.xpose.msra.mxu0 0
      %2577 = vmatprep.subr.bf16.mxu0 0
      %2578 = vmatpush1.bf16.xpose.msra.mxu0 0
      %2579 = vmatprep.mubr.bf16.mxu0 0
      %2580 = vmatmul.mubr.bf16.gmra.mrb[0].mxu0 %v2542
      %v2581 = vpop.f32.mrb[0].mxu0
      %v2582 = vadd.f32 0.0, %v2581
      %v2583 = vpop.f32.mrb[0].mxu0
      %v2584 = vpop.f32.mrb[0].mxu0
      %v2585 = vpop.f32.mrb[0].mxu0
      %2586 = vdwg.mxu0
      %v2587 = vmul.f32 %v2582, 0.35355338
      %v2588 = vadd.f32 %v2587, %v2282
      %v2589 = vsel %vm886, %v2588, -inf
      %2590 = vmax.xlane.f32.xlu0 %v2589
      %v2591 = vpop.xlane.xlu0 %2590
      %v2592 = vsub.f32 %v2588, %v2591
      %v2593 = vmul.f32 %v2592, 1.442695
      %v2594 = vpow.pop %v2593
      %v2595 = vsel %vm886, %v2594, 0.0
      %2596 = vadd.xlane.f32.xlu0 %v2595
      %v2597 = vpop.xlane.xlu0 %2596
      %v2598 = vrcp.pop %v2597
      %v2599 = vmul.f32 %v2594, %v2598
      %v2600 = vpack.c.bf16 %v2599, %v2599
      %v2601 = vpack.c.bf16 %v2534, %v2534
      %v2603 = vsel %vm886, %v2600, 0
      %v2606 = vsel %vm956, %v2601, 0
      %2608 = vmatprep.subr.bf16.mxu0 0
      %2609 = vmatpush1.bf16.msra.mxu0 %v2606
      %2610 = vmatprep.subr.bf16.mxu0 0
      %2611 = vmatpush1.bf16.msra.mxu0 0
      %2612 = vmatprep.subr.bf16.mxu0 0
      %2613 = vmatpush1.bf16.msra.mxu0 0
      %2614 = vmatprep.subr.bf16.mxu0 0
      %2615 = vmatpush1.bf16.msra.mxu0 0
      %2616 = vmatprep.subr.bf16.mxu0 0
      %2617 = vmatpush1.bf16.msra.mxu0 0
      %2618 = vmatprep.subr.bf16.mxu0 0
      %2619 = vmatpush1.bf16.msra.mxu0 0
      %2620 = vmatprep.subr.bf16.mxu0 0
      %2621 = vmatpush1.bf16.msra.mxu0 0
      %2622 = vmatprep.subr.bf16.mxu0 0
      %2623 = vmatpush1.bf16.msra.mxu0 0
      %2624 = vmatprep.subr.bf16.mxu0 0
      %2625 = vmatpush1.bf16.msra.mxu0 0
      %2626 = vmatprep.subr.bf16.mxu0 0
      %2627 = vmatpush1.bf16.msra.mxu0 0
      %2628 = vmatprep.subr.bf16.mxu0 0
      %2629 = vmatpush1.bf16.msra.mxu0 0
      %2630 = vmatprep.subr.bf16.mxu0 0
      %2631 = vmatpush1.bf16.msra.mxu0 0
      %2632 = vmatprep.subr.bf16.mxu0 0
      %2633 = vmatpush1.bf16.msra.mxu0 0
      %2634 = vmatprep.subr.bf16.mxu0 0
      %2635 = vmatpush1.bf16.msra.mxu0 0
      %2636 = vmatprep.subr.bf16.mxu0 0
      %2637 = vmatpush1.bf16.msra.mxu0 0
      %2638 = vmatprep.subr.bf16.mxu0 0
      %2639 = vmatpush1.bf16.msra.mxu0 0
      %2640 = vmatprep.mubr.bf16.mxu0 0
      %2641 = vmatmul.mubr.bf16.gmra.mrb[0].mxu0 %v2603
      %v2642 = vpop.f32.mrb[0].mxu0
      %v2643 = vadd.f32 0.0, %v2642
      %v2644 = vpop.f32.mrb[0].mxu0
      %v2645 = vpop.f32.mrb[0].mxu0
      %v2646 = vpop.f32.mrb[0].mxu0
      %2647 = vdwg.mxu0
      %s2648 = scalar_lea.vmem %s9, 32
      %v2649 = vld [vmem:[%s2648] sm:$0xf]
      %v2650 = vld [vmem:[%s2648 + $0x4] sm:$0xf]
      %v2651 = vld [vmem:[%s2648 + $0x8] sm:$0xf]
      %v2652 = vld [vmem:[%s2648 + $0xc] sm:$0xf]
      %s2653 = scalar_lea.vmem %s10, 2
      %v2654 = vld [vmem:[%s2653] sm:$0x1]
      %v2656 = vlaneseq
      %v2657 = vshrl.u32 %v2656, 7
      %v2658 = vsub.s32 0, %v2657
      %v2659 = vrot.slane %v2654, %v2658
      %v2665 = vunpack.c.l.b16 %v2649
      %v2666 = vunpack.c.l.b16 %v2650
      %v2667 = vunpack.c.l.b16 %v2651
      %v2668 = vunpack.c.l.b16 %v2652
      %v2669 = vpack.c.b16 %v2666, %v2665
      %v2670 = vpack.c.b16 %v2668, %v2667
      %2673 = vmatprep.subr.bf16.mxu0 0
      %2674 = vmatpush1.bf16.msra.mxu0 %v2669
      %2675 = vmatprep.subr.bf16.mxu0 0
      %2676 = vmatpush1.bf16.msra.mxu0 %v2670
      %2677 = vmatprep.subr.bf16.mxu0 0
      %2678 = vmatpush1.bf16.msra.mxu0 0
      %2679 = vmatprep.subr.bf16.mxu0 0
      %2680 = vmatpush1.bf16.msra.mxu0 0
      %2681 = vmatprep.subr.bf16.mxu0 0
      %2682 = vmatpush1.bf16.msra.mxu0 0
      %2683 = vmatprep.subr.bf16.mxu0 0
      %2684 = vmatpush1.bf16.msra.mxu0 0
      %2685 = vmatprep.subr.bf16.mxu0 0
      %2686 = vmatpush1.bf16.msra.mxu0 0
      %2687 = vmatprep.subr.bf16.mxu0 0
      %2688 = vmatpush1.bf16.msra.mxu0 0
      %2689 = vmatprep.subr.bf16.mxu0 0
      %2690 = vmatpush1.bf16.msra.mxu0 0
      %2691 = vmatprep.subr.bf16.mxu0 0
      %2692 = vmatpush1.bf16.msra.mxu0 0
      %2693 = vmatprep.subr.bf16.mxu0 0
      %2694 = vmatpush1.bf16.msra.mxu0 0
      %2695 = vmatprep.subr.bf16.mxu0 0
      %2696 = vmatpush1.bf16.msra.mxu0 0
      %2697 = vmatprep.subr.bf16.mxu0 0
      %2698 = vmatpush1.bf16.msra.mxu0 0
      %2699 = vmatprep.subr.bf16.mxu0 0
      %2700 = vmatpush1.bf16.msra.mxu0 0
      %2701 = vmatprep.subr.bf16.mxu0 0
      %2702 = vmatpush1.bf16.msra.mxu0 0
      %2703 = vmatprep.subr.bf16.mxu0 0
      %2704 = vmatpush1.bf16.msra.mxu0 0
      %2705 = vmatprep.mubr.bf16.mxu0 0
      %2706 = vmatmul.mubr.bf16.gmra.mrb[0].mxu0 %v2054
      %v2707 = vpop.f32.mrb[0].mxu0
      %v2708 = vadd.f32 %v2659, %v2707
      %v2709 = vpop.f32.mrb[0].mxu0
      %v2710 = vpop.f32.mrb[0].mxu0
      %v2711 = vpop.f32.mrb[0].mxu0
      %2712 = vdwg.mxu0
      %s2713 = scalar_lea.vmem %s9, 96
      %v2714 = vld [vmem:[%s2713] sm:$0xf]
      %v2715 = vld [vmem:[%s2713 + $0x4] sm:$0xf]
      %v2716 = vld [vmem:[%s2713 + $0x8] sm:$0xf]
      %v2717 = vld [vmem:[%s2713 + $0xc] sm:$0xf]
      %s2718 = scalar_lea.vmem %s10, 6
      %v2719 = vld [vmem:[%s2718] sm:$0x1]
      %v2721 = vlaneseq
      %v2722 = vshrl.u32 %v2721, 7
      %v2723 = vsub.s32 0, %v2722
      %v2724 = vrot.slane %v2719, %v2723
      %v2730 = vunpack.c.l.b16 %v2714
      %v2731 = vunpack.c.l.b16 %v2715
      %v2732 = vunpack.c.l.b16 %v2716
      %v2733 = vunpack.c.l.b16 %v2717
      %v2734 = vpack.c.b16 %v2731, %v2730
      %v2735 = vpack.c.b16 %v2733, %v2732
      %2738 = vmatprep.subr.bf16.mxu0 0
      %2739 = vmatpush1.bf16.msra.mxu0 %v2734
      %2740 = vmatprep.subr.bf16.mxu0 0
      %2741 = vmatpush1.bf16.msra.mxu0 %v2735
      %2742 = vmatprep.subr.bf16.mxu0 0
      %2743 = vmatpush1.bf16.msra.mxu0 0
      %2744 = vmatprep.subr.bf16.mxu0 0
      %2745 = vmatpush1.bf16.msra.mxu0 0
      %2746 = vmatprep.subr.bf16.mxu0 0
      %2747 = vmatpush1.bf16.msra.mxu0 0
      %2748 = vmatprep.subr.bf16.mxu0 0
      %2749 = vmatpush1.bf16.msra.mxu0 0
      %2750 = vmatprep.subr.bf16.mxu0 0
      %2751 = vmatpush1.bf16.msra.mxu0 0
      %2752 = vmatprep.subr.bf16.mxu0 0
      %2753 = vmatpush1.bf16.msra.mxu0 0
      %2754 = vmatprep.subr.bf16.mxu0 0
      %2755 = vmatpush1.bf16.msra.mxu0 0
      %2756 = vmatprep.subr.bf16.mxu0 0
      %2757 = vmatpush1.bf16.msra.mxu0 0
      %2758 = vmatprep.subr.bf16.mxu0 0
      %2759 = vmatpush1.bf16.msra.mxu0 0
      %2760 = vmatprep.subr.bf16.mxu0 0
      %2761 = vmatpush1.bf16.msra.mxu0 0
      %2762 = vmatprep.subr.bf16.mxu0 0
      %2763 = vmatpush1.bf16.msra.mxu0 0
      %2764 = vmatprep.subr.bf16.mxu0 0
      %2765 = vmatpush1.bf16.msra.mxu0 0
      %2766 = vmatprep.subr.bf16.mxu0 0
      %2767 = vmatpush1.bf16.msra.mxu0 0
      %2768 = vmatprep.subr.bf16.mxu0 0
      %2769 = vmatpush1.bf16.msra.mxu0 0
      %2770 = vmatprep.mubr.bf16.mxu0 0
      %2771 = vmatmul.mubr.bf16.gmra.mrb[0].mxu0 %v2122
      %v2772 = vpop.f32.mrb[0].mxu0
      %v2773 = vadd.f32 %v2724, %v2772
      %v2774 = vpop.f32.mrb[0].mxu0
      %v2775 = vpop.f32.mrb[0].mxu0
      %v2776 = vpop.f32.mrb[0].mxu0
      %2777 = vdwg.mxu0
      %s2778 = scalar_lea.vmem %s9, 160
      %v2779 = vld [vmem:[%s2778] sm:$0xf]
      %v2780 = vld [vmem:[%s2778 + $0x4] sm:$0xf]
      %v2781 = vld [vmem:[%s2778 + $0x8] sm:$0xf]
      %v2782 = vld [vmem:[%s2778 + $0xc] sm:$0xf]
      %s2783 = scalar_lea.vmem %s10, 10
      %v2784 = vld [vmem:[%s2783] sm:$0x1]
      %v2786 = vlaneseq
      %v2787 = vshrl.u32 %v2786, 7
      %v2788 = vsub.s32 0, %v2787
      %v2789 = vrot.slane %v2784, %v2788
      %v2795 = vunpack.c.l.b16 %v2779
      %v2796 = vunpack.c.l.b16 %v2780
      %v2797 = vunpack.c.l.b16 %v2781
      %v2798 = vunpack.c.l.b16 %v2782
      %v2799 = vpack.c.b16 %v2796, %v2795
      %v2800 = vpack.c.b16 %v2798, %v2797
      %2803 = vmatprep.subr.bf16.mxu0 0
      %2804 = vmatpush1.bf16.msra.mxu0 %v2799
      %2805 = vmatprep.subr.bf16.mxu0 0
      %2806 = vmatpush1.bf16.msra.mxu0 %v2800
      %2807 = vmatprep.subr.bf16.mxu0 0
      %2808 = vmatpush1.bf16.msra.mxu0 0
      %2809 = vmatprep.subr.bf16.mxu0 0
      %2810 = vmatpush1.bf16.msra.mxu0 0
      %2811 = vmatprep.subr.bf16.mxu0 0
      %2812 = vmatpush1.bf16.msra.mxu0 0
      %2813 = vmatprep.subr.bf16.mxu0 0
      %2814 = vmatpush1.bf16.msra.mxu0 0
      %2815 = vmatprep.subr.bf16.mxu0 0
      %2816 = vmatpush1.bf16.msra.mxu0 0
      %2817 = vmatprep.subr.bf16.mxu0 0
      %2818 = vmatpush1.bf16.msra.mxu0 0
      %2819 = vmatprep.subr.bf16.mxu0 0
      %2820 = vmatpush1.bf16.msra.mxu0 0
      %2821 = vmatprep.subr.bf16.mxu0 0
      %2822 = vmatpush1.bf16.msra.mxu0 0
      %2823 = vmatprep.subr.bf16.mxu0 0
      %2824 = vmatpush1.bf16.msra.mxu0 0
      %2825 = vmatprep.subr.bf16.mxu0 0
      %2826 = vmatpush1.bf16.msra.mxu0 0
      %2827 = vmatprep.subr.bf16.mxu0 0
      %2828 = vmatpush1.bf16.msra.mxu0 0
      %2829 = vmatprep.subr.bf16.mxu0 0
      %2830 = vmatpush1.bf16.msra.mxu0 0
      %2831 = vmatprep.subr.bf16.mxu0 0
      %2832 = vmatpush1.bf16.msra.mxu0 0
      %2833 = vmatprep.subr.bf16.mxu0 0
      %2834 = vmatpush1.bf16.msra.mxu0 0
      %2835 = vmatprep.mubr.bf16.mxu0 0
      %2836 = vmatmul.mubr.bf16.gmra.mrb[0].mxu0 %v2122
      %v2837 = vpop.f32.mrb[0].mxu0
      %v2838 = vadd.f32 %v2789, %v2837
      %v2839 = vpop.f32.mrb[0].mxu0
      %v2840 = vpop.f32.mrb[0].mxu0
      %v2841 = vpop.f32.mrb[0].mxu0
      %2842 = vdwg.mxu0
      %v2843 = vpack.c.bf16 %v2708, %v2708
      %v2844 = vpack.c.bf16 %v2773, %v2773
      %v2846 = vsel %vm886, %v2843, 0
      %v2849 = vsel %vm886, %v2844, 0
      %2851 = vmatprep.subr.bf16.mxu0 0
      %2852 = vmatpush1.bf16.xpose.msra.mxu0 %v2849
      %2853 = vmatprep.subr.bf16.mxu0 0
      %2854 = vmatpush1.bf16.xpose.msra.mxu0 0
      %2855 = vmatprep.subr.bf16.mxu0 0
      %2856 = vmatpush1.bf16.xpose.msra.mxu0 0
      %2857 = vmatprep.subr.bf16.mxu0 0
      %2858 = vmatpush1.bf16.xpose.msra.mxu0 0
      %2859 = vmatprep.subr.bf16.mxu0 0
      %2860 = vmatpush1.bf16.xpose.msra.mxu0 0
      %2861 = vmatprep.subr.bf16.mxu0 0
      %2862 = vmatpush1.bf16.xpose.msra.mxu0 0
      %2863 = vmatprep.subr.bf16.mxu0 0
      %2864 = vmatpush1.bf16.xpose.msra.mxu0 0
      %2865 = vmatprep.subr.bf16.mxu0 0
      %2866 = vmatpush1.bf16.xpose.msra.mxu0 0
      %2867 = vmatprep.subr.bf16.mxu0 0
      %2868 = vmatpush1.bf16.xpose.msra.mxu0 0
      %2869 = vmatprep.subr.bf16.mxu0 0
      %2870 = vmatpush1.bf16.xpose.msra.mxu0 0
      %2871 = vmatprep.subr.bf16.mxu0 0
      %2872 = vmatpush1.bf16.xpose.msra.mxu0 0
      %2873 = vmatprep.subr.bf16.mxu0 0
      %2874 = vmatpush1.bf16.xpose.msra.mxu0 0
      %2875 = vmatprep.subr.bf16.mxu0 0
      %2876 = vmatpush1.bf16.xpose.msra.mxu0 0
      %2877 = vmatprep.subr.bf16.mxu0 0
      %2878 = vmatpush1.bf16.xpose.msra.mxu0 0
      %2879 = vmatprep.subr.bf16.mxu0 0
      %2880 = vmatpush1.bf16.xpose.msra.mxu0 0
      %2881 = vmatprep.subr.bf16.mxu0 0
      %2882 = vmatpush1.bf16.xpose.msra.mxu0 0
      %2883 = vmatprep.mubr.bf16.mxu0 0
      %2884 = vmatmul.mubr.bf16.gmra.mrb[0].mxu0 %v2846
      %v2885 = vpop.f32.mrb[0].mxu0
      %v2886 = vadd.f32 0.0, %v2885
      %v2887 = vpop.f32.mrb[0].mxu0
      %v2888 = vpop.f32.mrb[0].mxu0
      %v2889 = vpop.f32.mrb[0].mxu0
      %2890 = vdwg.mxu0
      %v2891 = vmul.f32 %v2886, 0.35355338
      %v2892 = vadd.f32 %v2891, %v2282
      %v2893 = vsel %vm886, %v2892, -inf
      %2894 = vmax.xlane.f32.xlu0 %v2893
      %v2895 = vpop.xlane.xlu0 %2894
      %v2896 = vsub.f32 %v2892, %v2895
      %v2897 = vmul.f32 %v2896, 1.442695
      %v2898 = vpow.pop %v2897
      %v2899 = vsel %vm886, %v2898, 0.0
      %2900 = vadd.xlane.f32.xlu0 %v2899
      %v2901 = vpop.xlane.xlu0 %2900
      %v2902 = vrcp.pop %v2901
      %v2903 = vmul.f32 %v2898, %v2902
      %v2904 = vpack.c.bf16 %v2903, %v2903
      %v2905 = vpack.c.bf16 %v2838, %v2838
      %v2907 = vsel %vm886, %v2904, 0
      %v2910 = vsel %vm956, %v2905, 0
      %2912 = vmatprep.subr.bf16.mxu0 0
      %2913 = vmatpush1.bf16.msra.mxu0 %v2910
      %2914 = vmatprep.subr.bf16.mxu0 0
      %2915 = vmatpush1.bf16.msra.mxu0 0
      %2916 = vmatprep.subr.bf16.mxu0 0
      %2917 = vmatpush1.bf16.msra.mxu0 0
      %2918 = vmatprep.subr.bf16.mxu0 0
      %2919 = vmatpush1.bf16.msra.mxu0 0
      %2920 = vmatprep.subr.bf16.mxu0 0
      %2921 = vmatpush1.bf16.msra.mxu0 0
      %2922 = vmatprep.subr.bf16.mxu0 0
      %2923 = vmatpush1.bf16.msra.mxu0 0
      %2924 = vmatprep.subr.bf16.mxu0 0
      %2925 = vmatpush1.bf16.msra.mxu0 0
      %2926 = vmatprep.subr.bf16.mxu0 0
      %2927 = vmatpush1.bf16.msra.mxu0 0
      %2928 = vmatprep.subr.bf16.mxu0 0
      %2929 = vmatpush1.bf16.msra.mxu0 0
      %2930 = vmatprep.subr.bf16.mxu0 0
      %2931 = vmatpush1.bf16.msra.mxu0 0
      %2932 = vmatprep.subr.bf16.mxu0 0
      %2933 = vmatpush1.bf16.msra.mxu0 0
      %2934 = vmatprep.subr.bf16.mxu0 0
      %2935 = vmatpush1.bf16.msra.mxu0 0
      %2936 = vmatprep.subr.bf16.mxu0 0
      %2937 = vmatpush1.bf16.msra.mxu0 0
      %2938 = vmatprep.subr.bf16.mxu0 0
      %2939 = vmatpush1.bf16.msra.mxu0 0
      %2940 = vmatprep.subr.bf16.mxu0 0
      %2941 = vmatpush1.bf16.msra.mxu0 0
      %2942 = vmatprep.subr.bf16.mxu0 0
      %2943 = vmatpush1.bf16.msra.mxu0 0
      %2944 = vmatprep.mubr.bf16.mxu0 0
      %2945 = vmatmul.mubr.bf16.gmra.mrb[0].mxu0 %v2907
      %v2946 = vpop.f32.mrb[0].mxu0
      %v2947 = vadd.f32 0.0, %v2946
      %v2948 = vpop.f32.mrb[0].mxu0
      %v2949 = vpop.f32.mrb[0].mxu0
      %v2950 = vpop.f32.mrb[0].mxu0
      %2951 = vdwg.mxu0
      %s2952 = scalar_lea.vmem %s9, 48
      %v2953 = vld [vmem:[%s2952] sm:$0xf]
      %v2954 = vld [vmem:[%s2952 + $0x4] sm:$0xf]
      %v2955 = vld [vmem:[%s2952 + $0x8] sm:$0xf]
      %v2956 = vld [vmem:[%s2952 + $0xc] sm:$0xf]
      %s2957 = scalar_lea.vmem %s10, 3
      %v2958 = vld [vmem:[%s2957] sm:$0x1]
      %v2960 = vlaneseq
      %v2961 = vshrl.u32 %v2960, 7
      %v2962 = vsub.s32 0, %v2961
      %v2963 = vrot.slane %v2958, %v2962
      %v2969 = vunpack.c.l.b16 %v2953
      %v2970 = vunpack.c.l.b16 %v2954
      %v2971 = vunpack.c.l.b16 %v2955
      %v2972 = vunpack.c.l.b16 %v2956
      %v2973 = vpack.c.b16 %v2970, %v2969
      %v2974 = vpack.c.b16 %v2972, %v2971
      %2977 = vmatprep.subr.bf16.mxu0 0
      %2978 = vmatpush1.bf16.msra.mxu0 %v2973
      %2979 = vmatprep.subr.bf16.mxu0 0
      %2980 = vmatpush1.bf16.msra.mxu0 %v2974
      %2981 = vmatprep.subr.bf16.mxu0 0
      %2982 = vmatpush1.bf16.msra.mxu0 0
      %2983 = vmatprep.subr.bf16.mxu0 0
      %2984 = vmatpush1.bf16.msra.mxu0 0
      %2985 = vmatprep.subr.bf16.mxu0 0
      %2986 = vmatpush1.bf16.msra.mxu0 0
      %2987 = vmatprep.subr.bf16.mxu0 0
      %2988 = vmatpush1.bf16.msra.mxu0 0
      %2989 = vmatprep.subr.bf16.mxu0 0
      %2990 = vmatpush1.bf16.msra.mxu0 0
      %2991 = vmatprep.subr.bf16.mxu0 0
      %2992 = vmatpush1.bf16.msra.mxu0 0
      %2993 = vmatprep.subr.bf16.mxu0 0
      %2994 = vmatpush1.bf16.msra.mxu0 0
      %2995 = vmatprep.subr.bf16.mxu0 0
      %2996 = vmatpush1.bf16.msra.mxu0 0
      %2997 = vmatprep.subr.bf16.mxu0 0
      %2998 = vmatpush1.bf16.msra.mxu0 0
      %2999 = vmatprep.subr.bf16.mxu0 0
      %3000 = vmatpush1.bf16.msra.mxu0 0
      %3001 = vmatprep.subr.bf16.mxu0 0
      %3002 = vmatpush1.bf16.msra.mxu0 0
      %3003 = vmatprep.subr.bf16.mxu0 0
      %3004 = vmatpush1.bf16.msra.mxu0 0
      %3005 = vmatprep.subr.bf16.mxu0 0
      %3006 = vmatpush1.bf16.msra.mxu0 0
      %3007 = vmatprep.subr.bf16.mxu0 0
      %3008 = vmatpush1.bf16.msra.mxu0 0
      %3009 = vmatprep.mubr.bf16.mxu0 0
      %3010 = vmatmul.mubr.bf16.gmra.mrb[0].mxu0 %v2054
      %v3011 = vpop.f32.mrb[0].mxu0
      %v3012 = vadd.f32 %v2963, %v3011
      %v3013 = vpop.f32.mrb[0].mxu0
      %v3014 = vpop.f32.mrb[0].mxu0
      %v3015 = vpop.f32.mrb[0].mxu0
      %3016 = vdwg.mxu0
      %s3017 = scalar_lea.vmem %s9, 112
      %v3018 = vld [vmem:[%s3017] sm:$0xf]
      %v3019 = vld [vmem:[%s3017 + $0x4] sm:$0xf]
      %v3020 = vld [vmem:[%s3017 + $0x8] sm:$0xf]
      %v3021 = vld [vmem:[%s3017 + $0xc] sm:$0xf]
      %s3022 = scalar_lea.vmem %s10, 7
      %v3023 = vld [vmem:[%s3022] sm:$0x1]
      %v3025 = vlaneseq
      %v3026 = vshrl.u32 %v3025, 7
      %v3027 = vsub.s32 0, %v3026
      %v3028 = vrot.slane %v3023, %v3027
      %v3034 = vunpack.c.l.b16 %v3018
      %v3035 = vunpack.c.l.b16 %v3019
      %v3036 = vunpack.c.l.b16 %v3020
      %v3037 = vunpack.c.l.b16 %v3021
      %v3038 = vpack.c.b16 %v3035, %v3034
      %v3039 = vpack.c.b16 %v3037, %v3036
      %3042 = vmatprep.subr.bf16.mxu0 0
      %3043 = vmatpush1.bf16.msra.mxu0 %v3038
      %3044 = vmatprep.subr.bf16.mxu0 0
      %3045 = vmatpush1.bf16.msra.mxu0 %v3039
      %3046 = vmatprep.subr.bf16.mxu0 0
      %3047 = vmatpush1.bf16.msra.mxu0 0
      %3048 = vmatprep.subr.bf16.mxu0 0
      %3049 = vmatpush1.bf16.msra.mxu0 0
      %3050 = vmatprep.subr.bf16.mxu0 0
      %3051 = vmatpush1.bf16.msra.mxu0 0
      %3052 = vmatprep.subr.bf16.mxu0 0
      %3053 = vmatpush1.bf16.msra.mxu0 0
      %3054 = vmatprep.subr.bf16.mxu0 0
      %3055 = vmatpush1.bf16.msra.mxu0 0
      %3056 = vmatprep.subr.bf16.mxu0 0
      %3057 = vmatpush1.bf16.msra.mxu0 0
      %3058 = vmatprep.subr.bf16.mxu0 0
      %3059 = vmatpush1.bf16.msra.mxu0 0
      %3060 = vmatprep.subr.bf16.mxu0 0
      %3061 = vmatpush1.bf16.msra.mxu0 0
      %3062 = vmatprep.subr.bf16.mxu0 0
      %3063 = vmatpush1.bf16.msra.mxu0 0
      %3064 = vmatprep.subr.bf16.mxu0 0
      %3065 = vmatpush1.bf16.msra.mxu0 0
      %3066 = vmatprep.subr.bf16.mxu0 0
      %3067 = vmatpush1.bf16.msra.mxu0 0
      %3068 = vmatprep.subr.bf16.mxu0 0
      %3069 = vmatpush1.bf16.msra.mxu0 0
      %3070 = vmatprep.subr.bf16.mxu0 0
      %3071 = vmatpush1.bf16.msra.mxu0 0
      %3072 = vmatprep.subr.bf16.mxu0 0
      %3073 = vmatpush1.bf16.msra.mxu0 0
      %3074 = vmatprep.mubr.bf16.mxu0 0
      %3075 = vmatmul.mubr.bf16.gmra.mrb[0].mxu0 %v2122
      %v3076 = vpop.f32.mrb[0].mxu0
      %v3077 = vadd.f32 %v3028, %v3076
      %v3078 = vpop.f32.mrb[0].mxu0
      %v3079 = vpop.f32.mrb[0].mxu0
      %v3080 = vpop.f32.mrb[0].mxu0
      %3081 = vdwg.mxu0
      %s3082 = scalar_lea.vmem %s9, 176
      %v3083 = vld [vmem:[%s3082] sm:$0xf]
      %v3084 = vld [vmem:[%s3082 + $0x4] sm:$0xf]
      %v3085 = vld [vmem:[%s3082 + $0x8] sm:$0xf]
      %v3086 = vld [vmem:[%s3082 + $0xc] sm:$0xf]
      %s3087 = scalar_lea.vmem %s10, 11
      %v3088 = vld [vmem:[%s3087] sm:$0x1]
      %v3090 = vlaneseq
      %v3091 = vshrl.u32 %v3090, 7
      %v3092 = vsub.s32 0, %v3091
      %v3093 = vrot.slane %v3088, %v3092
      %v3099 = vunpack.c.l.b16 %v3083
      %v3100 = vunpack.c.l.b16 %v3084
      %v3101 = vunpack.c.l.b16 %v3085
      %v3102 = vunpack.c.l.b16 %v3086
      %v3103 = vpack.c.b16 %v3100, %v3099
      %v3104 = vpack.c.b16 %v3102, %v3101
      %3107 = vmatprep.subr.bf16.mxu0 0
      %3108 = vmatpush1.bf16.msra.mxu0 %v3103
      %3109 = vmatprep.subr.bf16.mxu0 0
      %3110 = vmatpush1.bf16.msra.mxu0 %v3104
      %3111 = vmatprep.subr.bf16.mxu0 0
      %3112 = vmatpush1.bf16.msra.mxu0 0
      %3113 = vmatprep.subr.bf16.mxu0 0
      %3114 = vmatpush1.bf16.msra.mxu0 0
      %3115 = vmatprep.subr.bf16.mxu0 0
      %3116 = vmatpush1.bf16.msra.mxu0 0
      %3117 = vmatprep.subr.bf16.mxu0 0
      %3118 = vmatpush1.bf16.msra.mxu0 0
      %3119 = vmatprep.subr.bf16.mxu0 0
      %3120 = vmatpush1.bf16.msra.mxu0 0
      %3121 = vmatprep.subr.bf16.mxu0 0
      %3122 = vmatpush1.bf16.msra.mxu0 0
      %3123 = vmatprep.subr.bf16.mxu0 0
      %3124 = vmatpush1.bf16.msra.mxu0 0
      %3125 = vmatprep.subr.bf16.mxu0 0
      %3126 = vmatpush1.bf16.msra.mxu0 0
      %3127 = vmatprep.subr.bf16.mxu0 0
      %3128 = vmatpush1.bf16.msra.mxu0 0
      %3129 = vmatprep.subr.bf16.mxu0 0
      %3130 = vmatpush1.bf16.msra.mxu0 0
      %3131 = vmatprep.subr.bf16.mxu0 0
      %3132 = vmatpush1.bf16.msra.mxu0 0
      %3133 = vmatprep.subr.bf16.mxu0 0
      %3134 = vmatpush1.bf16.msra.mxu0 0
      %3135 = vmatprep.subr.bf16.mxu0 0
      %3136 = vmatpush1.bf16.msra.mxu0 0
      %3137 = vmatprep.subr.bf16.mxu0 0
      %3138 = vmatpush1.bf16.msra.mxu0 0
      %3139 = vmatprep.mubr.bf16.mxu0 0
      %3140 = vmatmul.mubr.bf16.gmra.mrb[0].mxu0 %v2122
      %v3141 = vpop.f32.mrb[0].mxu0
      %v3142 = vadd.f32 %v3093, %v3141
      %v3143 = vpop.f32.mrb[0].mxu0
      %v3144 = vpop.f32.mrb[0].mxu0
      %v3145 = vpop.f32.mrb[0].mxu0
      %3146 = vdwg.mxu0
      %v3147 = vpack.c.bf16 %v3012, %v3012
      %v3148 = vpack.c.bf16 %v3077, %v3077
      %v3150 = vsel %vm886, %v3147, 0
      %v3153 = vsel %vm886, %v3148, 0
      %3155 = vmatprep.subr.bf16.mxu0 0
      %3156 = vmatpush1.bf16.xpose.msra.mxu0 %v3153
      %3157 = vmatprep.subr.bf16.mxu0 0
      %3158 = vmatpush1.bf16.xpose.msra.mxu0 0
      %3159 = vmatprep.subr.bf16.mxu0 0
      %3160 = vmatpush1.bf16.xpose.msra.mxu0 0
      %3161 = vmatprep.subr.bf16.mxu0 0
      %3162 = vmatpush1.bf16.xpose.msra.mxu0 0
      %3163 = vmatprep.subr.bf16.mxu0 0
      %3164 = vmatpush1.bf16.xpose.msra.mxu0 0
      %3165 = vmatprep.subr.bf16.mxu0 0
      %3166 = vmatpush1.bf16.xpose.msra.mxu0 0
      %3167 = vmatprep.subr.bf16.mxu0 0
      %3168 = vmatpush1.bf16.xpose.msra.mxu0 0
      %3169 = vmatprep.subr.bf16.mxu0 0
      %3170 = vmatpush1.bf16.xpose.msra.mxu0 0
      %3171 = vmatprep.subr.bf16.mxu0 0
      %3172 = vmatpush1.bf16.xpose.msra.mxu0 0
      %3173 = vmatprep.subr.bf16.mxu0 0
      %3174 = vmatpush1.bf16.xpose.msra.mxu0 0
      %3175 = vmatprep.subr.bf16.mxu0 0
      %3176 = vmatpush1.bf16.xpose.msra.mxu0 0
      %3177 = vmatprep.subr.bf16.mxu0 0
      %3178 = vmatpush1.bf16.xpose.msra.mxu0 0
      %3179 = vmatprep.subr.bf16.mxu0 0
      %3180 = vmatpush1.bf16.xpose.msra.mxu0 0
      %3181 = vmatprep.subr.bf16.mxu0 0
      %3182 = vmatpush1.bf16.xpose.msra.mxu0 0
      %3183 = vmatprep.subr.bf16.mxu0 0
      %3184 = vmatpush1.bf16.xpose.msra.mxu0 0
      %3185 = vmatprep.subr.bf16.mxu0 0
      %3186 = vmatpush1.bf16.xpose.msra.mxu0 0
      %3187 = vmatprep.mubr.bf16.mxu0 0
      %3188 = vmatmul.mubr.bf16.gmra.mrb[0].mxu0 %v3150
      %v3189 = vpop.f32.mrb[0].mxu0
      %v3190 = vadd.f32 0.0, %v3189
      %v3191 = vpop.f32.mrb[0].mxu0
      %v3192 = vpop.f32.mrb[0].mxu0
      %v3193 = vpop.f32.mrb[0].mxu0
      %3194 = vdwg.mxu0
      %v3195 = vmul.f32 %v3190, 0.35355338
      %v3196 = vadd.f32 %v3195, %v2282
      %v3197 = vsel %vm886, %v3196, -inf
      %3198 = vmax.xlane.f32.xlu0 %v3197
      %v3199 = vpop.xlane.xlu0 %3198
      %v3200 = vsub.f32 %v3196, %v3199
      %v3201 = vmul.f32 %v3200, 1.442695
      %v3202 = vpow.pop %v3201
      %v3203 = vsel %vm886, %v3202, 0.0
      %3204 = vadd.xlane.f32.xlu0 %v3203
      %v3205 = vpop.xlane.xlu0 %3204
      %v3206 = vrcp.pop %v3205
      %v3207 = vmul.f32 %v3202, %v3206
      %v3208 = vpack.c.bf16 %v3207, %v3207
      %v3209 = vpack.c.bf16 %v3142, %v3142
      %v3211 = vsel %vm886, %v3208, 0
      %v3214 = vsel %vm956, %v3209, 0
      %3216 = vmatprep.subr.bf16.mxu0 0
      %3217 = vmatpush1.bf16.msra.mxu0 %v3214
      %3218 = vmatprep.subr.bf16.mxu0 0
      %3219 = vmatpush1.bf16.msra.mxu0 0
      %3220 = vmatprep.subr.bf16.mxu0 0
      %3221 = vmatpush1.bf16.msra.mxu0 0
      %3222 = vmatprep.subr.bf16.mxu0 0
      %3223 = vmatpush1.bf16.msra.mxu0 0
      %3224 = vmatprep.subr.bf16.mxu0 0
      %3225 = vmatpush1.bf16.msra.mxu0 0
      %3226 = vmatprep.subr.bf16.mxu0 0
      %3227 = vmatpush1.bf16.msra.mxu0 0
      %3228 = vmatprep.subr.bf16.mxu0 0
      %3229 = vmatpush1.bf16.msra.mxu0 0
      %3230 = vmatprep.subr.bf16.mxu0 0
      %3231 = vmatpush1.bf16.msra.mxu0 0
      %3232 = vmatprep.subr.bf16.mxu0 0
      %3233 = vmatpush1.bf16.msra.mxu0 0
      %3234 = vmatprep.subr.bf16.mxu0 0
      %3235 = vmatpush1.bf16.msra.mxu0 0
      %3236 = vmatprep.subr.bf16.mxu0 0
      %3237 = vmatpush1.bf16.msra.mxu0 0
      %3238 = vmatprep.subr.bf16.mxu0 0
      %3239 = vmatpush1.bf16.msra.mxu0 0
      %3240 = vmatprep.subr.bf16.mxu0 0
      %3241 = vmatpush1.bf16.msra.mxu0 0
      %3242 = vmatprep.subr.bf16.mxu0 0
      %3243 = vmatpush1.bf16.msra.mxu0 0
      %3244 = vmatprep.subr.bf16.mxu0 0
      %3245 = vmatpush1.bf16.msra.mxu0 0
      %3246 = vmatprep.subr.bf16.mxu0 0
      %3247 = vmatpush1.bf16.msra.mxu0 0
      %3248 = vmatprep.mubr.bf16.mxu0 0
      %3249 = vmatmul.mubr.bf16.gmra.mrb[0].mxu0 %v3211
      %v3250 = vpop.f32.mrb[0].mxu0
      %v3251 = vadd.f32 0.0, %v3250
      %v3252 = vpop.f32.mrb[0].mxu0
      %v3253 = vpop.f32.mrb[0].mxu0
      %v3254 = vpop.f32.mrb[0].mxu0
      %3255 = vdwg.mxu0
      %3257 = vrot.lane.b32.xlu0 %v2643, 8
      %v3258 = vpop.permute.xlu0 %3257
      %3261 = vrot.lane.b32.xlu0 %v2947, 16
      %v3262 = vpop.permute.xlu0 %3261
      %3265 = vrot.lane.b32.xlu0 %v3251, 24
      %v3266 = vpop.permute.xlu0 %3265
      %v3268 = vsel %vm886, %v2339, %v3258
      %v3269 = vsel %vm1925, %v3268, %v3262
      %v3270 = vsel %vm1927, %v3269, %v3266
      %v3271 = vpack.c.bf16 %v3270, %v3270
      %v3272 = vld [vmem:[%s11] sm:$0xf]
      %v3273 = vld [vmem:[%s11 + $0x4] sm:$0xf]
      %v3274 = vld [vmem:[%s11 + $0x8] sm:$0xf]
      %v3275 = vld [vmem:[%s11 + $0xc] sm:$0xf]
      %v3276 = vld [vmem:[%s12] sm:$0x1]
      %v3278 = vlaneseq
      %v3279 = vshrl.u32 %v3278, 7
      %v3280 = vsub.s32 0, %v3279
      %v3281 = vrot.slane %v3276, %v3280
      %v3287 = vunpack.c.l.b16 %v3272
      %v3288 = vunpack.c.l.b16 %v3273
      %v3289 = vunpack.c.l.b16 %v3274
      %v3290 = vunpack.c.l.b16 %v3275
      %v3291 = vpack.c.b16 %v3288, %v3287
      %v3292 = vpack.c.b16 %v3290, %v3289
      %v3296 = vsel %vm710, %v3271, 0
      %3298 = vmatprep.subr.bf16.mxu0 0
      %3299 = vmatpush1.bf16.msra.mxu0 %v3291
      %3300 = vmatprep.subr.bf16.mxu0 0
      %3301 = vmatpush1.bf16.msra.mxu0 %v3292
      %3302 = vmatprep.subr.bf16.mxu0 0
      %3303 = vmatpush1.bf16.msra.mxu0 0
      %3304 = vmatprep.subr.bf16.mxu0 0
      %3305 = vmatpush1.bf16.msra.mxu0 0
      %3306 = vmatprep.subr.bf16.mxu0 0
      %3307 = vmatpush1.bf16.msra.mxu0 0
      %3308 = vmatprep.subr.bf16.mxu0 0
      %3309 = vmatpush1.bf16.msra.mxu0 0
      %3310 = vmatprep.subr.bf16.mxu0 0
      %3311 = vmatpush1.bf16.msra.mxu0 0
      %3312 = vmatprep.subr.bf16.mxu0 0
      %3313 = vmatpush1.bf16.msra.mxu0 0
      %3314 = vmatprep.subr.bf16.mxu0 0
      %3315 = vmatpush1.bf16.msra.mxu0 0
      %3316 = vmatprep.subr.bf16.mxu0 0
      %3317 = vmatpush1.bf16.msra.mxu0 0
      %3318 = vmatprep.subr.bf16.mxu0 0
      %3319 = vmatpush1.bf16.msra.mxu0 0
      %3320 = vmatprep.subr.bf16.mxu0 0
      %3321 = vmatpush1.bf16.msra.mxu0 0
      %3322 = vmatprep.subr.bf16.mxu0 0
      %3323 = vmatpush1.bf16.msra.mxu0 0
      %3324 = vmatprep.subr.bf16.mxu0 0
      %3325 = vmatpush1.bf16.msra.mxu0 0
      %3326 = vmatprep.subr.bf16.mxu0 0
      %3327 = vmatpush1.bf16.msra.mxu0 0
      %3328 = vmatprep.subr.bf16.mxu0 0
      %3329 = vmatpush1.bf16.msra.mxu0 0
      %3330 = vmatprep.mubr.bf16.mxu0 0
      %3331 = vmatmul.mubr.bf16.gmra.mrb[0].mxu0 %v3296
      %v3332 = vpop.f32.mrb[0].mxu0
      %v3333 = vadd.f32 %v3281, %v3332
      %v3334 = vpop.f32.mrb[0].mxu0
      %v3335 = vpop.f32.mrb[0].mxu0
      %v3336 = vpop.f32.mrb[0].mxu0
      %3337 = vdwg.mxu0
      %v3338 = vadd.f32 %v2026, %v3333
      %v3339 = vsel %vm710, %v3338, 0.0
      %3340 = vadd.xlane.f32.xlu0 %v3339
      %v3341 = vpop.xlane.xlu0 %3340
      %v3342 = vmul.f32 %v3341, %v2000
      %v3343 = vsub.f32 %v3338, %v3342
      %v3344 = vmul.f32 %v3343, %v3343
      %v3345 = vsel %vm710, %v3344, 0.0
      %3346 = vadd.xlane.f32.xlu0 %v3345
      %v3347 = vpop.xlane.xlu0 %3346
      %v3348 = vmul.f32 %v3347, %v2000
      %v3349 = vadd.f32 %v3348, 1e-05
      %v3350 = vrsqrt.pop %v3349
      %v3351 = vmul.f32 %v3343, %v3350
      %v3352 = vld [vmem:[%s13] sm:$0x1]
      %v3354 = vlaneseq
      %v3355 = vshrl.u32 %v3354, 7
      %v3356 = vsub.s32 0, %v3355
      %v3357 = vrot.slane %v3352, %v3356
      %v3359 = vmul.f32 %v3351, %v3357
      %v3360 = vld [vmem:[%s14] sm:$0x1]
      %v3362 = vlaneseq
      %v3363 = vshrl.u32 %v3362, 7
      %v3364 = vsub.s32 0, %v3363
      %v3365 = vrot.slane %v3360, %v3364
      %v3367 = vadd.f32 %v3359, %v3365
      %v3368 = vpack.c.bf16 %v3367, %v3367
      %v3369 = vld [vmem:[%s15] sm:$0xf]
      %v3370 = vld [vmem:[%s15 + $0x4] sm:$0xf]
      %v3371 = vld [vmem:[%s15 + $0x8] sm:$0xf]
      %v3372 = vld [vmem:[%s15 + $0xc] sm:$0xf]
      %v3373 = vld [vmem:[%s16] sm:$0x1]
      %v3375 = vlaneseq
      %v3376 = vshrl.u32 %v3375, 7
      %v3377 = vsub.s32 0, %v3376
      %v3378 = vrot.slane %v3373, %v3377
      %v3384 = vunpack.c.l.b16 %v3369
      %v3385 = vunpack.c.l.b16 %v3370
      %v3386 = vunpack.c.l.b16 %v3371
      %v3387 = vunpack.c.l.b16 %v3372
      %v3388 = vpack.c.b16 %v3385, %v3384
      %v3389 = vpack.c.b16 %v3387, %v3386
      %v3393 = vsel %vm710, %v3368, 0
      %3395 = vmatprep.subr.bf16.mxu0 0
      %3396 = vmatpush1.bf16.msra.mxu0 %v3388
      %3397 = vmatprep.subr.bf16.mxu0 0
      %3398 = vmatpush1.bf16.msra.mxu0 %v3389
      %3399 = vmatprep.subr.bf16.mxu0 0
      %3400 = vmatpush1.bf16.msra.mxu0 0
      %3401 = vmatprep.subr.bf16.mxu0 0
      %3402 = vmatpush1.bf16.msra.mxu0 0
      %3403 = vmatprep.subr.bf16.mxu0 0
      %3404 = vmatpush1.bf16.msra.mxu0 0
      %3405 = vmatprep.subr.bf16.mxu0 0
      %3406 = vmatpush1.bf16.msra.mxu0 0
      %3407 = vmatprep.subr.bf16.mxu0 0
      %3408 = vmatpush1.bf16.msra.mxu0 0
      %3409 = vmatprep.subr.bf16.mxu0 0
      %3410 = vmatpush1.bf16.msra.mxu0 0
      %3411 = vmatprep.subr.bf16.mxu0 0
      %3412 = vmatpush1.bf16.msra.mxu0 0
      %3413 = vmatprep.subr.bf16.mxu0 0
      %3414 = vmatpush1.bf16.msra.mxu0 0
      %3415 = vmatprep.subr.bf16.mxu0 0
      %3416 = vmatpush1.bf16.msra.mxu0 0
      %3417 = vmatprep.subr.bf16.mxu0 0
      %3418 = vmatpush1.bf16.msra.mxu0 0
      %3419 = vmatprep.subr.bf16.mxu0 0
      %3420 = vmatpush1.bf16.msra.mxu0 0
      %3421 = vmatprep.subr.bf16.mxu0 0
      %3422 = vmatpush1.bf16.msra.mxu0 0
      %3423 = vmatprep.subr.bf16.mxu0 0
      %3424 = vmatpush1.bf16.msra.mxu0 0
      %3425 = vmatprep.subr.bf16.mxu0 0
      %3426 = vmatpush1.bf16.msra.mxu0 0
      %3427 = vmatprep.mubr.bf16.mxu0 0
      %3428 = vmatmul.mubr.bf16.gmra.mrb[0].mxu0 %v3393
      %v3429 = vpop.f32.mrb[0].mxu0
      %v3430 = vadd.f32 %v3378, %v3429
      %v3431 = vpop.f32.mrb[0].mxu0
      %v3432 = vpop.f32.mrb[0].mxu0
      %v3433 = vpop.f32.mrb[0].mxu0
      %3434 = vdwg.mxu0
      %v3435 = vmax.f32 %v3430, 0.0
      %v3436 = vpack.c.bf16 %v3435, %v3435
      %v3437 = vld [vmem:[%s17] sm:$0xf]
      %v3438 = vld [vmem:[%s17 + $0x4] sm:$0xf]
      %v3439 = vld [vmem:[%s17 + $0x8] sm:$0xf]
      %v3440 = vld [vmem:[%s17 + $0xc] sm:$0xf]
      %v3441 = vld [vmem:[%s17 + $0x10] sm:$0xf]
      %v3442 = vld [vmem:[%s17 + $0x14] sm:$0xf]
      %v3443 = vld [vmem:[%s17 + $0x18] sm:$0xf]
      %v3444 = vld [vmem:[%s17 + $0x1c] sm:$0xf]
      %v3445 = vld [vmem:[%s18] sm:$0x1]
      %v3447 = vlaneseq
      %v3448 = vshrl.u32 %v3447, 7
      %v3449 = vsub.s32 0, %v3448
      %v3450 = vrot.slane %v3445, %v3449
      %v3460 = vunpack.c.l.b16 %v3437
      %v3461 = vunpack.c.l.b16 %v3438
      %v3462 = vunpack.c.l.b16 %v3439
      %v3463 = vunpack.c.l.b16 %v3440
      %v3464 = vunpack.c.l.b16 %v3441
      %v3465 = vunpack.c.l.b16 %v3442
      %v3466 = vunpack.c.l.b16 %v3443
      %v3467 = vunpack.c.l.b16 %v3444
      %v3468 = vpack.c.b16 %v3461, %v3460
      %v3469 = vpack.c.b16 %v3463, %v3462
      %v3470 = vpack.c.b16 %v3465, %v3464
      %v3471 = vpack.c.b16 %v3467, %v3466
      %vm3476 = vcmask 523264
      %v3478 = vsel %vm3476, %v3436, 0
      %3480 = vmatprep.subr.bf16.mxu0 0
      %3481 = vmatpush1.bf16.msra.mxu0 %v3468
      %3482 = vmatprep.subr.bf16.mxu0 0
      %3483 = vmatpush1.bf16.msra.mxu0 %v3469
      %3484 = vmatprep.subr.bf16.mxu0 0
      %3485 = vmatpush1.bf16.msra.mxu0 %v3470
      %3486 = vmatprep.subr.bf16.mxu0 0
      %3487 = vmatpush1.bf16.msra.mxu0 %v3471
      %3488 = vmatprep.subr.bf16.mxu0 0
      %3489 = vmatpush1.bf16.msra.mxu0 0
      %3490 = vmatprep.subr.bf16.mxu0 0
      %3491 = vmatpush1.bf16.msra.mxu0 0
      %3492 = vmatprep.subr.bf16.mxu0 0
      %3493 = vmatpush1.bf16.msra.mxu0 0
      %3494 = vmatprep.subr.bf16.mxu0 0
      %3495 = vmatpush1.bf16.msra.mxu0 0
      %3496 = vmatprep.subr.bf16.mxu0 0
      %3497 = vmatpush1.bf16.msra.mxu0 0
      %3498 = vmatprep.subr.bf16.mxu0 0
      %3499 = vmatpush1.bf16.msra.mxu0 0
      %3500 = vmatprep.subr.bf16.mxu0 0
      %3501 = vmatpush1.bf16.msra.mxu0 0
      %3502 = vmatprep.subr.bf16.mxu0 0
      %3503 = vmatpush1.bf16.msra.mxu0 0
      %3504 = vmatprep.subr.bf16.mxu0 0
      %3505 = vmatpush1.bf16.msra.mxu0 0
      %3506 = vmatprep.subr.bf16.mxu0 0
      %3507 = vmatpush1.bf16.msra.mxu0 0
      %3508 = vmatprep.subr.bf16.mxu0 0
      %3509 = vmatpush1.bf16.msra.mxu0 0
      %3510 = vmatprep.subr.bf16.mxu0 0
      %3511 = vmatpush1.bf16.msra.mxu0 0
      %3512 = vmatprep.mubr.bf16.mxu0 0
      %3513 = vmatmul.mubr.bf16.gmra.mrb[0].mxu0 %v3478
      %v3514 = vpop.f32.mrb[0].mxu0
      %v3515 = vadd.f32 %v3450, %v3514
      %v3516 = vpop.f32.mrb[0].mxu0
      %v3517 = vpop.f32.mrb[0].mxu0
      %v3518 = vpop.f32.mrb[0].mxu0
      %3519 = vdwg.mxu0
      %v3520 = vadd.f32 %v3367, %v3515
      %v3521 = vsel %vm710, %v3520, 0.0
      %3522 = vadd.xlane.f32.xlu0 %v3521
      %v3523 = vpop.xlane.xlu0 %3522
      %v3524 = vmul.f32 %v3523, %v2000
      %v3525 = vsub.f32 %v3520, %v3524
      %v3526 = vmul.f32 %v3525, %v3525
      %v3527 = vsel %vm710, %v3526, 0.0
      %3528 = vadd.xlane.f32.xlu0 %v3527
      %v3529 = vpop.xlane.xlu0 %3528
      %v3530 = vmul.f32 %v3529, %v2000
      %v3531 = vadd.f32 %v3530, 1e-05
      %v3532 = vrsqrt.pop %v3531
      %v3533 = vmul.f32 %v3525, %v3532
      %v3534 = vld [vmem:[%s19] sm:$0x1]
      %v3536 = vlaneseq
      %v3537 = vshrl.u32 %v3536, 7
      %v3538 = vsub.s32 0, %v3537
      %v3539 = vrot.slane %v3534, %v3538
      %v3541 = vmul.f32 %v3533, %v3539
      %v3542 = vld [vmem:[%s20] sm:$0x1]
      %v3544 = vlaneseq
      %v3545 = vshrl.u32 %v3544, 7
      %v3546 = vsub.s32 0, %v3545
      %v3547 = vrot.slane %v3542, %v3546
      %v3549 = vadd.f32 %v3541, %v3547
      %3550 = vst.msk [vmem:[%s682] sm:$0xff] %vm710, %v3549
      %p3551 = scmp.lt.s32.totalorder %s32, 1
      %s3552 = scalar_select %p3551, %s32, 1
      %s3553 = smul.addr %s3552, 8
      %s3554 = scalar_lea.vmem %s21, %s3553
      // Predicated region
      $region105: #{model_forward.7} parent=103 // pred_check
        %p3555 = pneg %p506
      $region106: #{model_forward.7} parent=103 // pred_check_branch
        %3557 = sbr.rel (%p3555) target = $region108
      $region107: #{model_forward.7} parent=103 // pred_region
        _
      $region108: #{model_forward.7} parent=103 // pred_fallthru
        _
    $region104: #{model_forward.7} parent=5 // pred_fallthru
      _
    %p3558 = scmp.le.s32.totalorder 2, %s27
    // Predicated region
    $region109: #{model_forward.7} parent=5 // pred_check
      %p3559 = pneg %p3558
    $region110: #{model_forward.7} parent=5 // pred_check_branch
      %3561 = sbr.rel (%p3559) target = $region112
    $region111: #{model_forward.7} parent=5 // pred_region
      %s3562 = ssub.s32 %s27, 2
      // Predicated region
      $region113: #{model_forward.7} parent=111 // pred_check
        %p3563 = pneg %p512
      $region114: #{model_forward.7} parent=111 // pred_check_branch
        %3565 = sbr.rel (%p3563) target = $region116
      $region115: #{model_forward.7} parent=111 // pred_region
        %p3566 = scmp.lt.s32.totalorder %s33, 1
        %s3567 = scalar_select %p3566, %s33, 1
        %s3568 = smul.addr %s3567, 8
        %s3569 = scalar_lea.vmem %s21, %s3568
      $region116: #{model_forward.7} parent=111 // pred_fallthru
        _
    $region112: #{model_forward.7} parent=5 // pred_fallthru
      _
  $region6: #{model_forward.7} parent=0 // loop_footer
    %s31 = sadd.s32 1, %s27
  $region7: #{model_forward.7} parent=0 // loop_footer_branch
    %26 = sbr.rel target = $region3
  $region8: #{model_forward.7} parent=0 // loop_exit
    _

</llo_original>
